<compile_context>
chip_gen: v5e
topology: v5e:2x2
jax: 0.10.0
libtpu: 0.0.40
codegen_flags: <defaults>
</compile_context>

<pallas_src>
import jax
import jax.numpy as jnp
from jax.experimental import pallas as pl
from jax.experimental.pallas import tpu as pltpu

LRELU_SLOPE = 0.2
BN_EPS = 1e-5
LANE = 128
VMEM_LIMIT = 48 * 1024 * 1024        # <= ~48 MiB keeps v7x (64 MiB VMEM) safe
TILE_BUDGET = 20 * 1024 * 1024       # double-buffered row-tile working set


# ----------------------------- Pallas kernels ------------------------------
def _conv_lrelu_kernel(p_ref, w_ref, o_ref):
    # conv-as-matmul (bf16 MXU, f32 accumulate) + LeakyReLU(0.2)
    y = jnp.dot(p_ref[...], w_ref[...], preferred_element_type=jnp.float32)
    o_ref[...] = jnp.where(y > 0, y, LRELU_SLOPE * y).astype(o_ref.dtype)


def _conv_stats_kernel(p_ref, w_ref, y_ref, stats_ref):
    # conv-as-matmul; writes the raw conv output tile and accumulates
    # per-channel sum / sum-of-squares across the (arbitrary) row-tile axis.
    @pl.when(pl.program_id(0) == 0)
    def _():
        stats_ref[...] = jnp.zeros_like(stats_ref)

    y = jnp.dot(p_ref[...], w_ref[...], preferred_element_type=jnp.float32)
    y_ref[...] = y.astype(y_ref.dtype)
    tile_stats = jnp.concatenate(
        [jnp.sum(y, axis=0, keepdims=True),
         jnp.sum(y * y, axis=0, keepdims=True)], axis=0)
    stats_ref[...] += tile_stats


def _bn_lrelu_kernel(y_ref, scale_ref, shift_ref, o_ref):
    # per-channel affine (folded BatchNorm) + LeakyReLU(0.2), f32 math.
    z = y_ref[...].astype(jnp.float32) * scale_ref[...] + shift_ref[...]
    o_ref[...] = jnp.where(z > 0, z, LRELU_SLOPE * z).astype(o_ref.dtype)


def _conv_sigmoid_kernel(p_ref, w_ref, o_ref):
    # conv-as-matmul + Sigmoid
    y = jnp.dot(p_ref[...], w_ref[...], preferred_element_type=jnp.float32)
    o_ref[...] = jax.nn.sigmoid(y).astype(o_ref.dtype)


# ------------------------------ Glue helpers -------------------------------
def _round_up(v, m):
    return (v + m - 1) // m * m


def _pick_tile(m, row_bytes):
    """Largest row tile that divides m, is a multiple of 8 and fits the
    double-buffered VMEM budget; falls back to the full extent."""
    cap = min(max(8, TILE_BUDGET // max(row_bytes, 1)), 4096)
    if m <= cap:
        return m
    best = None
    for d in range(8, cap + 1, 8):
        if m % d == 0:
            best = d
    return best if best is not None else m


def _im2col_nhwc(x, k, stride, pad):
    """x: (N, H, W, C) -> patches (N*OH*OW, K*K*C); features ordered (kh,kw,c)."""
    n, h, w, c = x.shape
    oh = (h + 2 * pad - k) // stride + 1
    ow = (w + 2 * pad - k) // stride + 1
    xp = jnp.pad(x, ((0, 0), (pad, pad), (pad, pad), (0, 0)))
    cols = []
    for i in range(k):
        for j in range(k):
            cols.append(xp[:, i:i + stride * oh:stride, j:j + stride * ow:stride, :])
    p = jnp.stack(cols, axis=3)                       # (n, oh, ow, k*k, c)
    return p.reshape(n * oh * ow, k * k * c), oh, ow


def _prep_weight(w):
    """Torch layout (OC, IC, KH, KW) -> ((KH*KW*IC), OCp) bf16, OC padded to 128."""
    oc, ic, kh, kw = w.shape
    ocp = _round_up(oc, LANE)
    w_mat = jnp.transpose(w, (2, 3, 1, 0)).reshape(kh * kw * ic, oc)
    w_mat = jnp.pad(w_mat, ((0, 0), (0, ocp - oc)))
    return w_mat.astype(jnp.bfloat16), oc, ocp


def _conv_matmul(kernel, patches, w_mat, out_dtype, *, with_stats, parallel,
                 transcendentals=0):
    m, k = patches.shape
    ocp = w_mat.shape[1]
    out_bytes = jnp.dtype(out_dtype).itemsize
    tile_m = _pick_tile(m, 2 * (k * 2 + ocp * out_bytes))
    grid = (m // tile_m,)

    in_specs = [pl.BlockSpec((tile_m, k), lambda i: (i, 0)),
                pl.BlockSpec((k, ocp), lambda i: (0, 0))]
    y_spec = pl.BlockSpec((tile_m, ocp), lambda i: (i, 0))
    y_shape = jax.ShapeDtypeStruct((m, ocp), out_dtype)
    if with_stats:
        out_specs = [y_spec, pl.BlockSpec((2, ocp), lambda i: (0, 0))]
        out_shape = [y_shape, jax.ShapeDtypeStruct((2, ocp), jnp.float32)]
    else:
        out_specs = y_spec
        out_shape = y_shape

    cost = pl.CostEstimate(
        flops=2 * m * k * ocp,
        transcendentals=int(transcendentals),
        bytes_accessed=m * k * 2 + k * ocp * 2 + m * ocp * out_bytes)

    return pl.pallas_call(
        kernel,
        grid=grid,
        in_specs=in_specs,
        out_specs=out_specs,
        out_shape=out_shape,
        compiler_params=pltpu.CompilerParams(
            dimension_semantics=("parallel" if parallel else "arbitrary",),
            vmem_limit_bytes=VMEM_LIMIT),
        cost_estimate=cost,
    )(patches, w_mat)


def _bn_lrelu(y, scale, shift, out_dtype):
    m, ocp = y.shape
    tile_m = _pick_tile(m, 2 * ocp * (y.dtype.itemsize + jnp.dtype(out_dtype).itemsize))
    return pl.pallas_call(
        _bn_lrelu_kernel,
        grid=(m // tile_m,),
        in_specs=[pl.BlockSpec((tile_m, ocp), lambda i: (i, 0)),
                  pl.BlockSpec((1, ocp), lambda i: (0, 0)),
                  pl.BlockSpec((1, ocp), lambda i: (0, 0))],
        out_specs=pl.BlockSpec((tile_m, ocp), lambda i: (i, 0)),
        out_shape=jax.ShapeDtypeStruct((m, ocp), out_dtype),
        compiler_params=pltpu.CompilerParams(
            dimension_semantics=("parallel",),
            vmem_limit_bytes=VMEM_LIMIT),
    )(y, scale, shift)


# --------------------------------- Layers -----------------------------------
def _conv_lrelu_layer(x, w):
    n = x.shape[0]
    w_mat, oc, _ = _prep_weight(w)
    patches, oh, ow = _im2col_nhwc(x, 4, 2, 1)
    y = _conv_matmul(_conv_lrelu_kernel, patches, w_mat, jnp.bfloat16,
                     with_stats=False, parallel=True)
    return y[:, :oc].reshape(n, oh, ow, oc)


def _conv_bn_lrelu_layer(x, w, gamma, beta):
    n = x.shape[0]
    w_mat, oc, ocp = _prep_weight(w)
    patches, oh, ow = _im2col_nhwc(x, 4, 2, 1)
    m = patches.shape[0]
    # Pass A: conv + cross-tile sum / sum-of-squares (BN batch statistics).
    y, stats = _conv_matmul(_conv_stats_kernel, patches, w_mat, jnp.bfloat16,
                            with_stats=True, parallel=False)
    mean = stats[0] / m
    var = jnp.maximum(stats[1] / m - mean * mean, 0.0)     # biased batch var
    inv_std = jax.lax.rsqrt(var + BN_EPS)
    gamma_p = jnp.pad(gamma.reshape(-1), (0, ocp - oc))
    beta_p = jnp.pad(beta.reshape(-1), (0, ocp - oc))
    scale = (gamma_p * inv_std).reshape(1, ocp).astype(jnp.float32)
    shift = (beta_p - mean * gamma_p * inv_std).reshape(1, ocp).astype(jnp.float32)
    # Pass B: per-channel affine + LeakyReLU over row tiles (parallel).
    z = _bn_lrelu(y, scale, shift, jnp.bfloat16)
    return z[:, :oc].reshape(n, oh, ow, oc)


def _conv_sigmoid_layer(x, w):
    n = x.shape[0]
    w_mat, oc, ocp = _prep_weight(w)
    patches, oh, ow = _im2col_nhwc(x, 4, 1, 0)
    y = _conv_matmul(_conv_sigmoid_kernel, patches, w_mat, jnp.float32,
                     with_stats=False, parallel=True,
                     transcendentals=patches.shape[0] * ocp)
    return y[:, :oc].reshape(n, oh, ow, oc)


# ------------------------------ Parameters ---------------------------------
def init_params(key, in_channels, ndf):
    keys = jax.random.split(key, 8)

    def conv_w(k, oc, ic):
        # DCGAN-style init: N(0, 0.02)
        return 0.02 * jax.random.normal(k, (oc, ic, 4, 4), jnp.float32)

    def bn_gamma(k, c):
        return 1.0 + 0.02 * jax.random.normal(k, (c,), jnp.float32)

    return {
        "w1": conv_w(keys[0], ndf, in_channels),
        "w2": conv_w(keys[1], ndf * 2, ndf),
        "w3": conv_w(keys[2], ndf * 4, ndf * 2),
        "w4": conv_w(keys[3], ndf * 8, ndf * 4),
        "w5": conv_w(keys[4], 1, ndf * 8),
        "g2": bn_gamma(keys[5], ndf * 2), "b2": jnp.zeros((ndf * 2,), jnp.float32),
        "g3": bn_gamma(keys[6], ndf * 4), "b3": jnp.zeros((ndf * 4,), jnp.float32),
        "g4": bn_gamma(keys[7], ndf * 8), "b4": jnp.zeros((ndf * 8,), jnp.float32),
    }


# -------------------------------- Forward ----------------------------------
def discriminator_forward(x, p):
    # Interface is NCHW (PyTorch convention); compute is NHWC + bf16 matmuls.
    x = jnp.transpose(x, (0, 2, 3, 1)).astype(jnp.bfloat16)
    x = _conv_lrelu_layer(x, p["w1"])
    x = _conv_bn_lrelu_layer(x, p["w2"], p["g2"], p["b2"])
    x = _conv_bn_lrelu_layer(x, p["w3"], p["g3"], p["b3"])
    x = _conv_bn_lrelu_layer(x, p["w4"], p["g4"], p["b4"])
    x = _conv_sigmoid_layer(x, p["w5"])                     # (N, 1, 1, 1) NHWC
    return jnp.transpose(x, (0, 3, 1, 2)).astype(jnp.float32)


if __name__ == "__main__":
    key = jax.random.PRNGKey(0)
    k_param, k_x = jax.random.split(key)

    in_channels = 3
    feature_map_size = 8   # small ndf for a quick synthetic run
    batch = 2
    spatial = 64           # DCGAN discriminator expects 64x64 -> 1x1 output

    params = init_params(k_param, in_channels, feature_map_size)
    x = jax.random.normal(k_x, (batch, in_channels, spatial, spatial), jnp.float32)

    fwd = jax.jit(discriminator_forward)
    out = fwd(x, params)
    out = jax.block_until_ready(out)

    assert out.shape == (batch, 1, 1, 1), out.shape
    assert bool(jnp.all(jnp.isfinite(out)))
    assert bool(jnp.all((out > 0.0) & (out < 1.0)))  # sigmoid range
    print("KERNEL_OK")
</pallas_src>

<mosaic_0001>
module attributes {stable_mosaic.version = 11 : i64} {
  func.func @_conv_lrelu_kernel(%arg0: i32, %arg1: memref<2048x48xbf16, #tpu.memory_space<vmem>>, %arg2: memref<48x128xbf16, #tpu.memory_space<vmem>>, %arg3: memref<2048x128xbf16, #tpu.memory_space<vmem>>) attributes {dimension_semantics = [#tpu.dimension_semantics<parallel>], iteration_bounds = array<i64: 1>, scalar_prefetch = 0 : i64, scratch_operands = 0 : i64, tpu.core_type = #tpu.core_type<tc>, window_params = [{transform_indices = @transform_0, window_bounds = array<i64: 2048, 48>}, {pipeline_mode = #tpu.pipeline_mode<synchronous>, transform_indices = @transform_1, window_bounds = array<i64: 48, 128>}, {transform_indices = @transform_2, window_bounds = array<i64: 2048, 128>}]} {
    %c0 = arith.constant 0 : index
    %c0_0 = arith.constant 0 : index
    %0 = vector.load %arg1[%c0, %c0_0] : memref<2048x48xbf16, #tpu.memory_space<vmem>>, vector<2048x48xbf16>
    %c0_1 = arith.constant 0 : index
    %c0_2 = arith.constant 0 : index
    %1 = vector.load %arg2[%c0_1, %c0_2] : memref<48x128xbf16, #tpu.memory_space<vmem>>, vector<48x128xbf16>
    %cst = arith.constant dense<0.000000e+00> : vector<2048x128xf32>
    %2 = tpu.matmul %0, %1, %cst {dimension_numbers = #tpu.dot_dimension_numbers<[1], [0], [0], [1], [0, 0, 1, 1], [], []>} : vector<2048x48xbf16>, vector<48x128xbf16>, vector<2048x128xf32> -> vector<2048x128xf32>
    %cst_3 = arith.constant 0.000000e+00 : f32
    %3 = vector.broadcast %cst_3 : f32 to vector<2048x128xf32>
    %4 = arith.cmpf ogt, %2, %3 : vector<2048x128xf32>
    %cst_4 = arith.constant 2.000000e-01 : f32
    %5 = vector.broadcast %cst_4 : f32 to vector<2048x128xf32>
    %6 = arith.mulf %5, %2 : vector<2048x128xf32>
    %7 = arith.select %4, %2, %6 : vector<2048x128xi1>, vector<2048x128xf32>
    %8 = arith.truncf %7 : vector<2048x128xf32> to vector<2048x128xbf16>
    %c0_5 = arith.constant 0 : index
    %c0_6 = arith.constant 0 : index
    %9 = vector.load %arg3[%c0_5, %c0_6] : memref<2048x128xbf16, #tpu.memory_space<vmem>>, vector<2048x128xbf16>
    tpu.vector_store %arg3[%c0_5, %c0_6], %8 {strides = array<i32>} : memref<2048x128xbf16, #tpu.memory_space<vmem>>, vector<2048x128xbf16>,
    return
  }
  func.func @transform_0(%arg0: i32) -> (i32, i32) {
    %c0_i32 = arith.constant 0 : i32
    %c0_i32_0 = arith.constant 0 : i32
    return %arg0, %c0_i32 : i32, i32
  }
  func.func @transform_1(%arg0: i32) -> (i32, i32) {
    %c0_i32 = arith.constant 0 : i32
    %c0_i32_0 = arith.constant 0 : i32
    %c0_i32_1 = arith.constant 0 : i32
    return %c0_i32, %c0_i32_0 : i32, i32
  }
  func.func @transform_2(%arg0: i32) -> (i32, i32) {
    %c0_i32 = arith.constant 0 : i32
    %c0_i32_0 = arith.constant 0 : i32
    return %arg0, %c0_i32 : i32, i32
  }
}

module attributes {stable_mosaic.version = 11 : i64} {
  func.func @_conv_stats_kernel(%arg0: i32, %arg1: memref<512x128xbf16, #tpu.memory_space<vmem>>, %arg2: memref<128x128xbf16, #tpu.memory_space<vmem>>, %arg3: memref<512x128xbf16, #tpu.memory_space<vmem>>, %arg4: memref<2x128xf32, #tpu.memory_space<vmem>>) attributes {dimension_semantics = [#tpu.dimension_semantics<arbitrary>], iteration_bounds = array<i64: 1>, scalar_prefetch = 0 : i64, scratch_operands = 0 : i64, tpu.core_type = #tpu.core_type<tc>, window_params = [{transform_indices = @transform_0, window_bounds = array<i64: 512, 128>}, {pipeline_mode = #tpu.pipeline_mode<synchronous>, transform_indices = @transform_1, window_bounds = array<i64: 128, 128>}, {transform_indices = @transform_2, window_bounds = array<i64: 512, 128>}, {pipeline_mode = #tpu.pipeline_mode<synchronous>, transform_indices = @transform_3, window_bounds = array<i64: 2, 128>}]} {
    %c0_i32 = arith.constant 0 : i32
    %0 = arith.cmpi eq, %arg0, %c0_i32 : i32
    %1 = arith.extui %0 : i1 to i32
    %c0_i32_0 = arith.constant 0 : i32
    %2 = arith.cmpi ne, %1, %c0_i32_0 : i32
    scf.if %2 {
      %cst_12 = arith.constant 0.000000e+00 : f32
      %17 = vector.broadcast %cst_12 : f32 to vector<2x128xf32>
      %c0_13 = arith.constant 0 : index
      %c0_14 = arith.constant 0 : index
      %18 = vector.load %arg4[%c0_13, %c0_14] : memref<2x128xf32, #tpu.memory_space<vmem>>, vector<2x128xf32>
      tpu.vector_store %arg4[%c0_13, %c0_14], %17 {strides = array<i32>} : memref<2x128xf32, #tpu.memory_space<vmem>>, vector<2x128xf32>,
    } else {
    }
    %c0 = arith.constant 0 : index
    %c0_1 = arith.constant 0 : index
    %3 = vector.load %arg1[%c0, %c0_1] : memref<512x128xbf16, #tpu.memory_space<vmem>>, vector<512x128xbf16>
    %c0_2 = arith.constant 0 : index
    %c0_3 = arith.constant 0 : index
    %4 = vector.load %arg2[%c0_2, %c0_3] : memref<128x128xbf16, #tpu.memory_space<vmem>>, vector<128x128xbf16>
    %cst = arith.constant dense<0.000000e+00> : vector<512x128xf32>
    %5 = tpu.matmul %3, %4, %cst {dimension_numbers = #tpu.dot_dimension_numbers<[1], [0], [0], [1], [0, 0, 1, 1], [], []>} : vector<512x128xbf16>, vector<128x128xbf16>, vector<512x128xf32> -> vector<512x128xf32>
    %6 = arith.truncf %5 : vector<512x128xf32> to vector<512x128xbf16>
    %c0_4 = arith.constant 0 : index
    %c0_5 = arith.constant 0 : index
    %7 = vector.load %arg3[%c0_4, %c0_5] : memref<512x128xbf16, #tpu.memory_space<vmem>>, vector<512x128xbf16>
    tpu.vector_store %arg3[%c0_4, %c0_5], %6 {strides = array<i32>} : memref<512x128xbf16, #tpu.memory_space<vmem>>, vector<512x128xbf16>,
    %cst_6 = arith.constant dense<0.000000e+00> : vector<128xf32>
    %8 = vector.multi_reduction <add>, %5, %cst_6 [0] : vector<512x128xf32> to vector<128xf32>
    %9 = vector.shape_cast %8 : vector<128xf32> to vector<1x128xf32>
    %10 = arith.mulf %5, %5 : vector<512x128xf32>
    %cst_7 = arith.constant dense<0.000000e+00> : vector<128xf32>
    %11 = vector.multi_reduction <add>, %10, %cst_7 [0] : vector<512x128xf32> to vector<128xf32>
    %12 = vector.shape_cast %11 : vector<128xf32> to vector<1x128xf32>
    %13 = tpu.concatenate %9, %12 in 0 : vector<1x128xf32>, vector<1x128xf32> -> vector<2x128xf32>
    %c0_8 = arith.constant 0 : index
    %c0_9 = arith.constant 0 : index
    %14 = vector.load %arg4[%c0_8, %c0_9] : memref<2x128xf32, #tpu.memory_space<vmem>>, vector<2x128xf32>
    %15 = arith.addf %14, %13 : vector<2x128xf32>
    %c0_10 = arith.constant 0 : index
    %c0_11 = arith.constant 0 : index
    %16 = vector.load %arg4[%c0_10, %c0_11] : memref<2x128xf32, #tpu.memory_space<vmem>>, vector<2x128xf32>
    tpu.vector_store %arg4[%c0_10, %c0_11], %15 {strides = array<i32>} : memref<2x128xf32, #tpu.memory_space<vmem>>, vector<2x128xf32>,
    return
  }
  func.func @transform_0(%arg0: i32) -> (i32, i32) {
    %c0_i32 = arith.constant 0 : i32
    %c0_i32_0 = arith.constant 0 : i32
    return %arg0, %c0_i32 : i32, i32
  }
  func.func @transform_1(%arg0: i32) -> (i32, i32) {
    %c0_i32 = arith.constant 0 : i32
    %c0_i32_0 = arith.constant 0 : i32
    %c0_i32_1 = arith.constant 0 : i32
    return %c0_i32, %c0_i32_0 : i32, i32
  }
  func.func @transform_2(%arg0: i32) -> (i32, i32) {
    %c0_i32 = arith.constant 0 : i32
    %c0_i32_0 = arith.constant 0 : i32
    return %arg0, %c0_i32 : i32, i32
  }
  func.func @transform_3(%arg0: i32) -> (i32, i32) {
    %c0_i32 = arith.constant 0 : i32
    %c0_i32_0 = arith.constant 0 : i32
    %c0_i32_1 = arith.constant 0 : i32
    return %c0_i32, %c0_i32_0 : i32, i32
  }
}

module attributes {stable_mosaic.version = 11 : i64} {
  func.func @_bn_lrelu_kernel(%arg0: i32, %arg1: memref<512x128xbf16, #tpu.memory_space<vmem>>, %arg2: memref<1x128xf32, #tpu.memory_space<vmem>>, %arg3: memref<1x128xf32, #tpu.memory_space<vmem>>, %arg4: memref<512x128xbf16, #tpu.memory_space<vmem>>) attributes {dimension_semantics = [#tpu.dimension_semantics<parallel>], iteration_bounds = array<i64: 1>, scalar_prefetch = 0 : i64, scratch_operands = 0 : i64, tpu.core_type = #tpu.core_type<tc>, window_params = [{transform_indices = @transform_0, window_bounds = array<i64: 512, 128>}, {pipeline_mode = #tpu.pipeline_mode<synchronous>, transform_indices = @transform_1, window_bounds = array<i64: 1, 128>}, {pipeline_mode = #tpu.pipeline_mode<synchronous>, transform_indices = @transform_2, window_bounds = array<i64: 1, 128>}, {transform_indices = @transform_3, window_bounds = array<i64: 512, 128>}]} {
    %c0 = arith.constant 0 : index
    %c0_0 = arith.constant 0 : index
    %0 = vector.load %arg1[%c0, %c0_0] : memref<512x128xbf16, #tpu.memory_space<vmem>>, vector<512x128xbf16>
    %1 = arith.extf %0 : vector<512x128xbf16> to vector<512x128xf32>
    %c0_1 = arith.constant 0 : index
    %c0_2 = arith.constant 0 : index
    %2 = vector.load %arg2[%c0_1, %c0_2] : memref<1x128xf32, #tpu.memory_space<vmem>>, vector<1x128xf32>
    %3 = vector.broadcast %2 : vector<1x128xf32> to vector<512x128xf32>
    %4 = arith.mulf %1, %3 : vector<512x128xf32>
    %c0_3 = arith.constant 0 : index
    %c0_4 = arith.constant 0 : index
    %5 = vector.load %arg3[%c0_3, %c0_4] : memref<1x128xf32, #tpu.memory_space<vmem>>, vector<1x128xf32>
    %6 = vector.broadcast %5 : vector<1x128xf32> to vector<512x128xf32>
    %7 = arith.addf %4, %6 : vector<512x128xf32>
    %cst = arith.constant 0.000000e+00 : f32
    %8 = vector.broadcast %cst : f32 to vector<512x128xf32>
    %9 = arith.cmpf ogt, %7, %8 : vector<512x128xf32>
    %cst_5 = arith.constant 2.000000e-01 : f32
    %10 = vector.broadcast %cst_5 : f32 to vector<512x128xf32>
    %11 = arith.mulf %10, %7 : vector<512x128xf32>
    %12 = arith.select %9, %7, %11 : vector<512x128xi1>, vector<512x128xf32>
    %13 = arith.truncf %12 : vector<512x128xf32> to vector<512x128xbf16>
    %c0_6 = arith.constant 0 : index
    %c0_7 = arith.constant 0 : index
    %14 = vector.load %arg4[%c0_6, %c0_7] : memref<512x128xbf16, #tpu.memory_space<vmem>>, vector<512x128xbf16>
    tpu.vector_store %arg4[%c0_6, %c0_7], %13 {strides = array<i32>} : memref<512x128xbf16, #tpu.memory_space<vmem>>, vector<512x128xbf16>,
    return
  }
  func.func @transform_0(%arg0: i32) -> (i32, i32) {
    %c0_i32 = arith.constant 0 : i32
    %c0_i32_0 = arith.constant 0 : i32
    return %arg0, %c0_i32 : i32, i32
  }
  func.func @transform_1(%arg0: i32) -> (i32, i32) {
    %c0_i32 = arith.constant 0 : i32
    %c0_i32_0 = arith.constant 0 : i32
    %c0_i32_1 = arith.constant 0 : i32
    return %c0_i32, %c0_i32_0 : i32, i32
  }
  func.func @transform_2(%arg0: i32) -> (i32, i32) {
    %c0_i32 = arith.constant 0 : i32
    %c0_i32_0 = arith.constant 0 : i32
    %c0_i32_1 = arith.constant 0 : i32
    return %c0_i32, %c0_i32_0 : i32, i32
  }
  func.func @transform_3(%arg0: i32) -> (i32, i32) {
    %c0_i32 = arith.constant 0 : i32
    %c0_i32_0 = arith.constant 0 : i32
    return %arg0, %c0_i32 : i32, i32
  }
}

module attributes {stable_mosaic.version = 11 : i64} {
  func.func @_conv_stats_kernel(%arg0: i32, %arg1: memref<128x256xbf16, #tpu.memory_space<vmem>>, %arg2: memref<256x128xbf16, #tpu.memory_space<vmem>>, %arg3: memref<128x128xbf16, #tpu.memory_space<vmem>>, %arg4: memref<2x128xf32, #tpu.memory_space<vmem>>) attributes {dimension_semantics = [#tpu.dimension_semantics<arbitrary>], iteration_bounds = array<i64: 1>, scalar_prefetch = 0 : i64, scratch_operands = 0 : i64, tpu.core_type = #tpu.core_type<tc>, window_params = [{transform_indices = @transform_0, window_bounds = array<i64: 128, 256>}, {pipeline_mode = #tpu.pipeline_mode<synchronous>, transform_indices = @transform_1, window_bounds = array<i64: 256, 128>}, {transform_indices = @transform_2, window_bounds = array<i64: 128, 128>}, {pipeline_mode = #tpu.pipeline_mode<synchronous>, transform_indices = @transform_3, window_bounds = array<i64: 2, 128>}]} {
    %c0_i32 = arith.constant 0 : i32
    %0 = arith.cmpi eq, %arg0, %c0_i32 : i32
    %1 = arith.extui %0 : i1 to i32
    %c0_i32_0 = arith.constant 0 : i32
    %2 = arith.cmpi ne, %1, %c0_i32_0 : i32
    scf.if %2 {
      %cst_12 = arith.constant 0.000000e+00 : f32
      %17 = vector.broadcast %cst_12 : f32 to vector<2x128xf32>
      %c0_13 = arith.constant 0 : index
      %c0_14 = arith.constant 0 : index
      %18 = vector.load %arg4[%c0_13, %c0_14] : memref<2x128xf32, #tpu.memory_space<vmem>>, vector<2x128xf32>
      tpu.vector_store %arg4[%c0_13, %c0_14], %17 {strides = array<i32>} : memref<2x128xf32, #tpu.memory_space<vmem>>, vector<2x128xf32>,
    } else {
    }
    %c0 = arith.constant 0 : index
    %c0_1 = arith.constant 0 : index
    %3 = vector.load %arg1[%c0, %c0_1] : memref<128x256xbf16, #tpu.memory_space<vmem>>, vector<128x256xbf16>
    %c0_2 = arith.constant 0 : index
    %c0_3 = arith.constant 0 : index
    %4 = vector.load %arg2[%c0_2, %c0_3] : memref<256x128xbf16, #tpu.memory_space<vmem>>, vector<256x128xbf16>
    %cst = arith.constant dense<0.000000e+00> : vector<128x128xf32>
    %5 = tpu.matmul %3, %4, %cst {dimension_numbers = #tpu.dot_dimension_numbers<[1], [0], [0], [1], [0, 0, 1, 1], [], []>} : vector<128x256xbf16>, vector<256x128xbf16>, vector<128x128xf32> -> vector<128x128xf32>
    %6 = arith.truncf %5 : vector<128x128xf32> to vector<128x128xbf16>
    %c0_4 = arith.constant 0 : index
    %c0_5 = arith.constant 0 : index
    %7 = vector.load %arg3[%c0_4, %c0_5] : memref<128x128xbf16, #tpu.memory_space<vmem>>, vector<128x128xbf16>
    tpu.vector_store %arg3[%c0_4, %c0_5], %6 {strides = array<i32>} : memref<128x128xbf16, #tpu.memory_space<vmem>>, vector<128x128xbf16>,
    %cst_6 = arith.constant dense<0.000000e+00> : vector<128xf32>
    %8 = vector.multi_reduction <add>, %5, %cst_6 [0] : vector<128x128xf32> to vector<128xf32>
    %9 = vector.shape_cast %8 : vector<128xf32> to vector<1x128xf32>
    %10 = arith.mulf %5, %5 : vector<128x128xf32>
    %cst_7 = arith.constant dense<0.000000e+00> : vector<128xf32>
    %11 = vector.multi_reduction <add>, %10, %cst_7 [0] : vector<128x128xf32> to vector<128xf32>
    %12 = vector.shape_cast %11 : vector<128xf32> to vector<1x128xf32>
    %13 = tpu.concatenate %9, %12 in 0 : vector<1x128xf32>, vector<1x128xf32> -> vector<2x128xf32>
    %c0_8 = arith.constant 0 : index
    %c0_9 = arith.constant 0 : index
    %14 = vector.load %arg4[%c0_8, %c0_9] : memref<2x128xf32, #tpu.memory_space<vmem>>, vector<2x128xf32>
    %15 = arith.addf %14, %13 : vector<2x128xf32>
    %c0_10 = arith.constant 0 : index
    %c0_11 = arith.constant 0 : index
    %16 = vector.load %arg4[%c0_10, %c0_11] : memref<2x128xf32, #tpu.memory_space<vmem>>, vector<2x128xf32>
    tpu.vector_store %arg4[%c0_10, %c0_11], %15 {strides = array<i32>} : memref<2x128xf32, #tpu.memory_space<vmem>>, vector<2x128xf32>,
    return
  }
  func.func @transform_0(%arg0: i32) -> (i32, i32) {
    %c0_i32 = arith.constant 0 : i32
    %c0_i32_0 = arith.constant 0 : i32
    return %arg0, %c0_i32 : i32, i32
  }
  func.func @transform_1(%arg0: i32) -> (i32, i32) {
    %c0_i32 = arith.constant 0 : i32
    %c0_i32_0 = arith.constant 0 : i32
    %c0_i32_1 = arith.constant 0 : i32
    return %c0_i32, %c0_i32_0 : i32, i32
  }
  func.func @transform_2(%arg0: i32) -> (i32, i32) {
    %c0_i32 = arith.constant 0 : i32
    %c0_i32_0 = arith.constant 0 : i32
    return %arg0, %c0_i32 : i32, i32
  }
  func.func @transform_3(%arg0: i32) -> (i32, i32) {
    %c0_i32 = arith.constant 0 : i32
    %c0_i32_0 = arith.constant 0 : i32
    %c0_i32_1 = arith.constant 0 : i32
    return %c0_i32, %c0_i32_0 : i32, i32
  }
}

module attributes {stable_mosaic.version = 11 : i64} {
  func.func @_bn_lrelu_kernel(%arg0: i32, %arg1: memref<128x128xbf16, #tpu.memory_space<vmem>>, %arg2: memref<1x128xf32, #tpu.memory_space<vmem>>, %arg3: memref<1x128xf32, #tpu.memory_space<vmem>>, %arg4: memref<128x128xbf16, #tpu.memory_space<vmem>>) attributes {dimension_semantics = [#tpu.dimension_semantics<parallel>], iteration_bounds = array<i64: 1>, scalar_prefetch = 0 : i64, scratch_operands = 0 : i64, tpu.core_type = #tpu.core_type<tc>, window_params = [{transform_indices = @transform_0, window_bounds = array<i64: 128, 128>}, {pipeline_mode = #tpu.pipeline_mode<synchronous>, transform_indices = @transform_1, window_bounds = array<i64: 1, 128>}, {pipeline_mode = #tpu.pipeline_mode<synchronous>, transform_indices = @transform_2, window_bounds = array<i64: 1, 128>}, {transform_indices = @transform_3, window_bounds = array<i64: 128, 128>}]} {
    %c0 = arith.constant 0 : index
    %c0_0 = arith.constant 0 : index
    %0 = vector.load %arg1[%c0, %c0_0] : memref<128x128xbf16, #tpu.memory_space<vmem>>, vector<128x128xbf16>
    %1 = arith.extf %0 : vector<128x128xbf16> to vector<128x128xf32>
    %c0_1 = arith.constant 0 : index
    %c0_2 = arith.constant 0 : index
    %2 = vector.load %arg2[%c0_1, %c0_2] : memref<1x128xf32, #tpu.memory_space<vmem>>, vector<1x128xf32>
    %3 = vector.broadcast %2 : vector<1x128xf32> to vector<128x128xf32>
    %4 = arith.mulf %1, %3 : vector<128x128xf32>
    %c0_3 = arith.constant 0 : index
    %c0_4 = arith.constant 0 : index
    %5 = vector.load %arg3[%c0_3, %c0_4] : memref<1x128xf32, #tpu.memory_space<vmem>>, vector<1x128xf32>
    %6 = vector.broadcast %5 : vector<1x128xf32> to vector<128x128xf32>
    %7 = arith.addf %4, %6 : vector<128x128xf32>
    %cst = arith.constant 0.000000e+00 : f32
    %8 = vector.broadcast %cst : f32 to vector<128x128xf32>
    %9 = arith.cmpf ogt, %7, %8 : vector<128x128xf32>
    %cst_5 = arith.constant 2.000000e-01 : f32
    %10 = vector.broadcast %cst_5 : f32 to vector<128x128xf32>
    %11 = arith.mulf %10, %7 : vector<128x128xf32>
    %12 = arith.select %9, %7, %11 : vector<128x128xi1>, vector<128x128xf32>
    %13 = arith.truncf %12 : vector<128x128xf32> to vector<128x128xbf16>
    %c0_6 = arith.constant 0 : index
    %c0_7 = arith.constant 0 : index
    %14 = vector.load %arg4[%c0_6, %c0_7] : memref<128x128xbf16, #tpu.memory_space<vmem>>, vector<128x128xbf16>
    tpu.vector_store %arg4[%c0_6, %c0_7], %13 {strides = array<i32>} : memref<128x128xbf16, #tpu.memory_space<vmem>>, vector<128x128xbf16>,
    return
  }
  func.func @transform_0(%arg0: i32) -> (i32, i32) {
    %c0_i32 = arith.constant 0 : i32
    %c0_i32_0 = arith.constant 0 : i32
    return %arg0, %c0_i32 : i32, i32
  }
  func.func @transform_1(%arg0: i32) -> (i32, i32) {
    %c0_i32 = arith.constant 0 : i32
    %c0_i32_0 = arith.constant 0 : i32
    %c0_i32_1 = arith.constant 0 : i32
    return %c0_i32, %c0_i32_0 : i32, i32
  }
  func.func @transform_2(%arg0: i32) -> (i32, i32) {
    %c0_i32 = arith.constant 0 : i32
    %c0_i32_0 = arith.constant 0 : i32
    %c0_i32_1 = arith.constant 0 : i32
    return %c0_i32, %c0_i32_0 : i32, i32
  }
  func.func @transform_3(%arg0: i32) -> (i32, i32) {
    %c0_i32 = arith.constant 0 : i32
    %c0_i32_0 = arith.constant 0 : i32
    return %arg0, %c0_i32 : i32, i32
  }
}

module attributes {stable_mosaic.version = 11 : i64} {
  func.func @_conv_stats_kernel(%arg0: i32, %arg1: memref<32x512xbf16, #tpu.memory_space<vmem>>, %arg2: memref<512x128xbf16, #tpu.memory_space<vmem>>, %arg3: memref<32x128xbf16, #tpu.memory_space<vmem>>, %arg4: memref<2x128xf32, #tpu.memory_space<vmem>>) attributes {dimension_semantics = [#tpu.dimension_semantics<arbitrary>], iteration_bounds = array<i64: 1>, scalar_prefetch = 0 : i64, scratch_operands = 0 : i64, tpu.core_type = #tpu.core_type<tc>, window_params = [{transform_indices = @transform_0, window_bounds = array<i64: 32, 512>}, {pipeline_mode = #tpu.pipeline_mode<synchronous>, transform_indices = @transform_1, window_bounds = array<i64: 512, 128>}, {transform_indices = @transform_2, window_bounds = array<i64: 32, 128>}, {pipeline_mode = #tpu.pipeline_mode<synchronous>, transform_indices = @transform_3, window_bounds = array<i64: 2, 128>}]} {
    %c0_i32 = arith.constant 0 : i32
    %0 = arith.cmpi eq, %arg0, %c0_i32 : i32
    %1 = arith.extui %0 : i1 to i32
    %c0_i32_0 = arith.constant 0 : i32
    %2 = arith.cmpi ne, %1, %c0_i32_0 : i32
    scf.if %2 {
      %cst_12 = arith.constant 0.000000e+00 : f32
      %17 = vector.broadcast %cst_12 : f32 to vector<2x128xf32>
      %c0_13 = arith.constant 0 : index
      %c0_14 = arith.constant 0 : index
      %18 = vector.load %arg4[%c0_13, %c0_14] : memref<2x128xf32, #tpu.memory_space<vmem>>, vector<2x128xf32>
      tpu.vector_store %arg4[%c0_13, %c0_14], %17 {strides = array<i32>} : memref<2x128xf32, #tpu.memory_space<vmem>>, vector<2x128xf32>,
    } else {
    }
    %c0 = arith.constant 0 : index
    %c0_1 = arith.constant 0 : index
    %3 = vector.load %arg1[%c0, %c0_1] : memref<32x512xbf16, #tpu.memory_space<vmem>>, vector<32x512xbf16>
    %c0_2 = arith.constant 0 : index
    %c0_3 = arith.constant 0 : index
    %4 = vector.load %arg2[%c0_2, %c0_3] : memref<512x128xbf16, #tpu.memory_space<vmem>>, vector<512x128xbf16>
    %cst = arith.constant dense<0.000000e+00> : vector<32x128xf32>
    %5 = tpu.matmul %3, %4, %cst {dimension_numbers = #tpu.dot_dimension_numbers<[1], [0], [0], [1], [0, 0, 1, 1], [], []>} : vector<32x512xbf16>, vector<512x128xbf16>, vector<32x128xf32> -> vector<32x128xf32>
    %6 = arith.truncf %5 : vector<32x128xf32> to vector<32x128xbf16>
    %c0_4 = arith.constant 0 : index
    %c0_5 = arith.constant 0 : index
    %7 = vector.load %arg3[%c0_4, %c0_5] : memref<32x128xbf16, #tpu.memory_space<vmem>>, vector<32x128xbf16>
    tpu.vector_store %arg3[%c0_4, %c0_5], %6 {strides = array<i32>} : memref<32x128xbf16, #tpu.memory_space<vmem>>, vector<32x128xbf16>,
    %cst_6 = arith.constant dense<0.000000e+00> : vector<128xf32>
    %8 = vector.multi_reduction <add>, %5, %cst_6 [0] : vector<32x128xf32> to vector<128xf32>
    %9 = vector.shape_cast %8 : vector<128xf32> to vector<1x128xf32>
    %10 = arith.mulf %5, %5 : vector<32x128xf32>
    %cst_7 = arith.constant dense<0.000000e+00> : vector<128xf32>
    %11 = vector.multi_reduction <add>, %10, %cst_7 [0] : vector<32x128xf32> to vector<128xf32>
    %12 = vector.shape_cast %11 : vector<128xf32> to vector<1x128xf32>
    %13 = tpu.concatenate %9, %12 in 0 : vector<1x128xf32>, vector<1x128xf32> -> vector<2x128xf32>
    %c0_8 = arith.constant 0 : index
    %c0_9 = arith.constant 0 : index
    %14 = vector.load %arg4[%c0_8, %c0_9] : memref<2x128xf32, #tpu.memory_space<vmem>>, vector<2x128xf32>
    %15 = arith.addf %14, %13 : vector<2x128xf32>
    %c0_10 = arith.constant 0 : index
    %c0_11 = arith.constant 0 : index
    %16 = vector.load %arg4[%c0_10, %c0_11] : memref<2x128xf32, #tpu.memory_space<vmem>>, vector<2x128xf32>
    tpu.vector_store %arg4[%c0_10, %c0_11], %15 {strides = array<i32>} : memref<2x128xf32, #tpu.memory_space<vmem>>, vector<2x128xf32>,
    return
  }
  func.func @transform_0(%arg0: i32) -> (i32, i32) {
    %c0_i32 = arith.constant 0 : i32
    %c0_i32_0 = arith.constant 0 : i32
    return %arg0, %c0_i32 : i32, i32
  }
  func.func @transform_1(%arg0: i32) -> (i32, i32) {
    %c0_i32 = arith.constant 0 : i32
    %c0_i32_0 = arith.constant 0 : i32
    %c0_i32_1 = arith.constant 0 : i32
    return %c0_i32, %c0_i32_0 : i32, i32
  }
  func.func @transform_2(%arg0: i32) -> (i32, i32) {
    %c0_i32 = arith.constant 0 : i32
    %c0_i32_0 = arith.constant 0 : i32
    return %arg0, %c0_i32 : i32, i32
  }
  func.func @transform_3(%arg0: i32) -> (i32, i32) {
    %c0_i32 = arith.constant 0 : i32
    %c0_i32_0 = arith.constant 0 : i32
    %c0_i32_1 = arith.constant 0 : i32
    return %c0_i32, %c0_i32_0 : i32, i32
  }
}

module attributes {stable_mosaic.version = 11 : i64} {
  func.func @_bn_lrelu_kernel(%arg0: i32, %arg1: memref<32x128xbf16, #tpu.memory_space<vmem>>, %arg2: memref<1x128xf32, #tpu.memory_space<vmem>>, %arg3: memref<1x128xf32, #tpu.memory_space<vmem>>, %arg4: memref<32x128xbf16, #tpu.memory_space<vmem>>) attributes {dimension_semantics = [#tpu.dimension_semantics<parallel>], iteration_bounds = array<i64: 1>, scalar_prefetch = 0 : i64, scratch_operands = 0 : i64, tpu.core_type = #tpu.core_type<tc>, window_params = [{transform_indices = @transform_0, window_bounds = array<i64: 32, 128>}, {pipeline_mode = #tpu.pipeline_mode<synchronous>, transform_indices = @transform_1, window_bounds = array<i64: 1, 128>}, {pipeline_mode = #tpu.pipeline_mode<synchronous>, transform_indices = @transform_2, window_bounds = array<i64: 1, 128>}, {transform_indices = @transform_3, window_bounds = array<i64: 32, 128>}]} {
    %c0 = arith.constant 0 : index
    %c0_0 = arith.constant 0 : index
    %0 = vector.load %arg1[%c0, %c0_0] : memref<32x128xbf16, #tpu.memory_space<vmem>>, vector<32x128xbf16>
    %1 = arith.extf %0 : vector<32x128xbf16> to vector<32x128xf32>
    %c0_1 = arith.constant 0 : index
    %c0_2 = arith.constant 0 : index
    %2 = vector.load %arg2[%c0_1, %c0_2] : memref<1x128xf32, #tpu.memory_space<vmem>>, vector<1x128xf32>
    %3 = vector.broadcast %2 : vector<1x128xf32> to vector<32x128xf32>
    %4 = arith.mulf %1, %3 : vector<32x128xf32>
    %c0_3 = arith.constant 0 : index
    %c0_4 = arith.constant 0 : index
    %5 = vector.load %arg3[%c0_3, %c0_4] : memref<1x128xf32, #tpu.memory_space<vmem>>, vector<1x128xf32>
    %6 = vector.broadcast %5 : vector<1x128xf32> to vector<32x128xf32>
    %7 = arith.addf %4, %6 : vector<32x128xf32>
    %cst = arith.constant 0.000000e+00 : f32
    %8 = vector.broadcast %cst : f32 to vector<32x128xf32>
    %9 = arith.cmpf ogt, %7, %8 : vector<32x128xf32>
    %cst_5 = arith.constant 2.000000e-01 : f32
    %10 = vector.broadcast %cst_5 : f32 to vector<32x128xf32>
    %11 = arith.mulf %10, %7 : vector<32x128xf32>
    %12 = arith.select %9, %7, %11 : vector<32x128xi1>, vector<32x128xf32>
    %13 = arith.truncf %12 : vector<32x128xf32> to vector<32x128xbf16>
    %c0_6 = arith.constant 0 : index
    %c0_7 = arith.constant 0 : index
    %14 = vector.load %arg4[%c0_6, %c0_7] : memref<32x128xbf16, #tpu.memory_space<vmem>>, vector<32x128xbf16>
    tpu.vector_store %arg4[%c0_6, %c0_7], %13 {strides = array<i32>} : memref<32x128xbf16, #tpu.memory_space<vmem>>, vector<32x128xbf16>,
    return
  }
  func.func @transform_0(%arg0: i32) -> (i32, i32) {
    %c0_i32 = arith.constant 0 : i32
    %c0_i32_0 = arith.constant 0 : i32
    return %arg0, %c0_i32 : i32, i32
  }
  func.func @transform_1(%arg0: i32) -> (i32, i32) {
    %c0_i32 = arith.constant 0 : i32
    %c0_i32_0 = arith.constant 0 : i32
    %c0_i32_1 = arith.constant 0 : i32
    return %c0_i32, %c0_i32_0 : i32, i32
  }
  func.func @transform_2(%arg0: i32) -> (i32, i32) {
    %c0_i32 = arith.constant 0 : i32
    %c0_i32_0 = arith.constant 0 : i32
    %c0_i32_1 = arith.constant 0 : i32
    return %c0_i32, %c0_i32_0 : i32, i32
  }
  func.func @transform_3(%arg0: i32) -> (i32, i32) {
    %c0_i32 = arith.constant 0 : i32
    %c0_i32_0 = arith.constant 0 : i32
    return %arg0, %c0_i32 : i32, i32
  }
}

module attributes {stable_mosaic.version = 11 : i64} {
  func.func @_conv_sigmoid_kernel(%arg0: i32, %arg1: memref<2x1024xbf16, #tpu.memory_space<vmem>>, %arg2: memref<1024x128xbf16, #tpu.memory_space<vmem>>, %arg3: memref<2x128xf32, #tpu.memory_space<vmem>>) attributes {dimension_semantics = [#tpu.dimension_semantics<parallel>], iteration_bounds = array<i64: 1>, scalar_prefetch = 0 : i64, scratch_operands = 0 : i64, tpu.core_type = #tpu.core_type<tc>, window_params = [{transform_indices = @transform_0, window_bounds = array<i64: 2, 1024>}, {pipeline_mode = #tpu.pipeline_mode<synchronous>, transform_indices = @transform_1, window_bounds = array<i64: 1024, 128>}, {transform_indices = @transform_2, window_bounds = array<i64: 2, 128>}]} {
    %c0 = arith.constant 0 : index
    %c0_0 = arith.constant 0 : index
    %0 = vector.load %arg1[%c0, %c0_0] : memref<2x1024xbf16, #tpu.memory_space<vmem>>, vector<2x1024xbf16>
    %c0_1 = arith.constant 0 : index
    %c0_2 = arith.constant 0 : index
    %1 = vector.load %arg2[%c0_1, %c0_2] : memref<1024x128xbf16, #tpu.memory_space<vmem>>, vector<1024x128xbf16>
    %cst = arith.constant dense<0.000000e+00> : vector<2x128xf32>
    %2 = tpu.matmul %0, %1, %cst {dimension_numbers = #tpu.dot_dimension_numbers<[1], [0], [0], [1], [0, 0, 1, 1], [], []>} : vector<2x1024xbf16>, vector<1024x128xbf16>, vector<2x128xf32> -> vector<2x128xf32>
    %3 = arith.negf %2 : vector<2x128xf32>
    %4 = math.exp %3 : vector<2x128xf32>
    %cst_3 = arith.constant 1.000000e+00 : f32
    %5 = vector.broadcast %cst_3 : f32 to vector<2x128xf32>
    %6 = arith.addf %5, %4 : vector<2x128xf32>
    %7 = arith.divf %5, %6 : vector<2x128xf32>
    %c0_4 = arith.constant 0 : index
    %c0_5 = arith.constant 0 : index
    %8 = vector.load %arg3[%c0_4, %c0_5] : memref<2x128xf32, #tpu.memory_space<vmem>>, vector<2x128xf32>
    tpu.vector_store %arg3[%c0_4, %c0_5], %7 {strides = array<i32>} : memref<2x128xf32, #tpu.memory_space<vmem>>, vector<2x128xf32>,
    return
  }
  func.func @transform_0(%arg0: i32) -> (i32, i32) {
    %c0_i32 = arith.constant 0 : i32
    %c0_i32_0 = arith.constant 0 : i32
    return %arg0, %c0_i32 : i32, i32
  }
  func.func @transform_1(%arg0: i32) -> (i32, i32) {
    %c0_i32 = arith.constant 0 : i32
    %c0_i32_0 = arith.constant 0 : i32
    %c0_i32_1 = arith.constant 0 : i32
    return %c0_i32, %c0_i32_0 : i32, i32
  }
  func.func @transform_2(%arg0: i32) -> (i32, i32) {
    %c0_i32 = arith.constant 0 : i32
    %c0_i32_0 = arith.constant 0 : i32
    return %arg0, %c0_i32 : i32, i32
  }
}

</mosaic_0001>

<llo_original>
// kernel: discriminator_forward.8
$region0: #{discriminator_forward.8}
  #allocation0 [shape = 'u32[]', space=smem, size = 0x4, offset = 0x4, fixed_abs, tag = 'smem constant byte address 0x4 - core index']
  #allocation1 [shape = 'u32[72,128]{1,0:T(1,128)}', space=vmem, size = 0x9000, scoped, tag = 'internal scratch']
  %s0 = inlined_call_operand.vmem [shape: bf16[2048,48], index: 0, kind: input, shape index: {}]
  %s1 = inlined_call_operand.vmem [shape: bf16[48,128], index: 1, kind: input, shape index: {}]
  %s2 = inlined_call_operand.vmem [shape: bf16[2048,128], index: 2, kind: output, shape index: {}]
  %s3 = sld [smem:[#allocation0]]
  $region18: #{discriminator_forward.8} parent=0
    _
  %s5 = ssub.s32 1, %s3
  %s6 = scalar_select 0, %s5, %s3
  // Predicated region
  $region2: #{discriminator_forward.8} parent=0 // pred_check
    _
  $region3: #{discriminator_forward.8} parent=0 // pred_check_branch
    %8 = sbr.rel (0) target = $region5
  $region4: #{discriminator_forward.8} parent=0 // pred_region
    _
  $region5: #{discriminator_forward.8} parent=0 // pred_fallthru
    _
  // Predicated region
  $region6: #{discriminator_forward.8} parent=0 // pred_check
    _
  $region7: #{discriminator_forward.8} parent=0 // pred_check_branch
    %10 = sbr.rel (0) target = $region9
  $region8: #{discriminator_forward.8} parent=0 // pred_region
    _
  $region9: #{discriminator_forward.8} parent=0 // pred_fallthru
    _
  %v12 = vld [vmem:[%s0] sm:$0xf]
  %v13 = vld [vmem:[%s0 + $0x4] sm:$0xf]
  %v14 = vld [vmem:[%s0 + $0x8] sm:$0xf]
  %v15 = vld [vmem:[%s0 + $0xc] sm:$0xf]
  %v16 = vld [vmem:[%s0 + $0x10] sm:$0xf]
  %v17 = vld [vmem:[%s0 + $0x14] sm:$0xf]
  %v18 = vld [vmem:[%s0 + $0x18] sm:$0xf]
  %v19 = vld [vmem:[%s0 + $0x1c] sm:$0xf]
  %v20 = vld [vmem:[%s0 + $0x20] sm:$0xf]
  %v21 = vld [vmem:[%s0 + $0x24] sm:$0xf]
  %v22 = vld [vmem:[%s0 + $0x28] sm:$0xf]
  %v23 = vld [vmem:[%s0 + $0x2c] sm:$0xf]
  %v24 = vld [vmem:[%s0 + $0x30] sm:$0xf]
  %v25 = vld [vmem:[%s0 + $0x34] sm:$0xf]
  %v26 = vld [vmem:[%s0 + $0x38] sm:$0xf]
  %v27 = vld [vmem:[%s0 + $0x3c] sm:$0xf]
  %v28 = vld [vmem:[%s0 + $0x40] sm:$0xf]
  %v29 = vld [vmem:[%s0 + $0x44] sm:$0xf]
  %v30 = vld [vmem:[%s0 + $0x48] sm:$0xf]
  %v31 = vld [vmem:[%s0 + $0x4c] sm:$0xf]
  %v32 = vld [vmem:[%s0 + $0x50] sm:$0xf]
  %v33 = vld [vmem:[%s0 + $0x54] sm:$0xf]
  %v34 = vld [vmem:[%s0 + $0x58] sm:$0xf]
  %v35 = vld [vmem:[%s0 + $0x5c] sm:$0xf]
  %v36 = vld [vmem:[%s0 + $0x60] sm:$0xf]
  %v37 = vld [vmem:[%s0 + $0x64] sm:$0xf]
  %v38 = vld [vmem:[%s0 + $0x68] sm:$0xf]
  %v39 = vld [vmem:[%s0 + $0x6c] sm:$0xf]
  %v40 = vld [vmem:[%s0 + $0x70] sm:$0xf]
  %v41 = vld [vmem:[%s0 + $0x74] sm:$0xf]
  %v42 = vld [vmem:[%s0 + $0x78] sm:$0xf]
  %v43 = vld [vmem:[%s0 + $0x7c] sm:$0xf]
  %v44 = vld [vmem:[%s0 + $0x80] sm:$0xf]
  %v45 = vld [vmem:[%s0 + $0x84] sm:$0xf]
  %v46 = vld [vmem:[%s0 + $0x88] sm:$0xf]
  %v47 = vld [vmem:[%s0 + $0x8c] sm:$0xf]
  %v48 = vld [vmem:[%s0 + $0x90] sm:$0xf]
  %v49 = vld [vmem:[%s0 + $0x94] sm:$0xf]
  %v50 = vld [vmem:[%s0 + $0x98] sm:$0xf]
  %v51 = vld [vmem:[%s0 + $0x9c] sm:$0xf]
  %v52 = vld [vmem:[%s0 + $0xa0] sm:$0xf]
  %v53 = vld [vmem:[%s0 + $0xa4] sm:$0xf]
  %v54 = vld [vmem:[%s0 + $0xa8] sm:$0xf]
  %v55 = vld [vmem:[%s0 + $0xac] sm:$0xf]
  %v56 = vld [vmem:[%s0 + $0xb0] sm:$0xf]
  %v57 = vld [vmem:[%s0 + $0xb4] sm:$0xf]
  %v58 = vld [vmem:[%s0 + $0xb8] sm:$0xf]
  %v59 = vld [vmem:[%s0 + $0xbc] sm:$0xf]
  %v60 = vld [vmem:[%s0 + $0xc0] sm:$0xf]
  %v61 = vld [vmem:[%s0 + $0xc4] sm:$0xf]
  %v62 = vld [vmem:[%s0 + $0xc8] sm:$0xf]
  %v63 = vld [vmem:[%s0 + $0xcc] sm:$0xf]
  %v64 = vld [vmem:[%s0 + $0xd0] sm:$0xf]
  %v65 = vld [vmem:[%s0 + $0xd4] sm:$0xf]
  %v66 = vld [vmem:[%s0 + $0xd8] sm:$0xf]
  %v67 = vld [vmem:[%s0 + $0xdc] sm:$0xf]
  %v68 = vld [vmem:[%s0 + $0xe0] sm:$0xf]
  %v69 = vld [vmem:[%s0 + $0xe4] sm:$0xf]
  %v70 = vld [vmem:[%s0 + $0xe8] sm:$0xf]
  %v71 = vld [vmem:[%s0 + $0xec] sm:$0xf]
  %v72 = vld [vmem:[%s0 + $0xf0] sm:$0xf]
  %v73 = vld [vmem:[%s0 + $0xf4] sm:$0xf]
  %v74 = vld [vmem:[%s0 + $0xf8] sm:$0xf]
  %v75 = vld [vmem:[%s0 + $0xfc] sm:$0xf]
  %v76 = vld [vmem:[%s0 + $0x100] sm:$0xf]
  %v77 = vld [vmem:[%s0 + $0x104] sm:$0xf]
  %v78 = vld [vmem:[%s0 + $0x108] sm:$0xf]
  %v79 = vld [vmem:[%s0 + $0x10c] sm:$0xf]
  %v80 = vld [vmem:[%s0 + $0x110] sm:$0xf]
  %v81 = vld [vmem:[%s0 + $0x114] sm:$0xf]
  %v82 = vld [vmem:[%s0 + $0x118] sm:$0xf]
  %v83 = vld [vmem:[%s0 + $0x11c] sm:$0xf]
  %v84 = vld [vmem:[%s0 + $0x120] sm:$0xf]
  %v85 = vld [vmem:[%s0 + $0x124] sm:$0xf]
  %v86 = vld [vmem:[%s0 + $0x128] sm:$0xf]
  %v87 = vld [vmem:[%s0 + $0x12c] sm:$0xf]
  %v88 = vld [vmem:[%s0 + $0x130] sm:$0xf]
  %v89 = vld [vmem:[%s0 + $0x134] sm:$0xf]
  %v90 = vld [vmem:[%s0 + $0x138] sm:$0xf]
  %v91 = vld [vmem:[%s0 + $0x13c] sm:$0xf]
  %v92 = vld [vmem:[%s0 + $0x140] sm:$0xf]
  %v93 = vld [vmem:[%s0 + $0x144] sm:$0xf]
  %v94 = vld [vmem:[%s0 + $0x148] sm:$0xf]
  %v95 = vld [vmem:[%s0 + $0x14c] sm:$0xf]
  %v96 = vld [vmem:[%s0 + $0x150] sm:$0xf]
  %v97 = vld [vmem:[%s0 + $0x154] sm:$0xf]
  %v98 = vld [vmem:[%s0 + $0x158] sm:$0xf]
  %v99 = vld [vmem:[%s0 + $0x15c] sm:$0xf]
  %v100 = vld [vmem:[%s0 + $0x160] sm:$0xf]
  %v101 = vld [vmem:[%s0 + $0x164] sm:$0xf]
  %v102 = vld [vmem:[%s0 + $0x168] sm:$0xf]
  %v103 = vld [vmem:[%s0 + $0x16c] sm:$0xf]
  %v104 = vld [vmem:[%s0 + $0x170] sm:$0xf]
  %v105 = vld [vmem:[%s0 + $0x174] sm:$0xf]
  %v106 = vld [vmem:[%s0 + $0x178] sm:$0xf]
  %v107 = vld [vmem:[%s0 + $0x17c] sm:$0xf]
  %v108 = vld [vmem:[%s0 + $0x180] sm:$0xf]
  %v109 = vld [vmem:[%s0 + $0x184] sm:$0xf]
  %v110 = vld [vmem:[%s0 + $0x188] sm:$0xf]
  %v111 = vld [vmem:[%s0 + $0x18c] sm:$0xf]
  %v112 = vld [vmem:[%s0 + $0x190] sm:$0xf]
  %v113 = vld [vmem:[%s0 + $0x194] sm:$0xf]
  %v114 = vld [vmem:[%s0 + $0x198] sm:$0xf]
  %v115 = vld [vmem:[%s0 + $0x19c] sm:$0xf]
  %v116 = vld [vmem:[%s0 + $0x1a0] sm:$0xf]
  %v117 = vld [vmem:[%s0 + $0x1a4] sm:$0xf]
  %v118 = vld [vmem:[%s0 + $0x1a8] sm:$0xf]
  %v119 = vld [vmem:[%s0 + $0x1ac] sm:$0xf]
  %v120 = vld [vmem:[%s0 + $0x1b0] sm:$0xf]
  %v121 = vld [vmem:[%s0 + $0x1b4] sm:$0xf]
  %v122 = vld [vmem:[%s0 + $0x1b8] sm:$0xf]
  %v123 = vld [vmem:[%s0 + $0x1bc] sm:$0xf]
  %v124 = vld [vmem:[%s0 + $0x1c0] sm:$0xf]
  %v125 = vld [vmem:[%s0 + $0x1c4] sm:$0xf]
  %v126 = vld [vmem:[%s0 + $0x1c8] sm:$0xf]
  %v127 = vld [vmem:[%s0 + $0x1cc] sm:$0xf]
  %v128 = vld [vmem:[%s0 + $0x1d0] sm:$0xf]
  %v129 = vld [vmem:[%s0 + $0x1d4] sm:$0xf]
  %v130 = vld [vmem:[%s0 + $0x1d8] sm:$0xf]
  %v131 = vld [vmem:[%s0 + $0x1dc] sm:$0xf]
  %v132 = vld [vmem:[%s0 + $0x1e0] sm:$0xf]
  %v133 = vld [vmem:[%s0 + $0x1e4] sm:$0xf]
  %v134 = vld [vmem:[%s0 + $0x1e8] sm:$0xf]
  %v135 = vld [vmem:[%s0 + $0x1ec] sm:$0xf]
  %v136 = vld [vmem:[%s0 + $0x1f0] sm:$0xf]
  %v137 = vld [vmem:[%s0 + $0x1f4] sm:$0xf]
  %v138 = vld [vmem:[%s0 + $0x1f8] sm:$0xf]
  %v139 = vld [vmem:[%s0 + $0x1fc] sm:$0xf]
  %v140 = vld [vmem:[%s0 + $0x200] sm:$0xf]
  %v141 = vld [vmem:[%s0 + $0x204] sm:$0xf]
  %v142 = vld [vmem:[%s0 + $0x208] sm:$0xf]
  %v143 = vld [vmem:[%s0 + $0x20c] sm:$0xf]
  %v144 = vld [vmem:[%s0 + $0x210] sm:$0xf]
  %v145 = vld [vmem:[%s0 + $0x214] sm:$0xf]
  %v146 = vld [vmem:[%s0 + $0x218] sm:$0xf]
  %v147 = vld [vmem:[%s0 + $0x21c] sm:$0xf]
  %v148 = vld [vmem:[%s0 + $0x220] sm:$0xf]
  %v149 = vld [vmem:[%s0 + $0x224] sm:$0xf]
  %v150 = vld [vmem:[%s0 + $0x228] sm:$0xf]
  %v151 = vld [vmem:[%s0 + $0x22c] sm:$0xf]
  %v152 = vld [vmem:[%s0 + $0x230] sm:$0xf]
  %v153 = vld [vmem:[%s0 + $0x234] sm:$0xf]
  %v154 = vld [vmem:[%s0 + $0x238] sm:$0xf]
  %v155 = vld [vmem:[%s0 + $0x23c] sm:$0xf]
  %v156 = vld [vmem:[%s0 + $0x240] sm:$0xf]
  %v157 = vld [vmem:[%s0 + $0x244] sm:$0xf]
  %v158 = vld [vmem:[%s0 + $0x248] sm:$0xf]
  %v159 = vld [vmem:[%s0 + $0x24c] sm:$0xf]
  %v160 = vld [vmem:[%s0 + $0x250] sm:$0xf]
  %v161 = vld [vmem:[%s0 + $0x254] sm:$0xf]
  %v162 = vld [vmem:[%s0 + $0x258] sm:$0xf]
  %v163 = vld [vmem:[%s0 + $0x25c] sm:$0xf]
  %v164 = vld [vmem:[%s0 + $0x260] sm:$0xf]
  %v165 = vld [vmem:[%s0 + $0x264] sm:$0xf]
  %v166 = vld [vmem:[%s0 + $0x268] sm:$0xf]
  %v167 = vld [vmem:[%s0 + $0x26c] sm:$0xf]
  %v168 = vld [vmem:[%s0 + $0x270] sm:$0xf]
  %v169 = vld [vmem:[%s0 + $0x274] sm:$0xf]
  %v170 = vld [vmem:[%s0 + $0x278] sm:$0xf]
  %v171 = vld [vmem:[%s0 + $0x27c] sm:$0xf]
  %v172 = vld [vmem:[%s0 + $0x280] sm:$0xf]
  %v173 = vld [vmem:[%s0 + $0x284] sm:$0xf]
  %v174 = vld [vmem:[%s0 + $0x288] sm:$0xf]
  %v175 = vld [vmem:[%s0 + $0x28c] sm:$0xf]
  %v176 = vld [vmem:[%s0 + $0x290] sm:$0xf]
  %v177 = vld [vmem:[%s0 + $0x294] sm:$0xf]
  %v178 = vld [vmem:[%s0 + $0x298] sm:$0xf]
  %v179 = vld [vmem:[%s0 + $0x29c] sm:$0xf]
  %v180 = vld [vmem:[%s0 + $0x2a0] sm:$0xf]
  %v181 = vld [vmem:[%s0 + $0x2a4] sm:$0xf]
  %v182 = vld [vmem:[%s0 + $0x2a8] sm:$0xf]
  %v183 = vld [vmem:[%s0 + $0x2ac] sm:$0xf]
  %v184 = vld [vmem:[%s0 + $0x2b0] sm:$0xf]
  %v185 = vld [vmem:[%s0 + $0x2b4] sm:$0xf]
  %v186 = vld [vmem:[%s0 + $0x2b8] sm:$0xf]
  %v187 = vld [vmem:[%s0 + $0x2bc] sm:$0xf]
  %v188 = vld [vmem:[%s0 + $0x2c0] sm:$0xf]
  %v189 = vld [vmem:[%s0 + $0x2c4] sm:$0xf]
  %v190 = vld [vmem:[%s0 + $0x2c8] sm:$0xf]
  %v191 = vld [vmem:[%s0 + $0x2cc] sm:$0xf]
  %v192 = vld [vmem:[%s0 + $0x2d0] sm:$0xf]
  %v193 = vld [vmem:[%s0 + $0x2d4] sm:$0xf]
  %v194 = vld [vmem:[%s0 + $0x2d8] sm:$0xf]
  %v195 = vld [vmem:[%s0 + $0x2dc] sm:$0xf]
  %v196 = vld [vmem:[%s0 + $0x2e0] sm:$0xf]
  %v197 = vld [vmem:[%s0 + $0x2e4] sm:$0xf]
  %v198 = vld [vmem:[%s0 + $0x2e8] sm:$0xf]
  %v199 = vld [vmem:[%s0 + $0x2ec] sm:$0xf]
  %v200 = vld [vmem:[%s0 + $0x2f0] sm:$0xf]
  %v201 = vld [vmem:[%s0 + $0x2f4] sm:$0xf]
  %v202 = vld [vmem:[%s0 + $0x2f8] sm:$0xf]
  %v203 = vld [vmem:[%s0 + $0x2fc] sm:$0xf]
  %v204 = vld [vmem:[%s0 + $0x300] sm:$0xf]
  %v205 = vld [vmem:[%s0 + $0x304] sm:$0xf]
  %v206 = vld [vmem:[%s0 + $0x308] sm:$0xf]
  %v207 = vld [vmem:[%s0 + $0x30c] sm:$0xf]
  %v208 = vld [vmem:[%s0 + $0x310] sm:$0xf]
  %v209 = vld [vmem:[%s0 + $0x314] sm:$0xf]
  %v210 = vld [vmem:[%s0 + $0x318] sm:$0xf]
  %v211 = vld [vmem:[%s0 + $0x31c] sm:$0xf]
  %v212 = vld [vmem:[%s0 + $0x320] sm:$0xf]
  %v213 = vld [vmem:[%s0 + $0x324] sm:$0xf]
  %v214 = vld [vmem:[%s0 + $0x328] sm:$0xf]
  %v215 = vld [vmem:[%s0 + $0x32c] sm:$0xf]
  %v216 = vld [vmem:[%s0 + $0x330] sm:$0xf]
  %v217 = vld [vmem:[%s0 + $0x334] sm:$0xf]
  %v218 = vld [vmem:[%s0 + $0x338] sm:$0xf]
  %v219 = vld [vmem:[%s0 + $0x33c] sm:$0xf]
  %v220 = vld [vmem:[%s0 + $0x340] sm:$0xf]
  %v221 = vld [vmem:[%s0 + $0x344] sm:$0xf]
  %v222 = vld [vmem:[%s0 + $0x348] sm:$0xf]
  %v223 = vld [vmem:[%s0 + $0x34c] sm:$0xf]
  %v224 = vld [vmem:[%s0 + $0x350] sm:$0xf]
  %v225 = vld [vmem:[%s0 + $0x354] sm:$0xf]
  %v226 = vld [vmem:[%s0 + $0x358] sm:$0xf]
  %v227 = vld [vmem:[%s0 + $0x35c] sm:$0xf]
  %v228 = vld [vmem:[%s0 + $0x360] sm:$0xf]
  %v229 = vld [vmem:[%s0 + $0x364] sm:$0xf]
  %v230 = vld [vmem:[%s0 + $0x368] sm:$0xf]
  %v231 = vld [vmem:[%s0 + $0x36c] sm:$0xf]
  %v232 = vld [vmem:[%s0 + $0x370] sm:$0xf]
  %v233 = vld [vmem:[%s0 + $0x374] sm:$0xf]
  %v234 = vld [vmem:[%s0 + $0x378] sm:$0xf]
  %v235 = vld [vmem:[%s0 + $0x37c] sm:$0xf]
  %v236 = vld [vmem:[%s0 + $0x380] sm:$0xf]
  %v237 = vld [vmem:[%s0 + $0x384] sm:$0xf]
  %v238 = vld [vmem:[%s0 + $0x388] sm:$0xf]
  %v239 = vld [vmem:[%s0 + $0x38c] sm:$0xf]
  %v240 = vld [vmem:[%s0 + $0x390] sm:$0xf]
  %v241 = vld [vmem:[%s0 + $0x394] sm:$0xf]
  %v242 = vld [vmem:[%s0 + $0x398] sm:$0xf]
  %v243 = vld [vmem:[%s0 + $0x39c] sm:$0xf]
  %v244 = vld [vmem:[%s0 + $0x3a0] sm:$0xf]
  %v245 = vld [vmem:[%s0 + $0x3a4] sm:$0xf]
  %v246 = vld [vmem:[%s0 + $0x3a8] sm:$0xf]
  %v247 = vld [vmem:[%s0 + $0x3ac] sm:$0xf]
  %v248 = vld [vmem:[%s0 + $0x3b0] sm:$0xf]
  %v249 = vld [vmem:[%s0 + $0x3b4] sm:$0xf]
  %v250 = vld [vmem:[%s0 + $0x3b8] sm:$0xf]
  %v251 = vld [vmem:[%s0 + $0x3bc] sm:$0xf]
  %v252 = vld [vmem:[%s0 + $0x3c0] sm:$0xf]
  %v253 = vld [vmem:[%s0 + $0x3c4] sm:$0xf]
  %v254 = vld [vmem:[%s0 + $0x3c8] sm:$0xf]
  %v255 = vld [vmem:[%s0 + $0x3cc] sm:$0xf]
  %v256 = vld [vmem:[%s0 + $0x3d0] sm:$0xf]
  %v257 = vld [vmem:[%s0 + $0x3d4] sm:$0xf]
  %v258 = vld [vmem:[%s0 + $0x3d8] sm:$0xf]
  %v259 = vld [vmem:[%s0 + $0x3dc] sm:$0xf]
  %v260 = vld [vmem:[%s0 + $0x3e0] sm:$0xf]
  %v261 = vld [vmem:[%s0 + $0x3e4] sm:$0xf]
  %v262 = vld [vmem:[%s0 + $0x3e8] sm:$0xf]
  %v263 = vld [vmem:[%s0 + $0x3ec] sm:$0xf]
  %v264 = vld [vmem:[%s0 + $0x3f0] sm:$0xf]
  %v265 = vld [vmem:[%s0 + $0x3f4] sm:$0xf]
  %v266 = vld [vmem:[%s0 + $0x3f8] sm:$0xf]
  %v267 = vld [vmem:[%s0 + $0x3fc] sm:$0xf]
  %v268 = vld [vmem:[%s1] sm:$0xf]
  %v269 = vld [vmem:[%s1 + $0x4] sm:$0xf]
  %v270 = vld [vmem:[%s1 + $0x8] sm:$0xf]
  %v271 = vld [vmem:[%s1 + $0xc] sm:$0xf]
  %v272 = vld [vmem:[%s1 + $0x10] sm:$0xf]
  %v273 = vld [vmem:[%s1 + $0x14] sm:$0xf]
  %v530 = vunpack.c.l.b16 %v12
  %v531 = vunpack.c.l.b16 %v13
  %v532 = vunpack.c.l.b16 %v14
  %v533 = vunpack.c.l.b16 %v15
  %v534 = vunpack.c.l.b16 %v16
  %v535 = vunpack.c.l.b16 %v17
  %v536 = vunpack.c.l.b16 %v18
  %v537 = vunpack.c.l.b16 %v19
  %v538 = vunpack.c.l.b16 %v20
  %v539 = vunpack.c.l.b16 %v21
  %v540 = vunpack.c.l.b16 %v22
  %v541 = vunpack.c.l.b16 %v23
  %v542 = vunpack.c.l.b16 %v24
  %v543 = vunpack.c.l.b16 %v25
  %v544 = vunpack.c.l.b16 %v26
  %v545 = vunpack.c.l.b16 %v27
  %v546 = vunpack.c.l.b16 %v28
  %v547 = vunpack.c.l.b16 %v29
  %v548 = vunpack.c.l.b16 %v30
  %v549 = vunpack.c.l.b16 %v31
  %v550 = vunpack.c.l.b16 %v32
  %v551 = vunpack.c.l.b16 %v33
  %v552 = vunpack.c.l.b16 %v34
  %v553 = vunpack.c.l.b16 %v35
  %v554 = vunpack.c.l.b16 %v36
  %v555 = vunpack.c.l.b16 %v37
  %v556 = vunpack.c.l.b16 %v38
  %v557 = vunpack.c.l.b16 %v39
  %v558 = vunpack.c.l.b16 %v40
  %v559 = vunpack.c.l.b16 %v41
  %v560 = vunpack.c.l.b16 %v42
  %v561 = vunpack.c.l.b16 %v43
  %v562 = vunpack.c.l.b16 %v44
  %v563 = vunpack.c.l.b16 %v45
  %v564 = vunpack.c.l.b16 %v46
  %v565 = vunpack.c.l.b16 %v47
  %v566 = vunpack.c.l.b16 %v48
  %v567 = vunpack.c.l.b16 %v49
  %v568 = vunpack.c.l.b16 %v50
  %v569 = vunpack.c.l.b16 %v51
  %v570 = vunpack.c.l.b16 %v52
  %v571 = vunpack.c.l.b16 %v53
  %v572 = vunpack.c.l.b16 %v54
  %v573 = vunpack.c.l.b16 %v55
  %v574 = vunpack.c.l.b16 %v56
  %v575 = vunpack.c.l.b16 %v57
  %v576 = vunpack.c.l.b16 %v58
  %v577 = vunpack.c.l.b16 %v59
  %v578 = vunpack.c.l.b16 %v60
  %v579 = vunpack.c.l.b16 %v61
  %v580 = vunpack.c.l.b16 %v62
  %v581 = vunpack.c.l.b16 %v63
  %v582 = vunpack.c.l.b16 %v64
  %v583 = vunpack.c.l.b16 %v65
  %v584 = vunpack.c.l.b16 %v66
  %v585 = vunpack.c.l.b16 %v67
  %v586 = vunpack.c.l.b16 %v68
  %v587 = vunpack.c.l.b16 %v69
  %v588 = vunpack.c.l.b16 %v70
  %v589 = vunpack.c.l.b16 %v71
  %v590 = vunpack.c.l.b16 %v72
  %v591 = vunpack.c.l.b16 %v73
  %v592 = vunpack.c.l.b16 %v74
  %v593 = vunpack.c.l.b16 %v75
  %v594 = vunpack.c.l.b16 %v76
  %v595 = vunpack.c.l.b16 %v77
  %v596 = vunpack.c.l.b16 %v78
  %v597 = vunpack.c.l.b16 %v79
  %v598 = vunpack.c.l.b16 %v80
  %v599 = vunpack.c.l.b16 %v81
  %v600 = vunpack.c.l.b16 %v82
  %v601 = vunpack.c.l.b16 %v83
  %v602 = vunpack.c.l.b16 %v84
  %v603 = vunpack.c.l.b16 %v85
  %v604 = vunpack.c.l.b16 %v86
  %v605 = vunpack.c.l.b16 %v87
  %v606 = vunpack.c.l.b16 %v88
  %v607 = vunpack.c.l.b16 %v89
  %v608 = vunpack.c.l.b16 %v90
  %v609 = vunpack.c.l.b16 %v91
  %v610 = vunpack.c.l.b16 %v92
  %v611 = vunpack.c.l.b16 %v93
  %v612 = vunpack.c.l.b16 %v94
  %v613 = vunpack.c.l.b16 %v95
  %v614 = vunpack.c.l.b16 %v96
  %v615 = vunpack.c.l.b16 %v97
  %v616 = vunpack.c.l.b16 %v98
  %v617 = vunpack.c.l.b16 %v99
  %v618 = vunpack.c.l.b16 %v100
  %v619 = vunpack.c.l.b16 %v101
  %v620 = vunpack.c.l.b16 %v102
  %v621 = vunpack.c.l.b16 %v103
  %v622 = vunpack.c.l.b16 %v104
  %v623 = vunpack.c.l.b16 %v105
  %v624 = vunpack.c.l.b16 %v106
  %v625 = vunpack.c.l.b16 %v107
  %v626 = vunpack.c.l.b16 %v108
  %v627 = vunpack.c.l.b16 %v109
  %v628 = vunpack.c.l.b16 %v110
  %v629 = vunpack.c.l.b16 %v111
  %v630 = vunpack.c.l.b16 %v112
  %v631 = vunpack.c.l.b16 %v113
  %v632 = vunpack.c.l.b16 %v114
  %v633 = vunpack.c.l.b16 %v115
  %v634 = vunpack.c.l.b16 %v116
  %v635 = vunpack.c.l.b16 %v117
  %v636 = vunpack.c.l.b16 %v118
  %v637 = vunpack.c.l.b16 %v119
  %v638 = vunpack.c.l.b16 %v120
  %v639 = vunpack.c.l.b16 %v121
  %v640 = vunpack.c.l.b16 %v122
  %v641 = vunpack.c.l.b16 %v123
  %v642 = vunpack.c.l.b16 %v124
  %v643 = vunpack.c.l.b16 %v125
  %v644 = vunpack.c.l.b16 %v126
  %v645 = vunpack.c.l.b16 %v127
  %v646 = vunpack.c.l.b16 %v128
  %v647 = vunpack.c.l.b16 %v129
  %v648 = vunpack.c.l.b16 %v130
  %v649 = vunpack.c.l.b16 %v131
  %v650 = vunpack.c.l.b16 %v132
  %v651 = vunpack.c.l.b16 %v133
  %v652 = vunpack.c.l.b16 %v134
  %v653 = vunpack.c.l.b16 %v135
  %v654 = vunpack.c.l.b16 %v136
  %v655 = vunpack.c.l.b16 %v137
  %v656 = vunpack.c.l.b16 %v138
  %v657 = vunpack.c.l.b16 %v139
  %v658 = vunpack.c.l.b16 %v140
  %v659 = vunpack.c.l.b16 %v141
  %v660 = vunpack.c.l.b16 %v142
  %v661 = vunpack.c.l.b16 %v143
  %v662 = vunpack.c.l.b16 %v144
  %v663 = vunpack.c.l.b16 %v145
  %v664 = vunpack.c.l.b16 %v146
  %v665 = vunpack.c.l.b16 %v147
  %v666 = vunpack.c.l.b16 %v148
  %v667 = vunpack.c.l.b16 %v149
  %v668 = vunpack.c.l.b16 %v150
  %v669 = vunpack.c.l.b16 %v151
  %v670 = vunpack.c.l.b16 %v152
  %v671 = vunpack.c.l.b16 %v153
  %v672 = vunpack.c.l.b16 %v154
  %v673 = vunpack.c.l.b16 %v155
  %v674 = vunpack.c.l.b16 %v156
  %v675 = vunpack.c.l.b16 %v157
  %v676 = vunpack.c.l.b16 %v158
  %v677 = vunpack.c.l.b16 %v159
  %v678 = vunpack.c.l.b16 %v160
  %v679 = vunpack.c.l.b16 %v161
  %v680 = vunpack.c.l.b16 %v162
  %v681 = vunpack.c.l.b16 %v163
  %v682 = vunpack.c.l.b16 %v164
  %v683 = vunpack.c.l.b16 %v165
  %v684 = vunpack.c.l.b16 %v166
  %v685 = vunpack.c.l.b16 %v167
  %v686 = vunpack.c.l.b16 %v168
  %v687 = vunpack.c.l.b16 %v169
  %v688 = vunpack.c.l.b16 %v170
  %v689 = vunpack.c.l.b16 %v171
  %v690 = vunpack.c.l.b16 %v172
  %v691 = vunpack.c.l.b16 %v173
  %v692 = vunpack.c.l.b16 %v174
  %v693 = vunpack.c.l.b16 %v175
  %v694 = vunpack.c.l.b16 %v176
  %v695 = vunpack.c.l.b16 %v177
  %v696 = vunpack.c.l.b16 %v178
  %v697 = vunpack.c.l.b16 %v179
  %v698 = vunpack.c.l.b16 %v180
  %v699 = vunpack.c.l.b16 %v181
  %v700 = vunpack.c.l.b16 %v182
  %v701 = vunpack.c.l.b16 %v183
  %v702 = vunpack.c.l.b16 %v184
  %v703 = vunpack.c.l.b16 %v185
  %v704 = vunpack.c.l.b16 %v186
  %v705 = vunpack.c.l.b16 %v187
  %v706 = vunpack.c.l.b16 %v188
  %v707 = vunpack.c.l.b16 %v189
  %v708 = vunpack.c.l.b16 %v190
  %v709 = vunpack.c.l.b16 %v191
  %v710 = vunpack.c.l.b16 %v192
  %v711 = vunpack.c.l.b16 %v193
  %v712 = vunpack.c.l.b16 %v194
  %v713 = vunpack.c.l.b16 %v195
  %v714 = vunpack.c.l.b16 %v196
  %v715 = vunpack.c.l.b16 %v197
  %v716 = vunpack.c.l.b16 %v198
  %v717 = vunpack.c.l.b16 %v199
  %v718 = vunpack.c.l.b16 %v200
  %v719 = vunpack.c.l.b16 %v201
  %v720 = vunpack.c.l.b16 %v202
  %v721 = vunpack.c.l.b16 %v203
  %v722 = vunpack.c.l.b16 %v204
  %v723 = vunpack.c.l.b16 %v205
  %v724 = vunpack.c.l.b16 %v206
  %v725 = vunpack.c.l.b16 %v207
  %v726 = vunpack.c.l.b16 %v208
  %v727 = vunpack.c.l.b16 %v209
  %v728 = vunpack.c.l.b16 %v210
  %v729 = vunpack.c.l.b16 %v211
  %v730 = vunpack.c.l.b16 %v212
  %v731 = vunpack.c.l.b16 %v213
  %v732 = vunpack.c.l.b16 %v214
  %v733 = vunpack.c.l.b16 %v215
  %v734 = vunpack.c.l.b16 %v216
  %v735 = vunpack.c.l.b16 %v217
  %v736 = vunpack.c.l.b16 %v218
  %v737 = vunpack.c.l.b16 %v219
  %v738 = vunpack.c.l.b16 %v220
  %v739 = vunpack.c.l.b16 %v221
  %v740 = vunpack.c.l.b16 %v222
  %v741 = vunpack.c.l.b16 %v223
  %v742 = vunpack.c.l.b16 %v224
  %v743 = vunpack.c.l.b16 %v225
  %v744 = vunpack.c.l.b16 %v226
  %v745 = vunpack.c.l.b16 %v227
  %v746 = vunpack.c.l.b16 %v228
  %v747 = vunpack.c.l.b16 %v229
  %v748 = vunpack.c.l.b16 %v230
  %v749 = vunpack.c.l.b16 %v231
  %v750 = vunpack.c.l.b16 %v232
  %v751 = vunpack.c.l.b16 %v233
  %v752 = vunpack.c.l.b16 %v234
  %v753 = vunpack.c.l.b16 %v235
  %v754 = vunpack.c.l.b16 %v236
  %v755 = vunpack.c.l.b16 %v237
  %v756 = vunpack.c.l.b16 %v238
  %v757 = vunpack.c.l.b16 %v239
  %v758 = vunpack.c.l.b16 %v240
  %v759 = vunpack.c.l.b16 %v241
  %v760 = vunpack.c.l.b16 %v242
  %v761 = vunpack.c.l.b16 %v243
  %v762 = vunpack.c.l.b16 %v244
  %v763 = vunpack.c.l.b16 %v245
  %v764 = vunpack.c.l.b16 %v246
  %v765 = vunpack.c.l.b16 %v247
  %v766 = vunpack.c.l.b16 %v248
  %v767 = vunpack.c.l.b16 %v249
  %v768 = vunpack.c.l.b16 %v250
  %v769 = vunpack.c.l.b16 %v251
  %v770 = vunpack.c.l.b16 %v252
  %v771 = vunpack.c.l.b16 %v253
  %v772 = vunpack.c.l.b16 %v254
  %v773 = vunpack.c.l.b16 %v255
  %v774 = vunpack.c.l.b16 %v256
  %v775 = vunpack.c.l.b16 %v257
  %v776 = vunpack.c.l.b16 %v258
  %v777 = vunpack.c.l.b16 %v259
  %v778 = vunpack.c.l.b16 %v260
  %v779 = vunpack.c.l.b16 %v261
  %v780 = vunpack.c.l.b16 %v262
  %v781 = vunpack.c.l.b16 %v263
  %v782 = vunpack.c.l.b16 %v264
  %v783 = vunpack.c.l.b16 %v265
  %v784 = vunpack.c.l.b16 %v266
  %v785 = vunpack.c.l.b16 %v267
  %v786 = vpack.c.b16 %v531, %v530
  %v787 = vpack.c.b16 %v533, %v532
  %v788 = vpack.c.b16 %v535, %v534
  %v789 = vpack.c.b16 %v537, %v536
  %v790 = vpack.c.b16 %v539, %v538
  %v791 = vpack.c.b16 %v541, %v540
  %v792 = vpack.c.b16 %v543, %v542
  %v793 = vpack.c.b16 %v545, %v544
  %v794 = vpack.c.b16 %v547, %v546
  %v795 = vpack.c.b16 %v549, %v548
  %v796 = vpack.c.b16 %v551, %v550
  %v797 = vpack.c.b16 %v553, %v552
  %v798 = vpack.c.b16 %v555, %v554
  %v799 = vpack.c.b16 %v557, %v556
  %v800 = vpack.c.b16 %v559, %v558
  %v801 = vpack.c.b16 %v561, %v560
  %v802 = vpack.c.b16 %v563, %v562
  %v803 = vpack.c.b16 %v565, %v564
  %v804 = vpack.c.b16 %v567, %v566
  %v805 = vpack.c.b16 %v569, %v568
  %v806 = vpack.c.b16 %v571, %v570
  %v807 = vpack.c.b16 %v573, %v572
  %v808 = vpack.c.b16 %v575, %v574
  %v809 = vpack.c.b16 %v577, %v576
  %v810 = vpack.c.b16 %v579, %v578
  %v811 = vpack.c.b16 %v581, %v580
  %v812 = vpack.c.b16 %v583, %v582
  %v813 = vpack.c.b16 %v585, %v584
  %v814 = vpack.c.b16 %v587, %v586
  %v815 = vpack.c.b16 %v589, %v588
  %v816 = vpack.c.b16 %v591, %v590
  %v817 = vpack.c.b16 %v593, %v592
  %v818 = vpack.c.b16 %v595, %v594
  %v819 = vpack.c.b16 %v597, %v596
  %v820 = vpack.c.b16 %v599, %v598
  %v821 = vpack.c.b16 %v601, %v600
  %v822 = vpack.c.b16 %v603, %v602
  %v823 = vpack.c.b16 %v605, %v604
  %v824 = vpack.c.b16 %v607, %v606
  %v825 = vpack.c.b16 %v609, %v608
  %v826 = vpack.c.b16 %v611, %v610
  %v827 = vpack.c.b16 %v613, %v612
  %v828 = vpack.c.b16 %v615, %v614
  %v829 = vpack.c.b16 %v617, %v616
  %v830 = vpack.c.b16 %v619, %v618
  %v831 = vpack.c.b16 %v621, %v620
  %v832 = vpack.c.b16 %v623, %v622
  %v833 = vpack.c.b16 %v625, %v624
  %v834 = vpack.c.b16 %v627, %v626
  %v835 = vpack.c.b16 %v629, %v628
  %v836 = vpack.c.b16 %v631, %v630
  %v837 = vpack.c.b16 %v633, %v632
  %v838 = vpack.c.b16 %v635, %v634
  %v839 = vpack.c.b16 %v637, %v636
  %v840 = vpack.c.b16 %v639, %v638
  %v841 = vpack.c.b16 %v641, %v640
  %v842 = vpack.c.b16 %v643, %v642
  %v843 = vpack.c.b16 %v645, %v644
  %v844 = vpack.c.b16 %v647, %v646
  %v845 = vpack.c.b16 %v649, %v648
  %v846 = vpack.c.b16 %v651, %v650
  %v847 = vpack.c.b16 %v653, %v652
  %v848 = vpack.c.b16 %v655, %v654
  %v849 = vpack.c.b16 %v657, %v656
  %v850 = vpack.c.b16 %v659, %v658
  %v851 = vpack.c.b16 %v661, %v660
  %v852 = vpack.c.b16 %v663, %v662
  %v853 = vpack.c.b16 %v665, %v664
  %v854 = vpack.c.b16 %v667, %v666
  %v855 = vpack.c.b16 %v669, %v668
  %v856 = vpack.c.b16 %v671, %v670
  %v857 = vpack.c.b16 %v673, %v672
  %v858 = vpack.c.b16 %v675, %v674
  %v859 = vpack.c.b16 %v677, %v676
  %v860 = vpack.c.b16 %v679, %v678
  %v861 = vpack.c.b16 %v681, %v680
  %v862 = vpack.c.b16 %v683, %v682
  %v863 = vpack.c.b16 %v685, %v684
  %v864 = vpack.c.b16 %v687, %v686
  %v865 = vpack.c.b16 %v689, %v688
  %v866 = vpack.c.b16 %v691, %v690
  %v867 = vpack.c.b16 %v693, %v692
  %v868 = vpack.c.b16 %v695, %v694
  %v869 = vpack.c.b16 %v697, %v696
  %v870 = vpack.c.b16 %v699, %v698
  %v871 = vpack.c.b16 %v701, %v700
  %v872 = vpack.c.b16 %v703, %v702
  %v873 = vpack.c.b16 %v705, %v704
  %v874 = vpack.c.b16 %v707, %v706
  %v875 = vpack.c.b16 %v709, %v708
  %v876 = vpack.c.b16 %v711, %v710
  %v877 = vpack.c.b16 %v713, %v712
  %v878 = vpack.c.b16 %v715, %v714
  %v879 = vpack.c.b16 %v717, %v716
  %v880 = vpack.c.b16 %v719, %v718
  %v881 = vpack.c.b16 %v721, %v720
  %v882 = vpack.c.b16 %v723, %v722
  %v883 = vpack.c.b16 %v725, %v724
  %v884 = vpack.c.b16 %v727, %v726
  %v885 = vpack.c.b16 %v729, %v728
  %v886 = vpack.c.b16 %v731, %v730
  %v887 = vpack.c.b16 %v733, %v732
  %v888 = vpack.c.b16 %v735, %v734
  %v889 = vpack.c.b16 %v737, %v736
  %v890 = vpack.c.b16 %v739, %v738
  %v891 = vpack.c.b16 %v741, %v740
  %v892 = vpack.c.b16 %v743, %v742
  %v893 = vpack.c.b16 %v745, %v744
  %v894 = vpack.c.b16 %v747, %v746
  %v895 = vpack.c.b16 %v749, %v748
  %v896 = vpack.c.b16 %v751, %v750
  %v897 = vpack.c.b16 %v753, %v752
  %v898 = vpack.c.b16 %v755, %v754
  %v899 = vpack.c.b16 %v757, %v756
  %v900 = vpack.c.b16 %v759, %v758
  %v901 = vpack.c.b16 %v761, %v760
  %v902 = vpack.c.b16 %v763, %v762
  %v903 = vpack.c.b16 %v765, %v764
  %v904 = vpack.c.b16 %v767, %v766
  %v905 = vpack.c.b16 %v769, %v768
  %v906 = vpack.c.b16 %v771, %v770
  %v907 = vpack.c.b16 %v773, %v772
  %v908 = vpack.c.b16 %v775, %v774
  %v909 = vpack.c.b16 %v777, %v776
  %v910 = vpack.c.b16 %v779, %v778
  %v911 = vpack.c.b16 %v781, %v780
  %v912 = vpack.c.b16 %v783, %v782
  %v913 = vpack.c.b16 %v785, %v784
  %v920 = vunpack.c.l.b16 %v268
  %v921 = vunpack.c.l.b16 %v269
  %v922 = vunpack.c.l.b16 %v270
  %v923 = vunpack.c.l.b16 %v271
  %v924 = vunpack.c.l.b16 %v272
  %v925 = vunpack.c.l.b16 %v273
  %v926 = vpack.c.b16 %v921, %v920
  %v927 = vpack.c.b16 %v923, %v922
  %v928 = vpack.c.b16 %v925, %v924
  %vm932 = vcmask 392192
  %v934 = vsel %vm932, %v786, 0
  %v937 = vsel %vm932, %v787, 0
  %v940 = vsel %vm932, %v788, 0
  %v943 = vsel %vm932, %v789, 0
  %v946 = vsel %vm932, %v790, 0
  %v949 = vsel %vm932, %v791, 0
  %v952 = vsel %vm932, %v792, 0
  %v955 = vsel %vm932, %v793, 0
  %v958 = vsel %vm932, %v794, 0
  %v961 = vsel %vm932, %v795, 0
  %v964 = vsel %vm932, %v796, 0
  %v967 = vsel %vm932, %v797, 0
  %v970 = vsel %vm932, %v798, 0
  %v973 = vsel %vm932, %v799, 0
  %v976 = vsel %vm932, %v800, 0
  %v979 = vsel %vm932, %v801, 0
  %v982 = vsel %vm932, %v802, 0
  %v985 = vsel %vm932, %v803, 0
  %v988 = vsel %vm932, %v804, 0
  %v991 = vsel %vm932, %v805, 0
  %v994 = vsel %vm932, %v806, 0
  %v997 = vsel %vm932, %v807, 0
  %v1000 = vsel %vm932, %v808, 0
  %v1003 = vsel %vm932, %v809, 0
  %v1006 = vsel %vm932, %v810, 0
  %v1009 = vsel %vm932, %v811, 0
  %v1012 = vsel %vm932, %v812, 0
  %v1015 = vsel %vm932, %v813, 0
  %v1018 = vsel %vm932, %v814, 0
  %v1021 = vsel %vm932, %v815, 0
  %v1024 = vsel %vm932, %v816, 0
  %v1027 = vsel %vm932, %v817, 0
  %v1030 = vsel %vm932, %v818, 0
  %v1033 = vsel %vm932, %v819, 0
  %v1036 = vsel %vm932, %v820, 0
  %v1039 = vsel %vm932, %v821, 0
  %v1042 = vsel %vm932, %v822, 0
  %v1045 = vsel %vm932, %v823, 0
  %v1048 = vsel %vm932, %v824, 0
  %v1051 = vsel %vm932, %v825, 0
  %v1054 = vsel %vm932, %v826, 0
  %v1057 = vsel %vm932, %v827, 0
  %v1060 = vsel %vm932, %v828, 0
  %v1063 = vsel %vm932, %v829, 0
  %v1066 = vsel %vm932, %v830, 0
  %v1069 = vsel %vm932, %v831, 0
  %v1072 = vsel %vm932, %v832, 0
  %v1075 = vsel %vm932, %v833, 0
  %v1078 = vsel %vm932, %v834, 0
  %v1081 = vsel %vm932, %v835, 0
  %v1084 = vsel %vm932, %v836, 0
  %v1087 = vsel %vm932, %v837, 0
  %v1090 = vsel %vm932, %v838, 0
  %v1093 = vsel %vm932, %v839, 0
  %v1096 = vsel %vm932, %v840, 0
  %v1099 = vsel %vm932, %v841, 0
  %v1102 = vsel %vm932, %v842, 0
  %v1105 = vsel %vm932, %v843, 0
  %v1108 = vsel %vm932, %v844, 0
  %v1111 = vsel %vm932, %v845, 0
  %v1114 = vsel %vm932, %v846, 0
  %v1117 = vsel %vm932, %v847, 0
  %v1120 = vsel %vm932, %v848, 0
  %v1123 = vsel %vm932, %v849, 0
  %v1126 = vsel %vm932, %v850, 0
  %v1129 = vsel %vm932, %v851, 0
  %v1132 = vsel %vm932, %v852, 0
  %v1135 = vsel %vm932, %v853, 0
  %v1138 = vsel %vm932, %v854, 0
  %v1141 = vsel %vm932, %v855, 0
  %v1144 = vsel %vm932, %v856, 0
  %v1147 = vsel %vm932, %v857, 0
  %v1150 = vsel %vm932, %v858, 0
  %v1153 = vsel %vm932, %v859, 0
  %v1156 = vsel %vm932, %v860, 0
  %v1159 = vsel %vm932, %v861, 0
  %v1162 = vsel %vm932, %v862, 0
  %v1165 = vsel %vm932, %v863, 0
  %v1168 = vsel %vm932, %v864, 0
  %v1171 = vsel %vm932, %v865, 0
  %v1174 = vsel %vm932, %v866, 0
  %v1177 = vsel %vm932, %v867, 0
  %v1180 = vsel %vm932, %v868, 0
  %v1183 = vsel %vm932, %v869, 0
  %v1186 = vsel %vm932, %v870, 0
  %v1189 = vsel %vm932, %v871, 0
  %v1192 = vsel %vm932, %v872, 0
  %v1195 = vsel %vm932, %v873, 0
  %v1198 = vsel %vm932, %v874, 0
  %v1201 = vsel %vm932, %v875, 0
  %v1204 = vsel %vm932, %v876, 0
  %v1207 = vsel %vm932, %v877, 0
  %v1210 = vsel %vm932, %v878, 0
  %v1213 = vsel %vm932, %v879, 0
  %v1216 = vsel %vm932, %v880, 0
  %v1219 = vsel %vm932, %v881, 0
  %v1222 = vsel %vm932, %v882, 0
  %v1225 = vsel %vm932, %v883, 0
  %v1228 = vsel %vm932, %v884, 0
  %v1231 = vsel %vm932, %v885, 0
  %v1234 = vsel %vm932, %v886, 0
  %v1237 = vsel %vm932, %v887, 0
  %v1240 = vsel %vm932, %v888, 0
  %v1243 = vsel %vm932, %v889, 0
  %v1246 = vsel %vm932, %v890, 0
  %v1249 = vsel %vm932, %v891, 0
  %v1252 = vsel %vm932, %v892, 0
  %v1255 = vsel %vm932, %v893, 0
  %v1258 = vsel %vm932, %v894, 0
  %v1261 = vsel %vm932, %v895, 0
  %v1264 = vsel %vm932, %v896, 0
  %v1267 = vsel %vm932, %v897, 0
  %v1270 = vsel %vm932, %v898, 0
  %v1273 = vsel %vm932, %v899, 0
  %v1276 = vsel %vm932, %v900, 0
  %v1279 = vsel %vm932, %v901, 0
  %v1282 = vsel %vm932, %v902, 0
  %v1285 = vsel %vm932, %v903, 0
  %v1288 = vsel %vm932, %v904, 0
  %v1291 = vsel %vm932, %v905, 0
  %v1294 = vsel %vm932, %v906, 0
  %v1297 = vsel %vm932, %v907, 0
  %v1300 = vsel %vm932, %v908, 0
  %v1303 = vsel %vm932, %v909, 0
  %v1306 = vsel %vm932, %v910, 0
  %v1309 = vsel %vm932, %v911, 0
  %v1312 = vsel %vm932, %v912, 0
  %v1315 = vsel %vm932, %v913, 0
  %1317 = vmatpush.bf16.msra.mxu0 0
  %1318 = vmatpush.bf16.msra.mxu0 0
  %1319 = vmatpush.bf16.msra.mxu0 0
  %1320 = vmatpush.bf16.msra.mxu0 0
  %1321 = vmatpush.bf16.msra.mxu0 0
  %1322 = vmatpush.bf16.msra.mxu0 %v928
  %1323 = vmatpush.bf16.msra.mxu0 %v927
  %1324 = vmatpush.bf16.msra.mxu0 %v926
  %1325 = vmatmul.bf16.gmra.mxu0 %v934
  %v1326 = vpop.f32.mrf.mxu0
  %v1327 = vadd.f32 0.0, %v1326
  %v1328 = vpop.f32.mrf.mxu0
  %v1329 = vadd.f32 0.0, %v1328
  %1330 = vmatmul.bf16.gmra.mxu0 %v937
  %v1331 = vpop.f32.mrf.mxu0
  %v1332 = vadd.f32 0.0, %v1331
  %v1333 = vpop.f32.mrf.mxu0
  %v1334 = vadd.f32 0.0, %v1333
  %1335 = vmatmul.bf16.gmra.mxu0 %v940
  %v1336 = vpop.f32.mrf.mxu0
  %v1337 = vadd.f32 0.0, %v1336
  %v1338 = vpop.f32.mrf.mxu0
  %v1339 = vadd.f32 0.0, %v1338
  %1340 = vmatmul.bf16.gmra.mxu0 %v943
  %v1341 = vpop.f32.mrf.mxu0
  %v1342 = vadd.f32 0.0, %v1341
  %v1343 = vpop.f32.mrf.mxu0
  %v1344 = vadd.f32 0.0, %v1343
  %1345 = vmatmul.bf16.gmra.mxu0 %v946
  %v1346 = vpop.f32.mrf.mxu0
  %v1347 = vadd.f32 0.0, %v1346
  %v1348 = vpop.f32.mrf.mxu0
  %v1349 = vadd.f32 0.0, %v1348
  %1350 = vmatmul.bf16.gmra.mxu0 %v949
  %v1351 = vpop.f32.mrf.mxu0
  %v1352 = vadd.f32 0.0, %v1351
  %v1353 = vpop.f32.mrf.mxu0
  %v1354 = vadd.f32 0.0, %v1353
  %1355 = vmatmul.bf16.gmra.mxu0 %v952
  %v1356 = vpop.f32.mrf.mxu0
  %v1357 = vadd.f32 0.0, %v1356
  %v1358 = vpop.f32.mrf.mxu0
  %v1359 = vadd.f32 0.0, %v1358
  %1360 = vmatmul.bf16.gmra.mxu0 %v955
  %v1361 = vpop.f32.mrf.mxu0
  %v1362 = vadd.f32 0.0, %v1361
  %v1363 = vpop.f32.mrf.mxu0
  %v1364 = vadd.f32 0.0, %v1363
  %1365 = vmatmul.bf16.gmra.mxu0 %v958
  %v1366 = vpop.f32.mrf.mxu0
  %v1367 = vadd.f32 0.0, %v1366
  %v1368 = vpop.f32.mrf.mxu0
  %v1369 = vadd.f32 0.0, %v1368
  %1370 = vmatmul.bf16.gmra.mxu0 %v961
  %v1371 = vpop.f32.mrf.mxu0
  %v1372 = vadd.f32 0.0, %v1371
  %v1373 = vpop.f32.mrf.mxu0
  %v1374 = vadd.f32 0.0, %v1373
  %1375 = vmatmul.bf16.gmra.mxu0 %v964
  %v1376 = vpop.f32.mrf.mxu0
  %v1377 = vadd.f32 0.0, %v1376
  %v1378 = vpop.f32.mrf.mxu0
  %v1379 = vadd.f32 0.0, %v1378
  %1380 = vmatmul.bf16.gmra.mxu0 %v967
  %v1381 = vpop.f32.mrf.mxu0
  %v1382 = vadd.f32 0.0, %v1381
  %v1383 = vpop.f32.mrf.mxu0
  %v1384 = vadd.f32 0.0, %v1383
  %1385 = vmatmul.bf16.gmra.mxu0 %v970
  %v1386 = vpop.f32.mrf.mxu0
  %v1387 = vadd.f32 0.0, %v1386
  %v1388 = vpop.f32.mrf.mxu0
  %v1389 = vadd.f32 0.0, %v1388
  %1390 = vmatmul.bf16.gmra.mxu0 %v973
  %v1391 = vpop.f32.mrf.mxu0
  %v1392 = vadd.f32 0.0, %v1391
  %v1393 = vpop.f32.mrf.mxu0
  %v1394 = vadd.f32 0.0, %v1393
  %1395 = vmatmul.bf16.gmra.mxu0 %v976
  %v1396 = vpop.f32.mrf.mxu0
  %v1397 = vadd.f32 0.0, %v1396
  %v1398 = vpop.f32.mrf.mxu0
  %v1399 = vadd.f32 0.0, %v1398
  %1400 = vmatmul.bf16.gmra.mxu0 %v979
  %v1401 = vpop.f32.mrf.mxu0
  %v1402 = vadd.f32 0.0, %v1401
  %v1403 = vpop.f32.mrf.mxu0
  %v1404 = vadd.f32 0.0, %v1403
  %1405 = vmatmul.bf16.gmra.mxu0 %v982
  %v1406 = vpop.f32.mrf.mxu0
  %v1407 = vadd.f32 0.0, %v1406
  %v1408 = vpop.f32.mrf.mxu0
  %v1409 = vadd.f32 0.0, %v1408
  %1410 = vmatmul.bf16.gmra.mxu0 %v985
  %v1411 = vpop.f32.mrf.mxu0
  %v1412 = vadd.f32 0.0, %v1411
  %v1413 = vpop.f32.mrf.mxu0
  %v1414 = vadd.f32 0.0, %v1413
  %1415 = vmatmul.bf16.gmra.mxu0 %v988
  %v1416 = vpop.f32.mrf.mxu0
  %v1417 = vadd.f32 0.0, %v1416
  %v1418 = vpop.f32.mrf.mxu0
  %v1419 = vadd.f32 0.0, %v1418
  %1420 = vmatmul.bf16.gmra.mxu0 %v991
  %v1421 = vpop.f32.mrf.mxu0
  %v1422 = vadd.f32 0.0, %v1421
  %v1423 = vpop.f32.mrf.mxu0
  %v1424 = vadd.f32 0.0, %v1423
  %1425 = vmatmul.bf16.gmra.mxu0 %v994
  %v1426 = vpop.f32.mrf.mxu0
  %v1427 = vadd.f32 0.0, %v1426
  %v1428 = vpop.f32.mrf.mxu0
  %v1429 = vadd.f32 0.0, %v1428
  %1430 = vmatmul.bf16.gmra.mxu0 %v997
  %v1431 = vpop.f32.mrf.mxu0
  %v1432 = vadd.f32 0.0, %v1431
  %v1433 = vpop.f32.mrf.mxu0
  %v1434 = vadd.f32 0.0, %v1433
  %1435 = vmatmul.bf16.gmra.mxu0 %v1000
  %v1436 = vpop.f32.mrf.mxu0
  %v1437 = vadd.f32 0.0, %v1436
  %v1438 = vpop.f32.mrf.mxu0
  %v1439 = vadd.f32 0.0, %v1438
  %1440 = vmatmul.bf16.gmra.mxu0 %v1003
  %v1441 = vpop.f32.mrf.mxu0
  %v1442 = vadd.f32 0.0, %v1441
  %v1443 = vpop.f32.mrf.mxu0
  %v1444 = vadd.f32 0.0, %v1443
  %1445 = vmatmul.bf16.gmra.mxu0 %v1006
  %v1446 = vpop.f32.mrf.mxu0
  %v1447 = vadd.f32 0.0, %v1446
  %v1448 = vpop.f32.mrf.mxu0
  %v1449 = vadd.f32 0.0, %v1448
  %1450 = vmatmul.bf16.gmra.mxu0 %v1009
  %v1451 = vpop.f32.mrf.mxu0
  %v1452 = vadd.f32 0.0, %v1451
  %v1453 = vpop.f32.mrf.mxu0
  %v1454 = vadd.f32 0.0, %v1453
  %1455 = vmatmul.bf16.gmra.mxu0 %v1012
  %v1456 = vpop.f32.mrf.mxu0
  %v1457 = vadd.f32 0.0, %v1456
  %v1458 = vpop.f32.mrf.mxu0
  %v1459 = vadd.f32 0.0, %v1458
  %1460 = vmatmul.bf16.gmra.mxu0 %v1015
  %v1461 = vpop.f32.mrf.mxu0
  %v1462 = vadd.f32 0.0, %v1461
  %v1463 = vpop.f32.mrf.mxu0
  %v1464 = vadd.f32 0.0, %v1463
  %1465 = vmatmul.bf16.gmra.mxu0 %v1018
  %v1466 = vpop.f32.mrf.mxu0
  %v1467 = vadd.f32 0.0, %v1466
  %v1468 = vpop.f32.mrf.mxu0
  %v1469 = vadd.f32 0.0, %v1468
  %1470 = vmatmul.bf16.gmra.mxu0 %v1021
  %v1471 = vpop.f32.mrf.mxu0
  %v1472 = vadd.f32 0.0, %v1471
  %v1473 = vpop.f32.mrf.mxu0
  %v1474 = vadd.f32 0.0, %v1473
  %1475 = vmatmul.bf16.gmra.mxu0 %v1024
  %v1476 = vpop.f32.mrf.mxu0
  %v1477 = vadd.f32 0.0, %v1476
  %v1478 = vpop.f32.mrf.mxu0
  %v1479 = vadd.f32 0.0, %v1478
  %1480 = vmatmul.bf16.gmra.mxu0 %v1027
  %v1481 = vpop.f32.mrf.mxu0
  %v1482 = vadd.f32 0.0, %v1481
  %v1483 = vpop.f32.mrf.mxu0
  %v1484 = vadd.f32 0.0, %v1483
  %1485 = vmatmul.bf16.gmra.mxu0 %v1030
  %v1486 = vpop.f32.mrf.mxu0
  %v1487 = vadd.f32 0.0, %v1486
  %v1488 = vpop.f32.mrf.mxu0
  %v1489 = vadd.f32 0.0, %v1488
  %1490 = vmatmul.bf16.gmra.mxu0 %v1033
  %v1491 = vpop.f32.mrf.mxu0
  %v1492 = vadd.f32 0.0, %v1491
  %v1493 = vpop.f32.mrf.mxu0
  %v1494 = vadd.f32 0.0, %v1493
  %1495 = vmatmul.bf16.gmra.mxu0 %v1036
  %v1496 = vpop.f32.mrf.mxu0
  %v1497 = vadd.f32 0.0, %v1496
  %v1498 = vpop.f32.mrf.mxu0
  %v1499 = vadd.f32 0.0, %v1498
  %1500 = vmatmul.bf16.gmra.mxu0 %v1039
  %v1501 = vpop.f32.mrf.mxu0
  %v1502 = vadd.f32 0.0, %v1501
  %v1503 = vpop.f32.mrf.mxu0
  %v1504 = vadd.f32 0.0, %v1503
  %1505 = vmatmul.bf16.gmra.mxu0 %v1042
  %v1506 = vpop.f32.mrf.mxu0
  %v1507 = vadd.f32 0.0, %v1506
  %v1508 = vpop.f32.mrf.mxu0
  %v1509 = vadd.f32 0.0, %v1508
  %1510 = vmatmul.bf16.gmra.mxu0 %v1045
  %v1511 = vpop.f32.mrf.mxu0
  %v1512 = vadd.f32 0.0, %v1511
  %v1513 = vpop.f32.mrf.mxu0
  %v1514 = vadd.f32 0.0, %v1513
  %1515 = vmatmul.bf16.gmra.mxu0 %v1048
  %v1516 = vpop.f32.mrf.mxu0
  %v1517 = vadd.f32 0.0, %v1516
  %v1518 = vpop.f32.mrf.mxu0
  %v1519 = vadd.f32 0.0, %v1518
  %1520 = vmatmul.bf16.gmra.mxu0 %v1051
  %v1521 = vpop.f32.mrf.mxu0
  %v1522 = vadd.f32 0.0, %v1521
  %v1523 = vpop.f32.mrf.mxu0
  %v1524 = vadd.f32 0.0, %v1523
  %1525 = vmatmul.bf16.gmra.mxu0 %v1054
  %v1526 = vpop.f32.mrf.mxu0
  %v1527 = vadd.f32 0.0, %v1526
  %v1528 = vpop.f32.mrf.mxu0
  %v1529 = vadd.f32 0.0, %v1528
  %1530 = vmatmul.bf16.gmra.mxu0 %v1057
  %v1531 = vpop.f32.mrf.mxu0
  %v1532 = vadd.f32 0.0, %v1531
  %v1533 = vpop.f32.mrf.mxu0
  %v1534 = vadd.f32 0.0, %v1533
  %1535 = vmatmul.bf16.gmra.mxu0 %v1060
  %v1536 = vpop.f32.mrf.mxu0
  %v1537 = vadd.f32 0.0, %v1536
  %v1538 = vpop.f32.mrf.mxu0
  %v1539 = vadd.f32 0.0, %v1538
  %1540 = vmatmul.bf16.gmra.mxu0 %v1063
  %v1541 = vpop.f32.mrf.mxu0
  %v1542 = vadd.f32 0.0, %v1541
  %v1543 = vpop.f32.mrf.mxu0
  %v1544 = vadd.f32 0.0, %v1543
  %1545 = vmatmul.bf16.gmra.mxu0 %v1066
  %v1546 = vpop.f32.mrf.mxu0
  %v1547 = vadd.f32 0.0, %v1546
  %v1548 = vpop.f32.mrf.mxu0
  %v1549 = vadd.f32 0.0, %v1548
  %1550 = vmatmul.bf16.gmra.mxu0 %v1069
  %v1551 = vpop.f32.mrf.mxu0
  %v1552 = vadd.f32 0.0, %v1551
  %v1553 = vpop.f32.mrf.mxu0
  %v1554 = vadd.f32 0.0, %v1553
  %1555 = vmatmul.bf16.gmra.mxu0 %v1072
  %v1556 = vpop.f32.mrf.mxu0
  %v1557 = vadd.f32 0.0, %v1556
  %v1558 = vpop.f32.mrf.mxu0
  %v1559 = vadd.f32 0.0, %v1558
  %1560 = vmatmul.bf16.gmra.mxu0 %v1075
  %v1561 = vpop.f32.mrf.mxu0
  %v1562 = vadd.f32 0.0, %v1561
  %v1563 = vpop.f32.mrf.mxu0
  %v1564 = vadd.f32 0.0, %v1563
  %1565 = vmatmul.bf16.gmra.mxu0 %v1078
  %v1566 = vpop.f32.mrf.mxu0
  %v1567 = vadd.f32 0.0, %v1566
  %v1568 = vpop.f32.mrf.mxu0
  %v1569 = vadd.f32 0.0, %v1568
  %1570 = vmatmul.bf16.gmra.mxu0 %v1081
  %v1571 = vpop.f32.mrf.mxu0
  %v1572 = vadd.f32 0.0, %v1571
  %v1573 = vpop.f32.mrf.mxu0
  %v1574 = vadd.f32 0.0, %v1573
  %1575 = vmatmul.bf16.gmra.mxu0 %v1084
  %v1576 = vpop.f32.mrf.mxu0
  %v1577 = vadd.f32 0.0, %v1576
  %v1578 = vpop.f32.mrf.mxu0
  %v1579 = vadd.f32 0.0, %v1578
  %1580 = vmatmul.bf16.gmra.mxu0 %v1087
  %v1581 = vpop.f32.mrf.mxu0
  %v1582 = vadd.f32 0.0, %v1581
  %v1583 = vpop.f32.mrf.mxu0
  %v1584 = vadd.f32 0.0, %v1583
  %1585 = vmatmul.bf16.gmra.mxu0 %v1090
  %v1586 = vpop.f32.mrf.mxu0
  %v1587 = vadd.f32 0.0, %v1586
  %v1588 = vpop.f32.mrf.mxu0
  %v1589 = vadd.f32 0.0, %v1588
  %1590 = vmatmul.bf16.gmra.mxu0 %v1093
  %v1591 = vpop.f32.mrf.mxu0
  %v1592 = vadd.f32 0.0, %v1591
  %v1593 = vpop.f32.mrf.mxu0
  %v1594 = vadd.f32 0.0, %v1593
  %1595 = vmatmul.bf16.gmra.mxu0 %v1096
  %v1596 = vpop.f32.mrf.mxu0
  %v1597 = vadd.f32 0.0, %v1596
  %v1598 = vpop.f32.mrf.mxu0
  %v1599 = vadd.f32 0.0, %v1598
  %1600 = vmatmul.bf16.gmra.mxu0 %v1099
  %v1601 = vpop.f32.mrf.mxu0
  %v1602 = vadd.f32 0.0, %v1601
  %v1603 = vpop.f32.mrf.mxu0
  %v1604 = vadd.f32 0.0, %v1603
  %1605 = vmatmul.bf16.gmra.mxu0 %v1102
  %v1606 = vpop.f32.mrf.mxu0
  %v1607 = vadd.f32 0.0, %v1606
  %v1608 = vpop.f32.mrf.mxu0
  %v1609 = vadd.f32 0.0, %v1608
  %1610 = vmatmul.bf16.gmra.mxu0 %v1105
  %v1611 = vpop.f32.mrf.mxu0
  %v1612 = vadd.f32 0.0, %v1611
  %v1613 = vpop.f32.mrf.mxu0
  %v1614 = vadd.f32 0.0, %v1613
  %1615 = vmatmul.bf16.gmra.mxu0 %v1108
  %v1616 = vpop.f32.mrf.mxu0
  %v1617 = vadd.f32 0.0, %v1616
  %v1618 = vpop.f32.mrf.mxu0
  %v1619 = vadd.f32 0.0, %v1618
  %1620 = vmatmul.bf16.gmra.mxu0 %v1111
  %v1621 = vpop.f32.mrf.mxu0
  %v1622 = vadd.f32 0.0, %v1621
  %v1623 = vpop.f32.mrf.mxu0
  %v1624 = vadd.f32 0.0, %v1623
  %1625 = vmatmul.bf16.gmra.mxu0 %v1114
  %v1626 = vpop.f32.mrf.mxu0
  %v1627 = vadd.f32 0.0, %v1626
  %v1628 = vpop.f32.mrf.mxu0
  %v1629 = vadd.f32 0.0, %v1628
  %1630 = vmatmul.bf16.gmra.mxu0 %v1117
  %v1631 = vpop.f32.mrf.mxu0
  %v1632 = vadd.f32 0.0, %v1631
  %v1633 = vpop.f32.mrf.mxu0
  %v1634 = vadd.f32 0.0, %v1633
  %1635 = vmatmul.bf16.gmra.mxu0 %v1120
  %v1636 = vpop.f32.mrf.mxu0
  %v1637 = vadd.f32 0.0, %v1636
  %v1638 = vpop.f32.mrf.mxu0
  %v1639 = vadd.f32 0.0, %v1638
  %1640 = vmatmul.bf16.gmra.mxu0 %v1123
  %v1641 = vpop.f32.mrf.mxu0
  %v1642 = vadd.f32 0.0, %v1641
  %v1643 = vpop.f32.mrf.mxu0
  %v1644 = vadd.f32 0.0, %v1643
  %1645 = vmatmul.bf16.gmra.mxu0 %v1126
  %v1646 = vpop.f32.mrf.mxu0
  %v1647 = vadd.f32 0.0, %v1646
  %v1648 = vpop.f32.mrf.mxu0
  %v1649 = vadd.f32 0.0, %v1648
  %1650 = vmatmul.bf16.gmra.mxu0 %v1129
  %v1651 = vpop.f32.mrf.mxu0
  %v1652 = vadd.f32 0.0, %v1651
  %v1653 = vpop.f32.mrf.mxu0
  %v1654 = vadd.f32 0.0, %v1653
  %1655 = vmatmul.bf16.gmra.mxu0 %v1132
  %v1656 = vpop.f32.mrf.mxu0
  %v1657 = vadd.f32 0.0, %v1656
  %v1658 = vpop.f32.mrf.mxu0
  %v1659 = vadd.f32 0.0, %v1658
  %1660 = vmatmul.bf16.gmra.mxu0 %v1135
  %v1661 = vpop.f32.mrf.mxu0
  %v1662 = vadd.f32 0.0, %v1661
  %v1663 = vpop.f32.mrf.mxu0
  %v1664 = vadd.f32 0.0, %v1663
  %1665 = vmatmul.bf16.gmra.mxu0 %v1138
  %v1666 = vpop.f32.mrf.mxu0
  %v1667 = vadd.f32 0.0, %v1666
  %v1668 = vpop.f32.mrf.mxu0
  %v1669 = vadd.f32 0.0, %v1668
  %1670 = vmatmul.bf16.gmra.mxu0 %v1141
  %v1671 = vpop.f32.mrf.mxu0
  %v1672 = vadd.f32 0.0, %v1671
  %v1673 = vpop.f32.mrf.mxu0
  %v1674 = vadd.f32 0.0, %v1673
  %1675 = vmatmul.bf16.gmra.mxu0 %v1144
  %v1676 = vpop.f32.mrf.mxu0
  %v1677 = vadd.f32 0.0, %v1676
  %v1678 = vpop.f32.mrf.mxu0
  %v1679 = vadd.f32 0.0, %v1678
  %1680 = vmatmul.bf16.gmra.mxu0 %v1147
  %v1681 = vpop.f32.mrf.mxu0
  %v1682 = vadd.f32 0.0, %v1681
  %v1683 = vpop.f32.mrf.mxu0
  %v1684 = vadd.f32 0.0, %v1683
  %1685 = vmatmul.bf16.gmra.mxu0 %v1150
  %v1686 = vpop.f32.mrf.mxu0
  %v1687 = vadd.f32 0.0, %v1686
  %v1688 = vpop.f32.mrf.mxu0
  %v1689 = vadd.f32 0.0, %v1688
  %1690 = vmatmul.bf16.gmra.mxu0 %v1153
  %v1691 = vpop.f32.mrf.mxu0
  %v1692 = vadd.f32 0.0, %v1691
  %v1693 = vpop.f32.mrf.mxu0
  %v1694 = vadd.f32 0.0, %v1693
  %1695 = vmatmul.bf16.gmra.mxu0 %v1156
  %v1696 = vpop.f32.mrf.mxu0
  %v1697 = vadd.f32 0.0, %v1696
  %v1698 = vpop.f32.mrf.mxu0
  %v1699 = vadd.f32 0.0, %v1698
  %1700 = vmatmul.bf16.gmra.mxu0 %v1159
  %v1701 = vpop.f32.mrf.mxu0
  %v1702 = vadd.f32 0.0, %v1701
  %v1703 = vpop.f32.mrf.mxu0
  %v1704 = vadd.f32 0.0, %v1703
  %1705 = vmatmul.bf16.gmra.mxu0 %v1162
  %v1706 = vpop.f32.mrf.mxu0
  %v1707 = vadd.f32 0.0, %v1706
  %v1708 = vpop.f32.mrf.mxu0
  %v1709 = vadd.f32 0.0, %v1708
  %1710 = vmatmul.bf16.gmra.mxu0 %v1165
  %v1711 = vpop.f32.mrf.mxu0
  %v1712 = vadd.f32 0.0, %v1711
  %v1713 = vpop.f32.mrf.mxu0
  %v1714 = vadd.f32 0.0, %v1713
  %1715 = vmatmul.bf16.gmra.mxu0 %v1168
  %v1716 = vpop.f32.mrf.mxu0
  %v1717 = vadd.f32 0.0, %v1716
  %v1718 = vpop.f32.mrf.mxu0
  %v1719 = vadd.f32 0.0, %v1718
  %1720 = vmatmul.bf16.gmra.mxu0 %v1171
  %v1721 = vpop.f32.mrf.mxu0
  %v1722 = vadd.f32 0.0, %v1721
  %v1723 = vpop.f32.mrf.mxu0
  %v1724 = vadd.f32 0.0, %v1723
  %1725 = vmatmul.bf16.gmra.mxu0 %v1174
  %v1726 = vpop.f32.mrf.mxu0
  %v1727 = vadd.f32 0.0, %v1726
  %v1728 = vpop.f32.mrf.mxu0
  %v1729 = vadd.f32 0.0, %v1728
  %1730 = vmatmul.bf16.gmra.mxu0 %v1177
  %v1731 = vpop.f32.mrf.mxu0
  %v1732 = vadd.f32 0.0, %v1731
  %v1733 = vpop.f32.mrf.mxu0
  %v1734 = vadd.f32 0.0, %v1733
  %1735 = vmatmul.bf16.gmra.mxu0 %v1180
  %v1736 = vpop.f32.mrf.mxu0
  %v1737 = vadd.f32 0.0, %v1736
  %v1738 = vpop.f32.mrf.mxu0
  %v1739 = vadd.f32 0.0, %v1738
  %1740 = vmatmul.bf16.gmra.mxu0 %v1183
  %v1741 = vpop.f32.mrf.mxu0
  %v1742 = vadd.f32 0.0, %v1741
  %v1743 = vpop.f32.mrf.mxu0
  %v1744 = vadd.f32 0.0, %v1743
  %1745 = vmatmul.bf16.gmra.mxu0 %v1186
  %v1746 = vpop.f32.mrf.mxu0
  %v1747 = vadd.f32 0.0, %v1746
  %v1748 = vpop.f32.mrf.mxu0
  %v1749 = vadd.f32 0.0, %v1748
  %1750 = vmatmul.bf16.gmra.mxu0 %v1189
  %v1751 = vpop.f32.mrf.mxu0
  %v1752 = vadd.f32 0.0, %v1751
  %v1753 = vpop.f32.mrf.mxu0
  %v1754 = vadd.f32 0.0, %v1753
  %1755 = vmatmul.bf16.gmra.mxu0 %v1192
  %v1756 = vpop.f32.mrf.mxu0
  %v1757 = vadd.f32 0.0, %v1756
  %v1758 = vpop.f32.mrf.mxu0
  %v1759 = vadd.f32 0.0, %v1758
  %1760 = vmatmul.bf16.gmra.mxu0 %v1195
  %v1761 = vpop.f32.mrf.mxu0
  %v1762 = vadd.f32 0.0, %v1761
  %v1763 = vpop.f32.mrf.mxu0
  %v1764 = vadd.f32 0.0, %v1763
  %1765 = vmatmul.bf16.gmra.mxu0 %v1198
  %v1766 = vpop.f32.mrf.mxu0
  %v1767 = vadd.f32 0.0, %v1766
  %v1768 = vpop.f32.mrf.mxu0
  %v1769 = vadd.f32 0.0, %v1768
  %1770 = vmatmul.bf16.gmra.mxu0 %v1201
  %v1771 = vpop.f32.mrf.mxu0
  %v1772 = vadd.f32 0.0, %v1771
  %v1773 = vpop.f32.mrf.mxu0
  %v1774 = vadd.f32 0.0, %v1773
  %1775 = vmatmul.bf16.gmra.mxu0 %v1204
  %v1776 = vpop.f32.mrf.mxu0
  %v1777 = vadd.f32 0.0, %v1776
  %v1778 = vpop.f32.mrf.mxu0
  %v1779 = vadd.f32 0.0, %v1778
  %1780 = vmatmul.bf16.gmra.mxu0 %v1207
  %v1781 = vpop.f32.mrf.mxu0
  %v1782 = vadd.f32 0.0, %v1781
  %v1783 = vpop.f32.mrf.mxu0
  %v1784 = vadd.f32 0.0, %v1783
  %1785 = vmatmul.bf16.gmra.mxu0 %v1210
  %v1786 = vpop.f32.mrf.mxu0
  %v1787 = vadd.f32 0.0, %v1786
  %v1788 = vpop.f32.mrf.mxu0
  %v1789 = vadd.f32 0.0, %v1788
  %1790 = vmatmul.bf16.gmra.mxu0 %v1213
  %v1791 = vpop.f32.mrf.mxu0
  %v1792 = vadd.f32 0.0, %v1791
  %v1793 = vpop.f32.mrf.mxu0
  %v1794 = vadd.f32 0.0, %v1793
  %1795 = vmatmul.bf16.gmra.mxu0 %v1216
  %v1796 = vpop.f32.mrf.mxu0
  %v1797 = vadd.f32 0.0, %v1796
  %v1798 = vpop.f32.mrf.mxu0
  %v1799 = vadd.f32 0.0, %v1798
  %1800 = vmatmul.bf16.gmra.mxu0 %v1219
  %v1801 = vpop.f32.mrf.mxu0
  %v1802 = vadd.f32 0.0, %v1801
  %v1803 = vpop.f32.mrf.mxu0
  %v1804 = vadd.f32 0.0, %v1803
  %1805 = vmatmul.bf16.gmra.mxu0 %v1222
  %v1806 = vpop.f32.mrf.mxu0
  %v1807 = vadd.f32 0.0, %v1806
  %v1808 = vpop.f32.mrf.mxu0
  %v1809 = vadd.f32 0.0, %v1808
  %1810 = vmatmul.bf16.gmra.mxu0 %v1225
  %v1811 = vpop.f32.mrf.mxu0
  %v1812 = vadd.f32 0.0, %v1811
  %v1813 = vpop.f32.mrf.mxu0
  %v1814 = vadd.f32 0.0, %v1813
  %1815 = vmatmul.bf16.gmra.mxu0 %v1228
  %v1816 = vpop.f32.mrf.mxu0
  %v1817 = vadd.f32 0.0, %v1816
  %v1818 = vpop.f32.mrf.mxu0
  %v1819 = vadd.f32 0.0, %v1818
  %1820 = vmatmul.bf16.gmra.mxu0 %v1231
  %v1821 = vpop.f32.mrf.mxu0
  %v1822 = vadd.f32 0.0, %v1821
  %v1823 = vpop.f32.mrf.mxu0
  %v1824 = vadd.f32 0.0, %v1823
  %1825 = vmatmul.bf16.gmra.mxu0 %v1234
  %v1826 = vpop.f32.mrf.mxu0
  %v1827 = vadd.f32 0.0, %v1826
  %v1828 = vpop.f32.mrf.mxu0
  %v1829 = vadd.f32 0.0, %v1828
  %1830 = vmatmul.bf16.gmra.mxu0 %v1237
  %v1831 = vpop.f32.mrf.mxu0
  %v1832 = vadd.f32 0.0, %v1831
  %v1833 = vpop.f32.mrf.mxu0
  %v1834 = vadd.f32 0.0, %v1833
  %1835 = vmatmul.bf16.gmra.mxu0 %v1240
  %v1836 = vpop.f32.mrf.mxu0
  %v1837 = vadd.f32 0.0, %v1836
  %v1838 = vpop.f32.mrf.mxu0
  %v1839 = vadd.f32 0.0, %v1838
  %1840 = vmatmul.bf16.gmra.mxu0 %v1243
  %v1841 = vpop.f32.mrf.mxu0
  %v1842 = vadd.f32 0.0, %v1841
  %v1843 = vpop.f32.mrf.mxu0
  %v1844 = vadd.f32 0.0, %v1843
  %1845 = vmatmul.bf16.gmra.mxu0 %v1246
  %v1846 = vpop.f32.mrf.mxu0
  %v1847 = vadd.f32 0.0, %v1846
  %v1848 = vpop.f32.mrf.mxu0
  %v1849 = vadd.f32 0.0, %v1848
  %1850 = vmatmul.bf16.gmra.mxu0 %v1249
  %v1851 = vpop.f32.mrf.mxu0
  %v1852 = vadd.f32 0.0, %v1851
  %v1853 = vpop.f32.mrf.mxu0
  %v1854 = vadd.f32 0.0, %v1853
  %1855 = vmatmul.bf16.gmra.mxu0 %v1252
  %v1856 = vpop.f32.mrf.mxu0
  %v1857 = vadd.f32 0.0, %v1856
  %v1858 = vpop.f32.mrf.mxu0
  %v1859 = vadd.f32 0.0, %v1858
  %1860 = vmatmul.bf16.gmra.mxu0 %v1255
  %v1861 = vpop.f32.mrf.mxu0
  %v1862 = vadd.f32 0.0, %v1861
  %v1863 = vpop.f32.mrf.mxu0
  %v1864 = vadd.f32 0.0, %v1863
  %1865 = vmatmul.bf16.gmra.mxu0 %v1258
  %v1866 = vpop.f32.mrf.mxu0
  %v1867 = vadd.f32 0.0, %v1866
  %v1868 = vpop.f32.mrf.mxu0
  %v1869 = vadd.f32 0.0, %v1868
  %1870 = vmatmul.bf16.gmra.mxu0 %v1261
  %v1871 = vpop.f32.mrf.mxu0
  %v1872 = vadd.f32 0.0, %v1871
  %v1873 = vpop.f32.mrf.mxu0
  %v1874 = vadd.f32 0.0, %v1873
  %1875 = vmatmul.bf16.gmra.mxu0 %v1264
  %v1876 = vpop.f32.mrf.mxu0
  %v1877 = vadd.f32 0.0, %v1876
  %v1878 = vpop.f32.mrf.mxu0
  %v1879 = vadd.f32 0.0, %v1878
  %1880 = vmatmul.bf16.gmra.mxu0 %v1267
  %v1881 = vpop.f32.mrf.mxu0
  %v1882 = vadd.f32 0.0, %v1881
  %v1883 = vpop.f32.mrf.mxu0
  %v1884 = vadd.f32 0.0, %v1883
  %1885 = vmatmul.bf16.gmra.mxu0 %v1270
  %v1886 = vpop.f32.mrf.mxu0
  %v1887 = vadd.f32 0.0, %v1886
  %v1888 = vpop.f32.mrf.mxu0
  %v1889 = vadd.f32 0.0, %v1888
  %1890 = vmatmul.bf16.gmra.mxu0 %v1273
  %v1891 = vpop.f32.mrf.mxu0
  %v1892 = vadd.f32 0.0, %v1891
  %v1893 = vpop.f32.mrf.mxu0
  %v1894 = vadd.f32 0.0, %v1893
  %1895 = vmatmul.bf16.gmra.mxu0 %v1276
  %v1896 = vpop.f32.mrf.mxu0
  %v1897 = vadd.f32 0.0, %v1896
  %v1898 = vpop.f32.mrf.mxu0
  %v1899 = vadd.f32 0.0, %v1898
  %1900 = vmatmul.bf16.gmra.mxu0 %v1279
  %v1901 = vpop.f32.mrf.mxu0
  %v1902 = vadd.f32 0.0, %v1901
  %v1903 = vpop.f32.mrf.mxu0
  %v1904 = vadd.f32 0.0, %v1903
  %1905 = vmatmul.bf16.gmra.mxu0 %v1282
  %v1906 = vpop.f32.mrf.mxu0
  %v1907 = vadd.f32 0.0, %v1906
  %v1908 = vpop.f32.mrf.mxu0
  %v1909 = vadd.f32 0.0, %v1908
  %1910 = vmatmul.bf16.gmra.mxu0 %v1285
  %v1911 = vpop.f32.mrf.mxu0
  %v1912 = vadd.f32 0.0, %v1911
  %v1913 = vpop.f32.mrf.mxu0
  %v1914 = vadd.f32 0.0, %v1913
  %1915 = vmatmul.bf16.gmra.mxu0 %v1288
  %v1916 = vpop.f32.mrf.mxu0
  %v1917 = vadd.f32 0.0, %v1916
  %v1918 = vpop.f32.mrf.mxu0
  %v1919 = vadd.f32 0.0, %v1918
  %1920 = vmatmul.bf16.gmra.mxu0 %v1291
  %v1921 = vpop.f32.mrf.mxu0
  %v1922 = vadd.f32 0.0, %v1921
  %v1923 = vpop.f32.mrf.mxu0
  %v1924 = vadd.f32 0.0, %v1923
  %1925 = vmatmul.bf16.gmra.mxu0 %v1294
  %v1926 = vpop.f32.mrf.mxu0
  %v1927 = vadd.f32 0.0, %v1926
  %v1928 = vpop.f32.mrf.mxu0
  %v1929 = vadd.f32 0.0, %v1928
  %1930 = vmatmul.bf16.gmra.mxu0 %v1297
  %v1931 = vpop.f32.mrf.mxu0
  %v1932 = vadd.f32 0.0, %v1931
  %v1933 = vpop.f32.mrf.mxu0
  %v1934 = vadd.f32 0.0, %v1933
  %1935 = vmatmul.bf16.gmra.mxu0 %v1300
  %v1936 = vpop.f32.mrf.mxu0
  %v1937 = vadd.f32 0.0, %v1936
  %v1938 = vpop.f32.mrf.mxu0
  %v1939 = vadd.f32 0.0, %v1938
  %1940 = vmatmul.bf16.gmra.mxu0 %v1303
  %v1941 = vpop.f32.mrf.mxu0
  %v1942 = vadd.f32 0.0, %v1941
  %v1943 = vpop.f32.mrf.mxu0
  %v1944 = vadd.f32 0.0, %v1943
  %1945 = vmatmul.bf16.gmra.mxu0 %v1306
  %v1946 = vpop.f32.mrf.mxu0
  %v1947 = vadd.f32 0.0, %v1946
  %v1948 = vpop.f32.mrf.mxu0
  %v1949 = vadd.f32 0.0, %v1948
  %1950 = vmatmul.bf16.gmra.mxu0 %v1309
  %v1951 = vpop.f32.mrf.mxu0
  %v1952 = vadd.f32 0.0, %v1951
  %v1953 = vpop.f32.mrf.mxu0
  %v1954 = vadd.f32 0.0, %v1953
  %1955 = vmatmul.bf16.gmra.mxu0 %v1312
  %v1956 = vpop.f32.mrf.mxu0
  %v1957 = vadd.f32 0.0, %v1956
  %v1958 = vpop.f32.mrf.mxu0
  %v1959 = vadd.f32 0.0, %v1958
  %1960 = vmatmul.bf16.gmra.mxu0 %v1315
  %v1961 = vpop.f32.mrf.mxu0
  %v1962 = vadd.f32 0.0, %v1961
  %v1963 = vpop.f32.mrf.mxu0
  %v1964 = vadd.f32 0.0, %v1963
  %1965 = vdwg.mxu0
  %vm1966 = vcmp.gt.f32.partialorder %v1327, 0.0
  %vm1967 = vcmp.gt.f32.partialorder %v1329, 0.0
  %vm1968 = vcmp.gt.f32.partialorder %v1332, 0.0
  %vm1969 = vcmp.gt.f32.partialorder %v1334, 0.0
  %vm1970 = vcmp.gt.f32.partialorder %v1337, 0.0
  %vm1971 = vcmp.gt.f32.partialorder %v1339, 0.0
  %vm1972 = vcmp.gt.f32.partialorder %v1342, 0.0
  %vm1973 = vcmp.gt.f32.partialorder %v1344, 0.0
  %vm1974 = vcmp.gt.f32.partialorder %v1347, 0.0
  %vm1975 = vcmp.gt.f32.partialorder %v1349, 0.0
  %vm1976 = vcmp.gt.f32.partialorder %v1352, 0.0
  %vm1977 = vcmp.gt.f32.partialorder %v1354, 0.0
  %vm1978 = vcmp.gt.f32.partialorder %v1357, 0.0
  %vm1979 = vcmp.gt.f32.partialorder %v1359, 0.0
  %vm1980 = vcmp.gt.f32.partialorder %v1362, 0.0
  %vm1981 = vcmp.gt.f32.partialorder %v1364, 0.0
  %vm1982 = vcmp.gt.f32.partialorder %v1367, 0.0
  %vm1983 = vcmp.gt.f32.partialorder %v1369, 0.0
  %vm1984 = vcmp.gt.f32.partialorder %v1372, 0.0
  %vm1985 = vcmp.gt.f32.partialorder %v1374, 0.0
  %vm1986 = vcmp.gt.f32.partialorder %v1377, 0.0
  %vm1987 = vcmp.gt.f32.partialorder %v1379, 0.0
  %vm1988 = vcmp.gt.f32.partialorder %v1382, 0.0
  %vm1989 = vcmp.gt.f32.partialorder %v1384, 0.0
  %vm1990 = vcmp.gt.f32.partialorder %v1387, 0.0
  %vm1991 = vcmp.gt.f32.partialorder %v1389, 0.0
  %vm1992 = vcmp.gt.f32.partialorder %v1392, 0.0
  %vm1993 = vcmp.gt.f32.partialorder %v1394, 0.0
  %vm1994 = vcmp.gt.f32.partialorder %v1397, 0.0
  %vm1995 = vcmp.gt.f32.partialorder %v1399, 0.0
  %vm1996 = vcmp.gt.f32.partialorder %v1402, 0.0
  %vm1997 = vcmp.gt.f32.partialorder %v1404, 0.0
  %vm1998 = vcmp.gt.f32.partialorder %v1407, 0.0
  %vm1999 = vcmp.gt.f32.partialorder %v1409, 0.0
  %vm2000 = vcmp.gt.f32.partialorder %v1412, 0.0
  %vm2001 = vcmp.gt.f32.partialorder %v1414, 0.0
  %vm2002 = vcmp.gt.f32.partialorder %v1417, 0.0
  %vm2003 = vcmp.gt.f32.partialorder %v1419, 0.0
  %vm2004 = vcmp.gt.f32.partialorder %v1422, 0.0
  %vm2005 = vcmp.gt.f32.partialorder %v1424, 0.0
  %vm2006 = vcmp.gt.f32.partialorder %v1427, 0.0
  %vm2007 = vcmp.gt.f32.partialorder %v1429, 0.0
  %vm2008 = vcmp.gt.f32.partialorder %v1432, 0.0
  %vm2009 = vcmp.gt.f32.partialorder %v1434, 0.0
  %vm2010 = vcmp.gt.f32.partialorder %v1437, 0.0
  %vm2011 = vcmp.gt.f32.partialorder %v1439, 0.0
  %vm2012 = vcmp.gt.f32.partialorder %v1442, 0.0
  %vm2013 = vcmp.gt.f32.partialorder %v1444, 0.0
  %vm2014 = vcmp.gt.f32.partialorder %v1447, 0.0
  %vm2015 = vcmp.gt.f32.partialorder %v1449, 0.0
  %vm2016 = vcmp.gt.f32.partialorder %v1452, 0.0
  %vm2017 = vcmp.gt.f32.partialorder %v1454, 0.0
  %vm2018 = vcmp.gt.f32.partialorder %v1457, 0.0
  %vm2019 = vcmp.gt.f32.partialorder %v1459, 0.0
  %vm2020 = vcmp.gt.f32.partialorder %v1462, 0.0
  %vm2021 = vcmp.gt.f32.partialorder %v1464, 0.0
  %vm2022 = vcmp.gt.f32.partialorder %v1467, 0.0
  %vm2023 = vcmp.gt.f32.partialorder %v1469, 0.0
  %vm2024 = vcmp.gt.f32.partialorder %v1472, 0.0
  %vm2025 = vcmp.gt.f32.partialorder %v1474, 0.0
  %vm2026 = vcmp.gt.f32.partialorder %v1477, 0.0
  %vm2027 = vcmp.gt.f32.partialorder %v1479, 0.0
  %vm2028 = vcmp.gt.f32.partialorder %v1482, 0.0
  %vm2029 = vcmp.gt.f32.partialorder %v1484, 0.0
  %vm2030 = vcmp.gt.f32.partialorder %v1487, 0.0
  %vm2031 = vcmp.gt.f32.partialorder %v1489, 0.0
  %vm2032 = vcmp.gt.f32.partialorder %v1492, 0.0
  %vm2033 = vcmp.gt.f32.partialorder %v1494, 0.0
  %vm2034 = vcmp.gt.f32.partialorder %v1497, 0.0
  %vm2035 = vcmp.gt.f32.partialorder %v1499, 0.0
  %vm2036 = vcmp.gt.f32.partialorder %v1502, 0.0
  %vm2037 = vcmp.gt.f32.partialorder %v1504, 0.0
  %vm2038 = vcmp.gt.f32.partialorder %v1507, 0.0
  %vm2039 = vcmp.gt.f32.partialorder %v1509, 0.0
  %vm2040 = vcmp.gt.f32.partialorder %v1512, 0.0
  %vm2041 = vcmp.gt.f32.partialorder %v1514, 0.0
  %vm2042 = vcmp.gt.f32.partialorder %v1517, 0.0
  %vm2043 = vcmp.gt.f32.partialorder %v1519, 0.0
  %vm2044 = vcmp.gt.f32.partialorder %v1522, 0.0
  %vm2045 = vcmp.gt.f32.partialorder %v1524, 0.0
  %vm2046 = vcmp.gt.f32.partialorder %v1527, 0.0
  %vm2047 = vcmp.gt.f32.partialorder %v1529, 0.0
  %vm2048 = vcmp.gt.f32.partialorder %v1532, 0.0
  %vm2049 = vcmp.gt.f32.partialorder %v1534, 0.0
  %vm2050 = vcmp.gt.f32.partialorder %v1537, 0.0
  %vm2051 = vcmp.gt.f32.partialorder %v1539, 0.0
  %vm2052 = vcmp.gt.f32.partialorder %v1542, 0.0
  %vm2053 = vcmp.gt.f32.partialorder %v1544, 0.0
  %vm2054 = vcmp.gt.f32.partialorder %v1547, 0.0
  %vm2055 = vcmp.gt.f32.partialorder %v1549, 0.0
  %vm2056 = vcmp.gt.f32.partialorder %v1552, 0.0
  %vm2057 = vcmp.gt.f32.partialorder %v1554, 0.0
  %vm2058 = vcmp.gt.f32.partialorder %v1557, 0.0
  %vm2059 = vcmp.gt.f32.partialorder %v1559, 0.0
  %vm2060 = vcmp.gt.f32.partialorder %v1562, 0.0
  %vm2061 = vcmp.gt.f32.partialorder %v1564, 0.0
  %vm2062 = vcmp.gt.f32.partialorder %v1567, 0.0
  %vm2063 = vcmp.gt.f32.partialorder %v1569, 0.0
  %vm2064 = vcmp.gt.f32.partialorder %v1572, 0.0
  %vm2065 = vcmp.gt.f32.partialorder %v1574, 0.0
  %vm2066 = vcmp.gt.f32.partialorder %v1577, 0.0
  %vm2067 = vcmp.gt.f32.partialorder %v1579, 0.0
  %vm2068 = vcmp.gt.f32.partialorder %v1582, 0.0
  %vm2069 = vcmp.gt.f32.partialorder %v1584, 0.0
  %vm2070 = vcmp.gt.f32.partialorder %v1587, 0.0
  %vm2071 = vcmp.gt.f32.partialorder %v1589, 0.0
  %vm2072 = vcmp.gt.f32.partialorder %v1592, 0.0
  %vm2073 = vcmp.gt.f32.partialorder %v1594, 0.0
  %vm2074 = vcmp.gt.f32.partialorder %v1597, 0.0
  %vm2075 = vcmp.gt.f32.partialorder %v1599, 0.0
  %vm2076 = vcmp.gt.f32.partialorder %v1602, 0.0
  %vm2077 = vcmp.gt.f32.partialorder %v1604, 0.0
  %vm2078 = vcmp.gt.f32.partialorder %v1607, 0.0
  %vm2079 = vcmp.gt.f32.partialorder %v1609, 0.0
  %vm2080 = vcmp.gt.f32.partialorder %v1612, 0.0
  %vm2081 = vcmp.gt.f32.partialorder %v1614, 0.0
  %vm2082 = vcmp.gt.f32.partialorder %v1617, 0.0
  %vm2083 = vcmp.gt.f32.partialorder %v1619, 0.0
  %vm2084 = vcmp.gt.f32.partialorder %v1622, 0.0
  %vm2085 = vcmp.gt.f32.partialorder %v1624, 0.0
  %vm2086 = vcmp.gt.f32.partialorder %v1627, 0.0
  %vm2087 = vcmp.gt.f32.partialorder %v1629, 0.0
  %vm2088 = vcmp.gt.f32.partialorder %v1632, 0.0
  %vm2089 = vcmp.gt.f32.partialorder %v1634, 0.0
  %vm2090 = vcmp.gt.f32.partialorder %v1637, 0.0
  %vm2091 = vcmp.gt.f32.partialorder %v1639, 0.0
  %vm2092 = vcmp.gt.f32.partialorder %v1642, 0.0
  %vm2093 = vcmp.gt.f32.partialorder %v1644, 0.0
  %vm2094 = vcmp.gt.f32.partialorder %v1647, 0.0
  %vm2095 = vcmp.gt.f32.partialorder %v1649, 0.0
  %vm2096 = vcmp.gt.f32.partialorder %v1652, 0.0
  %vm2097 = vcmp.gt.f32.partialorder %v1654, 0.0
  %vm2098 = vcmp.gt.f32.partialorder %v1657, 0.0
  %vm2099 = vcmp.gt.f32.partialorder %v1659, 0.0
  %vm2100 = vcmp.gt.f32.partialorder %v1662, 0.0
  %vm2101 = vcmp.gt.f32.partialorder %v1664, 0.0
  %vm2102 = vcmp.gt.f32.partialorder %v1667, 0.0
  %vm2103 = vcmp.gt.f32.partialorder %v1669, 0.0
  %vm2104 = vcmp.gt.f32.partialorder %v1672, 0.0
  %vm2105 = vcmp.gt.f32.partialorder %v1674, 0.0
  %vm2106 = vcmp.gt.f32.partialorder %v1677, 0.0
  %vm2107 = vcmp.gt.f32.partialorder %v1679, 0.0
  %vm2108 = vcmp.gt.f32.partialorder %v1682, 0.0
  %vm2109 = vcmp.gt.f32.partialorder %v1684, 0.0
  %vm2110 = vcmp.gt.f32.partialorder %v1687, 0.0
  %vm2111 = vcmp.gt.f32.partialorder %v1689, 0.0
  %vm2112 = vcmp.gt.f32.partialorder %v1692, 0.0
  %vm2113 = vcmp.gt.f32.partialorder %v1694, 0.0
  %vm2114 = vcmp.gt.f32.partialorder %v1697, 0.0
  %vm2115 = vcmp.gt.f32.partialorder %v1699, 0.0
  %vm2116 = vcmp.gt.f32.partialorder %v1702, 0.0
  %vm2117 = vcmp.gt.f32.partialorder %v1704, 0.0
  %vm2118 = vcmp.gt.f32.partialorder %v1707, 0.0
  %vm2119 = vcmp.gt.f32.partialorder %v1709, 0.0
  %vm2120 = vcmp.gt.f32.partialorder %v1712, 0.0
  %vm2121 = vcmp.gt.f32.partialorder %v1714, 0.0
  %vm2122 = vcmp.gt.f32.partialorder %v1717, 0.0
  %vm2123 = vcmp.gt.f32.partialorder %v1719, 0.0
  %vm2124 = vcmp.gt.f32.partialorder %v1722, 0.0
  %vm2125 = vcmp.gt.f32.partialorder %v1724, 0.0
  %vm2126 = vcmp.gt.f32.partialorder %v1727, 0.0
  %vm2127 = vcmp.gt.f32.partialorder %v1729, 0.0
  %vm2128 = vcmp.gt.f32.partialorder %v1732, 0.0
  %vm2129 = vcmp.gt.f32.partialorder %v1734, 0.0
  %vm2130 = vcmp.gt.f32.partialorder %v1737, 0.0
  %vm2131 = vcmp.gt.f32.partialorder %v1739, 0.0
  %vm2132 = vcmp.gt.f32.partialorder %v1742, 0.0
  %vm2133 = vcmp.gt.f32.partialorder %v1744, 0.0
  %vm2134 = vcmp.gt.f32.partialorder %v1747, 0.0
  %vm2135 = vcmp.gt.f32.partialorder %v1749, 0.0
  %vm2136 = vcmp.gt.f32.partialorder %v1752, 0.0
  %vm2137 = vcmp.gt.f32.partialorder %v1754, 0.0
  %vm2138 = vcmp.gt.f32.partialorder %v1757, 0.0
  %vm2139 = vcmp.gt.f32.partialorder %v1759, 0.0
  %vm2140 = vcmp.gt.f32.partialorder %v1762, 0.0
  %vm2141 = vcmp.gt.f32.partialorder %v1764, 0.0
  %vm2142 = vcmp.gt.f32.partialorder %v1767, 0.0
  %vm2143 = vcmp.gt.f32.partialorder %v1769, 0.0
  %vm2144 = vcmp.gt.f32.partialorder %v1772, 0.0
  %vm2145 = vcmp.gt.f32.partialorder %v1774, 0.0
  %vm2146 = vcmp.gt.f32.partialorder %v1777, 0.0
  %vm2147 = vcmp.gt.f32.partialorder %v1779, 0.0
  %vm2148 = vcmp.gt.f32.partialorder %v1782, 0.0
  %vm2149 = vcmp.gt.f32.partialorder %v1784, 0.0
  %vm2150 = vcmp.gt.f32.partialorder %v1787, 0.0
  %vm2151 = vcmp.gt.f32.partialorder %v1789, 0.0
  %vm2152 = vcmp.gt.f32.partialorder %v1792, 0.0
  %vm2153 = vcmp.gt.f32.partialorder %v1794, 0.0
  %vm2154 = vcmp.gt.f32.partialorder %v1797, 0.0
  %vm2155 = vcmp.gt.f32.partialorder %v1799, 0.0
  %vm2156 = vcmp.gt.f32.partialorder %v1802, 0.0
  %vm2157 = vcmp.gt.f32.partialorder %v1804, 0.0
  %vm2158 = vcmp.gt.f32.partialorder %v1807, 0.0
  %vm2159 = vcmp.gt.f32.partialorder %v1809, 0.0
  %vm2160 = vcmp.gt.f32.partialorder %v1812, 0.0
  %vm2161 = vcmp.gt.f32.partialorder %v1814, 0.0
  %vm2162 = vcmp.gt.f32.partialorder %v1817, 0.0
  %vm2163 = vcmp.gt.f32.partialorder %v1819, 0.0
  %vm2164 = vcmp.gt.f32.partialorder %v1822, 0.0
  %vm2165 = vcmp.gt.f32.partialorder %v1824, 0.0
  %vm2166 = vcmp.gt.f32.partialorder %v1827, 0.0
  %vm2167 = vcmp.gt.f32.partialorder %v1829, 0.0
  %vm2168 = vcmp.gt.f32.partialorder %v1832, 0.0
  %vm2169 = vcmp.gt.f32.partialorder %v1834, 0.0
  %vm2170 = vcmp.gt.f32.partialorder %v1837, 0.0
  %vm2171 = vcmp.gt.f32.partialorder %v1839, 0.0
  %vm2172 = vcmp.gt.f32.partialorder %v1842, 0.0
  %vm2173 = vcmp.gt.f32.partialorder %v1844, 0.0
  %vm2174 = vcmp.gt.f32.partialorder %v1847, 0.0
  %vm2175 = vcmp.gt.f32.partialorder %v1849, 0.0
  %vm2176 = vcmp.gt.f32.partialorder %v1852, 0.0
  %vm2177 = vcmp.gt.f32.partialorder %v1854, 0.0
  %vm2178 = vcmp.gt.f32.partialorder %v1857, 0.0
  %vm2179 = vcmp.gt.f32.partialorder %v1859, 0.0
  %vm2180 = vcmp.gt.f32.partialorder %v1862, 0.0
  %vm2181 = vcmp.gt.f32.partialorder %v1864, 0.0
  %vm2182 = vcmp.gt.f32.partialorder %v1867, 0.0
  %vm2183 = vcmp.gt.f32.partialorder %v1869, 0.0
  %vm2184 = vcmp.gt.f32.partialorder %v1872, 0.0
  %vm2185 = vcmp.gt.f32.partialorder %v1874, 0.0
  %vm2186 = vcmp.gt.f32.partialorder %v1877, 0.0
  %vm2187 = vcmp.gt.f32.partialorder %v1879, 0.0
  %vm2188 = vcmp.gt.f32.partialorder %v1882, 0.0
  %vm2189 = vcmp.gt.f32.partialorder %v1884, 0.0
  %vm2190 = vcmp.gt.f32.partialorder %v1887, 0.0
  %vm2191 = vcmp.gt.f32.partialorder %v1889, 0.0
  %vm2192 = vcmp.gt.f32.partialorder %v1892, 0.0
  %vm2193 = vcmp.gt.f32.partialorder %v1894, 0.0
  %vm2194 = vcmp.gt.f32.partialorder %v1897, 0.0
  %vm2195 = vcmp.gt.f32.partialorder %v1899, 0.0
  %vm2196 = vcmp.gt.f32.partialorder %v1902, 0.0
  %vm2197 = vcmp.gt.f32.partialorder %v1904, 0.0
  %vm2198 = vcmp.gt.f32.partialorder %v1907, 0.0
  %vm2199 = vcmp.gt.f32.partialorder %v1909, 0.0
  %vm2200 = vcmp.gt.f32.partialorder %v1912, 0.0
  %vm2201 = vcmp.gt.f32.partialorder %v1914, 0.0
  %vm2202 = vcmp.gt.f32.partialorder %v1917, 0.0
  %vm2203 = vcmp.gt.f32.partialorder %v1919, 0.0
  %vm2204 = vcmp.gt.f32.partialorder %v1922, 0.0
  %vm2205 = vcmp.gt.f32.partialorder %v1924, 0.0
  %vm2206 = vcmp.gt.f32.partialorder %v1927, 0.0
  %vm2207 = vcmp.gt.f32.partialorder %v1929, 0.0
  %vm2208 = vcmp.gt.f32.partialorder %v1932, 0.0
  %vm2209 = vcmp.gt.f32.partialorder %v1934, 0.0
  %vm2210 = vcmp.gt.f32.partialorder %v1937, 0.0
  %vm2211 = vcmp.gt.f32.partialorder %v1939, 0.0
  %vm2212 = vcmp.gt.f32.partialorder %v1942, 0.0
  %vm2213 = vcmp.gt.f32.partialorder %v1944, 0.0
  %vm2214 = vcmp.gt.f32.partialorder %v1947, 0.0
  %vm2215 = vcmp.gt.f32.partialorder %v1949, 0.0
  %vm2216 = vcmp.gt.f32.partialorder %v1952, 0.0
  %vm2217 = vcmp.gt.f32.partialorder %v1954, 0.0
  %vm2218 = vcmp.gt.f32.partialorder %v1957, 0.0
  %vm2219 = vcmp.gt.f32.partialorder %v1959, 0.0
  %vm2220 = vcmp.gt.f32.partialorder %v1962, 0.0
  %vm2221 = vcmp.gt.f32.partialorder %v1964, 0.0
  %v2222 = vmul.f32 %v1327, 0.2
  %v2223 = vmul.f32 %v1329, 0.2
  %v2224 = vmul.f32 %v1332, 0.2
  %v2225 = vmul.f32 %v1334, 0.2
  %v2226 = vmul.f32 %v1337, 0.2
  %v2227 = vmul.f32 %v1339, 0.2
  %v2228 = vmul.f32 %v1342, 0.2
  %v2229 = vmul.f32 %v1344, 0.2
  %v2230 = vmul.f32 %v1347, 0.2
  %v2231 = vmul.f32 %v1349, 0.2
  %v2232 = vmul.f32 %v1352, 0.2
  %v2233 = vmul.f32 %v1354, 0.2
  %v2234 = vmul.f32 %v1357, 0.2
  %v2235 = vmul.f32 %v1359, 0.2
  %v2236 = vmul.f32 %v1362, 0.2
  %v2237 = vmul.f32 %v1364, 0.2
  %v2238 = vmul.f32 %v1367, 0.2
  %v2239 = vmul.f32 %v1369, 0.2
  %v2240 = vmul.f32 %v1372, 0.2
  %v2241 = vmul.f32 %v1374, 0.2
  %v2242 = vmul.f32 %v1377, 0.2
  %v2243 = vmul.f32 %v1379, 0.2
  %v2244 = vmul.f32 %v1382, 0.2
  %v2245 = vmul.f32 %v1384, 0.2
  %v2246 = vmul.f32 %v1387, 0.2
  %v2247 = vmul.f32 %v1389, 0.2
  %v2248 = vmul.f32 %v1392, 0.2
  %v2249 = vmul.f32 %v1394, 0.2
  %v2250 = vmul.f32 %v1397, 0.2
  %v2251 = vmul.f32 %v1399, 0.2
  %v2252 = vmul.f32 %v1402, 0.2
  %v2253 = vmul.f32 %v1404, 0.2
  %v2254 = vmul.f32 %v1407, 0.2
  %v2255 = vmul.f32 %v1409, 0.2
  %v2256 = vmul.f32 %v1412, 0.2
  %v2257 = vmul.f32 %v1414, 0.2
  %v2258 = vmul.f32 %v1417, 0.2
  %v2259 = vmul.f32 %v1419, 0.2
  %v2260 = vmul.f32 %v1422, 0.2
  %v2261 = vmul.f32 %v1424, 0.2
  %v2262 = vmul.f32 %v1427, 0.2
  %v2263 = vmul.f32 %v1429, 0.2
  %v2264 = vmul.f32 %v1432, 0.2
  %v2265 = vmul.f32 %v1434, 0.2
  %v2266 = vmul.f32 %v1437, 0.2
  %v2267 = vmul.f32 %v1439, 0.2
  %v2268 = vmul.f32 %v1442, 0.2
  %v2269 = vmul.f32 %v1444, 0.2
  %v2270 = vmul.f32 %v1447, 0.2
  %v2271 = vmul.f32 %v1449, 0.2
  %v2272 = vmul.f32 %v1452, 0.2
  %v2273 = vmul.f32 %v1454, 0.2
  %v2274 = vmul.f32 %v1457, 0.2
  %v2275 = vmul.f32 %v1459, 0.2
  %v2276 = vmul.f32 %v1462, 0.2
  %v2277 = vmul.f32 %v1464, 0.2
  %v2278 = vmul.f32 %v1467, 0.2
  %v2279 = vmul.f32 %v1469, 0.2
  %v2280 = vmul.f32 %v1472, 0.2
  %v2281 = vmul.f32 %v1474, 0.2
  %v2282 = vmul.f32 %v1477, 0.2
  %v2283 = vmul.f32 %v1479, 0.2
  %v2284 = vmul.f32 %v1482, 0.2
  %v2285 = vmul.f32 %v1484, 0.2
  %v2286 = vmul.f32 %v1487, 0.2
  %v2287 = vmul.f32 %v1489, 0.2
  %v2288 = vmul.f32 %v1492, 0.2
  %v2289 = vmul.f32 %v1494, 0.2
  %v2290 = vmul.f32 %v1497, 0.2
  %v2291 = vmul.f32 %v1499, 0.2
  %v2292 = vmul.f32 %v1502, 0.2
  %v2293 = vmul.f32 %v1504, 0.2
  %v2294 = vmul.f32 %v1507, 0.2
  %v2295 = vmul.f32 %v1509, 0.2
  %v2296 = vmul.f32 %v1512, 0.2
  %v2297 = vmul.f32 %v1514, 0.2
  %v2298 = vmul.f32 %v1517, 0.2
  %v2299 = vmul.f32 %v1519, 0.2
  %v2300 = vmul.f32 %v1522, 0.2
  %v2301 = vmul.f32 %v1524, 0.2
  %v2302 = vmul.f32 %v1527, 0.2
  %v2303 = vmul.f32 %v1529, 0.2
  %v2304 = vmul.f32 %v1532, 0.2
  %v2305 = vmul.f32 %v1534, 0.2
  %v2306 = vmul.f32 %v1537, 0.2
  %v2307 = vmul.f32 %v1539, 0.2
  %v2308 = vmul.f32 %v1542, 0.2
  %v2309 = vmul.f32 %v1544, 0.2
  %v2310 = vmul.f32 %v1547, 0.2
  %v2311 = vmul.f32 %v1549, 0.2
  %v2312 = vmul.f32 %v1552, 0.2
  %v2313 = vmul.f32 %v1554, 0.2
  %v2314 = vmul.f32 %v1557, 0.2
  %v2315 = vmul.f32 %v1559, 0.2
  %v2316 = vmul.f32 %v1562, 0.2
  %v2317 = vmul.f32 %v1564, 0.2
  %v2318 = vmul.f32 %v1567, 0.2
  %v2319 = vmul.f32 %v1569, 0.2
  %v2320 = vmul.f32 %v1572, 0.2
  %v2321 = vmul.f32 %v1574, 0.2
  %v2322 = vmul.f32 %v1577, 0.2
  %v2323 = vmul.f32 %v1579, 0.2
  %v2324 = vmul.f32 %v1582, 0.2
  %v2325 = vmul.f32 %v1584, 0.2
  %v2326 = vmul.f32 %v1587, 0.2
  %v2327 = vmul.f32 %v1589, 0.2
  %v2328 = vmul.f32 %v1592, 0.2
  %v2329 = vmul.f32 %v1594, 0.2
  %v2330 = vmul.f32 %v1597, 0.2
  %v2331 = vmul.f32 %v1599, 0.2
  %v2332 = vmul.f32 %v1602, 0.2
  %v2333 = vmul.f32 %v1604, 0.2
  %v2334 = vmul.f32 %v1607, 0.2
  %v2335 = vmul.f32 %v1609, 0.2
  %v2336 = vmul.f32 %v1612, 0.2
  %v2337 = vmul.f32 %v1614, 0.2
  %v2338 = vmul.f32 %v1617, 0.2
  %v2339 = vmul.f32 %v1619, 0.2
  %v2340 = vmul.f32 %v1622, 0.2
  %v2341 = vmul.f32 %v1624, 0.2
  %v2342 = vmul.f32 %v1627, 0.2
  %v2343 = vmul.f32 %v1629, 0.2
  %v2344 = vmul.f32 %v1632, 0.2
  %v2345 = vmul.f32 %v1634, 0.2
  %v2346 = vmul.f32 %v1637, 0.2
  %v2347 = vmul.f32 %v1639, 0.2
  %v2348 = vmul.f32 %v1642, 0.2
  %v2349 = vmul.f32 %v1644, 0.2
  %v2350 = vmul.f32 %v1647, 0.2
  %v2351 = vmul.f32 %v1649, 0.2
  %v2352 = vmul.f32 %v1652, 0.2
  %v2353 = vmul.f32 %v1654, 0.2
  %v2354 = vmul.f32 %v1657, 0.2
  %v2355 = vmul.f32 %v1659, 0.2
  %v2356 = vmul.f32 %v1662, 0.2
  %v2357 = vmul.f32 %v1664, 0.2
  %v2358 = vmul.f32 %v1667, 0.2
  %v2359 = vmul.f32 %v1669, 0.2
  %v2360 = vmul.f32 %v1672, 0.2
  %v2361 = vmul.f32 %v1674, 0.2
  %v2362 = vmul.f32 %v1677, 0.2
  %v2363 = vmul.f32 %v1679, 0.2
  %v2364 = vmul.f32 %v1682, 0.2
  %v2365 = vmul.f32 %v1684, 0.2
  %v2366 = vmul.f32 %v1687, 0.2
  %v2367 = vmul.f32 %v1689, 0.2
  %v2368 = vmul.f32 %v1692, 0.2
  %v2369 = vmul.f32 %v1694, 0.2
  %v2370 = vmul.f32 %v1697, 0.2
  %v2371 = vmul.f32 %v1699, 0.2
  %v2372 = vmul.f32 %v1702, 0.2
  %v2373 = vmul.f32 %v1704, 0.2
  %v2374 = vmul.f32 %v1707, 0.2
  %v2375 = vmul.f32 %v1709, 0.2
  %v2376 = vmul.f32 %v1712, 0.2
  %v2377 = vmul.f32 %v1714, 0.2
  %v2378 = vmul.f32 %v1717, 0.2
  %v2379 = vmul.f32 %v1719, 0.2
  %v2380 = vmul.f32 %v1722, 0.2
  %v2381 = vmul.f32 %v1724, 0.2
  %v2382 = vmul.f32 %v1727, 0.2
  %v2383 = vmul.f32 %v1729, 0.2
  %v2384 = vmul.f32 %v1732, 0.2
  %v2385 = vmul.f32 %v1734, 0.2
  %v2386 = vmul.f32 %v1737, 0.2
  %v2387 = vmul.f32 %v1739, 0.2
  %v2388 = vmul.f32 %v1742, 0.2
  %v2389 = vmul.f32 %v1744, 0.2
  %v2390 = vmul.f32 %v1747, 0.2
  %v2391 = vmul.f32 %v1749, 0.2
  %v2392 = vmul.f32 %v1752, 0.2
  %v2393 = vmul.f32 %v1754, 0.2
  %v2394 = vmul.f32 %v1757, 0.2
  %v2395 = vmul.f32 %v1759, 0.2
  %v2396 = vmul.f32 %v1762, 0.2
  %v2397 = vmul.f32 %v1764, 0.2
  %v2398 = vmul.f32 %v1767, 0.2
  %v2399 = vmul.f32 %v1769, 0.2
  %v2400 = vmul.f32 %v1772, 0.2
  %v2401 = vmul.f32 %v1774, 0.2
  %v2402 = vmul.f32 %v1777, 0.2
  %v2403 = vmul.f32 %v1779, 0.2
  %v2404 = vmul.f32 %v1782, 0.2
  %v2405 = vmul.f32 %v1784, 0.2
  %v2406 = vmul.f32 %v1787, 0.2
  %v2407 = vmul.f32 %v1789, 0.2
  %v2408 = vmul.f32 %v1792, 0.2
  %v2409 = vmul.f32 %v1794, 0.2
  %v2410 = vmul.f32 %v1797, 0.2
  %v2411 = vmul.f32 %v1799, 0.2
  %v2412 = vmul.f32 %v1802, 0.2
  %v2413 = vmul.f32 %v1804, 0.2
  %v2414 = vmul.f32 %v1807, 0.2
  %v2415 = vmul.f32 %v1809, 0.2
  %v2416 = vmul.f32 %v1812, 0.2
  %v2417 = vmul.f32 %v1814, 0.2
  %v2418 = vmul.f32 %v1817, 0.2
  %v2419 = vmul.f32 %v1819, 0.2
  %v2420 = vmul.f32 %v1822, 0.2
  %v2421 = vmul.f32 %v1824, 0.2
  %v2422 = vmul.f32 %v1827, 0.2
  %v2423 = vmul.f32 %v1829, 0.2
  %v2424 = vmul.f32 %v1832, 0.2
  %v2425 = vmul.f32 %v1834, 0.2
  %v2426 = vmul.f32 %v1837, 0.2
  %v2427 = vmul.f32 %v1839, 0.2
  %v2428 = vmul.f32 %v1842, 0.2
  %v2429 = vmul.f32 %v1844, 0.2
  %v2430 = vmul.f32 %v1847, 0.2
  %v2431 = vmul.f32 %v1849, 0.2
  %v2432 = vmul.f32 %v1852, 0.2
  %v2433 = vmul.f32 %v1854, 0.2
  %v2434 = vmul.f32 %v1857, 0.2
  %v2435 = vmul.f32 %v1859, 0.2
  %v2436 = vmul.f32 %v1862, 0.2
  %v2437 = vmul.f32 %v1864, 0.2
  %v2438 = vmul.f32 %v1867, 0.2
  %v2439 = vmul.f32 %v1869, 0.2
  %v2440 = vmul.f32 %v1872, 0.2
  %v2441 = vmul.f32 %v1874, 0.2
  %v2442 = vmul.f32 %v1877, 0.2
  %v2443 = vmul.f32 %v1879, 0.2
  %v2444 = vmul.f32 %v1882, 0.2
  %v2445 = vmul.f32 %v1884, 0.2
  %v2446 = vmul.f32 %v1887, 0.2
  %v2447 = vmul.f32 %v1889, 0.2
  %v2448 = vmul.f32 %v1892, 0.2
  %v2449 = vmul.f32 %v1894, 0.2
  %v2450 = vmul.f32 %v1897, 0.2
  %v2451 = vmul.f32 %v1899, 0.2
  %v2452 = vmul.f32 %v1902, 0.2
  %v2453 = vmul.f32 %v1904, 0.2
  %v2454 = vmul.f32 %v1907, 0.2
  %v2455 = vmul.f32 %v1909, 0.2
  %v2456 = vmul.f32 %v1912, 0.2
  %v2457 = vmul.f32 %v1914, 0.2
  %v2458 = vmul.f32 %v1917, 0.2
  %v2459 = vmul.f32 %v1919, 0.2
  %v2460 = vmul.f32 %v1922, 0.2
  %v2461 = vmul.f32 %v1924, 0.2
  %v2462 = vmul.f32 %v1927, 0.2
  %v2463 = vmul.f32 %v1929, 0.2
  %v2464 = vmul.f32 %v1932, 0.2
  %v2465 = vmul.f32 %v1934, 0.2
  %v2466 = vmul.f32 %v1937, 0.2
  %v2467 = vmul.f32 %v1939, 0.2
  %v2468 = vmul.f32 %v1942, 0.2
  %v2469 = vmul.f32 %v1944, 0.2
  %v2470 = vmul.f32 %v1947, 0.2
  %v2471 = vmul.f32 %v1949, 0.2
  %v2472 = vmul.f32 %v1952, 0.2
  %v2473 = vmul.f32 %v1954, 0.2
  %v2474 = vmul.f32 %v1957, 0.2
  %v2475 = vmul.f32 %v1959, 0.2
  %v2476 = vmul.f32 %v1962, 0.2
  %v2477 = vmul.f32 %v1964, 0.2
  %v2478 = vsel %vm1966, %v1327, %v2222
  %v2479 = vsel %vm1967, %v1329, %v2223
  %v2480 = vsel %vm1968, %v1332, %v2224
  %v2481 = vsel %vm1969, %v1334, %v2225
  %v2482 = vsel %vm1970, %v1337, %v2226
  %v2483 = vsel %vm1971, %v1339, %v2227
  %v2484 = vsel %vm1972, %v1342, %v2228
  %v2485 = vsel %vm1973, %v1344, %v2229
  %v2486 = vsel %vm1974, %v1347, %v2230
  %v2487 = vsel %vm1975, %v1349, %v2231
  %v2488 = vsel %vm1976, %v1352, %v2232
  %v2489 = vsel %vm1977, %v1354, %v2233
  %v2490 = vsel %vm1978, %v1357, %v2234
  %v2491 = vsel %vm1979, %v1359, %v2235
  %v2492 = vsel %vm1980, %v1362, %v2236
  %v2493 = vsel %vm1981, %v1364, %v2237
  %v2494 = vsel %vm1982, %v1367, %v2238
  %v2495 = vsel %vm1983, %v1369, %v2239
  %v2496 = vsel %vm1984, %v1372, %v2240
  %v2497 = vsel %vm1985, %v1374, %v2241
  %v2498 = vsel %vm1986, %v1377, %v2242
  %v2499 = vsel %vm1987, %v1379, %v2243
  %v2500 = vsel %vm1988, %v1382, %v2244
  %v2501 = vsel %vm1989, %v1384, %v2245
  %v2502 = vsel %vm1990, %v1387, %v2246
  %v2503 = vsel %vm1991, %v1389, %v2247
  %v2504 = vsel %vm1992, %v1392, %v2248
  %v2505 = vsel %vm1993, %v1394, %v2249
  %v2506 = vsel %vm1994, %v1397, %v2250
  %v2507 = vsel %vm1995, %v1399, %v2251
  %v2508 = vsel %vm1996, %v1402, %v2252
  %v2509 = vsel %vm1997, %v1404, %v2253
  %v2510 = vsel %vm1998, %v1407, %v2254
  %v2511 = vsel %vm1999, %v1409, %v2255
  %v2512 = vsel %vm2000, %v1412, %v2256
  %v2513 = vsel %vm2001, %v1414, %v2257
  %v2514 = vsel %vm2002, %v1417, %v2258
  %v2515 = vsel %vm2003, %v1419, %v2259
  %v2516 = vsel %vm2004, %v1422, %v2260
  %v2517 = vsel %vm2005, %v1424, %v2261
  %v2518 = vsel %vm2006, %v1427, %v2262
  %v2519 = vsel %vm2007, %v1429, %v2263
  %v2520 = vsel %vm2008, %v1432, %v2264
  %v2521 = vsel %vm2009, %v1434, %v2265
  %v2522 = vsel %vm2010, %v1437, %v2266
  %v2523 = vsel %vm2011, %v1439, %v2267
  %v2524 = vsel %vm2012, %v1442, %v2268
  %v2525 = vsel %vm2013, %v1444, %v2269
  %v2526 = vsel %vm2014, %v1447, %v2270
  %v2527 = vsel %vm2015, %v1449, %v2271
  %v2528 = vsel %vm2016, %v1452, %v2272
  %v2529 = vsel %vm2017, %v1454, %v2273
  %v2530 = vsel %vm2018, %v1457, %v2274
  %v2531 = vsel %vm2019, %v1459, %v2275
  %v2532 = vsel %vm2020, %v1462, %v2276
  %v2533 = vsel %vm2021, %v1464, %v2277
  %v2534 = vsel %vm2022, %v1467, %v2278
  %v2535 = vsel %vm2023, %v1469, %v2279
  %v2536 = vsel %vm2024, %v1472, %v2280
  %v2537 = vsel %vm2025, %v1474, %v2281
  %v2538 = vsel %vm2026, %v1477, %v2282
  %v2539 = vsel %vm2027, %v1479, %v2283
  %v2540 = vsel %vm2028, %v1482, %v2284
  %v2541 = vsel %vm2029, %v1484, %v2285
  %v2542 = vsel %vm2030, %v1487, %v2286
  %v2543 = vsel %vm2031, %v1489, %v2287
  %v2544 = vsel %vm2032, %v1492, %v2288
  %v2545 = vsel %vm2033, %v1494, %v2289
  %v2546 = vsel %vm2034, %v1497, %v2290
  %v2547 = vsel %vm2035, %v1499, %v2291
  %v2548 = vsel %vm2036, %v1502, %v2292
  %v2549 = vsel %vm2037, %v1504, %v2293
  %v2550 = vsel %vm2038, %v1507, %v2294
  %v2551 = vsel %vm2039, %v1509, %v2295
  %v2552 = vsel %vm2040, %v1512, %v2296
  %v2553 = vsel %vm2041, %v1514, %v2297
  %v2554 = vsel %vm2042, %v1517, %v2298
  %v2555 = vsel %vm2043, %v1519, %v2299
  %v2556 = vsel %vm2044, %v1522, %v2300
  %v2557 = vsel %vm2045, %v1524, %v2301
  %v2558 = vsel %vm2046, %v1527, %v2302
  %v2559 = vsel %vm2047, %v1529, %v2303
  %v2560 = vsel %vm2048, %v1532, %v2304
  %v2561 = vsel %vm2049, %v1534, %v2305
  %v2562 = vsel %vm2050, %v1537, %v2306
  %v2563 = vsel %vm2051, %v1539, %v2307
  %v2564 = vsel %vm2052, %v1542, %v2308
  %v2565 = vsel %vm2053, %v1544, %v2309
  %v2566 = vsel %vm2054, %v1547, %v2310
  %v2567 = vsel %vm2055, %v1549, %v2311
  %v2568 = vsel %vm2056, %v1552, %v2312
  %v2569 = vsel %vm2057, %v1554, %v2313
  %v2570 = vsel %vm2058, %v1557, %v2314
  %v2571 = vsel %vm2059, %v1559, %v2315
  %v2572 = vsel %vm2060, %v1562, %v2316
  %v2573 = vsel %vm2061, %v1564, %v2317
  %v2574 = vsel %vm2062, %v1567, %v2318
  %v2575 = vsel %vm2063, %v1569, %v2319
  %v2576 = vsel %vm2064, %v1572, %v2320
  %v2577 = vsel %vm2065, %v1574, %v2321
  %v2578 = vsel %vm2066, %v1577, %v2322
  %v2579 = vsel %vm2067, %v1579, %v2323
  %v2580 = vsel %vm2068, %v1582, %v2324
  %v2581 = vsel %vm2069, %v1584, %v2325
  %v2582 = vsel %vm2070, %v1587, %v2326
  %v2583 = vsel %vm2071, %v1589, %v2327
  %v2584 = vsel %vm2072, %v1592, %v2328
  %v2585 = vsel %vm2073, %v1594, %v2329
  %v2586 = vsel %vm2074, %v1597, %v2330
  %v2587 = vsel %vm2075, %v1599, %v2331
  %v2588 = vsel %vm2076, %v1602, %v2332
  %v2589 = vsel %vm2077, %v1604, %v2333
  %v2590 = vsel %vm2078, %v1607, %v2334
  %v2591 = vsel %vm2079, %v1609, %v2335
  %v2592 = vsel %vm2080, %v1612, %v2336
  %v2593 = vsel %vm2081, %v1614, %v2337
  %v2594 = vsel %vm2082, %v1617, %v2338
  %v2595 = vsel %vm2083, %v1619, %v2339
  %v2596 = vsel %vm2084, %v1622, %v2340
  %v2597 = vsel %vm2085, %v1624, %v2341
  %v2598 = vsel %vm2086, %v1627, %v2342
  %v2599 = vsel %vm2087, %v1629, %v2343
  %v2600 = vsel %vm2088, %v1632, %v2344
  %v2601 = vsel %vm2089, %v1634, %v2345
  %v2602 = vsel %vm2090, %v1637, %v2346
  %v2603 = vsel %vm2091, %v1639, %v2347
  %v2604 = vsel %vm2092, %v1642, %v2348
  %v2605 = vsel %vm2093, %v1644, %v2349
  %v2606 = vsel %vm2094, %v1647, %v2350
  %v2607 = vsel %vm2095, %v1649, %v2351
  %v2608 = vsel %vm2096, %v1652, %v2352
  %v2609 = vsel %vm2097, %v1654, %v2353
  %v2610 = vsel %vm2098, %v1657, %v2354
  %v2611 = vsel %vm2099, %v1659, %v2355
  %v2612 = vsel %vm2100, %v1662, %v2356
  %v2613 = vsel %vm2101, %v1664, %v2357
  %v2614 = vsel %vm2102, %v1667, %v2358
  %v2615 = vsel %vm2103, %v1669, %v2359
  %v2616 = vsel %vm2104, %v1672, %v2360
  %v2617 = vsel %vm2105, %v1674, %v2361
  %v2618 = vsel %vm2106, %v1677, %v2362
  %v2619 = vsel %vm2107, %v1679, %v2363
  %v2620 = vsel %vm2108, %v1682, %v2364
  %v2621 = vsel %vm2109, %v1684, %v2365
  %v2622 = vsel %vm2110, %v1687, %v2366
  %v2623 = vsel %vm2111, %v1689, %v2367
  %v2624 = vsel %vm2112, %v1692, %v2368
  %v2625 = vsel %vm2113, %v1694, %v2369
  %v2626 = vsel %vm2114, %v1697, %v2370
  %v2627 = vsel %vm2115, %v1699, %v2371
  %v2628 = vsel %vm2116, %v1702, %v2372
  %v2629 = vsel %vm2117, %v1704, %v2373
  %v2630 = vsel %vm2118, %v1707, %v2374
  %v2631 = vsel %vm2119, %v1709, %v2375
  %v2632 = vsel %vm2120, %v1712, %v2376
  %v2633 = vsel %vm2121, %v1714, %v2377
  %v2634 = vsel %vm2122, %v1717, %v2378
  %v2635 = vsel %vm2123, %v1719, %v2379
  %v2636 = vsel %vm2124, %v1722, %v2380
  %v2637 = vsel %vm2125, %v1724, %v2381
  %v2638 = vsel %vm2126, %v1727, %v2382
  %v2639 = vsel %vm2127, %v1729, %v2383
  %v2640 = vsel %vm2128, %v1732, %v2384
  %v2641 = vsel %vm2129, %v1734, %v2385
  %v2642 = vsel %vm2130, %v1737, %v2386
  %v2643 = vsel %vm2131, %v1739, %v2387
  %v2644 = vsel %vm2132, %v1742, %v2388
  %v2645 = vsel %vm2133, %v1744, %v2389
  %v2646 = vsel %vm2134, %v1747, %v2390
  %v2647 = vsel %vm2135, %v1749, %v2391
  %v2648 = vsel %vm2136, %v1752, %v2392
  %v2649 = vsel %vm2137, %v1754, %v2393
  %v2650 = vsel %vm2138, %v1757, %v2394
  %v2651 = vsel %vm2139, %v1759, %v2395
  %v2652 = vsel %vm2140, %v1762, %v2396
  %v2653 = vsel %vm2141, %v1764, %v2397
  %v2654 = vsel %vm2142, %v1767, %v2398
  %v2655 = vsel %vm2143, %v1769, %v2399
  %v2656 = vsel %vm2144, %v1772, %v2400
  %v2657 = vsel %vm2145, %v1774, %v2401
  %v2658 = vsel %vm2146, %v1777, %v2402
  %v2659 = vsel %vm2147, %v1779, %v2403
  %v2660 = vsel %vm2148, %v1782, %v2404
  %v2661 = vsel %vm2149, %v1784, %v2405
  %v2662 = vsel %vm2150, %v1787, %v2406
  %v2663 = vsel %vm2151, %v1789, %v2407
  %v2664 = vsel %vm2152, %v1792, %v2408
  %v2665 = vsel %vm2153, %v1794, %v2409
  %v2666 = vsel %vm2154, %v1797, %v2410
  %v2667 = vsel %vm2155, %v1799, %v2411
  %v2668 = vsel %vm2156, %v1802, %v2412
  %v2669 = vsel %vm2157, %v1804, %v2413
  %v2670 = vsel %vm2158, %v1807, %v2414
  %v2671 = vsel %vm2159, %v1809, %v2415
  %v2672 = vsel %vm2160, %v1812, %v2416
  %v2673 = vsel %vm2161, %v1814, %v2417
  %v2674 = vsel %vm2162, %v1817, %v2418
  %v2675 = vsel %vm2163, %v1819, %v2419
  %v2676 = vsel %vm2164, %v1822, %v2420
  %v2677 = vsel %vm2165, %v1824, %v2421
  %v2678 = vsel %vm2166, %v1827, %v2422
  %v2679 = vsel %vm2167, %v1829, %v2423
  %v2680 = vsel %vm2168, %v1832, %v2424
  %v2681 = vsel %vm2169, %v1834, %v2425
  %v2682 = vsel %vm2170, %v1837, %v2426
  %v2683 = vsel %vm2171, %v1839, %v2427
  %v2684 = vsel %vm2172, %v1842, %v2428
  %v2685 = vsel %vm2173, %v1844, %v2429
  %v2686 = vsel %vm2174, %v1847, %v2430
  %v2687 = vsel %vm2175, %v1849, %v2431
  %v2688 = vsel %vm2176, %v1852, %v2432
  %v2689 = vsel %vm2177, %v1854, %v2433
  %v2690 = vsel %vm2178, %v1857, %v2434
  %v2691 = vsel %vm2179, %v1859, %v2435
  %v2692 = vsel %vm2180, %v1862, %v2436
  %v2693 = vsel %vm2181, %v1864, %v2437
  %v2694 = vsel %vm2182, %v1867, %v2438
  %v2695 = vsel %vm2183, %v1869, %v2439
  %v2696 = vsel %vm2184, %v1872, %v2440
  %v2697 = vsel %vm2185, %v1874, %v2441
  %v2698 = vsel %vm2186, %v1877, %v2442
  %v2699 = vsel %vm2187, %v1879, %v2443
  %v2700 = vsel %vm2188, %v1882, %v2444
  %v2701 = vsel %vm2189, %v1884, %v2445
  %v2702 = vsel %vm2190, %v1887, %v2446
  %v2703 = vsel %vm2191, %v1889, %v2447
  %v2704 = vsel %vm2192, %v1892, %v2448
  %v2705 = vsel %vm2193, %v1894, %v2449
  %v2706 = vsel %vm2194, %v1897, %v2450
  %v2707 = vsel %vm2195, %v1899, %v2451
  %v2708 = vsel %vm2196, %v1902, %v2452
  %v2709 = vsel %vm2197, %v1904, %v2453
  %v2710 = vsel %vm2198, %v1907, %v2454
  %v2711 = vsel %vm2199, %v1909, %v2455
  %v2712 = vsel %vm2200, %v1912, %v2456
  %v2713 = vsel %vm2201, %v1914, %v2457
  %v2714 = vsel %vm2202, %v1917, %v2458
  %v2715 = vsel %vm2203, %v1919, %v2459
  %v2716 = vsel %vm2204, %v1922, %v2460
  %v2717 = vsel %vm2205, %v1924, %v2461
  %v2718 = vsel %vm2206, %v1927, %v2462
  %v2719 = vsel %vm2207, %v1929, %v2463
  %v2720 = vsel %vm2208, %v1932, %v2464
  %v2721 = vsel %vm2209, %v1934, %v2465
  %v2722 = vsel %vm2210, %v1937, %v2466
  %v2723 = vsel %vm2211, %v1939, %v2467
  %v2724 = vsel %vm2212, %v1942, %v2468
  %v2725 = vsel %vm2213, %v1944, %v2469
  %v2726 = vsel %vm2214, %v1947, %v2470
  %v2727 = vsel %vm2215, %v1949, %v2471
  %v2728 = vsel %vm2216, %v1952, %v2472
  %v2729 = vsel %vm2217, %v1954, %v2473
  %v2730 = vsel %vm2218, %v1957, %v2474
  %v2731 = vsel %vm2219, %v1959, %v2475
  %v2732 = vsel %vm2220, %v1962, %v2476
  %v2733 = vsel %vm2221, %v1964, %v2477
  %v2734 = vpack.c.bf16 %v2478, %v2478
  %v2735 = vpack.c.bf16 %v2479, %v2479
  %v2736 = vpack.c.bf16 %v2480, %v2480
  %v2737 = vpack.c.bf16 %v2481, %v2481
  %v2738 = vpack.c.bf16 %v2482, %v2482
  %v2739 = vpack.c.bf16 %v2483, %v2483
  %v2740 = vpack.c.bf16 %v2484, %v2484
  %v2741 = vpack.c.bf16 %v2485, %v2485
  %v2742 = vpack.c.bf16 %v2486, %v2486
  %v2743 = vpack.c.bf16 %v2487, %v2487
  %v2744 = vpack.c.bf16 %v2488, %v2488
  %v2745 = vpack.c.bf16 %v2489, %v2489
  %v2746 = vpack.c.bf16 %v2490, %v2490
  %v2747 = vpack.c.bf16 %v2491, %v2491
  %v2748 = vpack.c.bf16 %v2492, %v2492
  %v2749 = vpack.c.bf16 %v2493, %v2493
  %v2750 = vpack.c.bf16 %v2494, %v2494
  %v2751 = vpack.c.bf16 %v2495, %v2495
  %v2752 = vpack.c.bf16 %v2496, %v2496
  %v2753 = vpack.c.bf16 %v2497, %v2497
  %v2754 = vpack.c.bf16 %v2498, %v2498
  %v2755 = vpack.c.bf16 %v2499, %v2499
  %v2756 = vpack.c.bf16 %v2500, %v2500
  %v2757 = vpack.c.bf16 %v2501, %v2501
  %v2758 = vpack.c.bf16 %v2502, %v2502
  %v2759 = vpack.c.bf16 %v2503, %v2503
  %v2760 = vpack.c.bf16 %v2504, %v2504
  %v2761 = vpack.c.bf16 %v2505, %v2505
  %v2762 = vpack.c.bf16 %v2506, %v2506
  %v2763 = vpack.c.bf16 %v2507, %v2507
  %v2764 = vpack.c.bf16 %v2508, %v2508
  %v2765 = vpack.c.bf16 %v2509, %v2509
  %v2766 = vpack.c.bf16 %v2510, %v2510
  %v2767 = vpack.c.bf16 %v2511, %v2511
  %v2768 = vpack.c.bf16 %v2512, %v2512
  %v2769 = vpack.c.bf16 %v2513, %v2513
  %v2770 = vpack.c.bf16 %v2514, %v2514
  %v2771 = vpack.c.bf16 %v2515, %v2515
  %v2772 = vpack.c.bf16 %v2516, %v2516
  %v2773 = vpack.c.bf16 %v2517, %v2517
  %v2774 = vpack.c.bf16 %v2518, %v2518
  %v2775 = vpack.c.bf16 %v2519, %v2519
  %v2776 = vpack.c.bf16 %v2520, %v2520
  %v2777 = vpack.c.bf16 %v2521, %v2521
  %v2778 = vpack.c.bf16 %v2522, %v2522
  %v2779 = vpack.c.bf16 %v2523, %v2523
  %v2780 = vpack.c.bf16 %v2524, %v2524
  %v2781 = vpack.c.bf16 %v2525, %v2525
  %v2782 = vpack.c.bf16 %v2526, %v2526
  %v2783 = vpack.c.bf16 %v2527, %v2527
  %v2784 = vpack.c.bf16 %v2528, %v2528
  %v2785 = vpack.c.bf16 %v2529, %v2529
  %v2786 = vpack.c.bf16 %v2530, %v2530
  %v2787 = vpack.c.bf16 %v2531, %v2531
  %v2788 = vpack.c.bf16 %v2532, %v2532
  %v2789 = vpack.c.bf16 %v2533, %v2533
  %v2790 = vpack.c.bf16 %v2534, %v2534
  %v2791 = vpack.c.bf16 %v2535, %v2535
  %v2792 = vpack.c.bf16 %v2536, %v2536
  %v2793 = vpack.c.bf16 %v2537, %v2537
  %v2794 = vpack.c.bf16 %v2538, %v2538
  %v2795 = vpack.c.bf16 %v2539, %v2539
  %v2796 = vpack.c.bf16 %v2540, %v2540
  %v2797 = vpack.c.bf16 %v2541, %v2541
  %v2798 = vpack.c.bf16 %v2542, %v2542
  %v2799 = vpack.c.bf16 %v2543, %v2543
  %v2800 = vpack.c.bf16 %v2544, %v2544
  %v2801 = vpack.c.bf16 %v2545, %v2545
  %v2802 = vpack.c.bf16 %v2546, %v2546
  %v2803 = vpack.c.bf16 %v2547, %v2547
  %v2804 = vpack.c.bf16 %v2548, %v2548
  %v2805 = vpack.c.bf16 %v2549, %v2549
  %v2806 = vpack.c.bf16 %v2550, %v2550
  %v2807 = vpack.c.bf16 %v2551, %v2551
  %v2808 = vpack.c.bf16 %v2552, %v2552
  %v2809 = vpack.c.bf16 %v2553, %v2553
  %v2810 = vpack.c.bf16 %v2554, %v2554
  %v2811 = vpack.c.bf16 %v2555, %v2555
  %v2812 = vpack.c.bf16 %v2556, %v2556
  %v2813 = vpack.c.bf16 %v2557, %v2557
  %v2814 = vpack.c.bf16 %v2558, %v2558
  %v2815 = vpack.c.bf16 %v2559, %v2559
  %v2816 = vpack.c.bf16 %v2560, %v2560
  %v2817 = vpack.c.bf16 %v2561, %v2561
  %v2818 = vpack.c.bf16 %v2562, %v2562
  %v2819 = vpack.c.bf16 %v2563, %v2563
  %v2820 = vpack.c.bf16 %v2564, %v2564
  %v2821 = vpack.c.bf16 %v2565, %v2565
  %v2822 = vpack.c.bf16 %v2566, %v2566
  %v2823 = vpack.c.bf16 %v2567, %v2567
  %v2824 = vpack.c.bf16 %v2568, %v2568
  %v2825 = vpack.c.bf16 %v2569, %v2569
  %v2826 = vpack.c.bf16 %v2570, %v2570
  %v2827 = vpack.c.bf16 %v2571, %v2571
  %v2828 = vpack.c.bf16 %v2572, %v2572
  %v2829 = vpack.c.bf16 %v2573, %v2573
  %v2830 = vpack.c.bf16 %v2574, %v2574
  %v2831 = vpack.c.bf16 %v2575, %v2575
  %v2832 = vpack.c.bf16 %v2576, %v2576
  %v2833 = vpack.c.bf16 %v2577, %v2577
  %v2834 = vpack.c.bf16 %v2578, %v2578
  %v2835 = vpack.c.bf16 %v2579, %v2579
  %v2836 = vpack.c.bf16 %v2580, %v2580
  %v2837 = vpack.c.bf16 %v2581, %v2581
  %v2838 = vpack.c.bf16 %v2582, %v2582
  %v2839 = vpack.c.bf16 %v2583, %v2583
  %v2840 = vpack.c.bf16 %v2584, %v2584
  %v2841 = vpack.c.bf16 %v2585, %v2585
  %v2842 = vpack.c.bf16 %v2586, %v2586
  %v2843 = vpack.c.bf16 %v2587, %v2587
  %v2844 = vpack.c.bf16 %v2588, %v2588
  %v2845 = vpack.c.bf16 %v2589, %v2589
  %v2846 = vpack.c.bf16 %v2590, %v2590
  %v2847 = vpack.c.bf16 %v2591, %v2591
  %v2848 = vpack.c.bf16 %v2592, %v2592
  %v2849 = vpack.c.bf16 %v2593, %v2593
  %v2850 = vpack.c.bf16 %v2594, %v2594
  %v2851 = vpack.c.bf16 %v2595, %v2595
  %v2852 = vpack.c.bf16 %v2596, %v2596
  %v2853 = vpack.c.bf16 %v2597, %v2597
  %v2854 = vpack.c.bf16 %v2598, %v2598
  %v2855 = vpack.c.bf16 %v2599, %v2599
  %v2856 = vpack.c.bf16 %v2600, %v2600
  %v2857 = vpack.c.bf16 %v2601, %v2601
  %v2858 = vpack.c.bf16 %v2602, %v2602
  %v2859 = vpack.c.bf16 %v2603, %v2603
  %v2860 = vpack.c.bf16 %v2604, %v2604
  %v2861 = vpack.c.bf16 %v2605, %v2605
  %v2862 = vpack.c.bf16 %v2606, %v2606
  %v2863 = vpack.c.bf16 %v2607, %v2607
  %v2864 = vpack.c.bf16 %v2608, %v2608
  %v2865 = vpack.c.bf16 %v2609, %v2609
  %v2866 = vpack.c.bf16 %v2610, %v2610
  %v2867 = vpack.c.bf16 %v2611, %v2611
  %v2868 = vpack.c.bf16 %v2612, %v2612
  %v2869 = vpack.c.bf16 %v2613, %v2613
  %v2870 = vpack.c.bf16 %v2614, %v2614
  %v2871 = vpack.c.bf16 %v2615, %v2615
  %v2872 = vpack.c.bf16 %v2616, %v2616
  %v2873 = vpack.c.bf16 %v2617, %v2617
  %v2874 = vpack.c.bf16 %v2618, %v2618
  %v2875 = vpack.c.bf16 %v2619, %v2619
  %v2876 = vpack.c.bf16 %v2620, %v2620
  %v2877 = vpack.c.bf16 %v2621, %v2621
  %v2878 = vpack.c.bf16 %v2622, %v2622
  %v2879 = vpack.c.bf16 %v2623, %v2623
  %v2880 = vpack.c.bf16 %v2624, %v2624
  %v2881 = vpack.c.bf16 %v2625, %v2625
  %v2882 = vpack.c.bf16 %v2626, %v2626
  %v2883 = vpack.c.bf16 %v2627, %v2627
  %v2884 = vpack.c.bf16 %v2628, %v2628
  %v2885 = vpack.c.bf16 %v2629, %v2629
  %v2886 = vpack.c.bf16 %v2630, %v2630
  %v2887 = vpack.c.bf16 %v2631, %v2631
  %v2888 = vpack.c.bf16 %v2632, %v2632
  %v2889 = vpack.c.bf16 %v2633, %v2633
  %v2890 = vpack.c.bf16 %v2634, %v2634
  %v2891 = vpack.c.bf16 %v2635, %v2635
  %v2892 = vpack.c.bf16 %v2636, %v2636
  %v2893 = vpack.c.bf16 %v2637, %v2637
  %v2894 = vpack.c.bf16 %v2638, %v2638
  %v2895 = vpack.c.bf16 %v2639, %v2639
  %v2896 = vpack.c.bf16 %v2640, %v2640
  %v2897 = vpack.c.bf16 %v2641, %v2641
  %v2898 = vpack.c.bf16 %v2642, %v2642
  %v2899 = vpack.c.bf16 %v2643, %v2643
  %v2900 = vpack.c.bf16 %v2644, %v2644
  %v2901 = vpack.c.bf16 %v2645, %v2645
  %v2902 = vpack.c.bf16 %v2646, %v2646
  %v2903 = vpack.c.bf16 %v2647, %v2647
  %v2904 = vpack.c.bf16 %v2648, %v2648
  %v2905 = vpack.c.bf16 %v2649, %v2649
  %v2906 = vpack.c.bf16 %v2650, %v2650
  %v2907 = vpack.c.bf16 %v2651, %v2651
  %v2908 = vpack.c.bf16 %v2652, %v2652
  %v2909 = vpack.c.bf16 %v2653, %v2653
  %v2910 = vpack.c.bf16 %v2654, %v2654
  %v2911 = vpack.c.bf16 %v2655, %v2655
  %v2912 = vpack.c.bf16 %v2656, %v2656
  %v2913 = vpack.c.bf16 %v2657, %v2657
  %v2914 = vpack.c.bf16 %v2658, %v2658
  %v2915 = vpack.c.bf16 %v2659, %v2659
  %v2916 = vpack.c.bf16 %v2660, %v2660
  %v2917 = vpack.c.bf16 %v2661, %v2661
  %v2918 = vpack.c.bf16 %v2662, %v2662
  %v2919 = vpack.c.bf16 %v2663, %v2663
  %v2920 = vpack.c.bf16 %v2664, %v2664
  %v2921 = vpack.c.bf16 %v2665, %v2665
  %v2922 = vpack.c.bf16 %v2666, %v2666
  %v2923 = vpack.c.bf16 %v2667, %v2667
  %v2924 = vpack.c.bf16 %v2668, %v2668
  %v2925 = vpack.c.bf16 %v2669, %v2669
  %v2926 = vpack.c.bf16 %v2670, %v2670
  %v2927 = vpack.c.bf16 %v2671, %v2671
  %v2928 = vpack.c.bf16 %v2672, %v2672
  %v2929 = vpack.c.bf16 %v2673, %v2673
  %v2930 = vpack.c.bf16 %v2674, %v2674
  %v2931 = vpack.c.bf16 %v2675, %v2675
  %v2932 = vpack.c.bf16 %v2676, %v2676
  %v2933 = vpack.c.bf16 %v2677, %v2677
  %v2934 = vpack.c.bf16 %v2678, %v2678
  %v2935 = vpack.c.bf16 %v2679, %v2679
  %v2936 = vpack.c.bf16 %v2680, %v2680
  %v2937 = vpack.c.bf16 %v2681, %v2681
  %v2938 = vpack.c.bf16 %v2682, %v2682
  %v2939 = vpack.c.bf16 %v2683, %v2683
  %v2940 = vpack.c.bf16 %v2684, %v2684
  %v2941 = vpack.c.bf16 %v2685, %v2685
  %v2942 = vpack.c.bf16 %v2686, %v2686
  %v2943 = vpack.c.bf16 %v2687, %v2687
  %v2944 = vpack.c.bf16 %v2688, %v2688
  %v2945 = vpack.c.bf16 %v2689, %v2689
  %v2946 = vpack.c.bf16 %v2690, %v2690
  %v2947 = vpack.c.bf16 %v2691, %v2691
  %v2948 = vpack.c.bf16 %v2692, %v2692
  %v2949 = vpack.c.bf16 %v2693, %v2693
  %v2950 = vpack.c.bf16 %v2694, %v2694
  %v2951 = vpack.c.bf16 %v2695, %v2695
  %v2952 = vpack.c.bf16 %v2696, %v2696
  %v2953 = vpack.c.bf16 %v2697, %v2697
  %v2954 = vpack.c.bf16 %v2698, %v2698
  %v2955 = vpack.c.bf16 %v2699, %v2699
  %v2956 = vpack.c.bf16 %v2700, %v2700
  %v2957 = vpack.c.bf16 %v2701, %v2701
  %v2958 = vpack.c.bf16 %v2702, %v2702
  %v2959 = vpack.c.bf16 %v2703, %v2703
  %v2960 = vpack.c.bf16 %v2704, %v2704
  %v2961 = vpack.c.bf16 %v2705, %v2705
  %v2962 = vpack.c.bf16 %v2706, %v2706
  %v2963 = vpack.c.bf16 %v2707, %v2707
  %v2964 = vpack.c.bf16 %v2708, %v2708
  %v2965 = vpack.c.bf16 %v2709, %v2709
  %v2966 = vpack.c.bf16 %v2710, %v2710
  %v2967 = vpack.c.bf16 %v2711, %v2711
  %v2968 = vpack.c.bf16 %v2712, %v2712
  %v2969 = vpack.c.bf16 %v2713, %v2713
  %v2970 = vpack.c.bf16 %v2714, %v2714
  %v2971 = vpack.c.bf16 %v2715, %v2715
  %v2972 = vpack.c.bf16 %v2716, %v2716
  %v2973 = vpack.c.bf16 %v2717, %v2717
  %v2974 = vpack.c.bf16 %v2718, %v2718
  %v2975 = vpack.c.bf16 %v2719, %v2719
  %v2976 = vpack.c.bf16 %v2720, %v2720
  %v2977 = vpack.c.bf16 %v2721, %v2721
  %v2978 = vpack.c.bf16 %v2722, %v2722
  %v2979 = vpack.c.bf16 %v2723, %v2723
  %v2980 = vpack.c.bf16 %v2724, %v2724
  %v2981 = vpack.c.bf16 %v2725, %v2725
  %v2982 = vpack.c.bf16 %v2726, %v2726
  %v2983 = vpack.c.bf16 %v2727, %v2727
  %v2984 = vpack.c.bf16 %v2728, %v2728
  %v2985 = vpack.c.bf16 %v2729, %v2729
  %v2986 = vpack.c.bf16 %v2730, %v2730
  %v2987 = vpack.c.bf16 %v2731, %v2731
  %v2988 = vpack.c.bf16 %v2732, %v2732
  %v2989 = vpack.c.bf16 %v2733, %v2733
  %2990 = vst [vmem:[%s2] sm:$0xf] %v2734
  %2991 = vst [vmem:[%s2 + $0x4] sm:$0xf] %v2735
  %2992 = vst [vmem:[%s2 + $0x8] sm:$0xf] %v2736
  %2993 = vst [vmem:[%s2 + $0xc] sm:$0xf] %v2737
  %2994 = vst [vmem:[%s2 + $0x10] sm:$0xf] %v2738
  %2995 = vst [vmem:[%s2 + $0x14] sm:$0xf] %v2739
  %2996 = vst [vmem:[%s2 + $0x18] sm:$0xf] %v2740
  %2997 = vst [vmem:[%s2 + $0x1c] sm:$0xf] %v2741
  %2998 = vst [vmem:[%s2 + $0x20] sm:$0xf] %v2742
  %2999 = vst [vmem:[%s2 + $0x24] sm:$0xf] %v2743
  %3000 = vst [vmem:[%s2 + $0x28] sm:$0xf] %v2744
  %3001 = vst [vmem:[%s2 + $0x2c] sm:$0xf] %v2745
  %3002 = vst [vmem:[%s2 + $0x30] sm:$0xf] %v2746
  %3003 = vst [vmem:[%s2 + $0x34] sm:$0xf] %v2747
  %3004 = vst [vmem:[%s2 + $0x38] sm:$0xf] %v2748
  %3005 = vst [vmem:[%s2 + $0x3c] sm:$0xf] %v2749
  %3006 = vst [vmem:[%s2 + $0x40] sm:$0xf] %v2750
  %3007 = vst [vmem:[%s2 + $0x44] sm:$0xf] %v2751
  %3008 = vst [vmem:[%s2 + $0x48] sm:$0xf] %v2752
  %3009 = vst [vmem:[%s2 + $0x4c] sm:$0xf] %v2753
  %3010 = vst [vmem:[%s2 + $0x50] sm:$0xf] %v2754
  %3011 = vst [vmem:[%s2 + $0x54] sm:$0xf] %v2755
  %3012 = vst [vmem:[%s2 + $0x58] sm:$0xf] %v2756
  %3013 = vst [vmem:[%s2 + $0x5c] sm:$0xf] %v2757
  %3014 = vst [vmem:[%s2 + $0x60] sm:$0xf] %v2758
  %3015 = vst [vmem:[%s2 + $0x64] sm:$0xf] %v2759
  %3016 = vst [vmem:[%s2 + $0x68] sm:$0xf] %v2760
  %3017 = vst [vmem:[%s2 + $0x6c] sm:$0xf] %v2761
  %3018 = vst [vmem:[%s2 + $0x70] sm:$0xf] %v2762
  %3019 = vst [vmem:[%s2 + $0x74] sm:$0xf] %v2763
  %3020 = vst [vmem:[%s2 + $0x78] sm:$0xf] %v2764
  %3021 = vst [vmem:[%s2 + $0x7c] sm:$0xf] %v2765
  %3022 = vst [vmem:[%s2 + $0x80] sm:$0xf] %v2766
  %3023 = vst [vmem:[%s2 + $0x84] sm:$0xf] %v2767
  %3024 = vst [vmem:[%s2 + $0x88] sm:$0xf] %v2768
  %3025 = vst [vmem:[%s2 + $0x8c] sm:$0xf] %v2769
  %3026 = vst [vmem:[%s2 + $0x90] sm:$0xf] %v2770
  %3027 = vst [vmem:[%s2 + $0x94] sm:$0xf] %v2771
  %3028 = vst [vmem:[%s2 + $0x98] sm:$0xf] %v2772
  %3029 = vst [vmem:[%s2 + $0x9c] sm:$0xf] %v2773
  %3030 = vst [vmem:[%s2 + $0xa0] sm:$0xf] %v2774
  %3031 = vst [vmem:[%s2 + $0xa4] sm:$0xf] %v2775
  %3032 = vst [vmem:[%s2 + $0xa8] sm:$0xf] %v2776
  %3033 = vst [vmem:[%s2 + $0xac] sm:$0xf] %v2777
  %3034 = vst [vmem:[%s2 + $0xb0] sm:$0xf] %v2778
  %3035 = vst [vmem:[%s2 + $0xb4] sm:$0xf] %v2779
  %3036 = vst [vmem:[%s2 + $0xb8] sm:$0xf] %v2780
  %3037 = vst [vmem:[%s2 + $0xbc] sm:$0xf] %v2781
  %3038 = vst [vmem:[%s2 + $0xc0] sm:$0xf] %v2782
  %3039 = vst [vmem:[%s2 + $0xc4] sm:$0xf] %v2783
  %3040 = vst [vmem:[%s2 + $0xc8] sm:$0xf] %v2784
  %3041 = vst [vmem:[%s2 + $0xcc] sm:$0xf] %v2785
  %3042 = vst [vmem:[%s2 + $0xd0] sm:$0xf] %v2786
  %3043 = vst [vmem:[%s2 + $0xd4] sm:$0xf] %v2787
  %3044 = vst [vmem:[%s2 + $0xd8] sm:$0xf] %v2788
  %3045 = vst [vmem:[%s2 + $0xdc] sm:$0xf] %v2789
  %3046 = vst [vmem:[%s2 + $0xe0] sm:$0xf] %v2790
  %3047 = vst [vmem:[%s2 + $0xe4] sm:$0xf] %v2791
  %3048 = vst [vmem:[%s2 + $0xe8] sm:$0xf] %v2792
  %3049 = vst [vmem:[%s2 + $0xec] sm:$0xf] %v2793
  %3050 = vst [vmem:[%s2 + $0xf0] sm:$0xf] %v2794
  %3051 = vst [vmem:[%s2 + $0xf4] sm:$0xf] %v2795
  %3052 = vst [vmem:[%s2 + $0xf8] sm:$0xf] %v2796
  %3053 = vst [vmem:[%s2 + $0xfc] sm:$0xf] %v2797
  %3054 = vst [vmem:[%s2 + $0x100] sm:$0xf] %v2798
  %3055 = vst [vmem:[%s2 + $0x104] sm:$0xf] %v2799
  %3056 = vst [vmem:[%s2 + $0x108] sm:$0xf] %v2800
  %3057 = vst [vmem:[%s2 + $0x10c] sm:$0xf] %v2801
  %3058 = vst [vmem:[%s2 + $0x110] sm:$0xf] %v2802
  %3059 = vst [vmem:[%s2 + $0x114] sm:$0xf] %v2803
  %3060 = vst [vmem:[%s2 + $0x118] sm:$0xf] %v2804
  %3061 = vst [vmem:[%s2 + $0x11c] sm:$0xf] %v2805
  %3062 = vst [vmem:[%s2 + $0x120] sm:$0xf] %v2806
  %3063 = vst [vmem:[%s2 + $0x124] sm:$0xf] %v2807
  %3064 = vst [vmem:[%s2 + $0x128] sm:$0xf] %v2808
  %3065 = vst [vmem:[%s2 + $0x12c] sm:$0xf] %v2809
  %3066 = vst [vmem:[%s2 + $0x130] sm:$0xf] %v2810
  %3067 = vst [vmem:[%s2 + $0x134] sm:$0xf] %v2811
  %3068 = vst [vmem:[%s2 + $0x138] sm:$0xf] %v2812
  %3069 = vst [vmem:[%s2 + $0x13c] sm:$0xf] %v2813
  %3070 = vst [vmem:[%s2 + $0x140] sm:$0xf] %v2814
  %3071 = vst [vmem:[%s2 + $0x144] sm:$0xf] %v2815
  %3072 = vst [vmem:[%s2 + $0x148] sm:$0xf] %v2816
  %3073 = vst [vmem:[%s2 + $0x14c] sm:$0xf] %v2817
  %3074 = vst [vmem:[%s2 + $0x150] sm:$0xf] %v2818
  %3075 = vst [vmem:[%s2 + $0x154] sm:$0xf] %v2819
  %3076 = vst [vmem:[%s2 + $0x158] sm:$0xf] %v2820
  %3077 = vst [vmem:[%s2 + $0x15c] sm:$0xf] %v2821
  %3078 = vst [vmem:[%s2 + $0x160] sm:$0xf] %v2822
  %3079 = vst [vmem:[%s2 + $0x164] sm:$0xf] %v2823
  %3080 = vst [vmem:[%s2 + $0x168] sm:$0xf] %v2824
  %3081 = vst [vmem:[%s2 + $0x16c] sm:$0xf] %v2825
  %3082 = vst [vmem:[%s2 + $0x170] sm:$0xf] %v2826
  %3083 = vst [vmem:[%s2 + $0x174] sm:$0xf] %v2827
  %3084 = vst [vmem:[%s2 + $0x178] sm:$0xf] %v2828
  %3085 = vst [vmem:[%s2 + $0x17c] sm:$0xf] %v2829
  %3086 = vst [vmem:[%s2 + $0x180] sm:$0xf] %v2830
  %3087 = vst [vmem:[%s2 + $0x184] sm:$0xf] %v2831
  %3088 = vst [vmem:[%s2 + $0x188] sm:$0xf] %v2832
  %3089 = vst [vmem:[%s2 + $0x18c] sm:$0xf] %v2833
  %3090 = vst [vmem:[%s2 + $0x190] sm:$0xf] %v2834
  %3091 = vst [vmem:[%s2 + $0x194] sm:$0xf] %v2835
  %3092 = vst [vmem:[%s2 + $0x198] sm:$0xf] %v2836
  %3093 = vst [vmem:[%s2 + $0x19c] sm:$0xf] %v2837
  %3094 = vst [vmem:[%s2 + $0x1a0] sm:$0xf] %v2838
  %3095 = vst [vmem:[%s2 + $0x1a4] sm:$0xf] %v2839
  %3096 = vst [vmem:[%s2 + $0x1a8] sm:$0xf] %v2840
  %3097 = vst [vmem:[%s2 + $0x1ac] sm:$0xf] %v2841
  %3098 = vst [vmem:[%s2 + $0x1b0] sm:$0xf] %v2842
  %3099 = vst [vmem:[%s2 + $0x1b4] sm:$0xf] %v2843
  %3100 = vst [vmem:[%s2 + $0x1b8] sm:$0xf] %v2844
  %3101 = vst [vmem:[%s2 + $0x1bc] sm:$0xf] %v2845
  %3102 = vst [vmem:[%s2 + $0x1c0] sm:$0xf] %v2846
  %3103 = vst [vmem:[%s2 + $0x1c4] sm:$0xf] %v2847
  %3104 = vst [vmem:[%s2 + $0x1c8] sm:$0xf] %v2848
  %3105 = vst [vmem:[%s2 + $0x1cc] sm:$0xf] %v2849
  %3106 = vst [vmem:[%s2 + $0x1d0] sm:$0xf] %v2850
  %3107 = vst [vmem:[%s2 + $0x1d4] sm:$0xf] %v2851
  %3108 = vst [vmem:[%s2 + $0x1d8] sm:$0xf] %v2852
  %3109 = vst [vmem:[%s2 + $0x1dc] sm:$0xf] %v2853
  %3110 = vst [vmem:[%s2 + $0x1e0] sm:$0xf] %v2854
  %3111 = vst [vmem:[%s2 + $0x1e4] sm:$0xf] %v2855
  %3112 = vst [vmem:[%s2 + $0x1e8] sm:$0xf] %v2856
  %3113 = vst [vmem:[%s2 + $0x1ec] sm:$0xf] %v2857
  %3114 = vst [vmem:[%s2 + $0x1f0] sm:$0xf] %v2858
  %3115 = vst [vmem:[%s2 + $0x1f4] sm:$0xf] %v2859
  %3116 = vst [vmem:[%s2 + $0x1f8] sm:$0xf] %v2860
  %3117 = vst [vmem:[%s2 + $0x1fc] sm:$0xf] %v2861
  %3118 = vst [vmem:[%s2 + $0x200] sm:$0xf] %v2862
  %3119 = vst [vmem:[%s2 + $0x204] sm:$0xf] %v2863
  %3120 = vst [vmem:[%s2 + $0x208] sm:$0xf] %v2864
  %3121 = vst [vmem:[%s2 + $0x20c] sm:$0xf] %v2865
  %3122 = vst [vmem:[%s2 + $0x210] sm:$0xf] %v2866
  %3123 = vst [vmem:[%s2 + $0x214] sm:$0xf] %v2867
  %3124 = vst [vmem:[%s2 + $0x218] sm:$0xf] %v2868
  %3125 = vst [vmem:[%s2 + $0x21c] sm:$0xf] %v2869
  %3126 = vst [vmem:[%s2 + $0x220] sm:$0xf] %v2870
  %3127 = vst [vmem:[%s2 + $0x224] sm:$0xf] %v2871
  %3128 = vst [vmem:[%s2 + $0x228] sm:$0xf] %v2872
  %3129 = vst [vmem:[%s2 + $0x22c] sm:$0xf] %v2873
  %3130 = vst [vmem:[%s2 + $0x230] sm:$0xf] %v2874
  %3131 = vst [vmem:[%s2 + $0x234] sm:$0xf] %v2875
  %3132 = vst [vmem:[%s2 + $0x238] sm:$0xf] %v2876
  %3133 = vst [vmem:[%s2 + $0x23c] sm:$0xf] %v2877
  %3134 = vst [vmem:[%s2 + $0x240] sm:$0xf] %v2878
  %3135 = vst [vmem:[%s2 + $0x244] sm:$0xf] %v2879
  %3136 = vst [vmem:[%s2 + $0x248] sm:$0xf] %v2880
  %3137 = vst [vmem:[%s2 + $0x24c] sm:$0xf] %v2881
  %3138 = vst [vmem:[%s2 + $0x250] sm:$0xf] %v2882
  %3139 = vst [vmem:[%s2 + $0x254] sm:$0xf] %v2883
  %3140 = vst [vmem:[%s2 + $0x258] sm:$0xf] %v2884
  %3141 = vst [vmem:[%s2 + $0x25c] sm:$0xf] %v2885
  %3142 = vst [vmem:[%s2 + $0x260] sm:$0xf] %v2886
  %3143 = vst [vmem:[%s2 + $0x264] sm:$0xf] %v2887
  %3144 = vst [vmem:[%s2 + $0x268] sm:$0xf] %v2888
  %3145 = vst [vmem:[%s2 + $0x26c] sm:$0xf] %v2889
  %3146 = vst [vmem:[%s2 + $0x270] sm:$0xf] %v2890
  %3147 = vst [vmem:[%s2 + $0x274] sm:$0xf] %v2891
  %3148 = vst [vmem:[%s2 + $0x278] sm:$0xf] %v2892
  %3149 = vst [vmem:[%s2 + $0x27c] sm:$0xf] %v2893
  %3150 = vst [vmem:[%s2 + $0x280] sm:$0xf] %v2894
  %3151 = vst [vmem:[%s2 + $0x284] sm:$0xf] %v2895
  %3152 = vst [vmem:[%s2 + $0x288] sm:$0xf] %v2896
  %3153 = vst [vmem:[%s2 + $0x28c] sm:$0xf] %v2897
  %3154 = vst [vmem:[%s2 + $0x290] sm:$0xf] %v2898
  %3155 = vst [vmem:[%s2 + $0x294] sm:$0xf] %v2899
  %3156 = vst [vmem:[%s2 + $0x298] sm:$0xf] %v2900
  %3157 = vst [vmem:[%s2 + $0x29c] sm:$0xf] %v2901
  %3158 = vst [vmem:[%s2 + $0x2a0] sm:$0xf] %v2902
  %3159 = vst [vmem:[%s2 + $0x2a4] sm:$0xf] %v2903
  %3160 = vst [vmem:[%s2 + $0x2a8] sm:$0xf] %v2904
  %3161 = vst [vmem:[%s2 + $0x2ac] sm:$0xf] %v2905
  %3162 = vst [vmem:[%s2 + $0x2b0] sm:$0xf] %v2906
  %3163 = vst [vmem:[%s2 + $0x2b4] sm:$0xf] %v2907
  %3164 = vst [vmem:[%s2 + $0x2b8] sm:$0xf] %v2908
  %3165 = vst [vmem:[%s2 + $0x2bc] sm:$0xf] %v2909
  %3166 = vst [vmem:[%s2 + $0x2c0] sm:$0xf] %v2910
  %3167 = vst [vmem:[%s2 + $0x2c4] sm:$0xf] %v2911
  %3168 = vst [vmem:[%s2 + $0x2c8] sm:$0xf] %v2912
  %3169 = vst [vmem:[%s2 + $0x2cc] sm:$0xf] %v2913
  %3170 = vst [vmem:[%s2 + $0x2d0] sm:$0xf] %v2914
  %3171 = vst [vmem:[%s2 + $0x2d4] sm:$0xf] %v2915
  %3172 = vst [vmem:[%s2 + $0x2d8] sm:$0xf] %v2916
  %3173 = vst [vmem:[%s2 + $0x2dc] sm:$0xf] %v2917
  %3174 = vst [vmem:[%s2 + $0x2e0] sm:$0xf] %v2918
  %3175 = vst [vmem:[%s2 + $0x2e4] sm:$0xf] %v2919
  %3176 = vst [vmem:[%s2 + $0x2e8] sm:$0xf] %v2920
  %3177 = vst [vmem:[%s2 + $0x2ec] sm:$0xf] %v2921
  %3178 = vst [vmem:[%s2 + $0x2f0] sm:$0xf] %v2922
  %3179 = vst [vmem:[%s2 + $0x2f4] sm:$0xf] %v2923
  %3180 = vst [vmem:[%s2 + $0x2f8] sm:$0xf] %v2924
  %3181 = vst [vmem:[%s2 + $0x2fc] sm:$0xf] %v2925
  %3182 = vst [vmem:[%s2 + $0x300] sm:$0xf] %v2926
  %3183 = vst [vmem:[%s2 + $0x304] sm:$0xf] %v2927
  %3184 = vst [vmem:[%s2 + $0x308] sm:$0xf] %v2928
  %3185 = vst [vmem:[%s2 + $0x30c] sm:$0xf] %v2929
  %3186 = vst [vmem:[%s2 + $0x310] sm:$0xf] %v2930
  %3187 = vst [vmem:[%s2 + $0x314] sm:$0xf] %v2931
  %3188 = vst [vmem:[%s2 + $0x318] sm:$0xf] %v2932
  %3189 = vst [vmem:[%s2 + $0x31c] sm:$0xf] %v2933
  %3190 = vst [vmem:[%s2 + $0x320] sm:$0xf] %v2934
  %3191 = vst [vmem:[%s2 + $0x324] sm:$0xf] %v2935
  %3192 = vst [vmem:[%s2 + $0x328] sm:$0xf] %v2936
  %3193 = vst [vmem:[%s2 + $0x32c] sm:$0xf] %v2937
  %3194 = vst [vmem:[%s2 + $0x330] sm:$0xf] %v2938
  %3195 = vst [vmem:[%s2 + $0x334] sm:$0xf] %v2939
  %3196 = vst [vmem:[%s2 + $0x338] sm:$0xf] %v2940
  %3197 = vst [vmem:[%s2 + $0x33c] sm:$0xf] %v2941
  %3198 = vst [vmem:[%s2 + $0x340] sm:$0xf] %v2942
  %3199 = vst [vmem:[%s2 + $0x344] sm:$0xf] %v2943
  %3200 = vst [vmem:[%s2 + $0x348] sm:$0xf] %v2944
  %3201 = vst [vmem:[%s2 + $0x34c] sm:$0xf] %v2945
  %3202 = vst [vmem:[%s2 + $0x350] sm:$0xf] %v2946
  %3203 = vst [vmem:[%s2 + $0x354] sm:$0xf] %v2947
  %3204 = vst [vmem:[%s2 + $0x358] sm:$0xf] %v2948
  %3205 = vst [vmem:[%s2 + $0x35c] sm:$0xf] %v2949
  %3206 = vst [vmem:[%s2 + $0x360] sm:$0xf] %v2950
  %3207 = vst [vmem:[%s2 + $0x364] sm:$0xf] %v2951
  %3208 = vst [vmem:[%s2 + $0x368] sm:$0xf] %v2952
  %3209 = vst [vmem:[%s2 + $0x36c] sm:$0xf] %v2953
  %3210 = vst [vmem:[%s2 + $0x370] sm:$0xf] %v2954
  %3211 = vst [vmem:[%s2 + $0x374] sm:$0xf] %v2955
  %3212 = vst [vmem:[%s2 + $0x378] sm:$0xf] %v2956
  %3213 = vst [vmem:[%s2 + $0x37c] sm:$0xf] %v2957
  %3214 = vst [vmem:[%s2 + $0x380] sm:$0xf] %v2958
  %3215 = vst [vmem:[%s2 + $0x384] sm:$0xf] %v2959
  %3216 = vst [vmem:[%s2 + $0x388] sm:$0xf] %v2960
  %3217 = vst [vmem:[%s2 + $0x38c] sm:$0xf] %v2961
  %3218 = vst [vmem:[%s2 + $0x390] sm:$0xf] %v2962
  %3219 = vst [vmem:[%s2 + $0x394] sm:$0xf] %v2963
  %3220 = vst [vmem:[%s2 + $0x398] sm:$0xf] %v2964
  %3221 = vst [vmem:[%s2 + $0x39c] sm:$0xf] %v2965
  %3222 = vst [vmem:[%s2 + $0x3a0] sm:$0xf] %v2966
  %3223 = vst [vmem:[%s2 + $0x3a4] sm:$0xf] %v2967
  %3224 = vst [vmem:[%s2 + $0x3a8] sm:$0xf] %v2968
  %3225 = vst [vmem:[%s2 + $0x3ac] sm:$0xf] %v2969
  %3226 = vst [vmem:[%s2 + $0x3b0] sm:$0xf] %v2970
  %3227 = vst [vmem:[%s2 + $0x3b4] sm:$0xf] %v2971
  %3228 = vst [vmem:[%s2 + $0x3b8] sm:$0xf] %v2972
  %3229 = vst [vmem:[%s2 + $0x3bc] sm:$0xf] %v2973
  %3230 = vst [vmem:[%s2 + $0x3c0] sm:$0xf] %v2974
  %3231 = vst [vmem:[%s2 + $0x3c4] sm:$0xf] %v2975
  %3232 = vst [vmem:[%s2 + $0x3c8] sm:$0xf] %v2976
  %3233 = vst [vmem:[%s2 + $0x3cc] sm:$0xf] %v2977
  %3234 = vst [vmem:[%s2 + $0x3d0] sm:$0xf] %v2978
  %3235 = vst [vmem:[%s2 + $0x3d4] sm:$0xf] %v2979
  %3236 = vst [vmem:[%s2 + $0x3d8] sm:$0xf] %v2980
  %3237 = vst [vmem:[%s2 + $0x3dc] sm:$0xf] %v2981
  %3238 = vst [vmem:[%s2 + $0x3e0] sm:$0xf] %v2982
  %3239 = vst [vmem:[%s2 + $0x3e4] sm:$0xf] %v2983
  %3240 = vst [vmem:[%s2 + $0x3e8] sm:$0xf] %v2984
  %3241 = vst [vmem:[%s2 + $0x3ec] sm:$0xf] %v2985
  %3242 = vst [vmem:[%s2 + $0x3f0] sm:$0xf] %v2986
  %3243 = vst [vmem:[%s2 + $0x3f4] sm:$0xf] %v2987
  %3244 = vst [vmem:[%s2 + $0x3f8] sm:$0xf] %v2988
  %3245 = vst [vmem:[%s2 + $0x3fc] sm:$0xf] %v2989
  // Predicated region
  $region10: #{discriminator_forward.8} parent=0 // pred_check
    _
  $region11: #{discriminator_forward.8} parent=0 // pred_check_branch
    %3247 = sbr.rel (0) target = $region13
  $region12: #{discriminator_forward.8} parent=0 // pred_region
    _
  $region13: #{discriminator_forward.8} parent=0 // pred_fallthru
    _
  // Predicated region
  $region14: #{discriminator_forward.8} parent=0 // pred_check
    _
  $region15: #{discriminator_forward.8} parent=0 // pred_check_branch
    %3249 = sbr.rel (0) target = $region17
  $region16: #{discriminator_forward.8} parent=0 // pred_region
    _
  $region17: #{discriminator_forward.8} parent=0 // pred_fallthru
    _

// kernel: discriminator_forward.9
$region0: #{discriminator_forward.9}
  #allocation0 [shape = 'u32[]', space=smem, size = 0x4, offset = 0x4, fixed_abs, tag = 'smem constant byte address 0x4 - core index']
  #allocation1 [shape = 'u32[72,128]{1,0:T(1,128)}', space=vmem, size = 0x9000, scoped, tag = 'internal scratch']
  %s0 = inlined_call_operand.vmem [shape: bf16[512,128], index: 0, kind: input, shape index: {}]
  %s1 = inlined_call_operand.vmem [shape: bf16[128,128], index: 1, kind: input, shape index: {}]
  %s2 = inlined_call_operand.vmem [shape: bf16[512,128], index: 2, kind: output, shape index: {0}]
  %s3 = inlined_call_operand.vmem [shape: f32[2,128], index: 3, kind: output, shape index: {1}]
  %4 = xla_tuple %s2, %s3
  %s5 = sld [smem:[#allocation0]]
  $region30: #{discriminator_forward.9} parent=0
    _
  %s7 = ssub.s32 1, %s5
  %s8 = scalar_select 0, %s7, %s5
  // Predicated region
  $region2: #{discriminator_forward.9} parent=0 // pred_check
    _
  $region3: #{discriminator_forward.9} parent=0 // pred_check_branch
    %10 = sbr.rel (0) target = $region5
  $region4: #{discriminator_forward.9} parent=0 // pred_region
    _
  $region5: #{discriminator_forward.9} parent=0 // pred_fallthru
    _
  // Predicated region
  $region6: #{discriminator_forward.9} parent=0 // pred_check
    _
  $region7: #{discriminator_forward.9} parent=0 // pred_check_branch
    %12 = sbr.rel (0) target = $region9
  $region8: #{discriminator_forward.9} parent=0 // pred_region
    _
  $region9: #{discriminator_forward.9} parent=0 // pred_fallthru
    _
  %p13 = scmp.eq.s32.totalorder 0, 0
  // Predicated region
  $region10: #{discriminator_forward.9} parent=0 // pred_check
    %p14 = pneg %p13
  $region11: #{discriminator_forward.9} parent=0 // pred_check_branch
    %16 = sbr.rel (%p14) target = $region13
  $region12: #{discriminator_forward.9} parent=0 // pred_region
    %17 = vst [vmem:[%s3] sm:$0x3] 0.0
  $region13: #{discriminator_forward.9} parent=0 // pred_fallthru
    _
  %v18 = vld [vmem:[%s0] sm:$0xf]
  %v19 = vld [vmem:[%s0 + $0x4] sm:$0xf]
  %v20 = vld [vmem:[%s0 + $0x8] sm:$0xf]
  %v21 = vld [vmem:[%s0 + $0xc] sm:$0xf]
  %v22 = vld [vmem:[%s0 + $0x10] sm:$0xf]
  %v23 = vld [vmem:[%s0 + $0x14] sm:$0xf]
  %v24 = vld [vmem:[%s0 + $0x18] sm:$0xf]
  %v25 = vld [vmem:[%s0 + $0x1c] sm:$0xf]
  %v26 = vld [vmem:[%s0 + $0x20] sm:$0xf]
  %v27 = vld [vmem:[%s0 + $0x24] sm:$0xf]
  %v28 = vld [vmem:[%s0 + $0x28] sm:$0xf]
  %v29 = vld [vmem:[%s0 + $0x2c] sm:$0xf]
  %v30 = vld [vmem:[%s0 + $0x30] sm:$0xf]
  %v31 = vld [vmem:[%s0 + $0x34] sm:$0xf]
  %v32 = vld [vmem:[%s0 + $0x38] sm:$0xf]
  %v33 = vld [vmem:[%s0 + $0x3c] sm:$0xf]
  %v34 = vld [vmem:[%s0 + $0x40] sm:$0xf]
  %v35 = vld [vmem:[%s0 + $0x44] sm:$0xf]
  %v36 = vld [vmem:[%s0 + $0x48] sm:$0xf]
  %v37 = vld [vmem:[%s0 + $0x4c] sm:$0xf]
  %v38 = vld [vmem:[%s0 + $0x50] sm:$0xf]
  %v39 = vld [vmem:[%s0 + $0x54] sm:$0xf]
  %v40 = vld [vmem:[%s0 + $0x58] sm:$0xf]
  %v41 = vld [vmem:[%s0 + $0x5c] sm:$0xf]
  %v42 = vld [vmem:[%s0 + $0x60] sm:$0xf]
  %v43 = vld [vmem:[%s0 + $0x64] sm:$0xf]
  %v44 = vld [vmem:[%s0 + $0x68] sm:$0xf]
  %v45 = vld [vmem:[%s0 + $0x6c] sm:$0xf]
  %v46 = vld [vmem:[%s0 + $0x70] sm:$0xf]
  %v47 = vld [vmem:[%s0 + $0x74] sm:$0xf]
  %v48 = vld [vmem:[%s0 + $0x78] sm:$0xf]
  %v49 = vld [vmem:[%s0 + $0x7c] sm:$0xf]
  %v50 = vld [vmem:[%s0 + $0x80] sm:$0xf]
  %v51 = vld [vmem:[%s0 + $0x84] sm:$0xf]
  %v52 = vld [vmem:[%s0 + $0x88] sm:$0xf]
  %v53 = vld [vmem:[%s0 + $0x8c] sm:$0xf]
  %v54 = vld [vmem:[%s0 + $0x90] sm:$0xf]
  %v55 = vld [vmem:[%s0 + $0x94] sm:$0xf]
  %v56 = vld [vmem:[%s0 + $0x98] sm:$0xf]
  %v57 = vld [vmem:[%s0 + $0x9c] sm:$0xf]
  %v58 = vld [vmem:[%s0 + $0xa0] sm:$0xf]
  %v59 = vld [vmem:[%s0 + $0xa4] sm:$0xf]
  %v60 = vld [vmem:[%s0 + $0xa8] sm:$0xf]
  %v61 = vld [vmem:[%s0 + $0xac] sm:$0xf]
  %v62 = vld [vmem:[%s0 + $0xb0] sm:$0xf]
  %v63 = vld [vmem:[%s0 + $0xb4] sm:$0xf]
  %v64 = vld [vmem:[%s0 + $0xb8] sm:$0xf]
  %v65 = vld [vmem:[%s0 + $0xbc] sm:$0xf]
  %v66 = vld [vmem:[%s0 + $0xc0] sm:$0xf]
  %v67 = vld [vmem:[%s0 + $0xc4] sm:$0xf]
  %v68 = vld [vmem:[%s0 + $0xc8] sm:$0xf]
  %v69 = vld [vmem:[%s0 + $0xcc] sm:$0xf]
  %v70 = vld [vmem:[%s0 + $0xd0] sm:$0xf]
  %v71 = vld [vmem:[%s0 + $0xd4] sm:$0xf]
  %v72 = vld [vmem:[%s0 + $0xd8] sm:$0xf]
  %v73 = vld [vmem:[%s0 + $0xdc] sm:$0xf]
  %v74 = vld [vmem:[%s0 + $0xe0] sm:$0xf]
  %v75 = vld [vmem:[%s0 + $0xe4] sm:$0xf]
  %v76 = vld [vmem:[%s0 + $0xe8] sm:$0xf]
  %v77 = vld [vmem:[%s0 + $0xec] sm:$0xf]
  %v78 = vld [vmem:[%s0 + $0xf0] sm:$0xf]
  %v79 = vld [vmem:[%s0 + $0xf4] sm:$0xf]
  %v80 = vld [vmem:[%s0 + $0xf8] sm:$0xf]
  %v81 = vld [vmem:[%s0 + $0xfc] sm:$0xf]
  %v82 = vld [vmem:[%s1] sm:$0xf]
  %v83 = vld [vmem:[%s1 + $0x4] sm:$0xf]
  %v84 = vld [vmem:[%s1 + $0x8] sm:$0xf]
  %v85 = vld [vmem:[%s1 + $0xc] sm:$0xf]
  %v86 = vld [vmem:[%s1 + $0x10] sm:$0xf]
  %v87 = vld [vmem:[%s1 + $0x14] sm:$0xf]
  %v88 = vld [vmem:[%s1 + $0x18] sm:$0xf]
  %v89 = vld [vmem:[%s1 + $0x1c] sm:$0xf]
  %v90 = vld [vmem:[%s1 + $0x20] sm:$0xf]
  %v91 = vld [vmem:[%s1 + $0x24] sm:$0xf]
  %v92 = vld [vmem:[%s1 + $0x28] sm:$0xf]
  %v93 = vld [vmem:[%s1 + $0x2c] sm:$0xf]
  %v94 = vld [vmem:[%s1 + $0x30] sm:$0xf]
  %v95 = vld [vmem:[%s1 + $0x34] sm:$0xf]
  %v96 = vld [vmem:[%s1 + $0x38] sm:$0xf]
  %v97 = vld [vmem:[%s1 + $0x3c] sm:$0xf]
  %v162 = vunpack.c.l.b16 %v18
  %v163 = vunpack.c.l.b16 %v19
  %v164 = vunpack.c.l.b16 %v20
  %v165 = vunpack.c.l.b16 %v21
  %v166 = vunpack.c.l.b16 %v22
  %v167 = vunpack.c.l.b16 %v23
  %v168 = vunpack.c.l.b16 %v24
  %v169 = vunpack.c.l.b16 %v25
  %v170 = vunpack.c.l.b16 %v26
  %v171 = vunpack.c.l.b16 %v27
  %v172 = vunpack.c.l.b16 %v28
  %v173 = vunpack.c.l.b16 %v29
  %v174 = vunpack.c.l.b16 %v30
  %v175 = vunpack.c.l.b16 %v31
  %v176 = vunpack.c.l.b16 %v32
  %v177 = vunpack.c.l.b16 %v33
  %v178 = vunpack.c.l.b16 %v34
  %v179 = vunpack.c.l.b16 %v35
  %v180 = vunpack.c.l.b16 %v36
  %v181 = vunpack.c.l.b16 %v37
  %v182 = vunpack.c.l.b16 %v38
  %v183 = vunpack.c.l.b16 %v39
  %v184 = vunpack.c.l.b16 %v40
  %v185 = vunpack.c.l.b16 %v41
  %v186 = vunpack.c.l.b16 %v42
  %v187 = vunpack.c.l.b16 %v43
  %v188 = vunpack.c.l.b16 %v44
  %v189 = vunpack.c.l.b16 %v45
  %v190 = vunpack.c.l.b16 %v46
  %v191 = vunpack.c.l.b16 %v47
  %v192 = vunpack.c.l.b16 %v48
  %v193 = vunpack.c.l.b16 %v49
  %v194 = vunpack.c.l.b16 %v50
  %v195 = vunpack.c.l.b16 %v51
  %v196 = vunpack.c.l.b16 %v52
  %v197 = vunpack.c.l.b16 %v53
  %v198 = vunpack.c.l.b16 %v54
  %v199 = vunpack.c.l.b16 %v55
  %v200 = vunpack.c.l.b16 %v56
  %v201 = vunpack.c.l.b16 %v57
  %v202 = vunpack.c.l.b16 %v58
  %v203 = vunpack.c.l.b16 %v59
  %v204 = vunpack.c.l.b16 %v60
  %v205 = vunpack.c.l.b16 %v61
  %v206 = vunpack.c.l.b16 %v62
  %v207 = vunpack.c.l.b16 %v63
  %v208 = vunpack.c.l.b16 %v64
  %v209 = vunpack.c.l.b16 %v65
  %v210 = vunpack.c.l.b16 %v66
  %v211 = vunpack.c.l.b16 %v67
  %v212 = vunpack.c.l.b16 %v68
  %v213 = vunpack.c.l.b16 %v69
  %v214 = vunpack.c.l.b16 %v70
  %v215 = vunpack.c.l.b16 %v71
  %v216 = vunpack.c.l.b16 %v72
  %v217 = vunpack.c.l.b16 %v73
  %v218 = vunpack.c.l.b16 %v74
  %v219 = vunpack.c.l.b16 %v75
  %v220 = vunpack.c.l.b16 %v76
  %v221 = vunpack.c.l.b16 %v77
  %v222 = vunpack.c.l.b16 %v78
  %v223 = vunpack.c.l.b16 %v79
  %v224 = vunpack.c.l.b16 %v80
  %v225 = vunpack.c.l.b16 %v81
  %v226 = vpack.c.b16 %v163, %v162
  %v227 = vpack.c.b16 %v165, %v164
  %v228 = vpack.c.b16 %v167, %v166
  %v229 = vpack.c.b16 %v169, %v168
  %v230 = vpack.c.b16 %v171, %v170
  %v231 = vpack.c.b16 %v173, %v172
  %v232 = vpack.c.b16 %v175, %v174
  %v233 = vpack.c.b16 %v177, %v176
  %v234 = vpack.c.b16 %v179, %v178
  %v235 = vpack.c.b16 %v181, %v180
  %v236 = vpack.c.b16 %v183, %v182
  %v237 = vpack.c.b16 %v185, %v184
  %v238 = vpack.c.b16 %v187, %v186
  %v239 = vpack.c.b16 %v189, %v188
  %v240 = vpack.c.b16 %v191, %v190
  %v241 = vpack.c.b16 %v193, %v192
  %v242 = vpack.c.b16 %v195, %v194
  %v243 = vpack.c.b16 %v197, %v196
  %v244 = vpack.c.b16 %v199, %v198
  %v245 = vpack.c.b16 %v201, %v200
  %v246 = vpack.c.b16 %v203, %v202
  %v247 = vpack.c.b16 %v205, %v204
  %v248 = vpack.c.b16 %v207, %v206
  %v249 = vpack.c.b16 %v209, %v208
  %v250 = vpack.c.b16 %v211, %v210
  %v251 = vpack.c.b16 %v213, %v212
  %v252 = vpack.c.b16 %v215, %v214
  %v253 = vpack.c.b16 %v217, %v216
  %v254 = vpack.c.b16 %v219, %v218
  %v255 = vpack.c.b16 %v221, %v220
  %v256 = vpack.c.b16 %v223, %v222
  %v257 = vpack.c.b16 %v225, %v224
  %v306 = vunpack.c.l.b16 %v82
  %v307 = vunpack.c.l.b16 %v83
  %v308 = vunpack.c.l.b16 %v84
  %v309 = vunpack.c.l.b16 %v85
  %v310 = vunpack.c.l.b16 %v86
  %v311 = vunpack.c.l.b16 %v87
  %v312 = vunpack.c.l.b16 %v88
  %v313 = vunpack.c.l.b16 %v89
  %v314 = vunpack.c.l.b16 %v90
  %v315 = vunpack.c.l.b16 %v91
  %v316 = vunpack.c.l.b16 %v92
  %v317 = vunpack.c.l.b16 %v93
  %v318 = vunpack.c.l.b16 %v94
  %v319 = vunpack.c.l.b16 %v95
  %v320 = vunpack.c.l.b16 %v96
  %v321 = vunpack.c.l.b16 %v97
  %v322 = vpack.c.b16 %v307, %v306
  %v323 = vpack.c.b16 %v309, %v308
  %v324 = vpack.c.b16 %v311, %v310
  %v325 = vpack.c.b16 %v313, %v312
  %v326 = vpack.c.b16 %v315, %v314
  %v327 = vpack.c.b16 %v317, %v316
  %v328 = vpack.c.b16 %v319, %v318
  %v329 = vpack.c.b16 %v321, %v320
  %338 = vmatpush.bf16.msra.mxu0 %v329
  %339 = vmatpush.bf16.msra.mxu0 %v328
  %340 = vmatpush.bf16.msra.mxu0 %v327
  %341 = vmatpush.bf16.msra.mxu0 %v326
  %342 = vmatpush.bf16.msra.mxu0 %v325
  %343 = vmatpush.bf16.msra.mxu0 %v324
  %344 = vmatpush.bf16.msra.mxu0 %v323
  %345 = vmatpush.bf16.msra.mxu0 %v322
  %346 = vmatmul.bf16.gmra.mxu0 %v226
  %v347 = vpop.f32.mrf.mxu0
  %v348 = vadd.f32 0.0, %v347
  %v349 = vpop.f32.mrf.mxu0
  %v350 = vadd.f32 0.0, %v349
  %351 = vmatmul.bf16.gmra.mxu0 %v227
  %v352 = vpop.f32.mrf.mxu0
  %v353 = vadd.f32 0.0, %v352
  %v354 = vpop.f32.mrf.mxu0
  %v355 = vadd.f32 0.0, %v354
  %356 = vmatmul.bf16.gmra.mxu0 %v228
  %v357 = vpop.f32.mrf.mxu0
  %v358 = vadd.f32 0.0, %v357
  %v359 = vpop.f32.mrf.mxu0
  %v360 = vadd.f32 0.0, %v359
  %361 = vmatmul.bf16.gmra.mxu0 %v229
  %v362 = vpop.f32.mrf.mxu0
  %v363 = vadd.f32 0.0, %v362
  %v364 = vpop.f32.mrf.mxu0
  %v365 = vadd.f32 0.0, %v364
  %366 = vmatmul.bf16.gmra.mxu0 %v230
  %v367 = vpop.f32.mrf.mxu0
  %v368 = vadd.f32 0.0, %v367
  %v369 = vpop.f32.mrf.mxu0
  %v370 = vadd.f32 0.0, %v369
  %371 = vmatmul.bf16.gmra.mxu0 %v231
  %v372 = vpop.f32.mrf.mxu0
  %v373 = vadd.f32 0.0, %v372
  %v374 = vpop.f32.mrf.mxu0
  %v375 = vadd.f32 0.0, %v374
  %376 = vmatmul.bf16.gmra.mxu0 %v232
  %v377 = vpop.f32.mrf.mxu0
  %v378 = vadd.f32 0.0, %v377
  %v379 = vpop.f32.mrf.mxu0
  %v380 = vadd.f32 0.0, %v379
  %381 = vmatmul.bf16.gmra.mxu0 %v233
  %v382 = vpop.f32.mrf.mxu0
  %v383 = vadd.f32 0.0, %v382
  %v384 = vpop.f32.mrf.mxu0
  %v385 = vadd.f32 0.0, %v384
  %386 = vmatmul.bf16.gmra.mxu0 %v234
  %v387 = vpop.f32.mrf.mxu0
  %v388 = vadd.f32 0.0, %v387
  %v389 = vpop.f32.mrf.mxu0
  %v390 = vadd.f32 0.0, %v389
  %391 = vmatmul.bf16.gmra.mxu0 %v235
  %v392 = vpop.f32.mrf.mxu0
  %v393 = vadd.f32 0.0, %v392
  %v394 = vpop.f32.mrf.mxu0
  %v395 = vadd.f32 0.0, %v394
  %396 = vmatmul.bf16.gmra.mxu0 %v236
  %v397 = vpop.f32.mrf.mxu0
  %v398 = vadd.f32 0.0, %v397
  %v399 = vpop.f32.mrf.mxu0
  %v400 = vadd.f32 0.0, %v399
  %401 = vmatmul.bf16.gmra.mxu0 %v237
  %v402 = vpop.f32.mrf.mxu0
  %v403 = vadd.f32 0.0, %v402
  %v404 = vpop.f32.mrf.mxu0
  %v405 = vadd.f32 0.0, %v404
  %406 = vmatmul.bf16.gmra.mxu0 %v238
  %v407 = vpop.f32.mrf.mxu0
  %v408 = vadd.f32 0.0, %v407
  %v409 = vpop.f32.mrf.mxu0
  %v410 = vadd.f32 0.0, %v409
  %411 = vmatmul.bf16.gmra.mxu0 %v239
  %v412 = vpop.f32.mrf.mxu0
  %v413 = vadd.f32 0.0, %v412
  %v414 = vpop.f32.mrf.mxu0
  %v415 = vadd.f32 0.0, %v414
  %416 = vmatmul.bf16.gmra.mxu0 %v240
  %v417 = vpop.f32.mrf.mxu0
  %v418 = vadd.f32 0.0, %v417
  %v419 = vpop.f32.mrf.mxu0
  %v420 = vadd.f32 0.0, %v419
  %421 = vmatmul.bf16.gmra.mxu0 %v241
  %v422 = vpop.f32.mrf.mxu0
  %v423 = vadd.f32 0.0, %v422
  %v424 = vpop.f32.mrf.mxu0
  %v425 = vadd.f32 0.0, %v424
  %426 = vmatmul.bf16.gmra.mxu0 %v242
  %v427 = vpop.f32.mrf.mxu0
  %v428 = vadd.f32 0.0, %v427
  %v429 = vpop.f32.mrf.mxu0
  %v430 = vadd.f32 0.0, %v429
  %431 = vmatmul.bf16.gmra.mxu0 %v243
  %v432 = vpop.f32.mrf.mxu0
  %v433 = vadd.f32 0.0, %v432
  %v434 = vpop.f32.mrf.mxu0
  %v435 = vadd.f32 0.0, %v434
  %436 = vmatmul.bf16.gmra.mxu0 %v244
  %v437 = vpop.f32.mrf.mxu0
  %v438 = vadd.f32 0.0, %v437
  %v439 = vpop.f32.mrf.mxu0
  %v440 = vadd.f32 0.0, %v439
  %441 = vmatmul.bf16.gmra.mxu0 %v245
  %v442 = vpop.f32.mrf.mxu0
  %v443 = vadd.f32 0.0, %v442
  %v444 = vpop.f32.mrf.mxu0
  %v445 = vadd.f32 0.0, %v444
  %446 = vmatmul.bf16.gmra.mxu0 %v246
  %v447 = vpop.f32.mrf.mxu0
  %v448 = vadd.f32 0.0, %v447
  %v449 = vpop.f32.mrf.mxu0
  %v450 = vadd.f32 0.0, %v449
  %451 = vmatmul.bf16.gmra.mxu0 %v247
  %v452 = vpop.f32.mrf.mxu0
  %v453 = vadd.f32 0.0, %v452
  %v454 = vpop.f32.mrf.mxu0
  %v455 = vadd.f32 0.0, %v454
  %456 = vmatmul.bf16.gmra.mxu0 %v248
  %v457 = vpop.f32.mrf.mxu0
  %v458 = vadd.f32 0.0, %v457
  %v459 = vpop.f32.mrf.mxu0
  %v460 = vadd.f32 0.0, %v459
  %461 = vmatmul.bf16.gmra.mxu0 %v249
  %v462 = vpop.f32.mrf.mxu0
  %v463 = vadd.f32 0.0, %v462
  %v464 = vpop.f32.mrf.mxu0
  %v465 = vadd.f32 0.0, %v464
  %466 = vmatmul.bf16.gmra.mxu0 %v250
  %v467 = vpop.f32.mrf.mxu0
  %v468 = vadd.f32 0.0, %v467
  %v469 = vpop.f32.mrf.mxu0
  %v470 = vadd.f32 0.0, %v469
  %471 = vmatmul.bf16.gmra.mxu0 %v251
  %v472 = vpop.f32.mrf.mxu0
  %v473 = vadd.f32 0.0, %v472
  %v474 = vpop.f32.mrf.mxu0
  %v475 = vadd.f32 0.0, %v474
  %476 = vmatmul.bf16.gmra.mxu0 %v252
  %v477 = vpop.f32.mrf.mxu0
  %v478 = vadd.f32 0.0, %v477
  %v479 = vpop.f32.mrf.mxu0
  %v480 = vadd.f32 0.0, %v479
  %481 = vmatmul.bf16.gmra.mxu0 %v253
  %v482 = vpop.f32.mrf.mxu0
  %v483 = vadd.f32 0.0, %v482
  %v484 = vpop.f32.mrf.mxu0
  %v485 = vadd.f32 0.0, %v484
  %486 = vmatmul.bf16.gmra.mxu0 %v254
  %v487 = vpop.f32.mrf.mxu0
  %v488 = vadd.f32 0.0, %v487
  %v489 = vpop.f32.mrf.mxu0
  %v490 = vadd.f32 0.0, %v489
  %491 = vmatmul.bf16.gmra.mxu0 %v255
  %v492 = vpop.f32.mrf.mxu0
  %v493 = vadd.f32 0.0, %v492
  %v494 = vpop.f32.mrf.mxu0
  %v495 = vadd.f32 0.0, %v494
  %496 = vmatmul.bf16.gmra.mxu0 %v256
  %v497 = vpop.f32.mrf.mxu0
  %v498 = vadd.f32 0.0, %v497
  %v499 = vpop.f32.mrf.mxu0
  %v500 = vadd.f32 0.0, %v499
  %501 = vmatmul.bf16.gmra.mxu0 %v257
  %v502 = vpop.f32.mrf.mxu0
  %v503 = vadd.f32 0.0, %v502
  %v504 = vpop.f32.mrf.mxu0
  %v505 = vadd.f32 0.0, %v504
  %506 = vdwg.mxu0
  %v507 = vpack.c.bf16 %v348, %v348
  %v508 = vpack.c.bf16 %v350, %v350
  %v509 = vpack.c.bf16 %v353, %v353
  %v510 = vpack.c.bf16 %v355, %v355
  %v511 = vpack.c.bf16 %v358, %v358
  %v512 = vpack.c.bf16 %v360, %v360
  %v513 = vpack.c.bf16 %v363, %v363
  %v514 = vpack.c.bf16 %v365, %v365
  %v515 = vpack.c.bf16 %v368, %v368
  %v516 = vpack.c.bf16 %v370, %v370
  %v517 = vpack.c.bf16 %v373, %v373
  %v518 = vpack.c.bf16 %v375, %v375
  %v519 = vpack.c.bf16 %v378, %v378
  %v520 = vpack.c.bf16 %v380, %v380
  %v521 = vpack.c.bf16 %v383, %v383
  %v522 = vpack.c.bf16 %v385, %v385
  %v523 = vpack.c.bf16 %v388, %v388
  %v524 = vpack.c.bf16 %v390, %v390
  %v525 = vpack.c.bf16 %v393, %v393
  %v526 = vpack.c.bf16 %v395, %v395
  %v527 = vpack.c.bf16 %v398, %v398
  %v528 = vpack.c.bf16 %v400, %v400
  %v529 = vpack.c.bf16 %v403, %v403
  %v530 = vpack.c.bf16 %v405, %v405
  %v531 = vpack.c.bf16 %v408, %v408
  %v532 = vpack.c.bf16 %v410, %v410
  %v533 = vpack.c.bf16 %v413, %v413
  %v534 = vpack.c.bf16 %v415, %v415
  %v535 = vpack.c.bf16 %v418, %v418
  %v536 = vpack.c.bf16 %v420, %v420
  %v537 = vpack.c.bf16 %v423, %v423
  %v538 = vpack.c.bf16 %v425, %v425
  %v539 = vpack.c.bf16 %v428, %v428
  %v540 = vpack.c.bf16 %v430, %v430
  %v541 = vpack.c.bf16 %v433, %v433
  %v542 = vpack.c.bf16 %v435, %v435
  %v543 = vpack.c.bf16 %v438, %v438
  %v544 = vpack.c.bf16 %v440, %v440
  %v545 = vpack.c.bf16 %v443, %v443
  %v546 = vpack.c.bf16 %v445, %v445
  %v547 = vpack.c.bf16 %v448, %v448
  %v548 = vpack.c.bf16 %v450, %v450
  %v549 = vpack.c.bf16 %v453, %v453
  %v550 = vpack.c.bf16 %v455, %v455
  %v551 = vpack.c.bf16 %v458, %v458
  %v552 = vpack.c.bf16 %v460, %v460
  %v553 = vpack.c.bf16 %v463, %v463
  %v554 = vpack.c.bf16 %v465, %v465
  %v555 = vpack.c.bf16 %v468, %v468
  %v556 = vpack.c.bf16 %v470, %v470
  %v557 = vpack.c.bf16 %v473, %v473
  %v558 = vpack.c.bf16 %v475, %v475
  %v559 = vpack.c.bf16 %v478, %v478
  %v560 = vpack.c.bf16 %v480, %v480
  %v561 = vpack.c.bf16 %v483, %v483
  %v562 = vpack.c.bf16 %v485, %v485
  %v563 = vpack.c.bf16 %v488, %v488
  %v564 = vpack.c.bf16 %v490, %v490
  %v565 = vpack.c.bf16 %v493, %v493
  %v566 = vpack.c.bf16 %v495, %v495
  %v567 = vpack.c.bf16 %v498, %v498
  %v568 = vpack.c.bf16 %v500, %v500
  %v569 = vpack.c.bf16 %v503, %v503
  %v570 = vpack.c.bf16 %v505, %v505
  %571 = vst [vmem:[%s2] sm:$0xf] %v507
  %572 = vst [vmem:[%s2 + $0x4] sm:$0xf] %v508
  %573 = vst [vmem:[%s2 + $0x8] sm:$0xf] %v509
  %574 = vst [vmem:[%s2 + $0xc] sm:$0xf] %v510
  %575 = vst [vmem:[%s2 + $0x10] sm:$0xf] %v511
  %576 = vst [vmem:[%s2 + $0x14] sm:$0xf] %v512
  %577 = vst [vmem:[%s2 + $0x18] sm:$0xf] %v513
  %578 = vst [vmem:[%s2 + $0x1c] sm:$0xf] %v514
  %579 = vst [vmem:[%s2 + $0x20] sm:$0xf] %v515
  %580 = vst [vmem:[%s2 + $0x24] sm:$0xf] %v516
  %581 = vst [vmem:[%s2 + $0x28] sm:$0xf] %v517
  %582 = vst [vmem:[%s2 + $0x2c] sm:$0xf] %v518
  %583 = vst [vmem:[%s2 + $0x30] sm:$0xf] %v519
  %584 = vst [vmem:[%s2 + $0x34] sm:$0xf] %v520
  %585 = vst [vmem:[%s2 + $0x38] sm:$0xf] %v521
  %586 = vst [vmem:[%s2 + $0x3c] sm:$0xf] %v522
  %587 = vst [vmem:[%s2 + $0x40] sm:$0xf] %v523
  %588 = vst [vmem:[%s2 + $0x44] sm:$0xf] %v524
  %589 = vst [vmem:[%s2 + $0x48] sm:$0xf] %v525
  %590 = vst [vmem:[%s2 + $0x4c] sm:$0xf] %v526
  %591 = vst [vmem:[%s2 + $0x50] sm:$0xf] %v527
  %592 = vst [vmem:[%s2 + $0x54] sm:$0xf] %v528
  %593 = vst [vmem:[%s2 + $0x58] sm:$0xf] %v529
  %594 = vst [vmem:[%s2 + $0x5c] sm:$0xf] %v530
  %595 = vst [vmem:[%s2 + $0x60] sm:$0xf] %v531
  %596 = vst [vmem:[%s2 + $0x64] sm:$0xf] %v532
  %597 = vst [vmem:[%s2 + $0x68] sm:$0xf] %v533
  %598 = vst [vmem:[%s2 + $0x6c] sm:$0xf] %v534
  %599 = vst [vmem:[%s2 + $0x70] sm:$0xf] %v535
  %600 = vst [vmem:[%s2 + $0x74] sm:$0xf] %v536
  %601 = vst [vmem:[%s2 + $0x78] sm:$0xf] %v537
  %602 = vst [vmem:[%s2 + $0x7c] sm:$0xf] %v538
  %603 = vst [vmem:[%s2 + $0x80] sm:$0xf] %v539
  %604 = vst [vmem:[%s2 + $0x84] sm:$0xf] %v540
  %605 = vst [vmem:[%s2 + $0x88] sm:$0xf] %v541
  %606 = vst [vmem:[%s2 + $0x8c] sm:$0xf] %v542
  %607 = vst [vmem:[%s2 + $0x90] sm:$0xf] %v543
  %608 = vst [vmem:[%s2 + $0x94] sm:$0xf] %v544
  %609 = vst [vmem:[%s2 + $0x98] sm:$0xf] %v545
  %610 = vst [vmem:[%s2 + $0x9c] sm:$0xf] %v546
  %611 = vst [vmem:[%s2 + $0xa0] sm:$0xf] %v547
  %612 = vst [vmem:[%s2 + $0xa4] sm:$0xf] %v548
  %613 = vst [vmem:[%s2 + $0xa8] sm:$0xf] %v549
  %614 = vst [vmem:[%s2 + $0xac] sm:$0xf] %v550
  %615 = vst [vmem:[%s2 + $0xb0] sm:$0xf] %v551
  %616 = vst [vmem:[%s2 + $0xb4] sm:$0xf] %v552
  %617 = vst [vmem:[%s2 + $0xb8] sm:$0xf] %v553
  %618 = vst [vmem:[%s2 + $0xbc] sm:$0xf] %v554
  %619 = vst [vmem:[%s2 + $0xc0] sm:$0xf] %v555
  %620 = vst [vmem:[%s2 + $0xc4] sm:$0xf] %v556
  %621 = vst [vmem:[%s2 + $0xc8] sm:$0xf] %v557
  %622 = vst [vmem:[%s2 + $0xcc] sm:$0xf] %v558
  %623 = vst [vmem:[%s2 + $0xd0] sm:$0xf] %v559
  %624 = vst [vmem:[%s2 + $0xd4] sm:$0xf] %v560
  %625 = vst [vmem:[%s2 + $0xd8] sm:$0xf] %v561
  %626 = vst [vmem:[%s2 + $0xdc] sm:$0xf] %v562
  %627 = vst [vmem:[%s2 + $0xe0] sm:$0xf] %v563
  %628 = vst [vmem:[%s2 + $0xe4] sm:$0xf] %v564
  %629 = vst [vmem:[%s2 + $0xe8] sm:$0xf] %v565
  %630 = vst [vmem:[%s2 + $0xec] sm:$0xf] %v566
  %631 = vst [vmem:[%s2 + $0xf0] sm:$0xf] %v567
  %632 = vst [vmem:[%s2 + $0xf4] sm:$0xf] %v568
  %633 = vst [vmem:[%s2 + $0xf8] sm:$0xf] %v569
  %634 = vst [vmem:[%s2 + $0xfc] sm:$0xf] %v570
  %v635 = vadd.f32 %v348, %v350
  %v636 = vadd.f32 %v635, %v353
  %v637 = vadd.f32 %v636, %v355
  %v638 = vadd.f32 %v637, %v358
  %v639 = vadd.f32 %v638, %v360
  %v640 = vadd.f32 %v639, %v363
  %v641 = vadd.f32 %v640, %v365
  %v642 = vadd.f32 %v641, %v368
  %v643 = vadd.f32 %v642, %v370
  %v644 = vadd.f32 %v643, %v373
  %v645 = vadd.f32 %v644, %v375
  %v646 = vadd.f32 %v645, %v378
  %v647 = vadd.f32 %v646, %v380
  %v648 = vadd.f32 %v647, %v383
  %v649 = vadd.f32 %v648, %v385
  %v650 = vadd.f32 %v649, %v388
  %v651 = vadd.f32 %v650, %v390
  %v652 = vadd.f32 %v651, %v393
  %v653 = vadd.f32 %v652, %v395
  %v654 = vadd.f32 %v653, %v398
  %v655 = vadd.f32 %v654, %v400
  %v656 = vadd.f32 %v655, %v403
  %v657 = vadd.f32 %v656, %v405
  %v658 = vadd.f32 %v657, %v408
  %v659 = vadd.f32 %v658, %v410
  %v660 = vadd.f32 %v659, %v413
  %v661 = vadd.f32 %v660, %v415
  %v662 = vadd.f32 %v661, %v418
  %v663 = vadd.f32 %v662, %v420
  %v664 = vadd.f32 %v663, %v423
  %v665 = vadd.f32 %v664, %v425
  %v666 = vadd.f32 %v665, %v428
  %v667 = vadd.f32 %v666, %v430
  %v668 = vadd.f32 %v667, %v433
  %v669 = vadd.f32 %v668, %v435
  %v670 = vadd.f32 %v669, %v438
  %v671 = vadd.f32 %v670, %v440
  %v672 = vadd.f32 %v671, %v443
  %v673 = vadd.f32 %v672, %v445
  %v674 = vadd.f32 %v673, %v448
  %v675 = vadd.f32 %v674, %v450
  %v676 = vadd.f32 %v675, %v453
  %v677 = vadd.f32 %v676, %v455
  %v678 = vadd.f32 %v677, %v458
  %v679 = vadd.f32 %v678, %v460
  %v680 = vadd.f32 %v679, %v463
  %v681 = vadd.f32 %v680, %v465
  %v682 = vadd.f32 %v681, %v468
  %v683 = vadd.f32 %v682, %v470
  %v684 = vadd.f32 %v683, %v473
  %v685 = vadd.f32 %v684, %v475
  %v686 = vadd.f32 %v685, %v478
  %v687 = vadd.f32 %v686, %v480
  %v688 = vadd.f32 %v687, %v483
  %v689 = vadd.f32 %v688, %v485
  %v690 = vadd.f32 %v689, %v488
  %v691 = vadd.f32 %v690, %v490
  %v692 = vadd.f32 %v691, %v493
  %v693 = vadd.f32 %v692, %v495
  %v694 = vadd.f32 %v693, %v498
  %v695 = vadd.f32 %v694, %v500
  %v696 = vadd.f32 %v695, %v503
  %v697 = vadd.f32 %v696, %v505
  %v698 = vrot.slane %v697, 4
  %v699 = vadd.f32 %v697, %v698
  %v700 = vrot.slane %v699, 2
  %v701 = vadd.f32 %v699, %v700
  %v702 = vrot.slane %v701, 1
  %v703 = vadd.f32 %v701, %v702
  %v704 = vmul.f32 %v348, %v348
  %v705 = vmul.f32 %v350, %v350
  %v706 = vmul.f32 %v353, %v353
  %v707 = vmul.f32 %v355, %v355
  %v708 = vmul.f32 %v358, %v358
  %v709 = vmul.f32 %v360, %v360
  %v710 = vmul.f32 %v363, %v363
  %v711 = vmul.f32 %v365, %v365
  %v712 = vmul.f32 %v368, %v368
  %v713 = vmul.f32 %v370, %v370
  %v714 = vmul.f32 %v373, %v373
  %v715 = vmul.f32 %v375, %v375
  %v716 = vmul.f32 %v378, %v378
  %v717 = vmul.f32 %v380, %v380
  %v718 = vmul.f32 %v383, %v383
  %v719 = vmul.f32 %v385, %v385
  %v720 = vmul.f32 %v388, %v388
  %v721 = vmul.f32 %v390, %v390
  %v722 = vmul.f32 %v393, %v393
  %v723 = vmul.f32 %v395, %v395
  %v724 = vmul.f32 %v398, %v398
  %v725 = vmul.f32 %v400, %v400
  %v726 = vmul.f32 %v403, %v403
  %v727 = vmul.f32 %v405, %v405
  %v728 = vmul.f32 %v408, %v408
  %v729 = vmul.f32 %v410, %v410
  %v730 = vmul.f32 %v413, %v413
  %v731 = vmul.f32 %v415, %v415
  %v732 = vmul.f32 %v418, %v418
  %v733 = vmul.f32 %v420, %v420
  %v734 = vmul.f32 %v423, %v423
  %v735 = vmul.f32 %v425, %v425
  %v736 = vmul.f32 %v428, %v428
  %v737 = vmul.f32 %v430, %v430
  %v738 = vmul.f32 %v433, %v433
  %v739 = vmul.f32 %v435, %v435
  %v740 = vmul.f32 %v438, %v438
  %v741 = vmul.f32 %v440, %v440
  %v742 = vmul.f32 %v443, %v443
  %v743 = vmul.f32 %v445, %v445
  %v744 = vmul.f32 %v448, %v448
  %v745 = vmul.f32 %v450, %v450
  %v746 = vmul.f32 %v453, %v453
  %v747 = vmul.f32 %v455, %v455
  %v748 = vmul.f32 %v458, %v458
  %v749 = vmul.f32 %v460, %v460
  %v750 = vmul.f32 %v463, %v463
  %v751 = vmul.f32 %v465, %v465
  %v752 = vmul.f32 %v468, %v468
  %v753 = vmul.f32 %v470, %v470
  %v754 = vmul.f32 %v473, %v473
  %v755 = vmul.f32 %v475, %v475
  %v756 = vmul.f32 %v478, %v478
  %v757 = vmul.f32 %v480, %v480
  %v758 = vmul.f32 %v483, %v483
  %v759 = vmul.f32 %v485, %v485
  %v760 = vmul.f32 %v488, %v488
  %v761 = vmul.f32 %v490, %v490
  %v762 = vmul.f32 %v493, %v493
  %v763 = vmul.f32 %v495, %v495
  %v764 = vmul.f32 %v498, %v498
  %v765 = vmul.f32 %v500, %v500
  %v766 = vmul.f32 %v503, %v503
  %v767 = vmul.f32 %v505, %v505
  %v768 = vadd.f32 %v704, %v705
  %v769 = vadd.f32 %v768, %v706
  %v770 = vadd.f32 %v769, %v707
  %v771 = vadd.f32 %v770, %v708
  %v772 = vadd.f32 %v771, %v709
  %v773 = vadd.f32 %v772, %v710
  %v774 = vadd.f32 %v773, %v711
  %v775 = vadd.f32 %v774, %v712
  %v776 = vadd.f32 %v775, %v713
  %v777 = vadd.f32 %v776, %v714
  %v778 = vadd.f32 %v777, %v715
  %v779 = vadd.f32 %v778, %v716
  %v780 = vadd.f32 %v779, %v717
  %v781 = vadd.f32 %v780, %v718
  %v782 = vadd.f32 %v781, %v719
  %v783 = vadd.f32 %v782, %v720
  %v784 = vadd.f32 %v783, %v721
  %v785 = vadd.f32 %v784, %v722
  %v786 = vadd.f32 %v785, %v723
  %v787 = vadd.f32 %v786, %v724
  %v788 = vadd.f32 %v787, %v725
  %v789 = vadd.f32 %v788, %v726
  %v790 = vadd.f32 %v789, %v727
  %v791 = vadd.f32 %v790, %v728
  %v792 = vadd.f32 %v791, %v729
  %v793 = vadd.f32 %v792, %v730
  %v794 = vadd.f32 %v793, %v731
  %v795 = vadd.f32 %v794, %v732
  %v796 = vadd.f32 %v795, %v733
  %v797 = vadd.f32 %v796, %v734
  %v798 = vadd.f32 %v797, %v735
  %v799 = vadd.f32 %v798, %v736
  %v800 = vadd.f32 %v799, %v737
  %v801 = vadd.f32 %v800, %v738
  %v802 = vadd.f32 %v801, %v739
  %v803 = vadd.f32 %v802, %v740
  %v804 = vadd.f32 %v803, %v741
  %v805 = vadd.f32 %v804, %v742
  %v806 = vadd.f32 %v805, %v743
  %v807 = vadd.f32 %v806, %v744
  %v808 = vadd.f32 %v807, %v745
  %v809 = vadd.f32 %v808, %v746
  %v810 = vadd.f32 %v809, %v747
  %v811 = vadd.f32 %v810, %v748
  %v812 = vadd.f32 %v811, %v749
  %v813 = vadd.f32 %v812, %v750
  %v814 = vadd.f32 %v813, %v751
  %v815 = vadd.f32 %v814, %v752
  %v816 = vadd.f32 %v815, %v753
  %v817 = vadd.f32 %v816, %v754
  %v818 = vadd.f32 %v817, %v755
  %v819 = vadd.f32 %v818, %v756
  %v820 = vadd.f32 %v819, %v757
  %v821 = vadd.f32 %v820, %v758
  %v822 = vadd.f32 %v821, %v759
  %v823 = vadd.f32 %v822, %v760
  %v824 = vadd.f32 %v823, %v761
  %v825 = vadd.f32 %v824, %v762
  %v826 = vadd.f32 %v825, %v763
  %v827 = vadd.f32 %v826, %v764
  %v828 = vadd.f32 %v827, %v765
  %v829 = vadd.f32 %v828, %v766
  %v830 = vadd.f32 %v829, %v767
  %v831 = vrot.slane %v830, 4
  %v832 = vadd.f32 %v830, %v831
  %v833 = vrot.slane %v832, 2
  %v834 = vadd.f32 %v832, %v833
  %v835 = vrot.slane %v834, 1
  %v836 = vadd.f32 %v834, %v835
  %vm837 = vcmask 1040384
  %v838 = vsel %vm837, %v703, %v836
  %v839 = vld [vmem:[%s3] sm:$0x3]
  %v840 = vadd.f32 %v839, %v838
  %841 = vst [vmem:[%s3] sm:$0x3] %v840
  // Predicated region
  $region14: #{discriminator_forward.9} parent=0 // pred_check
    _
  $region15: #{discriminator_forward.9} parent=0 // pred_check_branch
    %843 = sbr.rel (0) target = $region17
  $region16: #{discriminator_forward.9} parent=0 // pred_region
    _
  $region17: #{discriminator_forward.9} parent=0 // pred_fallthru
    _
  // Predicated region
  $region18: #{discriminator_forward.9} parent=0 // pred_check
    _
  $region19: #{discriminator_forward.9} parent=0 // pred_check_branch
    %845 = sbr.rel (0) target = $region21
  $region20: #{discriminator_forward.9} parent=0 // pred_region
    _
  $region21: #{discriminator_forward.9} parent=0 // pred_fallthru
    _
  // Predicated region
  $region22: #{discriminator_forward.9} parent=0 // pred_check
    _
  $region23: #{discriminator_forward.9} parent=0 // pred_check_branch
    %847 = sbr.rel (0) target = $region25
  $region24: #{discriminator_forward.9} parent=0 // pred_region
    _
  $region25: #{discriminator_forward.9} parent=0 // pred_fallthru
    _
  // Predicated region
  $region26: #{discriminator_forward.9} parent=0 // pred_check
    _
  $region27: #{discriminator_forward.9} parent=0 // pred_check_branch
    %849 = sbr.rel (0) target = $region29
  $region28: #{discriminator_forward.9} parent=0 // pred_region
    _
  $region29: #{discriminator_forward.9} parent=0 // pred_fallthru
    _

// kernel: discriminator_forward.10
$region0: #{discriminator_forward.10}
  #allocation0 [shape = 'u32[]', space=smem, size = 0x4, offset = 0x4, fixed_abs, tag = 'smem constant byte address 0x4 - core index']
  #allocation1 [shape = 'u32[72,128]{1,0:T(1,128)}', space=vmem, size = 0x9000, scoped, tag = 'internal scratch']
  %s0 = inlined_call_operand.vmem [shape: bf16[512,128], index: 0, kind: input, shape index: {}]
  %s1 = inlined_call_operand.vmem [shape: f32[1,128], index: 1, kind: input, shape index: {}]
  %s2 = inlined_call_operand.vmem [shape: f32[1,128], index: 2, kind: input, shape index: {}]
  %s3 = inlined_call_operand.vmem [shape: bf16[512,128], index: 3, kind: output, shape index: {}]
  %s4 = sld [smem:[#allocation0]]
  $region22: #{discriminator_forward.10} parent=0
    _
  %s6 = ssub.s32 1, %s4
  %s7 = scalar_select 0, %s6, %s4
  // Predicated region
  $region2: #{discriminator_forward.10} parent=0 // pred_check
    _
  $region3: #{discriminator_forward.10} parent=0 // pred_check_branch
    %9 = sbr.rel (0) target = $region5
  $region4: #{discriminator_forward.10} parent=0 // pred_region
    _
  $region5: #{discriminator_forward.10} parent=0 // pred_fallthru
    _
  // Predicated region
  $region6: #{discriminator_forward.10} parent=0 // pred_check
    _
  $region7: #{discriminator_forward.10} parent=0 // pred_check_branch
    %11 = sbr.rel (0) target = $region9
  $region8: #{discriminator_forward.10} parent=0 // pred_region
    _
  $region9: #{discriminator_forward.10} parent=0 // pred_fallthru
    _
  // Predicated region
  $region10: #{discriminator_forward.10} parent=0 // pred_check
    _
  $region11: #{discriminator_forward.10} parent=0 // pred_check_branch
    %13 = sbr.rel (0) target = $region13
  $region12: #{discriminator_forward.10} parent=0 // pred_region
    _
  $region13: #{discriminator_forward.10} parent=0 // pred_fallthru
    _
  %v14 = vld [vmem:[%s0] sm:$0xf]
  %v15 = vld [vmem:[%s0 + $0x4] sm:$0xf]
  %v16 = vld [vmem:[%s0 + $0x8] sm:$0xf]
  %v17 = vld [vmem:[%s0 + $0xc] sm:$0xf]
  %v18 = vld [vmem:[%s0 + $0x10] sm:$0xf]
  %v19 = vld [vmem:[%s0 + $0x14] sm:$0xf]
  %v20 = vld [vmem:[%s0 + $0x18] sm:$0xf]
  %v21 = vld [vmem:[%s0 + $0x1c] sm:$0xf]
  %v22 = vld [vmem:[%s0 + $0x20] sm:$0xf]
  %v23 = vld [vmem:[%s0 + $0x24] sm:$0xf]
  %v24 = vld [vmem:[%s0 + $0x28] sm:$0xf]
  %v25 = vld [vmem:[%s0 + $0x2c] sm:$0xf]
  %v26 = vld [vmem:[%s0 + $0x30] sm:$0xf]
  %v27 = vld [vmem:[%s0 + $0x34] sm:$0xf]
  %v28 = vld [vmem:[%s0 + $0x38] sm:$0xf]
  %v29 = vld [vmem:[%s0 + $0x3c] sm:$0xf]
  %v30 = vld [vmem:[%s0 + $0x40] sm:$0xf]
  %v31 = vld [vmem:[%s0 + $0x44] sm:$0xf]
  %v32 = vld [vmem:[%s0 + $0x48] sm:$0xf]
  %v33 = vld [vmem:[%s0 + $0x4c] sm:$0xf]
  %v34 = vld [vmem:[%s0 + $0x50] sm:$0xf]
  %v35 = vld [vmem:[%s0 + $0x54] sm:$0xf]
  %v36 = vld [vmem:[%s0 + $0x58] sm:$0xf]
  %v37 = vld [vmem:[%s0 + $0x5c] sm:$0xf]
  %v38 = vld [vmem:[%s0 + $0x60] sm:$0xf]
  %v39 = vld [vmem:[%s0 + $0x64] sm:$0xf]
  %v40 = vld [vmem:[%s0 + $0x68] sm:$0xf]
  %v41 = vld [vmem:[%s0 + $0x6c] sm:$0xf]
  %v42 = vld [vmem:[%s0 + $0x70] sm:$0xf]
  %v43 = vld [vmem:[%s0 + $0x74] sm:$0xf]
  %v44 = vld [vmem:[%s0 + $0x78] sm:$0xf]
  %v45 = vld [vmem:[%s0 + $0x7c] sm:$0xf]
  %v46 = vld [vmem:[%s0 + $0x80] sm:$0xf]
  %v47 = vld [vmem:[%s0 + $0x84] sm:$0xf]
  %v48 = vld [vmem:[%s0 + $0x88] sm:$0xf]
  %v49 = vld [vmem:[%s0 + $0x8c] sm:$0xf]
  %v50 = vld [vmem:[%s0 + $0x90] sm:$0xf]
  %v51 = vld [vmem:[%s0 + $0x94] sm:$0xf]
  %v52 = vld [vmem:[%s0 + $0x98] sm:$0xf]
  %v53 = vld [vmem:[%s0 + $0x9c] sm:$0xf]
  %v54 = vld [vmem:[%s0 + $0xa0] sm:$0xf]
  %v55 = vld [vmem:[%s0 + $0xa4] sm:$0xf]
  %v56 = vld [vmem:[%s0 + $0xa8] sm:$0xf]
  %v57 = vld [vmem:[%s0 + $0xac] sm:$0xf]
  %v58 = vld [vmem:[%s0 + $0xb0] sm:$0xf]
  %v59 = vld [vmem:[%s0 + $0xb4] sm:$0xf]
  %v60 = vld [vmem:[%s0 + $0xb8] sm:$0xf]
  %v61 = vld [vmem:[%s0 + $0xbc] sm:$0xf]
  %v62 = vld [vmem:[%s0 + $0xc0] sm:$0xf]
  %v63 = vld [vmem:[%s0 + $0xc4] sm:$0xf]
  %v64 = vld [vmem:[%s0 + $0xc8] sm:$0xf]
  %v65 = vld [vmem:[%s0 + $0xcc] sm:$0xf]
  %v66 = vld [vmem:[%s0 + $0xd0] sm:$0xf]
  %v67 = vld [vmem:[%s0 + $0xd4] sm:$0xf]
  %v68 = vld [vmem:[%s0 + $0xd8] sm:$0xf]
  %v69 = vld [vmem:[%s0 + $0xdc] sm:$0xf]
  %v70 = vld [vmem:[%s0 + $0xe0] sm:$0xf]
  %v71 = vld [vmem:[%s0 + $0xe4] sm:$0xf]
  %v72 = vld [vmem:[%s0 + $0xe8] sm:$0xf]
  %v73 = vld [vmem:[%s0 + $0xec] sm:$0xf]
  %v74 = vld [vmem:[%s0 + $0xf0] sm:$0xf]
  %v75 = vld [vmem:[%s0 + $0xf4] sm:$0xf]
  %v76 = vld [vmem:[%s0 + $0xf8] sm:$0xf]
  %v77 = vld [vmem:[%s0 + $0xfc] sm:$0xf]
  %v78 = vunpack.c.l.bf16 %v14
  %v79 = vunpack.c.l.bf16 %v15
  %v80 = vunpack.c.l.bf16 %v16
  %v81 = vunpack.c.l.bf16 %v17
  %v82 = vunpack.c.l.bf16 %v18
  %v83 = vunpack.c.l.bf16 %v19
  %v84 = vunpack.c.l.bf16 %v20
  %v85 = vunpack.c.l.bf16 %v21
  %v86 = vunpack.c.l.bf16 %v22
  %v87 = vunpack.c.l.bf16 %v23
  %v88 = vunpack.c.l.bf16 %v24
  %v89 = vunpack.c.l.bf16 %v25
  %v90 = vunpack.c.l.bf16 %v26
  %v91 = vunpack.c.l.bf16 %v27
  %v92 = vunpack.c.l.bf16 %v28
  %v93 = vunpack.c.l.bf16 %v29
  %v94 = vunpack.c.l.bf16 %v30
  %v95 = vunpack.c.l.bf16 %v31
  %v96 = vunpack.c.l.bf16 %v32
  %v97 = vunpack.c.l.bf16 %v33
  %v98 = vunpack.c.l.bf16 %v34
  %v99 = vunpack.c.l.bf16 %v35
  %v100 = vunpack.c.l.bf16 %v36
  %v101 = vunpack.c.l.bf16 %v37
  %v102 = vunpack.c.l.bf16 %v38
  %v103 = vunpack.c.l.bf16 %v39
  %v104 = vunpack.c.l.bf16 %v40
  %v105 = vunpack.c.l.bf16 %v41
  %v106 = vunpack.c.l.bf16 %v42
  %v107 = vunpack.c.l.bf16 %v43
  %v108 = vunpack.c.l.bf16 %v44
  %v109 = vunpack.c.l.bf16 %v45
  %v110 = vunpack.c.l.bf16 %v46
  %v111 = vunpack.c.l.bf16 %v47
  %v112 = vunpack.c.l.bf16 %v48
  %v113 = vunpack.c.l.bf16 %v49
  %v114 = vunpack.c.l.bf16 %v50
  %v115 = vunpack.c.l.bf16 %v51
  %v116 = vunpack.c.l.bf16 %v52
  %v117 = vunpack.c.l.bf16 %v53
  %v118 = vunpack.c.l.bf16 %v54
  %v119 = vunpack.c.l.bf16 %v55
  %v120 = vunpack.c.l.bf16 %v56
  %v121 = vunpack.c.l.bf16 %v57
  %v122 = vunpack.c.l.bf16 %v58
  %v123 = vunpack.c.l.bf16 %v59
  %v124 = vunpack.c.l.bf16 %v60
  %v125 = vunpack.c.l.bf16 %v61
  %v126 = vunpack.c.l.bf16 %v62
  %v127 = vunpack.c.l.bf16 %v63
  %v128 = vunpack.c.l.bf16 %v64
  %v129 = vunpack.c.l.bf16 %v65
  %v130 = vunpack.c.l.bf16 %v66
  %v131 = vunpack.c.l.bf16 %v67
  %v132 = vunpack.c.l.bf16 %v68
  %v133 = vunpack.c.l.bf16 %v69
  %v134 = vunpack.c.l.bf16 %v70
  %v135 = vunpack.c.l.bf16 %v71
  %v136 = vunpack.c.l.bf16 %v72
  %v137 = vunpack.c.l.bf16 %v73
  %v138 = vunpack.c.l.bf16 %v74
  %v139 = vunpack.c.l.bf16 %v75
  %v140 = vunpack.c.l.bf16 %v76
  %v141 = vunpack.c.l.bf16 %v77
  %v142 = vld [vmem:[%s1] sm:$0x1]
  %v144 = vperm.slane %v142, 0
  %v146 = vmul.f32 %v78, %v144
  %v147 = vmul.f32 %v79, %v144
  %v148 = vmul.f32 %v80, %v144
  %v149 = vmul.f32 %v81, %v144
  %v150 = vmul.f32 %v82, %v144
  %v151 = vmul.f32 %v83, %v144
  %v152 = vmul.f32 %v84, %v144
  %v153 = vmul.f32 %v85, %v144
  %v154 = vmul.f32 %v86, %v144
  %v155 = vmul.f32 %v87, %v144
  %v156 = vmul.f32 %v88, %v144
  %v157 = vmul.f32 %v89, %v144
  %v158 = vmul.f32 %v90, %v144
  %v159 = vmul.f32 %v91, %v144
  %v160 = vmul.f32 %v92, %v144
  %v161 = vmul.f32 %v93, %v144
  %v162 = vmul.f32 %v94, %v144
  %v163 = vmul.f32 %v95, %v144
  %v164 = vmul.f32 %v96, %v144
  %v165 = vmul.f32 %v97, %v144
  %v166 = vmul.f32 %v98, %v144
  %v167 = vmul.f32 %v99, %v144
  %v168 = vmul.f32 %v100, %v144
  %v169 = vmul.f32 %v101, %v144
  %v170 = vmul.f32 %v102, %v144
  %v171 = vmul.f32 %v103, %v144
  %v172 = vmul.f32 %v104, %v144
  %v173 = vmul.f32 %v105, %v144
  %v174 = vmul.f32 %v106, %v144
  %v175 = vmul.f32 %v107, %v144
  %v176 = vmul.f32 %v108, %v144
  %v177 = vmul.f32 %v109, %v144
  %v178 = vmul.f32 %v110, %v144
  %v179 = vmul.f32 %v111, %v144
  %v180 = vmul.f32 %v112, %v144
  %v181 = vmul.f32 %v113, %v144
  %v182 = vmul.f32 %v114, %v144
  %v183 = vmul.f32 %v115, %v144
  %v184 = vmul.f32 %v116, %v144
  %v185 = vmul.f32 %v117, %v144
  %v186 = vmul.f32 %v118, %v144
  %v187 = vmul.f32 %v119, %v144
  %v188 = vmul.f32 %v120, %v144
  %v189 = vmul.f32 %v121, %v144
  %v190 = vmul.f32 %v122, %v144
  %v191 = vmul.f32 %v123, %v144
  %v192 = vmul.f32 %v124, %v144
  %v193 = vmul.f32 %v125, %v144
  %v194 = vmul.f32 %v126, %v144
  %v195 = vmul.f32 %v127, %v144
  %v196 = vmul.f32 %v128, %v144
  %v197 = vmul.f32 %v129, %v144
  %v198 = vmul.f32 %v130, %v144
  %v199 = vmul.f32 %v131, %v144
  %v200 = vmul.f32 %v132, %v144
  %v201 = vmul.f32 %v133, %v144
  %v202 = vmul.f32 %v134, %v144
  %v203 = vmul.f32 %v135, %v144
  %v204 = vmul.f32 %v136, %v144
  %v205 = vmul.f32 %v137, %v144
  %v206 = vmul.f32 %v138, %v144
  %v207 = vmul.f32 %v139, %v144
  %v208 = vmul.f32 %v140, %v144
  %v209 = vmul.f32 %v141, %v144
  %v210 = vld [vmem:[%s2] sm:$0x1]
  %v212 = vperm.slane %v210, 0
  %v214 = vadd.f32 %v146, %v212
  %v215 = vadd.f32 %v147, %v212
  %v216 = vadd.f32 %v148, %v212
  %v217 = vadd.f32 %v149, %v212
  %v218 = vadd.f32 %v150, %v212
  %v219 = vadd.f32 %v151, %v212
  %v220 = vadd.f32 %v152, %v212
  %v221 = vadd.f32 %v153, %v212
  %v222 = vadd.f32 %v154, %v212
  %v223 = vadd.f32 %v155, %v212
  %v224 = vadd.f32 %v156, %v212
  %v225 = vadd.f32 %v157, %v212
  %v226 = vadd.f32 %v158, %v212
  %v227 = vadd.f32 %v159, %v212
  %v228 = vadd.f32 %v160, %v212
  %v229 = vadd.f32 %v161, %v212
  %v230 = vadd.f32 %v162, %v212
  %v231 = vadd.f32 %v163, %v212
  %v232 = vadd.f32 %v164, %v212
  %v233 = vadd.f32 %v165, %v212
  %v234 = vadd.f32 %v166, %v212
  %v235 = vadd.f32 %v167, %v212
  %v236 = vadd.f32 %v168, %v212
  %v237 = vadd.f32 %v169, %v212
  %v238 = vadd.f32 %v170, %v212
  %v239 = vadd.f32 %v171, %v212
  %v240 = vadd.f32 %v172, %v212
  %v241 = vadd.f32 %v173, %v212
  %v242 = vadd.f32 %v174, %v212
  %v243 = vadd.f32 %v175, %v212
  %v244 = vadd.f32 %v176, %v212
  %v245 = vadd.f32 %v177, %v212
  %v246 = vadd.f32 %v178, %v212
  %v247 = vadd.f32 %v179, %v212
  %v248 = vadd.f32 %v180, %v212
  %v249 = vadd.f32 %v181, %v212
  %v250 = vadd.f32 %v182, %v212
  %v251 = vadd.f32 %v183, %v212
  %v252 = vadd.f32 %v184, %v212
  %v253 = vadd.f32 %v185, %v212
  %v254 = vadd.f32 %v186, %v212
  %v255 = vadd.f32 %v187, %v212
  %v256 = vadd.f32 %v188, %v212
  %v257 = vadd.f32 %v189, %v212
  %v258 = vadd.f32 %v190, %v212
  %v259 = vadd.f32 %v191, %v212
  %v260 = vadd.f32 %v192, %v212
  %v261 = vadd.f32 %v193, %v212
  %v262 = vadd.f32 %v194, %v212
  %v263 = vadd.f32 %v195, %v212
  %v264 = vadd.f32 %v196, %v212
  %v265 = vadd.f32 %v197, %v212
  %v266 = vadd.f32 %v198, %v212
  %v267 = vadd.f32 %v199, %v212
  %v268 = vadd.f32 %v200, %v212
  %v269 = vadd.f32 %v201, %v212
  %v270 = vadd.f32 %v202, %v212
  %v271 = vadd.f32 %v203, %v212
  %v272 = vadd.f32 %v204, %v212
  %v273 = vadd.f32 %v205, %v212
  %v274 = vadd.f32 %v206, %v212
  %v275 = vadd.f32 %v207, %v212
  %v276 = vadd.f32 %v208, %v212
  %v277 = vadd.f32 %v209, %v212
  %vm278 = vcmp.gt.f32.partialorder %v214, 0.0
  %vm279 = vcmp.gt.f32.partialorder %v215, 0.0
  %vm280 = vcmp.gt.f32.partialorder %v216, 0.0
  %vm281 = vcmp.gt.f32.partialorder %v217, 0.0
  %vm282 = vcmp.gt.f32.partialorder %v218, 0.0
  %vm283 = vcmp.gt.f32.partialorder %v219, 0.0
  %vm284 = vcmp.gt.f32.partialorder %v220, 0.0
  %vm285 = vcmp.gt.f32.partialorder %v221, 0.0
  %vm286 = vcmp.gt.f32.partialorder %v222, 0.0
  %vm287 = vcmp.gt.f32.partialorder %v223, 0.0
  %vm288 = vcmp.gt.f32.partialorder %v224, 0.0
  %vm289 = vcmp.gt.f32.partialorder %v225, 0.0
  %vm290 = vcmp.gt.f32.partialorder %v226, 0.0
  %vm291 = vcmp.gt.f32.partialorder %v227, 0.0
  %vm292 = vcmp.gt.f32.partialorder %v228, 0.0
  %vm293 = vcmp.gt.f32.partialorder %v229, 0.0
  %vm294 = vcmp.gt.f32.partialorder %v230, 0.0
  %vm295 = vcmp.gt.f32.partialorder %v231, 0.0
  %vm296 = vcmp.gt.f32.partialorder %v232, 0.0
  %vm297 = vcmp.gt.f32.partialorder %v233, 0.0
  %vm298 = vcmp.gt.f32.partialorder %v234, 0.0
  %vm299 = vcmp.gt.f32.partialorder %v235, 0.0
  %vm300 = vcmp.gt.f32.partialorder %v236, 0.0
  %vm301 = vcmp.gt.f32.partialorder %v237, 0.0
  %vm302 = vcmp.gt.f32.partialorder %v238, 0.0
  %vm303 = vcmp.gt.f32.partialorder %v239, 0.0
  %vm304 = vcmp.gt.f32.partialorder %v240, 0.0
  %vm305 = vcmp.gt.f32.partialorder %v241, 0.0
  %vm306 = vcmp.gt.f32.partialorder %v242, 0.0
  %vm307 = vcmp.gt.f32.partialorder %v243, 0.0
  %vm308 = vcmp.gt.f32.partialorder %v244, 0.0
  %vm309 = vcmp.gt.f32.partialorder %v245, 0.0
  %vm310 = vcmp.gt.f32.partialorder %v246, 0.0
  %vm311 = vcmp.gt.f32.partialorder %v247, 0.0
  %vm312 = vcmp.gt.f32.partialorder %v248, 0.0
  %vm313 = vcmp.gt.f32.partialorder %v249, 0.0
  %vm314 = vcmp.gt.f32.partialorder %v250, 0.0
  %vm315 = vcmp.gt.f32.partialorder %v251, 0.0
  %vm316 = vcmp.gt.f32.partialorder %v252, 0.0
  %vm317 = vcmp.gt.f32.partialorder %v253, 0.0
  %vm318 = vcmp.gt.f32.partialorder %v254, 0.0
  %vm319 = vcmp.gt.f32.partialorder %v255, 0.0
  %vm320 = vcmp.gt.f32.partialorder %v256, 0.0
  %vm321 = vcmp.gt.f32.partialorder %v257, 0.0
  %vm322 = vcmp.gt.f32.partialorder %v258, 0.0
  %vm323 = vcmp.gt.f32.partialorder %v259, 0.0
  %vm324 = vcmp.gt.f32.partialorder %v260, 0.0
  %vm325 = vcmp.gt.f32.partialorder %v261, 0.0
  %vm326 = vcmp.gt.f32.partialorder %v262, 0.0
  %vm327 = vcmp.gt.f32.partialorder %v263, 0.0
  %vm328 = vcmp.gt.f32.partialorder %v264, 0.0
  %vm329 = vcmp.gt.f32.partialorder %v265, 0.0
  %vm330 = vcmp.gt.f32.partialorder %v266, 0.0
  %vm331 = vcmp.gt.f32.partialorder %v267, 0.0
  %vm332 = vcmp.gt.f32.partialorder %v268, 0.0
  %vm333 = vcmp.gt.f32.partialorder %v269, 0.0
  %vm334 = vcmp.gt.f32.partialorder %v270, 0.0
  %vm335 = vcmp.gt.f32.partialorder %v271, 0.0
  %vm336 = vcmp.gt.f32.partialorder %v272, 0.0
  %vm337 = vcmp.gt.f32.partialorder %v273, 0.0
  %vm338 = vcmp.gt.f32.partialorder %v274, 0.0
  %vm339 = vcmp.gt.f32.partialorder %v275, 0.0
  %vm340 = vcmp.gt.f32.partialorder %v276, 0.0
  %vm341 = vcmp.gt.f32.partialorder %v277, 0.0
  %v342 = vmul.f32 %v214, 0.2
  %v343 = vmul.f32 %v215, 0.2
  %v344 = vmul.f32 %v216, 0.2
  %v345 = vmul.f32 %v217, 0.2
  %v346 = vmul.f32 %v218, 0.2
  %v347 = vmul.f32 %v219, 0.2
  %v348 = vmul.f32 %v220, 0.2
  %v349 = vmul.f32 %v221, 0.2
  %v350 = vmul.f32 %v222, 0.2
  %v351 = vmul.f32 %v223, 0.2
  %v352 = vmul.f32 %v224, 0.2
  %v353 = vmul.f32 %v225, 0.2
  %v354 = vmul.f32 %v226, 0.2
  %v355 = vmul.f32 %v227, 0.2
  %v356 = vmul.f32 %v228, 0.2
  %v357 = vmul.f32 %v229, 0.2
  %v358 = vmul.f32 %v230, 0.2
  %v359 = vmul.f32 %v231, 0.2
  %v360 = vmul.f32 %v232, 0.2
  %v361 = vmul.f32 %v233, 0.2
  %v362 = vmul.f32 %v234, 0.2
  %v363 = vmul.f32 %v235, 0.2
  %v364 = vmul.f32 %v236, 0.2
  %v365 = vmul.f32 %v237, 0.2
  %v366 = vmul.f32 %v238, 0.2
  %v367 = vmul.f32 %v239, 0.2
  %v368 = vmul.f32 %v240, 0.2
  %v369 = vmul.f32 %v241, 0.2
  %v370 = vmul.f32 %v242, 0.2
  %v371 = vmul.f32 %v243, 0.2
  %v372 = vmul.f32 %v244, 0.2
  %v373 = vmul.f32 %v245, 0.2
  %v374 = vmul.f32 %v246, 0.2
  %v375 = vmul.f32 %v247, 0.2
  %v376 = vmul.f32 %v248, 0.2
  %v377 = vmul.f32 %v249, 0.2
  %v378 = vmul.f32 %v250, 0.2
  %v379 = vmul.f32 %v251, 0.2
  %v380 = vmul.f32 %v252, 0.2
  %v381 = vmul.f32 %v253, 0.2
  %v382 = vmul.f32 %v254, 0.2
  %v383 = vmul.f32 %v255, 0.2
  %v384 = vmul.f32 %v256, 0.2
  %v385 = vmul.f32 %v257, 0.2
  %v386 = vmul.f32 %v258, 0.2
  %v387 = vmul.f32 %v259, 0.2
  %v388 = vmul.f32 %v260, 0.2
  %v389 = vmul.f32 %v261, 0.2
  %v390 = vmul.f32 %v262, 0.2
  %v391 = vmul.f32 %v263, 0.2
  %v392 = vmul.f32 %v264, 0.2
  %v393 = vmul.f32 %v265, 0.2
  %v394 = vmul.f32 %v266, 0.2
  %v395 = vmul.f32 %v267, 0.2
  %v396 = vmul.f32 %v268, 0.2
  %v397 = vmul.f32 %v269, 0.2
  %v398 = vmul.f32 %v270, 0.2
  %v399 = vmul.f32 %v271, 0.2
  %v400 = vmul.f32 %v272, 0.2
  %v401 = vmul.f32 %v273, 0.2
  %v402 = vmul.f32 %v274, 0.2
  %v403 = vmul.f32 %v275, 0.2
  %v404 = vmul.f32 %v276, 0.2
  %v405 = vmul.f32 %v277, 0.2
  %v406 = vsel %vm278, %v214, %v342
  %v407 = vsel %vm279, %v215, %v343
  %v408 = vsel %vm280, %v216, %v344
  %v409 = vsel %vm281, %v217, %v345
  %v410 = vsel %vm282, %v218, %v346
  %v411 = vsel %vm283, %v219, %v347
  %v412 = vsel %vm284, %v220, %v348
  %v413 = vsel %vm285, %v221, %v349
  %v414 = vsel %vm286, %v222, %v350
  %v415 = vsel %vm287, %v223, %v351
  %v416 = vsel %vm288, %v224, %v352
  %v417 = vsel %vm289, %v225, %v353
  %v418 = vsel %vm290, %v226, %v354
  %v419 = vsel %vm291, %v227, %v355
  %v420 = vsel %vm292, %v228, %v356
  %v421 = vsel %vm293, %v229, %v357
  %v422 = vsel %vm294, %v230, %v358
  %v423 = vsel %vm295, %v231, %v359
  %v424 = vsel %vm296, %v232, %v360
  %v425 = vsel %vm297, %v233, %v361
  %v426 = vsel %vm298, %v234, %v362
  %v427 = vsel %vm299, %v235, %v363
  %v428 = vsel %vm300, %v236, %v364
  %v429 = vsel %vm301, %v237, %v365
  %v430 = vsel %vm302, %v238, %v366
  %v431 = vsel %vm303, %v239, %v367
  %v432 = vsel %vm304, %v240, %v368
  %v433 = vsel %vm305, %v241, %v369
  %v434 = vsel %vm306, %v242, %v370
  %v435 = vsel %vm307, %v243, %v371
  %v436 = vsel %vm308, %v244, %v372
  %v437 = vsel %vm309, %v245, %v373
  %v438 = vsel %vm310, %v246, %v374
  %v439 = vsel %vm311, %v247, %v375
  %v440 = vsel %vm312, %v248, %v376
  %v441 = vsel %vm313, %v249, %v377
  %v442 = vsel %vm314, %v250, %v378
  %v443 = vsel %vm315, %v251, %v379
  %v444 = vsel %vm316, %v252, %v380
  %v445 = vsel %vm317, %v253, %v381
  %v446 = vsel %vm318, %v254, %v382
  %v447 = vsel %vm319, %v255, %v383
  %v448 = vsel %vm320, %v256, %v384
  %v449 = vsel %vm321, %v257, %v385
  %v450 = vsel %vm322, %v258, %v386
  %v451 = vsel %vm323, %v259, %v387
  %v452 = vsel %vm324, %v260, %v388
  %v453 = vsel %vm325, %v261, %v389
  %v454 = vsel %vm326, %v262, %v390
  %v455 = vsel %vm327, %v263, %v391
  %v456 = vsel %vm328, %v264, %v392
  %v457 = vsel %vm329, %v265, %v393
  %v458 = vsel %vm330, %v266, %v394
  %v459 = vsel %vm331, %v267, %v395
  %v460 = vsel %vm332, %v268, %v396
  %v461 = vsel %vm333, %v269, %v397
  %v462 = vsel %vm334, %v270, %v398
  %v463 = vsel %vm335, %v271, %v399
  %v464 = vsel %vm336, %v272, %v400
  %v465 = vsel %vm337, %v273, %v401
  %v466 = vsel %vm338, %v274, %v402
  %v467 = vsel %vm339, %v275, %v403
  %v468 = vsel %vm340, %v276, %v404
  %v469 = vsel %vm341, %v277, %v405
  %v470 = vpack.c.bf16 %v406, %v406
  %v471 = vpack.c.bf16 %v407, %v407
  %v472 = vpack.c.bf16 %v408, %v408
  %v473 = vpack.c.bf16 %v409, %v409
  %v474 = vpack.c.bf16 %v410, %v410
  %v475 = vpack.c.bf16 %v411, %v411
  %v476 = vpack.c.bf16 %v412, %v412
  %v477 = vpack.c.bf16 %v413, %v413
  %v478 = vpack.c.bf16 %v414, %v414
  %v479 = vpack.c.bf16 %v415, %v415
  %v480 = vpack.c.bf16 %v416, %v416
  %v481 = vpack.c.bf16 %v417, %v417
  %v482 = vpack.c.bf16 %v418, %v418
  %v483 = vpack.c.bf16 %v419, %v419
  %v484 = vpack.c.bf16 %v420, %v420
  %v485 = vpack.c.bf16 %v421, %v421
  %v486 = vpack.c.bf16 %v422, %v422
  %v487 = vpack.c.bf16 %v423, %v423
  %v488 = vpack.c.bf16 %v424, %v424
  %v489 = vpack.c.bf16 %v425, %v425
  %v490 = vpack.c.bf16 %v426, %v426
  %v491 = vpack.c.bf16 %v427, %v427
  %v492 = vpack.c.bf16 %v428, %v428
  %v493 = vpack.c.bf16 %v429, %v429
  %v494 = vpack.c.bf16 %v430, %v430
  %v495 = vpack.c.bf16 %v431, %v431
  %v496 = vpack.c.bf16 %v432, %v432
  %v497 = vpack.c.bf16 %v433, %v433
  %v498 = vpack.c.bf16 %v434, %v434
  %v499 = vpack.c.bf16 %v435, %v435
  %v500 = vpack.c.bf16 %v436, %v436
  %v501 = vpack.c.bf16 %v437, %v437
  %v502 = vpack.c.bf16 %v438, %v438
  %v503 = vpack.c.bf16 %v439, %v439
  %v504 = vpack.c.bf16 %v440, %v440
  %v505 = vpack.c.bf16 %v441, %v441
  %v506 = vpack.c.bf16 %v442, %v442
  %v507 = vpack.c.bf16 %v443, %v443
  %v508 = vpack.c.bf16 %v444, %v444
  %v509 = vpack.c.bf16 %v445, %v445
  %v510 = vpack.c.bf16 %v446, %v446
  %v511 = vpack.c.bf16 %v447, %v447
  %v512 = vpack.c.bf16 %v448, %v448
  %v513 = vpack.c.bf16 %v449, %v449
  %v514 = vpack.c.bf16 %v450, %v450
  %v515 = vpack.c.bf16 %v451, %v451
  %v516 = vpack.c.bf16 %v452, %v452
  %v517 = vpack.c.bf16 %v453, %v453
  %v518 = vpack.c.bf16 %v454, %v454
  %v519 = vpack.c.bf16 %v455, %v455
  %v520 = vpack.c.bf16 %v456, %v456
  %v521 = vpack.c.bf16 %v457, %v457
  %v522 = vpack.c.bf16 %v458, %v458
  %v523 = vpack.c.bf16 %v459, %v459
  %v524 = vpack.c.bf16 %v460, %v460
  %v525 = vpack.c.bf16 %v461, %v461
  %v526 = vpack.c.bf16 %v462, %v462
  %v527 = vpack.c.bf16 %v463, %v463
  %v528 = vpack.c.bf16 %v464, %v464
  %v529 = vpack.c.bf16 %v465, %v465
  %v530 = vpack.c.bf16 %v466, %v466
  %v531 = vpack.c.bf16 %v467, %v467
  %v532 = vpack.c.bf16 %v468, %v468
  %v533 = vpack.c.bf16 %v469, %v469
  %534 = vst [vmem:[%s3] sm:$0xf] %v470
  %535 = vst [vmem:[%s3 + $0x4] sm:$0xf] %v471
  %536 = vst [vmem:[%s3 + $0x8] sm:$0xf] %v472
  %537 = vst [vmem:[%s3 + $0xc] sm:$0xf] %v473
  %538 = vst [vmem:[%s3 + $0x10] sm:$0xf] %v474
  %539 = vst [vmem:[%s3 + $0x14] sm:$0xf] %v475
  %540 = vst [vmem:[%s3 + $0x18] sm:$0xf] %v476
  %541 = vst [vmem:[%s3 + $0x1c] sm:$0xf] %v477
  %542 = vst [vmem:[%s3 + $0x20] sm:$0xf] %v478
  %543 = vst [vmem:[%s3 + $0x24] sm:$0xf] %v479
  %544 = vst [vmem:[%s3 + $0x28] sm:$0xf] %v480
  %545 = vst [vmem:[%s3 + $0x2c] sm:$0xf] %v481
  %546 = vst [vmem:[%s3 + $0x30] sm:$0xf] %v482
  %547 = vst [vmem:[%s3 + $0x34] sm:$0xf] %v483
  %548 = vst [vmem:[%s3 + $0x38] sm:$0xf] %v484
  %549 = vst [vmem:[%s3 + $0x3c] sm:$0xf] %v485
  %550 = vst [vmem:[%s3 + $0x40] sm:$0xf] %v486
  %551 = vst [vmem:[%s3 + $0x44] sm:$0xf] %v487
  %552 = vst [vmem:[%s3 + $0x48] sm:$0xf] %v488
  %553 = vst [vmem:[%s3 + $0x4c] sm:$0xf] %v489
  %554 = vst [vmem:[%s3 + $0x50] sm:$0xf] %v490
  %555 = vst [vmem:[%s3 + $0x54] sm:$0xf] %v491
  %556 = vst [vmem:[%s3 + $0x58] sm:$0xf] %v492
  %557 = vst [vmem:[%s3 + $0x5c] sm:$0xf] %v493
  %558 = vst [vmem:[%s3 + $0x60] sm:$0xf] %v494
  %559 = vst [vmem:[%s3 + $0x64] sm:$0xf] %v495
  %560 = vst [vmem:[%s3 + $0x68] sm:$0xf] %v496
  %561 = vst [vmem:[%s3 + $0x6c] sm:$0xf] %v497
  %562 = vst [vmem:[%s3 + $0x70] sm:$0xf] %v498
  %563 = vst [vmem:[%s3 + $0x74] sm:$0xf] %v499
  %564 = vst [vmem:[%s3 + $0x78] sm:$0xf] %v500
  %565 = vst [vmem:[%s3 + $0x7c] sm:$0xf] %v501
  %566 = vst [vmem:[%s3 + $0x80] sm:$0xf] %v502
  %567 = vst [vmem:[%s3 + $0x84] sm:$0xf] %v503
  %568 = vst [vmem:[%s3 + $0x88] sm:$0xf] %v504
  %569 = vst [vmem:[%s3 + $0x8c] sm:$0xf] %v505
  %570 = vst [vmem:[%s3 + $0x90] sm:$0xf] %v506
  %571 = vst [vmem:[%s3 + $0x94] sm:$0xf] %v507
  %572 = vst [vmem:[%s3 + $0x98] sm:$0xf] %v508
  %573 = vst [vmem:[%s3 + $0x9c] sm:$0xf] %v509
  %574 = vst [vmem:[%s3 + $0xa0] sm:$0xf] %v510
  %575 = vst [vmem:[%s3 + $0xa4] sm:$0xf] %v511
  %576 = vst [vmem:[%s3 + $0xa8] sm:$0xf] %v512
  %577 = vst [vmem:[%s3 + $0xac] sm:$0xf] %v513
  %578 = vst [vmem:[%s3 + $0xb0] sm:$0xf] %v514
  %579 = vst [vmem:[%s3 + $0xb4] sm:$0xf] %v515
  %580 = vst [vmem:[%s3 + $0xb8] sm:$0xf] %v516
  %581 = vst [vmem:[%s3 + $0xbc] sm:$0xf] %v517
  %582 = vst [vmem:[%s3 + $0xc0] sm:$0xf] %v518
  %583 = vst [vmem:[%s3 + $0xc4] sm:$0xf] %v519
  %584 = vst [vmem:[%s3 + $0xc8] sm:$0xf] %v520
  %585 = vst [vmem:[%s3 + $0xcc] sm:$0xf] %v521
  %586 = vst [vmem:[%s3 + $0xd0] sm:$0xf] %v522
  %587 = vst [vmem:[%s3 + $0xd4] sm:$0xf] %v523
  %588 = vst [vmem:[%s3 + $0xd8] sm:$0xf] %v524
  %589 = vst [vmem:[%s3 + $0xdc] sm:$0xf] %v525
  %590 = vst [vmem:[%s3 + $0xe0] sm:$0xf] %v526
  %591 = vst [vmem:[%s3 + $0xe4] sm:$0xf] %v527
  %592 = vst [vmem:[%s3 + $0xe8] sm:$0xf] %v528
  %593 = vst [vmem:[%s3 + $0xec] sm:$0xf] %v529
  %594 = vst [vmem:[%s3 + $0xf0] sm:$0xf] %v530
  %595 = vst [vmem:[%s3 + $0xf4] sm:$0xf] %v531
  %596 = vst [vmem:[%s3 + $0xf8] sm:$0xf] %v532
  %597 = vst [vmem:[%s3 + $0xfc] sm:$0xf] %v533
  // Predicated region
  $region14: #{discriminator_forward.10} parent=0 // pred_check
    _
  $region15: #{discriminator_forward.10} parent=0 // pred_check_branch
    %599 = sbr.rel (0) target = $region17
  $region16: #{discriminator_forward.10} parent=0 // pred_region
    _
  $region17: #{discriminator_forward.10} parent=0 // pred_fallthru
    _
  // Predicated region
  $region18: #{discriminator_forward.10} parent=0 // pred_check
    _
  $region19: #{discriminator_forward.10} parent=0 // pred_check_branch
    %601 = sbr.rel (0) target = $region21
  $region20: #{discriminator_forward.10} parent=0 // pred_region
    _
  $region21: #{discriminator_forward.10} parent=0 // pred_fallthru
    _

// kernel: discriminator_forward.11
$region0: #{discriminator_forward.11}
  #allocation0 [shape = 'u32[]', space=smem, size = 0x4, offset = 0x4, fixed_abs, tag = 'smem constant byte address 0x4 - core index']
  #allocation1 [shape = 'u32[72,128]{1,0:T(1,128)}', space=vmem, size = 0x9000, scoped, tag = 'internal scratch']
  %s0 = inlined_call_operand.vmem [shape: bf16[128,256], index: 0, kind: input, shape index: {}]
  %s1 = inlined_call_operand.vmem [shape: bf16[256,128], index: 1, kind: input, shape index: {}]
  %s2 = inlined_call_operand.vmem [shape: bf16[128,128], index: 2, kind: output, shape index: {0}]
  %s3 = inlined_call_operand.vmem [shape: f32[2,128], index: 3, kind: output, shape index: {1}]
  %4 = xla_tuple %s2, %s3
  %s5 = sld [smem:[#allocation0]]
  $region30: #{discriminator_forward.11} parent=0
    _
  %s7 = ssub.s32 1, %s5
  %s8 = scalar_select 0, %s7, %s5
  // Predicated region
  $region2: #{discriminator_forward.11} parent=0 // pred_check
    _
  $region3: #{discriminator_forward.11} parent=0 // pred_check_branch
    %10 = sbr.rel (0) target = $region5
  $region4: #{discriminator_forward.11} parent=0 // pred_region
    _
  $region5: #{discriminator_forward.11} parent=0 // pred_fallthru
    _
  // Predicated region
  $region6: #{discriminator_forward.11} parent=0 // pred_check
    _
  $region7: #{discriminator_forward.11} parent=0 // pred_check_branch
    %12 = sbr.rel (0) target = $region9
  $region8: #{discriminator_forward.11} parent=0 // pred_region
    _
  $region9: #{discriminator_forward.11} parent=0 // pred_fallthru
    _
  %p13 = scmp.eq.s32.totalorder 0, 0
  // Predicated region
  $region10: #{discriminator_forward.11} parent=0 // pred_check
    %p14 = pneg %p13
  $region11: #{discriminator_forward.11} parent=0 // pred_check_branch
    %16 = sbr.rel (%p14) target = $region13
  $region12: #{discriminator_forward.11} parent=0 // pred_region
    %17 = vst [vmem:[%s3] sm:$0x3] 0.0
  $region13: #{discriminator_forward.11} parent=0 // pred_fallthru
    _
  %v18 = vld [vmem:[%s0] sm:$0xff]
  %v19 = vld [vmem:[%s0 + $0x8] sm:$0xff]
  %v20 = vld [vmem:[%s0 + $0x10] sm:$0xff]
  %v21 = vld [vmem:[%s0 + $0x18] sm:$0xff]
  %v22 = vld [vmem:[%s0 + $0x20] sm:$0xff]
  %v23 = vld [vmem:[%s0 + $0x28] sm:$0xff]
  %v24 = vld [vmem:[%s0 + $0x30] sm:$0xff]
  %v25 = vld [vmem:[%s0 + $0x38] sm:$0xff]
  %v26 = vld [vmem:[%s0 + $0x40] sm:$0xff]
  %v27 = vld [vmem:[%s0 + $0x48] sm:$0xff]
  %v28 = vld [vmem:[%s0 + $0x50] sm:$0xff]
  %v29 = vld [vmem:[%s0 + $0x58] sm:$0xff]
  %v30 = vld [vmem:[%s0 + $0x60] sm:$0xff]
  %v31 = vld [vmem:[%s0 + $0x68] sm:$0xff]
  %v32 = vld [vmem:[%s0 + $0x70] sm:$0xff]
  %v33 = vld [vmem:[%s0 + $0x78] sm:$0xff]
  %v34 = vld [vmem:[%s1] sm:$0xf]
  %v35 = vld [vmem:[%s1 + $0x4] sm:$0xf]
  %v36 = vld [vmem:[%s1 + $0x8] sm:$0xf]
  %v37 = vld [vmem:[%s1 + $0xc] sm:$0xf]
  %v38 = vld [vmem:[%s1 + $0x10] sm:$0xf]
  %v39 = vld [vmem:[%s1 + $0x14] sm:$0xf]
  %v40 = vld [vmem:[%s1 + $0x18] sm:$0xf]
  %v41 = vld [vmem:[%s1 + $0x1c] sm:$0xf]
  %v42 = vld [vmem:[%s1 + $0x20] sm:$0xf]
  %v43 = vld [vmem:[%s1 + $0x24] sm:$0xf]
  %v44 = vld [vmem:[%s1 + $0x28] sm:$0xf]
  %v45 = vld [vmem:[%s1 + $0x2c] sm:$0xf]
  %v46 = vld [vmem:[%s1 + $0x30] sm:$0xf]
  %v47 = vld [vmem:[%s1 + $0x34] sm:$0xf]
  %v48 = vld [vmem:[%s1 + $0x38] sm:$0xf]
  %v49 = vld [vmem:[%s1 + $0x3c] sm:$0xf]
  %v50 = vld [vmem:[%s1 + $0x40] sm:$0xf]
  %v51 = vld [vmem:[%s1 + $0x44] sm:$0xf]
  %v52 = vld [vmem:[%s1 + $0x48] sm:$0xf]
  %v53 = vld [vmem:[%s1 + $0x4c] sm:$0xf]
  %v54 = vld [vmem:[%s1 + $0x50] sm:$0xf]
  %v55 = vld [vmem:[%s1 + $0x54] sm:$0xf]
  %v56 = vld [vmem:[%s1 + $0x58] sm:$0xf]
  %v57 = vld [vmem:[%s1 + $0x5c] sm:$0xf]
  %v58 = vld [vmem:[%s1 + $0x60] sm:$0xf]
  %v59 = vld [vmem:[%s1 + $0x64] sm:$0xf]
  %v60 = vld [vmem:[%s1 + $0x68] sm:$0xf]
  %v61 = vld [vmem:[%s1 + $0x6c] sm:$0xf]
  %v62 = vld [vmem:[%s1 + $0x70] sm:$0xf]
  %v63 = vld [vmem:[%s1 + $0x74] sm:$0xf]
  %v64 = vld [vmem:[%s1 + $0x78] sm:$0xf]
  %v65 = vld [vmem:[%s1 + $0x7c] sm:$0xf]
  %v82 = vunpack.c.l.b16 %v18
  %v83 = vunpack.c.h.b16 %v18
  %v84 = vunpack.c.l.b16 %v19
  %v85 = vunpack.c.h.b16 %v19
  %v86 = vunpack.c.l.b16 %v20
  %v87 = vunpack.c.h.b16 %v20
  %v88 = vunpack.c.l.b16 %v21
  %v89 = vunpack.c.h.b16 %v21
  %v90 = vunpack.c.l.b16 %v22
  %v91 = vunpack.c.h.b16 %v22
  %v92 = vunpack.c.l.b16 %v23
  %v93 = vunpack.c.h.b16 %v23
  %v94 = vunpack.c.l.b16 %v24
  %v95 = vunpack.c.h.b16 %v24
  %v96 = vunpack.c.l.b16 %v25
  %v97 = vunpack.c.h.b16 %v25
  %v98 = vunpack.c.l.b16 %v26
  %v99 = vunpack.c.h.b16 %v26
  %v100 = vunpack.c.l.b16 %v27
  %v101 = vunpack.c.h.b16 %v27
  %v102 = vunpack.c.l.b16 %v28
  %v103 = vunpack.c.h.b16 %v28
  %v104 = vunpack.c.l.b16 %v29
  %v105 = vunpack.c.h.b16 %v29
  %v106 = vunpack.c.l.b16 %v30
  %v107 = vunpack.c.h.b16 %v30
  %v108 = vunpack.c.l.b16 %v31
  %v109 = vunpack.c.h.b16 %v31
  %v110 = vunpack.c.l.b16 %v32
  %v111 = vunpack.c.h.b16 %v32
  %v112 = vunpack.c.l.b16 %v33
  %v113 = vunpack.c.h.b16 %v33
  %v114 = vpack.c.b16 %v84, %v82
  %v115 = vpack.c.b16 %v85, %v83
  %v116 = vpack.c.b16 %v88, %v86
  %v117 = vpack.c.b16 %v89, %v87
  %v118 = vpack.c.b16 %v92, %v90
  %v119 = vpack.c.b16 %v93, %v91
  %v120 = vpack.c.b16 %v96, %v94
  %v121 = vpack.c.b16 %v97, %v95
  %v122 = vpack.c.b16 %v100, %v98
  %v123 = vpack.c.b16 %v101, %v99
  %v124 = vpack.c.b16 %v104, %v102
  %v125 = vpack.c.b16 %v105, %v103
  %v126 = vpack.c.b16 %v108, %v106
  %v127 = vpack.c.b16 %v109, %v107
  %v128 = vpack.c.b16 %v112, %v110
  %v129 = vpack.c.b16 %v113, %v111
  %v178 = vunpack.c.l.b16 %v34
  %v179 = vunpack.c.l.b16 %v35
  %v180 = vunpack.c.l.b16 %v36
  %v181 = vunpack.c.l.b16 %v37
  %v182 = vunpack.c.l.b16 %v38
  %v183 = vunpack.c.l.b16 %v39
  %v184 = vunpack.c.l.b16 %v40
  %v185 = vunpack.c.l.b16 %v41
  %v186 = vunpack.c.l.b16 %v42
  %v187 = vunpack.c.l.b16 %v43
  %v188 = vunpack.c.l.b16 %v44
  %v189 = vunpack.c.l.b16 %v45
  %v190 = vunpack.c.l.b16 %v46
  %v191 = vunpack.c.l.b16 %v47
  %v192 = vunpack.c.l.b16 %v48
  %v193 = vunpack.c.l.b16 %v49
  %v194 = vunpack.c.l.b16 %v50
  %v195 = vunpack.c.l.b16 %v51
  %v196 = vunpack.c.l.b16 %v52
  %v197 = vunpack.c.l.b16 %v53
  %v198 = vunpack.c.l.b16 %v54
  %v199 = vunpack.c.l.b16 %v55
  %v200 = vunpack.c.l.b16 %v56
  %v201 = vunpack.c.l.b16 %v57
  %v202 = vunpack.c.l.b16 %v58
  %v203 = vunpack.c.l.b16 %v59
  %v204 = vunpack.c.l.b16 %v60
  %v205 = vunpack.c.l.b16 %v61
  %v206 = vunpack.c.l.b16 %v62
  %v207 = vunpack.c.l.b16 %v63
  %v208 = vunpack.c.l.b16 %v64
  %v209 = vunpack.c.l.b16 %v65
  %v210 = vpack.c.b16 %v179, %v178
  %v211 = vpack.c.b16 %v181, %v180
  %v212 = vpack.c.b16 %v183, %v182
  %v213 = vpack.c.b16 %v185, %v184
  %v214 = vpack.c.b16 %v187, %v186
  %v215 = vpack.c.b16 %v189, %v188
  %v216 = vpack.c.b16 %v191, %v190
  %v217 = vpack.c.b16 %v193, %v192
  %v218 = vpack.c.b16 %v195, %v194
  %v219 = vpack.c.b16 %v197, %v196
  %v220 = vpack.c.b16 %v199, %v198
  %v221 = vpack.c.b16 %v201, %v200
  %v222 = vpack.c.b16 %v203, %v202
  %v223 = vpack.c.b16 %v205, %v204
  %v224 = vpack.c.b16 %v207, %v206
  %v225 = vpack.c.b16 %v209, %v208
  %242 = vmatpush.bf16.msra.mxu0 %v217
  %243 = vmatpush.bf16.msra.mxu0 %v216
  %244 = vmatpush.bf16.msra.mxu0 %v215
  %245 = vmatpush.bf16.msra.mxu0 %v214
  %246 = vmatpush.bf16.msra.mxu0 %v213
  %247 = vmatpush.bf16.msra.mxu0 %v212
  %248 = vmatpush.bf16.msra.mxu0 %v211
  %249 = vmatpush.bf16.msra.mxu0 %v210
  %250 = vmatmul.bf16.gmra.mxu0 %v114
  %v251 = vpop.f32.mrf.mxu0
  %v252 = vadd.f32 0.0, %v251
  %v253 = vpop.f32.mrf.mxu0
  %v254 = vadd.f32 0.0, %v253
  %255 = vmatmul.bf16.gmra.mxu0 %v116
  %v256 = vpop.f32.mrf.mxu0
  %v257 = vadd.f32 0.0, %v256
  %v258 = vpop.f32.mrf.mxu0
  %v259 = vadd.f32 0.0, %v258
  %260 = vmatmul.bf16.gmra.mxu0 %v118
  %v261 = vpop.f32.mrf.mxu0
  %v262 = vadd.f32 0.0, %v261
  %v263 = vpop.f32.mrf.mxu0
  %v264 = vadd.f32 0.0, %v263
  %265 = vmatmul.bf16.gmra.mxu0 %v120
  %v266 = vpop.f32.mrf.mxu0
  %v267 = vadd.f32 0.0, %v266
  %v268 = vpop.f32.mrf.mxu0
  %v269 = vadd.f32 0.0, %v268
  %270 = vmatmul.bf16.gmra.mxu0 %v122
  %v271 = vpop.f32.mrf.mxu0
  %v272 = vadd.f32 0.0, %v271
  %v273 = vpop.f32.mrf.mxu0
  %v274 = vadd.f32 0.0, %v273
  %275 = vmatmul.bf16.gmra.mxu0 %v124
  %v276 = vpop.f32.mrf.mxu0
  %v277 = vadd.f32 0.0, %v276
  %v278 = vpop.f32.mrf.mxu0
  %v279 = vadd.f32 0.0, %v278
  %280 = vmatmul.bf16.gmra.mxu0 %v126
  %v281 = vpop.f32.mrf.mxu0
  %v282 = vadd.f32 0.0, %v281
  %v283 = vpop.f32.mrf.mxu0
  %v284 = vadd.f32 0.0, %v283
  %285 = vmatmul.bf16.gmra.mxu0 %v128
  %v286 = vpop.f32.mrf.mxu0
  %v287 = vadd.f32 0.0, %v286
  %v288 = vpop.f32.mrf.mxu0
  %v289 = vadd.f32 0.0, %v288
  %290 = vdwg.mxu0
  %291 = vmatpush.bf16.msra.mxu0 %v225
  %292 = vmatpush.bf16.msra.mxu0 %v224
  %293 = vmatpush.bf16.msra.mxu0 %v223
  %294 = vmatpush.bf16.msra.mxu0 %v222
  %295 = vmatpush.bf16.msra.mxu0 %v221
  %296 = vmatpush.bf16.msra.mxu0 %v220
  %297 = vmatpush.bf16.msra.mxu0 %v219
  %298 = vmatpush.bf16.msra.mxu0 %v218
  %299 = vmatmul.bf16.gmra.mxu0 %v115
  %v300 = vpop.f32.mrf.mxu0
  %v301 = vadd.f32 %v252, %v300
  %v302 = vpop.f32.mrf.mxu0
  %v303 = vadd.f32 %v254, %v302
  %304 = vmatmul.bf16.gmra.mxu0 %v117
  %v305 = vpop.f32.mrf.mxu0
  %v306 = vadd.f32 %v257, %v305
  %v307 = vpop.f32.mrf.mxu0
  %v308 = vadd.f32 %v259, %v307
  %309 = vmatmul.bf16.gmra.mxu0 %v119
  %v310 = vpop.f32.mrf.mxu0
  %v311 = vadd.f32 %v262, %v310
  %v312 = vpop.f32.mrf.mxu0
  %v313 = vadd.f32 %v264, %v312
  %314 = vmatmul.bf16.gmra.mxu0 %v121
  %v315 = vpop.f32.mrf.mxu0
  %v316 = vadd.f32 %v267, %v315
  %v317 = vpop.f32.mrf.mxu0
  %v318 = vadd.f32 %v269, %v317
  %319 = vmatmul.bf16.gmra.mxu0 %v123
  %v320 = vpop.f32.mrf.mxu0
  %v321 = vadd.f32 %v272, %v320
  %v322 = vpop.f32.mrf.mxu0
  %v323 = vadd.f32 %v274, %v322
  %324 = vmatmul.bf16.gmra.mxu0 %v125
  %v325 = vpop.f32.mrf.mxu0
  %v326 = vadd.f32 %v277, %v325
  %v327 = vpop.f32.mrf.mxu0
  %v328 = vadd.f32 %v279, %v327
  %329 = vmatmul.bf16.gmra.mxu0 %v127
  %v330 = vpop.f32.mrf.mxu0
  %v331 = vadd.f32 %v282, %v330
  %v332 = vpop.f32.mrf.mxu0
  %v333 = vadd.f32 %v284, %v332
  %334 = vmatmul.bf16.gmra.mxu0 %v129
  %v335 = vpop.f32.mrf.mxu0
  %v336 = vadd.f32 %v287, %v335
  %v337 = vpop.f32.mrf.mxu0
  %v338 = vadd.f32 %v289, %v337
  %339 = vdwg.mxu0
  %v340 = vpack.c.bf16 %v301, %v301
  %v341 = vpack.c.bf16 %v303, %v303
  %v342 = vpack.c.bf16 %v306, %v306
  %v343 = vpack.c.bf16 %v308, %v308
  %v344 = vpack.c.bf16 %v311, %v311
  %v345 = vpack.c.bf16 %v313, %v313
  %v346 = vpack.c.bf16 %v316, %v316
  %v347 = vpack.c.bf16 %v318, %v318
  %v348 = vpack.c.bf16 %v321, %v321
  %v349 = vpack.c.bf16 %v323, %v323
  %v350 = vpack.c.bf16 %v326, %v326
  %v351 = vpack.c.bf16 %v328, %v328
  %v352 = vpack.c.bf16 %v331, %v331
  %v353 = vpack.c.bf16 %v333, %v333
  %v354 = vpack.c.bf16 %v336, %v336
  %v355 = vpack.c.bf16 %v338, %v338
  %356 = vst [vmem:[%s2] sm:$0xf] %v340
  %357 = vst [vmem:[%s2 + $0x4] sm:$0xf] %v341
  %358 = vst [vmem:[%s2 + $0x8] sm:$0xf] %v342
  %359 = vst [vmem:[%s2 + $0xc] sm:$0xf] %v343
  %360 = vst [vmem:[%s2 + $0x10] sm:$0xf] %v344
  %361 = vst [vmem:[%s2 + $0x14] sm:$0xf] %v345
  %362 = vst [vmem:[%s2 + $0x18] sm:$0xf] %v346
  %363 = vst [vmem:[%s2 + $0x1c] sm:$0xf] %v347
  %364 = vst [vmem:[%s2 + $0x20] sm:$0xf] %v348
  %365 = vst [vmem:[%s2 + $0x24] sm:$0xf] %v349
  %366 = vst [vmem:[%s2 + $0x28] sm:$0xf] %v350
  %367 = vst [vmem:[%s2 + $0x2c] sm:$0xf] %v351
  %368 = vst [vmem:[%s2 + $0x30] sm:$0xf] %v352
  %369 = vst [vmem:[%s2 + $0x34] sm:$0xf] %v353
  %370 = vst [vmem:[%s2 + $0x38] sm:$0xf] %v354
  %371 = vst [vmem:[%s2 + $0x3c] sm:$0xf] %v355
  %v372 = vadd.f32 %v301, %v303
  %v373 = vadd.f32 %v372, %v306
  %v374 = vadd.f32 %v373, %v308
  %v375 = vadd.f32 %v374, %v311
  %v376 = vadd.f32 %v375, %v313
  %v377 = vadd.f32 %v376, %v316
  %v378 = vadd.f32 %v377, %v318
  %v379 = vadd.f32 %v378, %v321
  %v380 = vadd.f32 %v379, %v323
  %v381 = vadd.f32 %v380, %v326
  %v382 = vadd.f32 %v381, %v328
  %v383 = vadd.f32 %v382, %v331
  %v384 = vadd.f32 %v383, %v333
  %v385 = vadd.f32 %v384, %v336
  %v386 = vadd.f32 %v385, %v338
  %v387 = vrot.slane %v386, 4
  %v388 = vadd.f32 %v386, %v387
  %v389 = vrot.slane %v388, 2
  %v390 = vadd.f32 %v388, %v389
  %v391 = vrot.slane %v390, 1
  %v392 = vadd.f32 %v390, %v391
  %v393 = vmul.f32 %v301, %v301
  %v394 = vmul.f32 %v303, %v303
  %v395 = vmul.f32 %v306, %v306
  %v396 = vmul.f32 %v308, %v308
  %v397 = vmul.f32 %v311, %v311
  %v398 = vmul.f32 %v313, %v313
  %v399 = vmul.f32 %v316, %v316
  %v400 = vmul.f32 %v318, %v318
  %v401 = vmul.f32 %v321, %v321
  %v402 = vmul.f32 %v323, %v323
  %v403 = vmul.f32 %v326, %v326
  %v404 = vmul.f32 %v328, %v328
  %v405 = vmul.f32 %v331, %v331
  %v406 = vmul.f32 %v333, %v333
  %v407 = vmul.f32 %v336, %v336
  %v408 = vmul.f32 %v338, %v338
  %v409 = vadd.f32 %v393, %v394
  %v410 = vadd.f32 %v409, %v395
  %v411 = vadd.f32 %v410, %v396
  %v412 = vadd.f32 %v411, %v397
  %v413 = vadd.f32 %v412, %v398
  %v414 = vadd.f32 %v413, %v399
  %v415 = vadd.f32 %v414, %v400
  %v416 = vadd.f32 %v415, %v401
  %v417 = vadd.f32 %v416, %v402
  %v418 = vadd.f32 %v417, %v403
  %v419 = vadd.f32 %v418, %v404
  %v420 = vadd.f32 %v419, %v405
  %v421 = vadd.f32 %v420, %v406
  %v422 = vadd.f32 %v421, %v407
  %v423 = vadd.f32 %v422, %v408
  %v424 = vrot.slane %v423, 4
  %v425 = vadd.f32 %v423, %v424
  %v426 = vrot.slane %v425, 2
  %v427 = vadd.f32 %v425, %v426
  %v428 = vrot.slane %v427, 1
  %v429 = vadd.f32 %v427, %v428
  %vm430 = vcmask 1040384
  %v431 = vsel %vm430, %v392, %v429
  %v432 = vld [vmem:[%s3] sm:$0x3]
  %v433 = vadd.f32 %v432, %v431
  %434 = vst [vmem:[%s3] sm:$0x3] %v433
  // Predicated region
  $region14: #{discriminator_forward.11} parent=0 // pred_check
    _
  $region15: #{discriminator_forward.11} parent=0 // pred_check_branch
    %436 = sbr.rel (0) target = $region17
  $region16: #{discriminator_forward.11} parent=0 // pred_region
    _
  $region17: #{discriminator_forward.11} parent=0 // pred_fallthru
    _
  // Predicated region
  $region18: #{discriminator_forward.11} parent=0 // pred_check
    _
  $region19: #{discriminator_forward.11} parent=0 // pred_check_branch
    %438 = sbr.rel (0) target = $region21
  $region20: #{discriminator_forward.11} parent=0 // pred_region
    _
  $region21: #{discriminator_forward.11} parent=0 // pred_fallthru
    _
  // Predicated region
  $region22: #{discriminator_forward.11} parent=0 // pred_check
    _
  $region23: #{discriminator_forward.11} parent=0 // pred_check_branch
    %440 = sbr.rel (0) target = $region25
  $region24: #{discriminator_forward.11} parent=0 // pred_region
    _
  $region25: #{discriminator_forward.11} parent=0 // pred_fallthru
    _
  // Predicated region
  $region26: #{discriminator_forward.11} parent=0 // pred_check
    _
  $region27: #{discriminator_forward.11} parent=0 // pred_check_branch
    %442 = sbr.rel (0) target = $region29
  $region28: #{discriminator_forward.11} parent=0 // pred_region
    _
  $region29: #{discriminator_forward.11} parent=0 // pred_fallthru
    _

// kernel: discriminator_forward.12
$region0: #{discriminator_forward.12}
  #allocation0 [shape = 'u32[]', space=smem, size = 0x4, offset = 0x4, fixed_abs, tag = 'smem constant byte address 0x4 - core index']
  #allocation1 [shape = 'u32[72,128]{1,0:T(1,128)}', space=vmem, size = 0x9000, scoped, tag = 'internal scratch']
  %s0 = inlined_call_operand.vmem [shape: bf16[128,128], index: 0, kind: input, shape index: {}]
  %s1 = inlined_call_operand.vmem [shape: f32[1,128], index: 1, kind: input, shape index: {}]
  %s2 = inlined_call_operand.vmem [shape: f32[1,128], index: 2, kind: input, shape index: {}]
  %s3 = inlined_call_operand.vmem [shape: bf16[128,128], index: 3, kind: output, shape index: {}]
  %s4 = sld [smem:[#allocation0]]
  $region22: #{discriminator_forward.12} parent=0
    _
  %s6 = ssub.s32 1, %s4
  %s7 = scalar_select 0, %s6, %s4
  // Predicated region
  $region2: #{discriminator_forward.12} parent=0 // pred_check
    _
  $region3: #{discriminator_forward.12} parent=0 // pred_check_branch
    %9 = sbr.rel (0) target = $region5
  $region4: #{discriminator_forward.12} parent=0 // pred_region
    _
  $region5: #{discriminator_forward.12} parent=0 // pred_fallthru
    _
  // Predicated region
  $region6: #{discriminator_forward.12} parent=0 // pred_check
    _
  $region7: #{discriminator_forward.12} parent=0 // pred_check_branch
    %11 = sbr.rel (0) target = $region9
  $region8: #{discriminator_forward.12} parent=0 // pred_region
    _
  $region9: #{discriminator_forward.12} parent=0 // pred_fallthru
    _
  // Predicated region
  $region10: #{discriminator_forward.12} parent=0 // pred_check
    _
  $region11: #{discriminator_forward.12} parent=0 // pred_check_branch
    %13 = sbr.rel (0) target = $region13
  $region12: #{discriminator_forward.12} parent=0 // pred_region
    _
  $region13: #{discriminator_forward.12} parent=0 // pred_fallthru
    _
  %v14 = vld [vmem:[%s0] sm:$0xf]
  %v15 = vld [vmem:[%s0 + $0x4] sm:$0xf]
  %v16 = vld [vmem:[%s0 + $0x8] sm:$0xf]
  %v17 = vld [vmem:[%s0 + $0xc] sm:$0xf]
  %v18 = vld [vmem:[%s0 + $0x10] sm:$0xf]
  %v19 = vld [vmem:[%s0 + $0x14] sm:$0xf]
  %v20 = vld [vmem:[%s0 + $0x18] sm:$0xf]
  %v21 = vld [vmem:[%s0 + $0x1c] sm:$0xf]
  %v22 = vld [vmem:[%s0 + $0x20] sm:$0xf]
  %v23 = vld [vmem:[%s0 + $0x24] sm:$0xf]
  %v24 = vld [vmem:[%s0 + $0x28] sm:$0xf]
  %v25 = vld [vmem:[%s0 + $0x2c] sm:$0xf]
  %v26 = vld [vmem:[%s0 + $0x30] sm:$0xf]
  %v27 = vld [vmem:[%s0 + $0x34] sm:$0xf]
  %v28 = vld [vmem:[%s0 + $0x38] sm:$0xf]
  %v29 = vld [vmem:[%s0 + $0x3c] sm:$0xf]
  %v30 = vunpack.c.l.bf16 %v14
  %v31 = vunpack.c.l.bf16 %v15
  %v32 = vunpack.c.l.bf16 %v16
  %v33 = vunpack.c.l.bf16 %v17
  %v34 = vunpack.c.l.bf16 %v18
  %v35 = vunpack.c.l.bf16 %v19
  %v36 = vunpack.c.l.bf16 %v20
  %v37 = vunpack.c.l.bf16 %v21
  %v38 = vunpack.c.l.bf16 %v22
  %v39 = vunpack.c.l.bf16 %v23
  %v40 = vunpack.c.l.bf16 %v24
  %v41 = vunpack.c.l.bf16 %v25
  %v42 = vunpack.c.l.bf16 %v26
  %v43 = vunpack.c.l.bf16 %v27
  %v44 = vunpack.c.l.bf16 %v28
  %v45 = vunpack.c.l.bf16 %v29
  %v46 = vld [vmem:[%s1] sm:$0x1]
  %v48 = vperm.slane %v46, 0
  %v50 = vmul.f32 %v30, %v48
  %v51 = vmul.f32 %v31, %v48
  %v52 = vmul.f32 %v32, %v48
  %v53 = vmul.f32 %v33, %v48
  %v54 = vmul.f32 %v34, %v48
  %v55 = vmul.f32 %v35, %v48
  %v56 = vmul.f32 %v36, %v48
  %v57 = vmul.f32 %v37, %v48
  %v58 = vmul.f32 %v38, %v48
  %v59 = vmul.f32 %v39, %v48
  %v60 = vmul.f32 %v40, %v48
  %v61 = vmul.f32 %v41, %v48
  %v62 = vmul.f32 %v42, %v48
  %v63 = vmul.f32 %v43, %v48
  %v64 = vmul.f32 %v44, %v48
  %v65 = vmul.f32 %v45, %v48
  %v66 = vld [vmem:[%s2] sm:$0x1]
  %v68 = vperm.slane %v66, 0
  %v70 = vadd.f32 %v50, %v68
  %v71 = vadd.f32 %v51, %v68
  %v72 = vadd.f32 %v52, %v68
  %v73 = vadd.f32 %v53, %v68
  %v74 = vadd.f32 %v54, %v68
  %v75 = vadd.f32 %v55, %v68
  %v76 = vadd.f32 %v56, %v68
  %v77 = vadd.f32 %v57, %v68
  %v78 = vadd.f32 %v58, %v68
  %v79 = vadd.f32 %v59, %v68
  %v80 = vadd.f32 %v60, %v68
  %v81 = vadd.f32 %v61, %v68
  %v82 = vadd.f32 %v62, %v68
  %v83 = vadd.f32 %v63, %v68
  %v84 = vadd.f32 %v64, %v68
  %v85 = vadd.f32 %v65, %v68
  %vm86 = vcmp.gt.f32.partialorder %v70, 0.0
  %vm87 = vcmp.gt.f32.partialorder %v71, 0.0
  %vm88 = vcmp.gt.f32.partialorder %v72, 0.0
  %vm89 = vcmp.gt.f32.partialorder %v73, 0.0
  %vm90 = vcmp.gt.f32.partialorder %v74, 0.0
  %vm91 = vcmp.gt.f32.partialorder %v75, 0.0
  %vm92 = vcmp.gt.f32.partialorder %v76, 0.0
  %vm93 = vcmp.gt.f32.partialorder %v77, 0.0
  %vm94 = vcmp.gt.f32.partialorder %v78, 0.0
  %vm95 = vcmp.gt.f32.partialorder %v79, 0.0
  %vm96 = vcmp.gt.f32.partialorder %v80, 0.0
  %vm97 = vcmp.gt.f32.partialorder %v81, 0.0
  %vm98 = vcmp.gt.f32.partialorder %v82, 0.0
  %vm99 = vcmp.gt.f32.partialorder %v83, 0.0
  %vm100 = vcmp.gt.f32.partialorder %v84, 0.0
  %vm101 = vcmp.gt.f32.partialorder %v85, 0.0
  %v102 = vmul.f32 %v70, 0.2
  %v103 = vmul.f32 %v71, 0.2
  %v104 = vmul.f32 %v72, 0.2
  %v105 = vmul.f32 %v73, 0.2
  %v106 = vmul.f32 %v74, 0.2
  %v107 = vmul.f32 %v75, 0.2
  %v108 = vmul.f32 %v76, 0.2
  %v109 = vmul.f32 %v77, 0.2
  %v110 = vmul.f32 %v78, 0.2
  %v111 = vmul.f32 %v79, 0.2
  %v112 = vmul.f32 %v80, 0.2
  %v113 = vmul.f32 %v81, 0.2
  %v114 = vmul.f32 %v82, 0.2
  %v115 = vmul.f32 %v83, 0.2
  %v116 = vmul.f32 %v84, 0.2
  %v117 = vmul.f32 %v85, 0.2
  %v118 = vsel %vm86, %v70, %v102
  %v119 = vsel %vm87, %v71, %v103
  %v120 = vsel %vm88, %v72, %v104
  %v121 = vsel %vm89, %v73, %v105
  %v122 = vsel %vm90, %v74, %v106
  %v123 = vsel %vm91, %v75, %v107
  %v124 = vsel %vm92, %v76, %v108
  %v125 = vsel %vm93, %v77, %v109
  %v126 = vsel %vm94, %v78, %v110
  %v127 = vsel %vm95, %v79, %v111
  %v128 = vsel %vm96, %v80, %v112
  %v129 = vsel %vm97, %v81, %v113
  %v130 = vsel %vm98, %v82, %v114
  %v131 = vsel %vm99, %v83, %v115
  %v132 = vsel %vm100, %v84, %v116
  %v133 = vsel %vm101, %v85, %v117
  %v134 = vpack.c.bf16 %v118, %v118
  %v135 = vpack.c.bf16 %v119, %v119
  %v136 = vpack.c.bf16 %v120, %v120
  %v137 = vpack.c.bf16 %v121, %v121
  %v138 = vpack.c.bf16 %v122, %v122
  %v139 = vpack.c.bf16 %v123, %v123
  %v140 = vpack.c.bf16 %v124, %v124
  %v141 = vpack.c.bf16 %v125, %v125
  %v142 = vpack.c.bf16 %v126, %v126
  %v143 = vpack.c.bf16 %v127, %v127
  %v144 = vpack.c.bf16 %v128, %v128
  %v145 = vpack.c.bf16 %v129, %v129
  %v146 = vpack.c.bf16 %v130, %v130
  %v147 = vpack.c.bf16 %v131, %v131
  %v148 = vpack.c.bf16 %v132, %v132
  %v149 = vpack.c.bf16 %v133, %v133
  %150 = vst [vmem:[%s3] sm:$0xf] %v134
  %151 = vst [vmem:[%s3 + $0x4] sm:$0xf] %v135
  %152 = vst [vmem:[%s3 + $0x8] sm:$0xf] %v136
  %153 = vst [vmem:[%s3 + $0xc] sm:$0xf] %v137
  %154 = vst [vmem:[%s3 + $0x10] sm:$0xf] %v138
  %155 = vst [vmem:[%s3 + $0x14] sm:$0xf] %v139
  %156 = vst [vmem:[%s3 + $0x18] sm:$0xf] %v140
  %157 = vst [vmem:[%s3 + $0x1c] sm:$0xf] %v141
  %158 = vst [vmem:[%s3 + $0x20] sm:$0xf] %v142
  %159 = vst [vmem:[%s3 + $0x24] sm:$0xf] %v143
  %160 = vst [vmem:[%s3 + $0x28] sm:$0xf] %v144
  %161 = vst [vmem:[%s3 + $0x2c] sm:$0xf] %v145
  %162 = vst [vmem:[%s3 + $0x30] sm:$0xf] %v146
  %163 = vst [vmem:[%s3 + $0x34] sm:$0xf] %v147
  %164 = vst [vmem:[%s3 + $0x38] sm:$0xf] %v148
  %165 = vst [vmem:[%s3 + $0x3c] sm:$0xf] %v149
  // Predicated region
  $region14: #{discriminator_forward.12} parent=0 // pred_check
    _
  $region15: #{discriminator_forward.12} parent=0 // pred_check_branch
    %167 = sbr.rel (0) target = $region17
  $region16: #{discriminator_forward.12} parent=0 // pred_region
    _
  $region17: #{discriminator_forward.12} parent=0 // pred_fallthru
    _
  // Predicated region
  $region18: #{discriminator_forward.12} parent=0 // pred_check
    _
  $region19: #{discriminator_forward.12} parent=0 // pred_check_branch
    %169 = sbr.rel (0) target = $region21
  $region20: #{discriminator_forward.12} parent=0 // pred_region
    _
  $region21: #{discriminator_forward.12} parent=0 // pred_fallthru
    _

// kernel: discriminator_forward.14
$region0: #{discriminator_forward.14}
  #allocation0 [shape = 'u32[]', space=smem, size = 0x4, offset = 0x4, fixed_abs, tag = 'smem constant byte address 0x4 - core index']
  #allocation1 [shape = 'u32[72,128]{1,0:T(1,128)}', space=vmem, size = 0x9000, scoped, tag = 'internal scratch']
  %s0 = inlined_call_operand.vmem [shape: bf16[32,128], index: 0, kind: input, shape index: {}]
  %s1 = inlined_call_operand.vmem [shape: f32[1,128], index: 1, kind: input, shape index: {}]
  %s2 = inlined_call_operand.vmem [shape: f32[1,128], index: 2, kind: input, shape index: {}]
  %s3 = inlined_call_operand.vmem [shape: bf16[32,128], index: 3, kind: output, shape index: {}]
  %s4 = sld [smem:[#allocation0]]
  $region22: #{discriminator_forward.14} parent=0
    _
  %s6 = ssub.s32 1, %s4
  %s7 = scalar_select 0, %s6, %s4
  // Predicated region
  $region2: #{discriminator_forward.14} parent=0 // pred_check
    _
  $region3: #{discriminator_forward.14} parent=0 // pred_check_branch
    %9 = sbr.rel (0) target = $region5
  $region4: #{discriminator_forward.14} parent=0 // pred_region
    _
  $region5: #{discriminator_forward.14} parent=0 // pred_fallthru
    _
  // Predicated region
  $region6: #{discriminator_forward.14} parent=0 // pred_check
    _
  $region7: #{discriminator_forward.14} parent=0 // pred_check_branch
    %11 = sbr.rel (0) target = $region9
  $region8: #{discriminator_forward.14} parent=0 // pred_region
    _
  $region9: #{discriminator_forward.14} parent=0 // pred_fallthru
    _
  // Predicated region
  $region10: #{discriminator_forward.14} parent=0 // pred_check
    _
  $region11: #{discriminator_forward.14} parent=0 // pred_check_branch
    %13 = sbr.rel (0) target = $region13
  $region12: #{discriminator_forward.14} parent=0 // pred_region
    _
  $region13: #{discriminator_forward.14} parent=0 // pred_fallthru
    _
  %v14 = vld [vmem:[%s0] sm:$0xf]
  %v15 = vld [vmem:[%s0 + $0x4] sm:$0xf]
  %v16 = vld [vmem:[%s0 + $0x8] sm:$0xf]
  %v17 = vld [vmem:[%s0 + $0xc] sm:$0xf]
  %v18 = vunpack.c.l.bf16 %v14
  %v19 = vunpack.c.l.bf16 %v15
  %v20 = vunpack.c.l.bf16 %v16
  %v21 = vunpack.c.l.bf16 %v17
  %v22 = vld [vmem:[%s1] sm:$0x1]
  %v24 = vperm.slane %v22, 0
  %v26 = vmul.f32 %v18, %v24
  %v27 = vmul.f32 %v19, %v24
  %v28 = vmul.f32 %v20, %v24
  %v29 = vmul.f32 %v21, %v24
  %v30 = vld [vmem:[%s2] sm:$0x1]
  %v32 = vperm.slane %v30, 0
  %v34 = vadd.f32 %v26, %v32
  %v35 = vadd.f32 %v27, %v32
  %v36 = vadd.f32 %v28, %v32
  %v37 = vadd.f32 %v29, %v32
  %vm38 = vcmp.gt.f32.partialorder %v34, 0.0
  %vm39 = vcmp.gt.f32.partialorder %v35, 0.0
  %vm40 = vcmp.gt.f32.partialorder %v36, 0.0
  %vm41 = vcmp.gt.f32.partialorder %v37, 0.0
  %v42 = vmul.f32 %v34, 0.2
  %v43 = vmul.f32 %v35, 0.2
  %v44 = vmul.f32 %v36, 0.2
  %v45 = vmul.f32 %v37, 0.2
  %v46 = vsel %vm38, %v34, %v42
  %v47 = vsel %vm39, %v35, %v43
  %v48 = vsel %vm40, %v36, %v44
  %v49 = vsel %vm41, %v37, %v45
  %v50 = vpack.c.bf16 %v46, %v46
  %v51 = vpack.c.bf16 %v47, %v47
  %v52 = vpack.c.bf16 %v48, %v48
  %v53 = vpack.c.bf16 %v49, %v49
  %54 = vst [vmem:[%s3] sm:$0xf] %v50
  %55 = vst [vmem:[%s3 + $0x4] sm:$0xf] %v51
  %56 = vst [vmem:[%s3 + $0x8] sm:$0xf] %v52
  %57 = vst [vmem:[%s3 + $0xc] sm:$0xf] %v53
  // Predicated region
  $region14: #{discriminator_forward.14} parent=0 // pred_check
    _
  $region15: #{discriminator_forward.14} parent=0 // pred_check_branch
    %59 = sbr.rel (0) target = $region17
  $region16: #{discriminator_forward.14} parent=0 // pred_region
    _
  $region17: #{discriminator_forward.14} parent=0 // pred_fallthru
    _
  // Predicated region
  $region18: #{discriminator_forward.14} parent=0 // pred_check
    _
  $region19: #{discriminator_forward.14} parent=0 // pred_check_branch
    %61 = sbr.rel (0) target = $region21
  $region20: #{discriminator_forward.14} parent=0 // pred_region
    _
  $region21: #{discriminator_forward.14} parent=0 // pred_fallthru
    _

// kernel: discriminator_forward.13
$region0: #{discriminator_forward.13}
  #allocation0 [shape = 'u32[]', space=smem, size = 0x4, offset = 0x4, fixed_abs, tag = 'smem constant byte address 0x4 - core index']
  #allocation1 [shape = 'u32[72,128]{1,0:T(1,128)}', space=vmem, size = 0x9000, scoped, tag = 'internal scratch']
  %s0 = inlined_call_operand.vmem [shape: bf16[32,512], index: 0, kind: input, shape index: {}]
  %s1 = inlined_call_operand.vmem [shape: bf16[512,128], index: 1, kind: input, shape index: {}]
  %s2 = inlined_call_operand.vmem [shape: bf16[32,128], index: 2, kind: output, shape index: {0}]
  %s3 = inlined_call_operand.vmem [shape: f32[2,128], index: 3, kind: output, shape index: {1}]
  %4 = xla_tuple %s2, %s3
  %s5 = sld [smem:[#allocation0]]
  $region30: #{discriminator_forward.13} parent=0
    _
  %s7 = ssub.s32 1, %s5
  %s8 = scalar_select 0, %s7, %s5
  // Predicated region
  $region2: #{discriminator_forward.13} parent=0 // pred_check
    _
  $region3: #{discriminator_forward.13} parent=0 // pred_check_branch
    %10 = sbr.rel (0) target = $region5
  $region4: #{discriminator_forward.13} parent=0 // pred_region
    _
  $region5: #{discriminator_forward.13} parent=0 // pred_fallthru
    _
  // Predicated region
  $region6: #{discriminator_forward.13} parent=0 // pred_check
    _
  $region7: #{discriminator_forward.13} parent=0 // pred_check_branch
    %12 = sbr.rel (0) target = $region9
  $region8: #{discriminator_forward.13} parent=0 // pred_region
    _
  $region9: #{discriminator_forward.13} parent=0 // pred_fallthru
    _
  %p13 = scmp.eq.s32.totalorder 0, 0
  // Predicated region
  $region10: #{discriminator_forward.13} parent=0 // pred_check
    %p14 = pneg %p13
  $region11: #{discriminator_forward.13} parent=0 // pred_check_branch
    %16 = sbr.rel (%p14) target = $region13
  $region12: #{discriminator_forward.13} parent=0 // pred_region
    %17 = vst [vmem:[%s3] sm:$0x3] 0.0
  $region13: #{discriminator_forward.13} parent=0 // pred_fallthru
    _
  %v18 = vld [vmem:[%s0] sm:$0xff]
  %v19 = vld [vmem:[%s0 + $0x8] sm:$0xff]
  %v20 = vld [vmem:[%s0 + $0x10] sm:$0xff]
  %v21 = vld [vmem:[%s0 + $0x18] sm:$0xff]
  %v22 = vld [vmem:[%s0 + $0x20] sm:$0xff]
  %v23 = vld [vmem:[%s0 + $0x28] sm:$0xff]
  %v24 = vld [vmem:[%s0 + $0x30] sm:$0xff]
  %v25 = vld [vmem:[%s0 + $0x38] sm:$0xff]
  %v26 = vld [vmem:[%s1] sm:$0xf]
  %v27 = vld [vmem:[%s1 + $0x4] sm:$0xf]
  %v28 = vld [vmem:[%s1 + $0x8] sm:$0xf]
  %v29 = vld [vmem:[%s1 + $0xc] sm:$0xf]
  %v30 = vld [vmem:[%s1 + $0x10] sm:$0xf]
  %v31 = vld [vmem:[%s1 + $0x14] sm:$0xf]
  %v32 = vld [vmem:[%s1 + $0x18] sm:$0xf]
  %v33 = vld [vmem:[%s1 + $0x1c] sm:$0xf]
  %v34 = vld [vmem:[%s1 + $0x20] sm:$0xf]
  %v35 = vld [vmem:[%s1 + $0x24] sm:$0xf]
  %v36 = vld [vmem:[%s1 + $0x28] sm:$0xf]
  %v37 = vld [vmem:[%s1 + $0x2c] sm:$0xf]
  %v38 = vld [vmem:[%s1 + $0x30] sm:$0xf]
  %v39 = vld [vmem:[%s1 + $0x34] sm:$0xf]
  %v40 = vld [vmem:[%s1 + $0x38] sm:$0xf]
  %v41 = vld [vmem:[%s1 + $0x3c] sm:$0xf]
  %v42 = vld [vmem:[%s1 + $0x40] sm:$0xf]
  %v43 = vld [vmem:[%s1 + $0x44] sm:$0xf]
  %v44 = vld [vmem:[%s1 + $0x48] sm:$0xf]
  %v45 = vld [vmem:[%s1 + $0x4c] sm:$0xf]
  %v46 = vld [vmem:[%s1 + $0x50] sm:$0xf]
  %v47 = vld [vmem:[%s1 + $0x54] sm:$0xf]
  %v48 = vld [vmem:[%s1 + $0x58] sm:$0xf]
  %v49 = vld [vmem:[%s1 + $0x5c] sm:$0xf]
  %v50 = vld [vmem:[%s1 + $0x60] sm:$0xf]
  %v51 = vld [vmem:[%s1 + $0x64] sm:$0xf]
  %v52 = vld [vmem:[%s1 + $0x68] sm:$0xf]
  %v53 = vld [vmem:[%s1 + $0x6c] sm:$0xf]
  %v54 = vld [vmem:[%s1 + $0x70] sm:$0xf]
  %v55 = vld [vmem:[%s1 + $0x74] sm:$0xf]
  %v56 = vld [vmem:[%s1 + $0x78] sm:$0xf]
  %v57 = vld [vmem:[%s1 + $0x7c] sm:$0xf]
  %v58 = vld [vmem:[%s1 + $0x80] sm:$0xf]
  %v59 = vld [vmem:[%s1 + $0x84] sm:$0xf]
  %v60 = vld [vmem:[%s1 + $0x88] sm:$0xf]
  %v61 = vld [vmem:[%s1 + $0x8c] sm:$0xf]
  %v62 = vld [vmem:[%s1 + $0x90] sm:$0xf]
  %v63 = vld [vmem:[%s1 + $0x94] sm:$0xf]
  %v64 = vld [vmem:[%s1 + $0x98] sm:$0xf]
  %v65 = vld [vmem:[%s1 + $0x9c] sm:$0xf]
  %v66 = vld [vmem:[%s1 + $0xa0] sm:$0xf]
  %v67 = vld [vmem:[%s1 + $0xa4] sm:$0xf]
  %v68 = vld [vmem:[%s1 + $0xa8] sm:$0xf]
  %v69 = vld [vmem:[%s1 + $0xac] sm:$0xf]
  %v70 = vld [vmem:[%s1 + $0xb0] sm:$0xf]
  %v71 = vld [vmem:[%s1 + $0xb4] sm:$0xf]
  %v72 = vld [vmem:[%s1 + $0xb8] sm:$0xf]
  %v73 = vld [vmem:[%s1 + $0xbc] sm:$0xf]
  %v74 = vld [vmem:[%s1 + $0xc0] sm:$0xf]
  %v75 = vld [vmem:[%s1 + $0xc4] sm:$0xf]
  %v76 = vld [vmem:[%s1 + $0xc8] sm:$0xf]
  %v77 = vld [vmem:[%s1 + $0xcc] sm:$0xf]
  %v78 = vld [vmem:[%s1 + $0xd0] sm:$0xf]
  %v79 = vld [vmem:[%s1 + $0xd4] sm:$0xf]
  %v80 = vld [vmem:[%s1 + $0xd8] sm:$0xf]
  %v81 = vld [vmem:[%s1 + $0xdc] sm:$0xf]
  %v82 = vld [vmem:[%s1 + $0xe0] sm:$0xf]
  %v83 = vld [vmem:[%s1 + $0xe4] sm:$0xf]
  %v84 = vld [vmem:[%s1 + $0xe8] sm:$0xf]
  %v85 = vld [vmem:[%s1 + $0xec] sm:$0xf]
  %v86 = vld [vmem:[%s1 + $0xf0] sm:$0xf]
  %v87 = vld [vmem:[%s1 + $0xf4] sm:$0xf]
  %v88 = vld [vmem:[%s1 + $0xf8] sm:$0xf]
  %v89 = vld [vmem:[%s1 + $0xfc] sm:$0xf]
  %v98 = vunpack.c.l.b16 %v18
  %v99 = vunpack.c.h.b16 %v18
  %v100 = vunpack.c.l.b16 %v19
  %v101 = vunpack.c.h.b16 %v19
  %v102 = vunpack.c.l.b16 %v20
  %v103 = vunpack.c.h.b16 %v20
  %v104 = vunpack.c.l.b16 %v21
  %v105 = vunpack.c.h.b16 %v21
  %v106 = vunpack.c.l.b16 %v22
  %v107 = vunpack.c.h.b16 %v22
  %v108 = vunpack.c.l.b16 %v23
  %v109 = vunpack.c.h.b16 %v23
  %v110 = vunpack.c.l.b16 %v24
  %v111 = vunpack.c.h.b16 %v24
  %v112 = vunpack.c.l.b16 %v25
  %v113 = vunpack.c.h.b16 %v25
  %v114 = vpack.c.b16 %v102, %v98
  %v115 = vpack.c.b16 %v103, %v99
  %v116 = vpack.c.b16 %v104, %v100
  %v117 = vpack.c.b16 %v105, %v101
  %v118 = vpack.c.b16 %v110, %v106
  %v119 = vpack.c.b16 %v111, %v107
  %v120 = vpack.c.b16 %v112, %v108
  %v121 = vpack.c.b16 %v113, %v109
  %v194 = vunpack.c.l.b16 %v26
  %v195 = vunpack.c.l.b16 %v27
  %v196 = vunpack.c.l.b16 %v28
  %v197 = vunpack.c.l.b16 %v29
  %v198 = vunpack.c.l.b16 %v30
  %v199 = vunpack.c.l.b16 %v31
  %v200 = vunpack.c.l.b16 %v32
  %v201 = vunpack.c.l.b16 %v33
  %v202 = vunpack.c.l.b16 %v34
  %v203 = vunpack.c.l.b16 %v35
  %v204 = vunpack.c.l.b16 %v36
  %v205 = vunpack.c.l.b16 %v37
  %v206 = vunpack.c.l.b16 %v38
  %v207 = vunpack.c.l.b16 %v39
  %v208 = vunpack.c.l.b16 %v40
  %v209 = vunpack.c.l.b16 %v41
  %v210 = vunpack.c.l.b16 %v42
  %v211 = vunpack.c.l.b16 %v43
  %v212 = vunpack.c.l.b16 %v44
  %v213 = vunpack.c.l.b16 %v45
  %v214 = vunpack.c.l.b16 %v46
  %v215 = vunpack.c.l.b16 %v47
  %v216 = vunpack.c.l.b16 %v48
  %v217 = vunpack.c.l.b16 %v49
  %v218 = vunpack.c.l.b16 %v50
  %v219 = vunpack.c.l.b16 %v51
  %v220 = vunpack.c.l.b16 %v52
  %v221 = vunpack.c.l.b16 %v53
  %v222 = vunpack.c.l.b16 %v54
  %v223 = vunpack.c.l.b16 %v55
  %v224 = vunpack.c.l.b16 %v56
  %v225 = vunpack.c.l.b16 %v57
  %v226 = vunpack.c.l.b16 %v58
  %v227 = vunpack.c.l.b16 %v59
  %v228 = vunpack.c.l.b16 %v60
  %v229 = vunpack.c.l.b16 %v61
  %v230 = vunpack.c.l.b16 %v62
  %v231 = vunpack.c.l.b16 %v63
  %v232 = vunpack.c.l.b16 %v64
  %v233 = vunpack.c.l.b16 %v65
  %v234 = vunpack.c.l.b16 %v66
  %v235 = vunpack.c.l.b16 %v67
  %v236 = vunpack.c.l.b16 %v68
  %v237 = vunpack.c.l.b16 %v69
  %v238 = vunpack.c.l.b16 %v70
  %v239 = vunpack.c.l.b16 %v71
  %v240 = vunpack.c.l.b16 %v72
  %v241 = vunpack.c.l.b16 %v73
  %v242 = vunpack.c.l.b16 %v74
  %v243 = vunpack.c.l.b16 %v75
  %v244 = vunpack.c.l.b16 %v76
  %v245 = vunpack.c.l.b16 %v77
  %v246 = vunpack.c.l.b16 %v78
  %v247 = vunpack.c.l.b16 %v79
  %v248 = vunpack.c.l.b16 %v80
  %v249 = vunpack.c.l.b16 %v81
  %v250 = vunpack.c.l.b16 %v82
  %v251 = vunpack.c.l.b16 %v83
  %v252 = vunpack.c.l.b16 %v84
  %v253 = vunpack.c.l.b16 %v85
  %v254 = vunpack.c.l.b16 %v86
  %v255 = vunpack.c.l.b16 %v87
  %v256 = vunpack.c.l.b16 %v88
  %v257 = vunpack.c.l.b16 %v89
  %v258 = vpack.c.b16 %v195, %v194
  %v259 = vpack.c.b16 %v197, %v196
  %v260 = vpack.c.b16 %v199, %v198
  %v261 = vpack.c.b16 %v201, %v200
  %v262 = vpack.c.b16 %v203, %v202
  %v263 = vpack.c.b16 %v205, %v204
  %v264 = vpack.c.b16 %v207, %v206
  %v265 = vpack.c.b16 %v209, %v208
  %v266 = vpack.c.b16 %v211, %v210
  %v267 = vpack.c.b16 %v213, %v212
  %v268 = vpack.c.b16 %v215, %v214
  %v269 = vpack.c.b16 %v217, %v216
  %v270 = vpack.c.b16 %v219, %v218
  %v271 = vpack.c.b16 %v221, %v220
  %v272 = vpack.c.b16 %v223, %v222
  %v273 = vpack.c.b16 %v225, %v224
  %v274 = vpack.c.b16 %v227, %v226
  %v275 = vpack.c.b16 %v229, %v228
  %v276 = vpack.c.b16 %v231, %v230
  %v277 = vpack.c.b16 %v233, %v232
  %v278 = vpack.c.b16 %v235, %v234
  %v279 = vpack.c.b16 %v237, %v236
  %v280 = vpack.c.b16 %v239, %v238
  %v281 = vpack.c.b16 %v241, %v240
  %v282 = vpack.c.b16 %v243, %v242
  %v283 = vpack.c.b16 %v245, %v244
  %v284 = vpack.c.b16 %v247, %v246
  %v285 = vpack.c.b16 %v249, %v248
  %v286 = vpack.c.b16 %v251, %v250
  %v287 = vpack.c.b16 %v253, %v252
  %v288 = vpack.c.b16 %v255, %v254
  %v289 = vpack.c.b16 %v257, %v256
  %322 = vmatpush.bf16.msra.mxu0 %v265
  %323 = vmatpush.bf16.msra.mxu0 %v264
  %324 = vmatpush.bf16.msra.mxu0 %v263
  %325 = vmatpush.bf16.msra.mxu0 %v262
  %326 = vmatpush.bf16.msra.mxu0 %v261
  %327 = vmatpush.bf16.msra.mxu0 %v260
  %328 = vmatpush.bf16.msra.mxu0 %v259
  %329 = vmatpush.bf16.msra.mxu0 %v258
  %330 = vmatmul.bf16.gmra.mxu0 %v114
  %v331 = vpop.f32.mrf.mxu0
  %v332 = vadd.f32 0.0, %v331
  %v333 = vpop.f32.mrf.mxu0
  %v334 = vadd.f32 0.0, %v333
  %335 = vmatmul.bf16.gmra.mxu0 %v118
  %v336 = vpop.f32.mrf.mxu0
  %v337 = vadd.f32 0.0, %v336
  %v338 = vpop.f32.mrf.mxu0
  %v339 = vadd.f32 0.0, %v338
  %340 = vdwg.mxu0
  %341 = vmatpush.bf16.msra.mxu0 %v273
  %342 = vmatpush.bf16.msra.mxu0 %v272
  %343 = vmatpush.bf16.msra.mxu0 %v271
  %344 = vmatpush.bf16.msra.mxu0 %v270
  %345 = vmatpush.bf16.msra.mxu0 %v269
  %346 = vmatpush.bf16.msra.mxu0 %v268
  %347 = vmatpush.bf16.msra.mxu0 %v267
  %348 = vmatpush.bf16.msra.mxu0 %v266
  %349 = vmatmul.bf16.gmra.mxu0 %v115
  %v350 = vpop.f32.mrf.mxu0
  %v351 = vadd.f32 %v332, %v350
  %v352 = vpop.f32.mrf.mxu0
  %v353 = vadd.f32 %v334, %v352
  %354 = vmatmul.bf16.gmra.mxu0 %v119
  %v355 = vpop.f32.mrf.mxu0
  %v356 = vadd.f32 %v337, %v355
  %v357 = vpop.f32.mrf.mxu0
  %v358 = vadd.f32 %v339, %v357
  %359 = vdwg.mxu0
  %360 = vmatpush.bf16.msra.mxu0 %v281
  %361 = vmatpush.bf16.msra.mxu0 %v280
  %362 = vmatpush.bf16.msra.mxu0 %v279
  %363 = vmatpush.bf16.msra.mxu0 %v278
  %364 = vmatpush.bf16.msra.mxu0 %v277
  %365 = vmatpush.bf16.msra.mxu0 %v276
  %366 = vmatpush.bf16.msra.mxu0 %v275
  %367 = vmatpush.bf16.msra.mxu0 %v274
  %368 = vmatmul.bf16.gmra.mxu0 %v116
  %v369 = vpop.f32.mrf.mxu0
  %v370 = vadd.f32 %v351, %v369
  %v371 = vpop.f32.mrf.mxu0
  %v372 = vadd.f32 %v353, %v371
  %373 = vmatmul.bf16.gmra.mxu0 %v120
  %v374 = vpop.f32.mrf.mxu0
  %v375 = vadd.f32 %v356, %v374
  %v376 = vpop.f32.mrf.mxu0
  %v377 = vadd.f32 %v358, %v376
  %378 = vdwg.mxu0
  %379 = vmatpush.bf16.msra.mxu0 %v289
  %380 = vmatpush.bf16.msra.mxu0 %v288
  %381 = vmatpush.bf16.msra.mxu0 %v287
  %382 = vmatpush.bf16.msra.mxu0 %v286
  %383 = vmatpush.bf16.msra.mxu0 %v285
  %384 = vmatpush.bf16.msra.mxu0 %v284
  %385 = vmatpush.bf16.msra.mxu0 %v283
  %386 = vmatpush.bf16.msra.mxu0 %v282
  %387 = vmatmul.bf16.gmra.mxu0 %v117
  %v388 = vpop.f32.mrf.mxu0
  %v389 = vadd.f32 %v370, %v388
  %v390 = vpop.f32.mrf.mxu0
  %v391 = vadd.f32 %v372, %v390
  %392 = vmatmul.bf16.gmra.mxu0 %v121
  %v393 = vpop.f32.mrf.mxu0
  %v394 = vadd.f32 %v375, %v393
  %v395 = vpop.f32.mrf.mxu0
  %v396 = vadd.f32 %v377, %v395
  %397 = vdwg.mxu0
  %v398 = vpack.c.bf16 %v389, %v389
  %v399 = vpack.c.bf16 %v391, %v391
  %v400 = vpack.c.bf16 %v394, %v394
  %v401 = vpack.c.bf16 %v396, %v396
  %402 = vst [vmem:[%s2] sm:$0xf] %v398
  %403 = vst [vmem:[%s2 + $0x4] sm:$0xf] %v399
  %404 = vst [vmem:[%s2 + $0x8] sm:$0xf] %v400
  %405 = vst [vmem:[%s2 + $0xc] sm:$0xf] %v401
  %v406 = vadd.f32 %v389, %v391
  %v407 = vadd.f32 %v406, %v394
  %v408 = vadd.f32 %v407, %v396
  %v409 = vrot.slane %v408, 4
  %v410 = vadd.f32 %v408, %v409
  %v411 = vrot.slane %v410, 2
  %v412 = vadd.f32 %v410, %v411
  %v413 = vrot.slane %v412, 1
  %v414 = vadd.f32 %v412, %v413
  %v415 = vmul.f32 %v389, %v389
  %v416 = vmul.f32 %v391, %v391
  %v417 = vmul.f32 %v394, %v394
  %v418 = vmul.f32 %v396, %v396
  %v419 = vadd.f32 %v415, %v416
  %v420 = vadd.f32 %v419, %v417
  %v421 = vadd.f32 %v420, %v418
  %v422 = vrot.slane %v421, 4
  %v423 = vadd.f32 %v421, %v422
  %v424 = vrot.slane %v423, 2
  %v425 = vadd.f32 %v423, %v424
  %v426 = vrot.slane %v425, 1
  %v427 = vadd.f32 %v425, %v426
  %vm428 = vcmask 1040384
  %v429 = vsel %vm428, %v414, %v427
  %v430 = vld [vmem:[%s3] sm:$0x3]
  %v431 = vadd.f32 %v430, %v429
  %432 = vst [vmem:[%s3] sm:$0x3] %v431
  // Predicated region
  $region14: #{discriminator_forward.13} parent=0 // pred_check
    _
  $region15: #{discriminator_forward.13} parent=0 // pred_check_branch
    %434 = sbr.rel (0) target = $region17
  $region16: #{discriminator_forward.13} parent=0 // pred_region
    _
  $region17: #{discriminator_forward.13} parent=0 // pred_fallthru
    _
  // Predicated region
  $region18: #{discriminator_forward.13} parent=0 // pred_check
    _
  $region19: #{discriminator_forward.13} parent=0 // pred_check_branch
    %436 = sbr.rel (0) target = $region21
  $region20: #{discriminator_forward.13} parent=0 // pred_region
    _
  $region21: #{discriminator_forward.13} parent=0 // pred_fallthru
    _
  // Predicated region
  $region22: #{discriminator_forward.13} parent=0 // pred_check
    _
  $region23: #{discriminator_forward.13} parent=0 // pred_check_branch
    %438 = sbr.rel (0) target = $region25
  $region24: #{discriminator_forward.13} parent=0 // pred_region
    _
  $region25: #{discriminator_forward.13} parent=0 // pred_fallthru
    _
  // Predicated region
  $region26: #{discriminator_forward.13} parent=0 // pred_check
    _
  $region27: #{discriminator_forward.13} parent=0 // pred_check_branch
    %440 = sbr.rel (0) target = $region29
  $region28: #{discriminator_forward.13} parent=0 // pred_region
    _
  $region29: #{discriminator_forward.13} parent=0 // pred_fallthru
    _

// kernel: discriminator_forward.15
$region0: #{discriminator_forward.15}
  #allocation0 [shape = 'u32[]', space=smem, size = 0x4, offset = 0x4, fixed_abs, tag = 'smem constant byte address 0x4 - core index']
  #allocation1 [shape = 'u32[72,128]{1,0:T(1,128)}', space=vmem, size = 0x9000, scoped, tag = 'internal scratch']
  %s0 = inlined_call_operand.vmem [shape: bf16[2,1024], index: 0, kind: input, shape index: {}]
  %s1 = inlined_call_operand.vmem [shape: bf16[1024,128], index: 1, kind: input, shape index: {}]
  %s2 = inlined_call_operand.vmem [shape: f32[2,128], index: 2, kind: output, shape index: {}]
  %s3 = sld [smem:[#allocation0]]
  $region18: #{discriminator_forward.15} parent=0
    _
  %s5 = ssub.s32 1, %s3
  %s6 = scalar_select 0, %s5, %s3
  // Predicated region
  $region2: #{discriminator_forward.15} parent=0 // pred_check
    _
  $region3: #{discriminator_forward.15} parent=0 // pred_check_branch
    %8 = sbr.rel (0) target = $region5
  $region4: #{discriminator_forward.15} parent=0 // pred_region
    _
  $region5: #{discriminator_forward.15} parent=0 // pred_fallthru
    _
  // Predicated region
  $region6: #{discriminator_forward.15} parent=0 // pred_check
    _
  $region7: #{discriminator_forward.15} parent=0 // pred_check_branch
    %10 = sbr.rel (0) target = $region9
  $region8: #{discriminator_forward.15} parent=0 // pred_region
    _
  $region9: #{discriminator_forward.15} parent=0 // pred_fallthru
    _
  %v11 = vld [vmem:[%s0] sm:$0xff]
  %v12 = vld [vmem:[%s1] sm:$0xf]
  %v13 = vld [vmem:[%s1 + $0x4] sm:$0xf]
  %v14 = vld [vmem:[%s1 + $0x8] sm:$0xf]
  %v15 = vld [vmem:[%s1 + $0xc] sm:$0xf]
  %v16 = vld [vmem:[%s1 + $0x10] sm:$0xf]
  %v17 = vld [vmem:[%s1 + $0x14] sm:$0xf]
  %v18 = vld [vmem:[%s1 + $0x18] sm:$0xf]
  %v19 = vld [vmem:[%s1 + $0x1c] sm:$0xf]
  %v20 = vld [vmem:[%s1 + $0x20] sm:$0xf]
  %v21 = vld [vmem:[%s1 + $0x24] sm:$0xf]
  %v22 = vld [vmem:[%s1 + $0x28] sm:$0xf]
  %v23 = vld [vmem:[%s1 + $0x2c] sm:$0xf]
  %v24 = vld [vmem:[%s1 + $0x30] sm:$0xf]
  %v25 = vld [vmem:[%s1 + $0x34] sm:$0xf]
  %v26 = vld [vmem:[%s1 + $0x38] sm:$0xf]
  %v27 = vld [vmem:[%s1 + $0x3c] sm:$0xf]
  %v28 = vld [vmem:[%s1 + $0x40] sm:$0xf]
  %v29 = vld [vmem:[%s1 + $0x44] sm:$0xf]
  %v30 = vld [vmem:[%s1 + $0x48] sm:$0xf]
  %v31 = vld [vmem:[%s1 + $0x4c] sm:$0xf]
  %v32 = vld [vmem:[%s1 + $0x50] sm:$0xf]
  %v33 = vld [vmem:[%s1 + $0x54] sm:$0xf]
  %v34 = vld [vmem:[%s1 + $0x58] sm:$0xf]
  %v35 = vld [vmem:[%s1 + $0x5c] sm:$0xf]
  %v36 = vld [vmem:[%s1 + $0x60] sm:$0xf]
  %v37 = vld [vmem:[%s1 + $0x64] sm:$0xf]
  %v38 = vld [vmem:[%s1 + $0x68] sm:$0xf]
  %v39 = vld [vmem:[%s1 + $0x6c] sm:$0xf]
  %v40 = vld [vmem:[%s1 + $0x70] sm:$0xf]
  %v41 = vld [vmem:[%s1 + $0x74] sm:$0xf]
  %v42 = vld [vmem:[%s1 + $0x78] sm:$0xf]
  %v43 = vld [vmem:[%s1 + $0x7c] sm:$0xf]
  %v44 = vld [vmem:[%s1 + $0x80] sm:$0xf]
  %v45 = vld [vmem:[%s1 + $0x84] sm:$0xf]
  %v46 = vld [vmem:[%s1 + $0x88] sm:$0xf]
  %v47 = vld [vmem:[%s1 + $0x8c] sm:$0xf]
  %v48 = vld [vmem:[%s1 + $0x90] sm:$0xf]
  %v49 = vld [vmem:[%s1 + $0x94] sm:$0xf]
  %v50 = vld [vmem:[%s1 + $0x98] sm:$0xf]
  %v51 = vld [vmem:[%s1 + $0x9c] sm:$0xf]
  %v52 = vld [vmem:[%s1 + $0xa0] sm:$0xf]
  %v53 = vld [vmem:[%s1 + $0xa4] sm:$0xf]
  %v54 = vld [vmem:[%s1 + $0xa8] sm:$0xf]
  %v55 = vld [vmem:[%s1 + $0xac] sm:$0xf]
  %v56 = vld [vmem:[%s1 + $0xb0] sm:$0xf]
  %v57 = vld [vmem:[%s1 + $0xb4] sm:$0xf]
  %v58 = vld [vmem:[%s1 + $0xb8] sm:$0xf]
  %v59 = vld [vmem:[%s1 + $0xbc] sm:$0xf]
  %v60 = vld [vmem:[%s1 + $0xc0] sm:$0xf]
  %v61 = vld [vmem:[%s1 + $0xc4] sm:$0xf]
  %v62 = vld [vmem:[%s1 + $0xc8] sm:$0xf]
  %v63 = vld [vmem:[%s1 + $0xcc] sm:$0xf]
  %v64 = vld [vmem:[%s1 + $0xd0] sm:$0xf]
  %v65 = vld [vmem:[%s1 + $0xd4] sm:$0xf]
  %v66 = vld [vmem:[%s1 + $0xd8] sm:$0xf]
  %v67 = vld [vmem:[%s1 + $0xdc] sm:$0xf]
  %v68 = vld [vmem:[%s1 + $0xe0] sm:$0xf]
  %v69 = vld [vmem:[%s1 + $0xe4] sm:$0xf]
  %v70 = vld [vmem:[%s1 + $0xe8] sm:$0xf]
  %v71 = vld [vmem:[%s1 + $0xec] sm:$0xf]
  %v72 = vld [vmem:[%s1 + $0xf0] sm:$0xf]
  %v73 = vld [vmem:[%s1 + $0xf4] sm:$0xf]
  %v74 = vld [vmem:[%s1 + $0xf8] sm:$0xf]
  %v75 = vld [vmem:[%s1 + $0xfc] sm:$0xf]
  %v76 = vld [vmem:[%s1 + $0x100] sm:$0xf]
  %v77 = vld [vmem:[%s1 + $0x104] sm:$0xf]
  %v78 = vld [vmem:[%s1 + $0x108] sm:$0xf]
  %v79 = vld [vmem:[%s1 + $0x10c] sm:$0xf]
  %v80 = vld [vmem:[%s1 + $0x110] sm:$0xf]
  %v81 = vld [vmem:[%s1 + $0x114] sm:$0xf]
  %v82 = vld [vmem:[%s1 + $0x118] sm:$0xf]
  %v83 = vld [vmem:[%s1 + $0x11c] sm:$0xf]
  %v84 = vld [vmem:[%s1 + $0x120] sm:$0xf]
  %v85 = vld [vmem:[%s1 + $0x124] sm:$0xf]
  %v86 = vld [vmem:[%s1 + $0x128] sm:$0xf]
  %v87 = vld [vmem:[%s1 + $0x12c] sm:$0xf]
  %v88 = vld [vmem:[%s1 + $0x130] sm:$0xf]
  %v89 = vld [vmem:[%s1 + $0x134] sm:$0xf]
  %v90 = vld [vmem:[%s1 + $0x138] sm:$0xf]
  %v91 = vld [vmem:[%s1 + $0x13c] sm:$0xf]
  %v92 = vld [vmem:[%s1 + $0x140] sm:$0xf]
  %v93 = vld [vmem:[%s1 + $0x144] sm:$0xf]
  %v94 = vld [vmem:[%s1 + $0x148] sm:$0xf]
  %v95 = vld [vmem:[%s1 + $0x14c] sm:$0xf]
  %v96 = vld [vmem:[%s1 + $0x150] sm:$0xf]
  %v97 = vld [vmem:[%s1 + $0x154] sm:$0xf]
  %v98 = vld [vmem:[%s1 + $0x158] sm:$0xf]
  %v99 = vld [vmem:[%s1 + $0x15c] sm:$0xf]
  %v100 = vld [vmem:[%s1 + $0x160] sm:$0xf]
  %v101 = vld [vmem:[%s1 + $0x164] sm:$0xf]
  %v102 = vld [vmem:[%s1 + $0x168] sm:$0xf]
  %v103 = vld [vmem:[%s1 + $0x16c] sm:$0xf]
  %v104 = vld [vmem:[%s1 + $0x170] sm:$0xf]
  %v105 = vld [vmem:[%s1 + $0x174] sm:$0xf]
  %v106 = vld [vmem:[%s1 + $0x178] sm:$0xf]
  %v107 = vld [vmem:[%s1 + $0x17c] sm:$0xf]
  %v108 = vld [vmem:[%s1 + $0x180] sm:$0xf]
  %v109 = vld [vmem:[%s1 + $0x184] sm:$0xf]
  %v110 = vld [vmem:[%s1 + $0x188] sm:$0xf]
  %v111 = vld [vmem:[%s1 + $0x18c] sm:$0xf]
  %v112 = vld [vmem:[%s1 + $0x190] sm:$0xf]
  %v113 = vld [vmem:[%s1 + $0x194] sm:$0xf]
  %v114 = vld [vmem:[%s1 + $0x198] sm:$0xf]
  %v115 = vld [vmem:[%s1 + $0x19c] sm:$0xf]
  %v116 = vld [vmem:[%s1 + $0x1a0] sm:$0xf]
  %v117 = vld [vmem:[%s1 + $0x1a4] sm:$0xf]
  %v118 = vld [vmem:[%s1 + $0x1a8] sm:$0xf]
  %v119 = vld [vmem:[%s1 + $0x1ac] sm:$0xf]
  %v120 = vld [vmem:[%s1 + $0x1b0] sm:$0xf]
  %v121 = vld [vmem:[%s1 + $0x1b4] sm:$0xf]
  %v122 = vld [vmem:[%s1 + $0x1b8] sm:$0xf]
  %v123 = vld [vmem:[%s1 + $0x1bc] sm:$0xf]
  %v124 = vld [vmem:[%s1 + $0x1c0] sm:$0xf]
  %v125 = vld [vmem:[%s1 + $0x1c4] sm:$0xf]
  %v126 = vld [vmem:[%s1 + $0x1c8] sm:$0xf]
  %v127 = vld [vmem:[%s1 + $0x1cc] sm:$0xf]
  %v128 = vld [vmem:[%s1 + $0x1d0] sm:$0xf]
  %v129 = vld [vmem:[%s1 + $0x1d4] sm:$0xf]
  %v130 = vld [vmem:[%s1 + $0x1d8] sm:$0xf]
  %v131 = vld [vmem:[%s1 + $0x1dc] sm:$0xf]
  %v132 = vld [vmem:[%s1 + $0x1e0] sm:$0xf]
  %v133 = vld [vmem:[%s1 + $0x1e4] sm:$0xf]
  %v134 = vld [vmem:[%s1 + $0x1e8] sm:$0xf]
  %v135 = vld [vmem:[%s1 + $0x1ec] sm:$0xf]
  %v136 = vld [vmem:[%s1 + $0x1f0] sm:$0xf]
  %v137 = vld [vmem:[%s1 + $0x1f4] sm:$0xf]
  %v138 = vld [vmem:[%s1 + $0x1f8] sm:$0xf]
  %v139 = vld [vmem:[%s1 + $0x1fc] sm:$0xf]
  %141 = vst [vmem:[#allocation1] ss:$9 sm:$0xff] %v11
  %v142 = vld [vmem:[#allocation1] sm:$0xff]
  %v143 = vld [vmem:[#allocation1 + $0x9] sm:$0xff]
  %v144 = vld [vmem:[#allocation1 + $0x12] sm:$0xff]
  %v145 = vld [vmem:[#allocation1 + $0x1b] sm:$0xff]
  %v146 = vld [vmem:[#allocation1 + $0x24] sm:$0xff]
  %v147 = vld [vmem:[#allocation1 + $0x2d] sm:$0xff]
  %v148 = vld [vmem:[#allocation1 + $0x36] sm:$0xff]
  %v149 = vld [vmem:[#allocation1 + $0x3f] sm:$0xff]
  %v286 = vunpack.c.l.b16 %v12
  %v287 = vunpack.c.l.b16 %v13
  %v288 = vunpack.c.l.b16 %v14
  %v289 = vunpack.c.l.b16 %v15
  %v290 = vunpack.c.l.b16 %v16
  %v291 = vunpack.c.l.b16 %v17
  %v292 = vunpack.c.l.b16 %v18
  %v293 = vunpack.c.l.b16 %v19
  %v294 = vunpack.c.l.b16 %v20
  %v295 = vunpack.c.l.b16 %v21
  %v296 = vunpack.c.l.b16 %v22
  %v297 = vunpack.c.l.b16 %v23
  %v298 = vunpack.c.l.b16 %v24
  %v299 = vunpack.c.l.b16 %v25
  %v300 = vunpack.c.l.b16 %v26
  %v301 = vunpack.c.l.b16 %v27
  %v302 = vunpack.c.l.b16 %v28
  %v303 = vunpack.c.l.b16 %v29
  %v304 = vunpack.c.l.b16 %v30
  %v305 = vunpack.c.l.b16 %v31
  %v306 = vunpack.c.l.b16 %v32
  %v307 = vunpack.c.l.b16 %v33
  %v308 = vunpack.c.l.b16 %v34
  %v309 = vunpack.c.l.b16 %v35
  %v310 = vunpack.c.l.b16 %v36
  %v311 = vunpack.c.l.b16 %v37
  %v312 = vunpack.c.l.b16 %v38
  %v313 = vunpack.c.l.b16 %v39
  %v314 = vunpack.c.l.b16 %v40
  %v315 = vunpack.c.l.b16 %v41
  %v316 = vunpack.c.l.b16 %v42
  %v317 = vunpack.c.l.b16 %v43
  %v318 = vunpack.c.l.b16 %v44
  %v319 = vunpack.c.l.b16 %v45
  %v320 = vunpack.c.l.b16 %v46
  %v321 = vunpack.c.l.b16 %v47
  %v322 = vunpack.c.l.b16 %v48
  %v323 = vunpack.c.l.b16 %v49
  %v324 = vunpack.c.l.b16 %v50
  %v325 = vunpack.c.l.b16 %v51
  %v326 = vunpack.c.l.b16 %v52
  %v327 = vunpack.c.l.b16 %v53
  %v328 = vunpack.c.l.b16 %v54
  %v329 = vunpack.c.l.b16 %v55
  %v330 = vunpack.c.l.b16 %v56
  %v331 = vunpack.c.l.b16 %v57
  %v332 = vunpack.c.l.b16 %v58
  %v333 = vunpack.c.l.b16 %v59
  %v334 = vunpack.c.l.b16 %v60
  %v335 = vunpack.c.l.b16 %v61
  %v336 = vunpack.c.l.b16 %v62
  %v337 = vunpack.c.l.b16 %v63
  %v338 = vunpack.c.l.b16 %v64
  %v339 = vunpack.c.l.b16 %v65
  %v340 = vunpack.c.l.b16 %v66
  %v341 = vunpack.c.l.b16 %v67
  %v342 = vunpack.c.l.b16 %v68
  %v343 = vunpack.c.l.b16 %v69
  %v344 = vunpack.c.l.b16 %v70
  %v345 = vunpack.c.l.b16 %v71
  %v346 = vunpack.c.l.b16 %v72
  %v347 = vunpack.c.l.b16 %v73
  %v348 = vunpack.c.l.b16 %v74
  %v349 = vunpack.c.l.b16 %v75
  %v350 = vunpack.c.l.b16 %v76
  %v351 = vunpack.c.l.b16 %v77
  %v352 = vunpack.c.l.b16 %v78
  %v353 = vunpack.c.l.b16 %v79
  %v354 = vunpack.c.l.b16 %v80
  %v355 = vunpack.c.l.b16 %v81
  %v356 = vunpack.c.l.b16 %v82
  %v357 = vunpack.c.l.b16 %v83
  %v358 = vunpack.c.l.b16 %v84
  %v359 = vunpack.c.l.b16 %v85
  %v360 = vunpack.c.l.b16 %v86
  %v361 = vunpack.c.l.b16 %v87
  %v362 = vunpack.c.l.b16 %v88
  %v363 = vunpack.c.l.b16 %v89
  %v364 = vunpack.c.l.b16 %v90
  %v365 = vunpack.c.l.b16 %v91
  %v366 = vunpack.c.l.b16 %v92
  %v367 = vunpack.c.l.b16 %v93
  %v368 = vunpack.c.l.b16 %v94
  %v369 = vunpack.c.l.b16 %v95
  %v370 = vunpack.c.l.b16 %v96
  %v371 = vunpack.c.l.b16 %v97
  %v372 = vunpack.c.l.b16 %v98
  %v373 = vunpack.c.l.b16 %v99
  %v374 = vunpack.c.l.b16 %v100
  %v375 = vunpack.c.l.b16 %v101
  %v376 = vunpack.c.l.b16 %v102
  %v377 = vunpack.c.l.b16 %v103
  %v378 = vunpack.c.l.b16 %v104
  %v379 = vunpack.c.l.b16 %v105
  %v380 = vunpack.c.l.b16 %v106
  %v381 = vunpack.c.l.b16 %v107
  %v382 = vunpack.c.l.b16 %v108
  %v383 = vunpack.c.l.b16 %v109
  %v384 = vunpack.c.l.b16 %v110
  %v385 = vunpack.c.l.b16 %v111
  %v386 = vunpack.c.l.b16 %v112
  %v387 = vunpack.c.l.b16 %v113
  %v388 = vunpack.c.l.b16 %v114
  %v389 = vunpack.c.l.b16 %v115
  %v390 = vunpack.c.l.b16 %v116
  %v391 = vunpack.c.l.b16 %v117
  %v392 = vunpack.c.l.b16 %v118
  %v393 = vunpack.c.l.b16 %v119
  %v394 = vunpack.c.l.b16 %v120
  %v395 = vunpack.c.l.b16 %v121
  %v396 = vunpack.c.l.b16 %v122
  %v397 = vunpack.c.l.b16 %v123
  %v398 = vunpack.c.l.b16 %v124
  %v399 = vunpack.c.l.b16 %v125
  %v400 = vunpack.c.l.b16 %v126
  %v401 = vunpack.c.l.b16 %v127
  %v402 = vunpack.c.l.b16 %v128
  %v403 = vunpack.c.l.b16 %v129
  %v404 = vunpack.c.l.b16 %v130
  %v405 = vunpack.c.l.b16 %v131
  %v406 = vunpack.c.l.b16 %v132
  %v407 = vunpack.c.l.b16 %v133
  %v408 = vunpack.c.l.b16 %v134
  %v409 = vunpack.c.l.b16 %v135
  %v410 = vunpack.c.l.b16 %v136
  %v411 = vunpack.c.l.b16 %v137
  %v412 = vunpack.c.l.b16 %v138
  %v413 = vunpack.c.l.b16 %v139
  %v414 = vpack.c.b16 %v287, %v286
  %v415 = vpack.c.b16 %v289, %v288
  %v416 = vpack.c.b16 %v291, %v290
  %v417 = vpack.c.b16 %v293, %v292
  %v418 = vpack.c.b16 %v295, %v294
  %v419 = vpack.c.b16 %v297, %v296
  %v420 = vpack.c.b16 %v299, %v298
  %v421 = vpack.c.b16 %v301, %v300
  %v422 = vpack.c.b16 %v303, %v302
  %v423 = vpack.c.b16 %v305, %v304
  %v424 = vpack.c.b16 %v307, %v306
  %v425 = vpack.c.b16 %v309, %v308
  %v426 = vpack.c.b16 %v311, %v310
  %v427 = vpack.c.b16 %v313, %v312
  %v428 = vpack.c.b16 %v315, %v314
  %v429 = vpack.c.b16 %v317, %v316
  %v430 = vpack.c.b16 %v319, %v318
  %v431 = vpack.c.b16 %v321, %v320
  %v432 = vpack.c.b16 %v323, %v322
  %v433 = vpack.c.b16 %v325, %v324
  %v434 = vpack.c.b16 %v327, %v326
  %v435 = vpack.c.b16 %v329, %v328
  %v436 = vpack.c.b16 %v331, %v330
  %v437 = vpack.c.b16 %v333, %v332
  %v438 = vpack.c.b16 %v335, %v334
  %v439 = vpack.c.b16 %v337, %v336
  %v440 = vpack.c.b16 %v339, %v338
  %v441 = vpack.c.b16 %v341, %v340
  %v442 = vpack.c.b16 %v343, %v342
  %v443 = vpack.c.b16 %v345, %v344
  %v444 = vpack.c.b16 %v347, %v346
  %v445 = vpack.c.b16 %v349, %v348
  %v446 = vpack.c.b16 %v351, %v350
  %v447 = vpack.c.b16 %v353, %v352
  %v448 = vpack.c.b16 %v355, %v354
  %v449 = vpack.c.b16 %v357, %v356
  %v450 = vpack.c.b16 %v359, %v358
  %v451 = vpack.c.b16 %v361, %v360
  %v452 = vpack.c.b16 %v363, %v362
  %v453 = vpack.c.b16 %v365, %v364
  %v454 = vpack.c.b16 %v367, %v366
  %v455 = vpack.c.b16 %v369, %v368
  %v456 = vpack.c.b16 %v371, %v370
  %v457 = vpack.c.b16 %v373, %v372
  %v458 = vpack.c.b16 %v375, %v374
  %v459 = vpack.c.b16 %v377, %v376
  %v460 = vpack.c.b16 %v379, %v378
  %v461 = vpack.c.b16 %v381, %v380
  %v462 = vpack.c.b16 %v383, %v382
  %v463 = vpack.c.b16 %v385, %v384
  %v464 = vpack.c.b16 %v387, %v386
  %v465 = vpack.c.b16 %v389, %v388
  %v466 = vpack.c.b16 %v391, %v390
  %v467 = vpack.c.b16 %v393, %v392
  %v468 = vpack.c.b16 %v395, %v394
  %v469 = vpack.c.b16 %v397, %v396
  %v470 = vpack.c.b16 %v399, %v398
  %v471 = vpack.c.b16 %v401, %v400
  %v472 = vpack.c.b16 %v403, %v402
  %v473 = vpack.c.b16 %v405, %v404
  %v474 = vpack.c.b16 %v407, %v406
  %v475 = vpack.c.b16 %v409, %v408
  %v476 = vpack.c.b16 %v411, %v410
  %v477 = vpack.c.b16 %v413, %v412
  %542 = vmatpush.bf16.msra.mxu0 %v421
  %543 = vmatpush.bf16.msra.mxu0 %v420
  %544 = vmatpush.bf16.msra.mxu0 %v419
  %545 = vmatpush.bf16.msra.mxu0 %v418
  %546 = vmatpush.bf16.msra.mxu0 %v417
  %547 = vmatpush.bf16.msra.mxu0 %v416
  %548 = vmatpush.bf16.msra.mxu0 %v415
  %549 = vmatpush.bf16.msra.mxu0 %v414
  %550 = vmatmul.bf16.gmra.mxu0 %v142
  %v551 = vpop.f32.mrf.mxu0
  %v552 = vadd.f32 0.0, %v551
  %v553 = vpop.f32.mrf.mxu0
  %554 = vdwg.mxu0
  %555 = vmatpush.bf16.msra.mxu0 %v429
  %556 = vmatpush.bf16.msra.mxu0 %v428
  %557 = vmatpush.bf16.msra.mxu0 %v427
  %558 = vmatpush.bf16.msra.mxu0 %v426
  %559 = vmatpush.bf16.msra.mxu0 %v425
  %560 = vmatpush.bf16.msra.mxu0 %v424
  %561 = vmatpush.bf16.msra.mxu0 %v423
  %562 = vmatpush.bf16.msra.mxu0 %v422
  %563 = vmatmul.bf16.gmra.mxu0 %v143
  %v564 = vpop.f32.mrf.mxu0
  %v565 = vadd.f32 %v552, %v564
  %v566 = vpop.f32.mrf.mxu0
  %567 = vdwg.mxu0
  %568 = vmatpush.bf16.msra.mxu0 %v437
  %569 = vmatpush.bf16.msra.mxu0 %v436
  %570 = vmatpush.bf16.msra.mxu0 %v435
  %571 = vmatpush.bf16.msra.mxu0 %v434
  %572 = vmatpush.bf16.msra.mxu0 %v433
  %573 = vmatpush.bf16.msra.mxu0 %v432
  %574 = vmatpush.bf16.msra.mxu0 %v431
  %575 = vmatpush.bf16.msra.mxu0 %v430
  %576 = vmatmul.bf16.gmra.mxu0 %v144
  %v577 = vpop.f32.mrf.mxu0
  %v578 = vadd.f32 %v565, %v577
  %v579 = vpop.f32.mrf.mxu0
  %580 = vdwg.mxu0
  %581 = vmatpush.bf16.msra.mxu0 %v445
  %582 = vmatpush.bf16.msra.mxu0 %v444
  %583 = vmatpush.bf16.msra.mxu0 %v443
  %584 = vmatpush.bf16.msra.mxu0 %v442
  %585 = vmatpush.bf16.msra.mxu0 %v441
  %586 = vmatpush.bf16.msra.mxu0 %v440
  %587 = vmatpush.bf16.msra.mxu0 %v439
  %588 = vmatpush.bf16.msra.mxu0 %v438
  %589 = vmatmul.bf16.gmra.mxu0 %v145
  %v590 = vpop.f32.mrf.mxu0
  %v591 = vadd.f32 %v578, %v590
  %v592 = vpop.f32.mrf.mxu0
  %593 = vdwg.mxu0
  %594 = vmatpush.bf16.msra.mxu0 %v453
  %595 = vmatpush.bf16.msra.mxu0 %v452
  %596 = vmatpush.bf16.msra.mxu0 %v451
  %597 = vmatpush.bf16.msra.mxu0 %v450
  %598 = vmatpush.bf16.msra.mxu0 %v449
  %599 = vmatpush.bf16.msra.mxu0 %v448
  %600 = vmatpush.bf16.msra.mxu0 %v447
  %601 = vmatpush.bf16.msra.mxu0 %v446
  %602 = vmatmul.bf16.gmra.mxu0 %v146
  %v603 = vpop.f32.mrf.mxu0
  %v604 = vadd.f32 %v591, %v603
  %v605 = vpop.f32.mrf.mxu0
  %606 = vdwg.mxu0
  %607 = vmatpush.bf16.msra.mxu0 %v461
  %608 = vmatpush.bf16.msra.mxu0 %v460
  %609 = vmatpush.bf16.msra.mxu0 %v459
  %610 = vmatpush.bf16.msra.mxu0 %v458
  %611 = vmatpush.bf16.msra.mxu0 %v457
  %612 = vmatpush.bf16.msra.mxu0 %v456
  %613 = vmatpush.bf16.msra.mxu0 %v455
  %614 = vmatpush.bf16.msra.mxu0 %v454
  %615 = vmatmul.bf16.gmra.mxu0 %v147
  %v616 = vpop.f32.mrf.mxu0
  %v617 = vadd.f32 %v604, %v616
  %v618 = vpop.f32.mrf.mxu0
  %619 = vdwg.mxu0
  %620 = vmatpush.bf16.msra.mxu0 %v469
  %621 = vmatpush.bf16.msra.mxu0 %v468
  %622 = vmatpush.bf16.msra.mxu0 %v467
  %623 = vmatpush.bf16.msra.mxu0 %v466
  %624 = vmatpush.bf16.msra.mxu0 %v465
  %625 = vmatpush.bf16.msra.mxu0 %v464
  %626 = vmatpush.bf16.msra.mxu0 %v463
  %627 = vmatpush.bf16.msra.mxu0 %v462
  %628 = vmatmul.bf16.gmra.mxu0 %v148
  %v629 = vpop.f32.mrf.mxu0
  %v630 = vadd.f32 %v617, %v629
  %v631 = vpop.f32.mrf.mxu0
  %632 = vdwg.mxu0
  %633 = vmatpush.bf16.msra.mxu0 %v477
  %634 = vmatpush.bf16.msra.mxu0 %v476
  %635 = vmatpush.bf16.msra.mxu0 %v475
  %636 = vmatpush.bf16.msra.mxu0 %v474
  %637 = vmatpush.bf16.msra.mxu0 %v473
  %638 = vmatpush.bf16.msra.mxu0 %v472
  %639 = vmatpush.bf16.msra.mxu0 %v471
  %640 = vmatpush.bf16.msra.mxu0 %v470
  %641 = vmatmul.bf16.gmra.mxu0 %v149
  %v642 = vpop.f32.mrf.mxu0
  %v643 = vadd.f32 %v630, %v642
  %v644 = vpop.f32.mrf.mxu0
  %645 = vdwg.mxu0
  %v646 = vxor.u32 %v643, 2147483648
  %v647 = vmul.f32 %v646, 1.442695
  %v648 = vpow.pop %v647
  %v649 = vadd.f32 %v648, 1.0
  %v650 = vrcp.pop %v649
  %v651 = vmul.f32 %v649, %v650
  %v652 = vsub.f32 1.0, %v651
  %v653 = vmul.f32 %v650, %v652
  %v654 = vadd.f32 %v650, %v653
  %vm655 = vweird.f32 %v649
  %vm656 = vweird.f32 %v650
  %vm657 = vmor %vm655, %vm656
  %v658 = vsel %vm657, %v650, %v654
  %v659 = vand.u32 2147483647, %v649
  %vm660 = vcmp.eq.f32.partialorder %v659, 8.507059e+37
  %v661 = vand.u32 %v649, 2147483648
  %v662 = vor.u32 1.1754944e-38, %v661
  %v663 = vsel %vm660, %v662, %v658
  %v664 = vmul.f32 1.0, %v663
  %665 = vst [vmem:[%s2] sm:$0x3] %v664
  // Predicated region
  $region10: #{discriminator_forward.15} parent=0 // pred_check
    _
  $region11: #{discriminator_forward.15} parent=0 // pred_check_branch
    %667 = sbr.rel (0) target = $region13
  $region12: #{discriminator_forward.15} parent=0 // pred_region
    _
  $region13: #{discriminator_forward.15} parent=0 // pred_fallthru
    _
  // Predicated region
  $region14: #{discriminator_forward.15} parent=0 // pred_check
    _
  $region15: #{discriminator_forward.15} parent=0 // pred_check_branch
    %669 = sbr.rel (0) target = $region17
  $region16: #{discriminator_forward.15} parent=0 // pred_region
    _
  $region17: #{discriminator_forward.15} parent=0 // pred_fallthru
    _

</llo_original>
